<compile_context>
chip_gen: v7x
topology: tpu7x:2x2x1
jax: 0.10.0
libtpu: 0.0.40
codegen_flags: <defaults>
</compile_context>

<pallas_src>
import math

import jax
import jax.numpy as jnp
import numpy as np
from jax.experimental import pallas as pl
from jax.experimental.pallas import tpu as pltpu

# ----------------------------- model config ---------------------------------
BATCH = 2
SEQ = 8
INPUT_SIZE = 4
HIDDEN = 32          # d_model
NUM_LAYERS = 2
NUM_CLASSES = 3
D_STATE = 64         # N
D_CONV = 2           # K
EXPAND = 2
D_INNER = EXPAND * HIDDEN                    # 64
DT_RANK = math.ceil(HIDDEN / 16)             # 2   (mamba "auto" dt_rank)

_VMEM = pl.BlockSpec(memory_space=pltpu.MemorySpace.VMEM)


def _silu(x):
    # x * sigmoid(x); the divide becomes an approximate EUP reciprocal, which
    # co-issues with the surrounding VPU work.
    return x * pl.reciprocal(1.0 + jnp.exp(-x), approx=True)


def _softplus(x):
    return jnp.where(x > 20.0, x, jnp.log1p(jnp.exp(jnp.minimum(x, 20.0))))


# ------------------------------ fused kernel --------------------------------
def fused_mamba_kernel(
    x_ref,        # (B, L, F)
    exp_w_ref,    # (F, Dm)
    exp_b_ref,    # (1, Dm)
    w_in_ref,     # (NL, Dm, 2*Di)   [w_in_x | w_in_z]
    conv_w_ref,   # (NL, K, Di)      depthwise taps, channels-last
    conv_b_ref,   # (NL, 1, Di)
    w_xbc_ref,    # (NL, Di, 2*N)    [w_x_B | w_x_C]
    w_dt_ref,     # (NL, Di, Di)     w_x_dt @ w_dt   (pre-composed low-rank)
    b_dt_ref,     # (NL, 1, Di)
    A_ref,        # (NL, Di, B*N)    -exp(A_log) tiled over the batch lanes
    D_ref,        # (NL, 1, Di)
    w_out_ref,    # (NL-1, Di, Dm)   out_proj for all but the last layer
    head_w_ref,   # (Di, C)          w_out[last] @ fc_w   (pre-composed head)
    fc_b_ref,     # (1, C)
    out_ref,      # (B, C)
):
    f32 = jnp.float32
    B, L, F = x_ref.shape
    NL, Dm, two_di = w_in_ref.shape
    Di = two_di // 2
    N = w_xbc_ref.shape[2] // 2
    K = conv_w_ref.shape[1]

    # expander linear: (B*L, F) @ (F, Dm)
    x2 = x_ref[...].reshape(B * L, F)
    h2 = jnp.dot(x2, exp_w_ref[...], preferred_element_type=f32) + exp_b_ref[...]

    # per-row timestep index l (rows are ordered (b, l)); hoisted out of the loop
    row_l = jax.lax.broadcasted_iota(jnp.int32, (B, L, Di), 1).reshape(B * L, Di)

    for layer in range(NL):
        # ---- in_proj: x-branch and z-branch in ONE 128-lane-dense matmul ----
        xz = jnp.dot(h2, w_in_ref[layer], preferred_element_type=f32)  # (B*L, 2Di)
        xc2 = xz[:, :Di]                                               # (B*L, Di)
        z2 = xz[:, Di:]                                                # (B*L, Di)

        # ---- depthwise causal conv over L (channels-last) -------------------
        conv_w = conv_w_ref[layer]                                     # (K, Di)
        acc = xc2 * conv_w[K - 1][None, :]
        for k in range(K - 1):
            shift = K - 1 - k
            # shift rows forward in time; rows with l < shift are masked so no
            # tap leaks across the batch boundary (or wraps around).
            shifted = jnp.roll(xc2, shift, axis=0)
            shifted = jnp.where(row_l >= shift, shifted, 0.0)
            acc = acc + shifted * conv_w[k][None, :]
        u2 = _silu(acc + conv_b_ref[layer])                            # (B*L, Di)

        # ---- x_proj (B|C fused, lane-dense) + pre-composed dt projection ----
        bc = jnp.dot(u2, w_xbc_ref[layer], preferred_element_type=f32)  # (B*L, 2N)
        dt2 = _softplus(
            jnp.dot(u2, w_dt_ref[layer], preferred_element_type=f32)
            + b_dt_ref[layer])                                          # (B*L, Di)

        u3 = u2.reshape(B, L, Di)
        z3 = z2.reshape(B, L, Di)
        dt3 = dt2.reshape(B, L, Di)
        g3 = dt3 * u3                                                   # dt * u
        Bm3 = bc[:, :N].reshape(B, L, N)
        Cm3 = bc[:, N:].reshape(B, L, N)

        A_p = A_ref[layer]                                              # (Di, B*N)

        # Pack per-step operands into the lane-dense (Di, B*N) scan layout.
        # All broadcasts (and the exp) are hoisted over the whole sequence so
        # nothing but the recurrence itself lives inside the unrolled loop.
        def pack_feat(v3):   # (B, L, Di) -> (L, Di, B*N); value indexed by (l, di)
            return jnp.concatenate(
                [jnp.broadcast_to(v3[b][:, :, None], (L, Di, N)) for b in range(B)],
                axis=-1)

        def pack_state(w3):  # (B, L, N) -> (L, Di, B*N); value indexed by (l, n)
            return jnp.concatenate(
                [jnp.broadcast_to(w3[b][:, None, :], (L, Di, N)) for b in range(B)],
                axis=-1)

        dA_all = jnp.exp(pack_feat(dt3) * A_p[None])                    # (L, Di, B*N)
        dBu_all = pack_feat(g3) * pack_state(Bm3)                       # (L, Di, B*N)
        C_all = pack_state(Cm3)                                         # (L, Di, B*N)

        # ---- selective scan: one FMA on a (64,128) state per step -----------
        h_state = jnp.zeros((Di, B * N), f32)
        hs = []
        for l in range(L):
            h_state = dA_all[l] * h_state + dBu_all[l]
            hs.append(h_state)

        if layer + 1 < NL:
            h_all = jnp.stack(hs, axis=0)                               # (L, Di, B*N)
            hc = h_all * C_all
            y3 = jnp.stack(
                [jnp.sum(hc[:, :, b * N:(b + 1) * N], axis=2) for b in range(B)],
                axis=0)                                                 # (B, L, Di)
            y3 = (y3 + u3 * D_ref[layer][None]) * _silu(z3)
            h2 = jnp.dot(y3.reshape(B * L, Di), w_out_ref[layer],
                         preferred_element_type=f32)                    # (B*L, Dm)
        else:
            # only the final timestep of the last layer feeds the classifier
            hc = (h_state * C_all[L - 1])[None]                         # (1, Di, B*N)
            y_last = jnp.concatenate(
                [jnp.sum(hc[:, :, b * N:(b + 1) * N], axis=2) for b in range(B)],
                axis=0)                                                 # (B, Di)
            y_last = (y_last + u3[:, L - 1, :] * D_ref[layer]) * _silu(z3[:, L - 1, :])
            out_ref[...] = (
                jnp.dot(y_last, head_w_ref[...], preferred_element_type=f32)
                + fc_b_ref[...])


# ------------------------------ wrapper --------------------------------------
@jax.jit
def model_forward(x, packed):
    B = x.shape[0]
    return pl.pallas_call(
        fused_mamba_kernel,
        out_shape=jax.ShapeDtypeStruct((B, NUM_CLASSES), jnp.float32),
        in_specs=[_VMEM] * 14,
        out_specs=_VMEM,
    )(
        x,
        packed["exp_w"], packed["exp_b"],
        packed["w_in"], packed["conv_w"], packed["conv_b"],
        packed["w_xbc"], packed["w_dt"], packed["b_dt"],
        packed["A"], packed["D"], packed["w_out"],
        packed["head_w"], packed["fc_b"],
    )


def pack_params(params, batch):
    """Offline weight packing: concat projections so every in-kernel matmul is
    128-lane dense, pre-compose the rank-2 dt path and the (out_proj @ fc) head,
    and pre-tile A = -exp(A_log) into the (Di, batch*N) scan layout."""
    layers = params["layers"]
    nl = len(layers)
    w_in = jnp.stack(
        [jnp.concatenate([lp["w_in_x"], lp["w_in_z"]], axis=1) for lp in layers])
    conv_w = jnp.stack([lp["conv_w"].T for lp in layers])               # (NL, K, Di)
    conv_b = jnp.stack([lp["conv_b"] for lp in layers])                 # (NL, 1, Di)
    w_xbc = jnp.stack(
        [jnp.concatenate([lp["w_x_B"], lp["w_x_C"]], axis=1) for lp in layers])
    w_dt = jnp.stack([lp["w_x_dt"] @ lp["w_dt"] for lp in layers])      # (NL, Di, Di)
    b_dt = jnp.stack([lp["b_dt"] for lp in layers])                     # (NL, 1, Di)
    A = jnp.stack(
        [jnp.tile(-jnp.exp(lp["A_log"]), (1, batch)) for lp in layers])  # (NL, Di, B*N)
    D = jnp.stack([lp["D"] for lp in layers])                           # (NL, 1, Di)
    w_out = jnp.stack([layers[i]["w_out"] for i in range(max(nl - 1, 1))])
    head_w = layers[-1]["w_out"] @ params["fc_w"]                       # (Di, C)
    return {
        "exp_w": params["exp_w"], "exp_b": params["exp_b"],
        "w_in": w_in, "conv_w": conv_w, "conv_b": conv_b,
        "w_xbc": w_xbc, "w_dt": w_dt, "b_dt": b_dt,
        "A": A, "D": D, "w_out": w_out,
        "head_w": head_w, "fc_b": params["fc_b"],
    }


# --------------------------- pure-JAX reference ------------------------------
def _ref_mamba_layer(x, p):
    B, L, Dm = x.shape
    xc = (x.reshape(B * L, Dm) @ p["w_in_x"]).reshape(B, L, D_INNER)
    z = (x.reshape(B * L, Dm) @ p["w_in_z"]).reshape(B, L, D_INNER)
    xconv = jnp.zeros_like(xc)
    for k in range(D_CONV):
        shift = D_CONV - 1 - k
        xs = xc if shift == 0 else jnp.concatenate(
            [jnp.zeros((B, shift, D_INNER)), xc[:, : L - shift, :]], axis=1)
        xconv = xconv + xs * p["conv_w"][:, k][None, None, :]
    xa = jax.nn.silu(xconv + p["conv_b"][None, :, :])
    xa2 = xa.reshape(B * L, D_INNER)
    dt = jax.nn.softplus(
        xa2 @ p["w_x_dt"] @ p["w_dt"] + p["b_dt"]).reshape(B, L, D_INNER)
    Bm = (xa2 @ p["w_x_B"]).reshape(B, L, D_STATE)
    Cm = (xa2 @ p["w_x_C"]).reshape(B, L, D_STATE)
    A = -jnp.exp(p["A_log"])
    h = jnp.zeros((B, D_INNER, D_STATE))
    ys = []
    for l in range(L):
        dA = jnp.exp(dt[:, l, :, None] * A[None])
        dBu = dt[:, l, :, None] * Bm[:, l, None, :] * xa[:, l, :, None]
        h = dA * h + dBu
        ys.append(jnp.sum(h * Cm[:, l, None, :], axis=-1))
    y = jnp.stack(ys, axis=1) + xa * p["D"][None, :, :]
    y = y * jax.nn.silu(z)
    return (y.reshape(B * L, D_INNER) @ p["w_out"]).reshape(B, L, Dm)


def ref_forward(x, params):
    B, L, F = x.shape
    h = (x.reshape(B * L, F) @ params["exp_w"] + params["exp_b"]).reshape(B, L, HIDDEN)
    for lp in params["layers"]:
        h = _ref_mamba_layer(h, lp)
    return h[:, -1, :] @ params["fc_w"] + params["fc_b"]


# ----------------------------- parameter init --------------------------------
def init_params(key):
    def nrm(k, shape, fan_in):
        return (1.0 / np.sqrt(fan_in)) * jax.random.normal(k, shape, jnp.float32)

    keys = jax.random.split(key, 4 + NUM_LAYERS)
    params = {
        "exp_w": nrm(keys[0], (INPUT_SIZE, HIDDEN), INPUT_SIZE),
        "exp_b": nrm(keys[1], (1, HIDDEN), INPUT_SIZE),
        "fc_w": nrm(keys[2], (HIDDEN, NUM_CLASSES), HIDDEN),
        "fc_b": nrm(keys[3], (1, NUM_CLASSES), HIDDEN),
    }
    layers = []
    for i in range(NUM_LAYERS):
        lk = jax.random.split(keys[4 + i], 10)
        # S4D-real style A_log init: A = [1..N] repeated over channels
        A_log = jnp.log(jnp.broadcast_to(
            jnp.arange(1, D_STATE + 1, dtype=jnp.float32), (D_INNER, D_STATE)))
        layers.append({
            "w_in_x": nrm(lk[0], (HIDDEN, D_INNER), HIDDEN),
            "w_in_z": nrm(lk[1], (HIDDEN, D_INNER), HIDDEN),
            "conv_w": nrm(lk[2], (D_INNER, D_CONV), D_CONV),
            "conv_b": nrm(lk[3], (1, D_INNER), D_CONV),
            "w_x_dt": nrm(lk[4], (D_INNER, DT_RANK), D_INNER),
            "w_x_B": nrm(lk[5], (D_INNER, D_STATE), D_INNER),
            "w_x_C": nrm(lk[6], (D_INNER, D_STATE), D_INNER),
            "w_dt": nrm(lk[7], (DT_RANK, D_INNER), DT_RANK),
            "b_dt": nrm(lk[8], (1, D_INNER), DT_RANK),
            "A_log": A_log,
            "D": jnp.ones((1, D_INNER), jnp.float32),
            "w_out": nrm(lk[9], (D_INNER, HIDDEN), D_INNER),
        })
    params["layers"] = tuple(layers)
    return params


# TODO(synk): sample_action (host-side epsilon-greedy with random.random() /
# .item()) is Python control-flow glue, not part of the tensor forward pass.

if __name__ == "__main__":
    key = jax.random.PRNGKey(0)
    pkey, xkey = jax.random.split(key)
    params = init_params(pkey)
    packed = pack_params(params, BATCH)
    x = jax.random.normal(xkey, (BATCH, SEQ, INPUT_SIZE), jnp.float32)

    out = model_forward(x, packed)
    out = jax.block_until_ready(out)

    ref = np.asarray(ref_forward(x, params))
    assert out.shape == (BATCH, NUM_CLASSES)
    assert np.allclose(np.asarray(out), ref, atol=2e-2, rtol=2e-2), (
        np.abs(np.asarray(out) - ref).max())

    print("KERNEL_OK")
</pallas_src>

<mosaic_0001>
module attributes {stable_mosaic.version = 11 : i64} {
  func.func @fused_mamba_kernel(%arg0: memref<2x8x4xf32, #tpu.memory_space<vmem>>, %arg1: memref<4x32xf32, #tpu.memory_space<vmem>>, %arg2: memref<1x32xf32, #tpu.memory_space<vmem>>, %arg3: memref<2x32x128xf32, #tpu.memory_space<vmem>>, %arg4: memref<2x2x64xf32, #tpu.memory_space<vmem>>, %arg5: memref<2x1x64xf32, #tpu.memory_space<vmem>>, %arg6: memref<2x64x128xf32, #tpu.memory_space<vmem>>, %arg7: memref<2x64x64xf32, #tpu.memory_space<vmem>>, %arg8: memref<2x1x64xf32, #tpu.memory_space<vmem>>, %arg9: memref<2x64x128xf32, #tpu.memory_space<vmem>>, %arg10: memref<2x1x64xf32, #tpu.memory_space<vmem>>, %arg11: memref<1x64x32xf32, #tpu.memory_space<vmem>>, %arg12: memref<64x3xf32, #tpu.memory_space<vmem>>, %arg13: memref<1x3xf32, #tpu.memory_space<vmem>>, %arg14: memref<2x3xf32, #tpu.memory_space<vmem>>) attributes {dimension_semantics = [], scalar_prefetch = 0 : i64, scratch_operands = 0 : i64, tpu.core_type = #tpu.core_type<tc>} {
    %c0 = arith.constant 0 : index
    %c0_0 = arith.constant 0 : index
    %c0_1 = arith.constant 0 : index
    %0 = vector.load %arg0[%c0, %c0_0, %c0_1] : memref<2x8x4xf32, #tpu.memory_space<vmem>>, vector<2x8x4xf32>
    %1 = vector.shape_cast %0 : vector<2x8x4xf32> to vector<16x4xf32>
    %c0_2 = arith.constant 0 : index
    %c0_3 = arith.constant 0 : index
    %2 = vector.load %arg1[%c0_2, %c0_3] : memref<4x32xf32, #tpu.memory_space<vmem>>, vector<4x32xf32>
    %cst = arith.constant dense<0.000000e+00> : vector<16x32xf32>
    %3 = tpu.matmul %1, %2, %cst {dimension_numbers = #tpu.dot_dimension_numbers<[1], [0], [0], [1], [0, 0, 1, 1], [], []>} : vector<16x4xf32>, vector<4x32xf32>, vector<16x32xf32> -> vector<16x32xf32>
    %c0_4 = arith.constant 0 : index
    %c0_5 = arith.constant 0 : index
    %4 = vector.load %arg2[%c0_4, %c0_5] : memref<1x32xf32, #tpu.memory_space<vmem>>, vector<1x32xf32>
    %5 = vector.broadcast %4 : vector<1x32xf32> to vector<16x32xf32>
    %6 = arith.addf %3, %5 : vector<16x32xf32>
    %7 = tpu.iota {dimensions = array<i32: 1>} : vector<2x8x64xi32>
    %8 = vector.shape_cast %7 : vector<2x8x64xi32> to vector<16x64xi32>
    %c0_6 = arith.constant 0 : index
    %c0_7 = arith.constant 0 : index
    %c0_8 = arith.constant 0 : index
    %9 = vector.load %arg3[%c0_6, %c0_7, %c0_8] : memref<2x32x128xf32, #tpu.memory_space<vmem>>, vector<1x32x128xf32>
    %10 = vector.shape_cast %9 : vector<1x32x128xf32> to vector<32x128xf32>
    %cst_9 = arith.constant dense<0.000000e+00> : vector<16x128xf32>
    %11 = tpu.matmul %6, %10, %cst_9 {dimension_numbers = #tpu.dot_dimension_numbers<[1], [0], [0], [1], [0, 0, 1, 1], [], []>} : vector<16x32xf32>, vector<32x128xf32>, vector<16x128xf32> -> vector<16x128xf32>
    %12 = vector.extract_strided_slice %11 {offsets = [0, 0], sizes = [16, 64], strides = [1, 1]} : vector<16x128xf32> to vector<16x64xf32>
    %13 = vector.extract_strided_slice %11 {offsets = [0, 64], sizes = [16, 64], strides = [1, 1]} : vector<16x128xf32> to vector<16x64xf32>
    %c0_10 = arith.constant 0 : index
    %c0_11 = arith.constant 0 : index
    %c0_12 = arith.constant 0 : index
    %14 = vector.load %arg4[%c0_10, %c0_11, %c0_12] : memref<2x2x64xf32, #tpu.memory_space<vmem>>, vector<1x2x64xf32>
    %15 = vector.shape_cast %14 : vector<1x2x64xf32> to vector<2x64xf32>
    %16 = vector.extract_strided_slice %15 {offsets = [1, 0], sizes = [1, 64], strides = [1, 1]} : vector<2x64xf32> to vector<1x64xf32>
    %17 = vector.shape_cast %16 : vector<1x64xf32> to vector<64xf32>
    %18 = vector.shape_cast %17 : vector<64xf32> to vector<1x64xf32>
    %19 = vector.broadcast %18 : vector<1x64xf32> to vector<16x64xf32>
    %20 = arith.mulf %12, %19 : vector<16x64xf32>
    %21 = vector.extract_strided_slice %12 {offsets = [15, 0], sizes = [1, 64], strides = [1, 1]} : vector<16x64xf32> to vector<1x64xf32>
    %22 = vector.extract_strided_slice %12 {offsets = [0, 0], sizes = [15, 64], strides = [1, 1]} : vector<16x64xf32> to vector<15x64xf32>
    %23 = tpu.concatenate %21, %22 in 0 : vector<1x64xf32>, vector<15x64xf32> -> vector<16x64xf32>
    %c1_i32 = arith.constant 1 : i32
    %24 = vector.broadcast %c1_i32 : i32 to vector<16x64xi32>
    %25 = arith.cmpi sge, %8, %24 : vector<16x64xi32>
    %cst_13 = arith.constant 0.000000e+00 : f32
    %26 = vector.broadcast %cst_13 : f32 to vector<16x64xf32>
    %27 = arith.select %25, %23, %26 : vector<16x64xi1>, vector<16x64xf32>
    %28 = vector.extract_strided_slice %15 {offsets = [0, 0], sizes = [1, 64], strides = [1, 1]} : vector<2x64xf32> to vector<1x64xf32>
    %29 = vector.shape_cast %28 : vector<1x64xf32> to vector<64xf32>
    %30 = vector.shape_cast %29 : vector<64xf32> to vector<1x64xf32>
    %31 = vector.broadcast %30 : vector<1x64xf32> to vector<16x64xf32>
    %32 = arith.mulf %27, %31 : vector<16x64xf32>
    %33 = arith.addf %20, %32 : vector<16x64xf32>
    %c0_14 = arith.constant 0 : index
    %c0_15 = arith.constant 0 : index
    %c0_16 = arith.constant 0 : index
    %34 = vector.load %arg5[%c0_14, %c0_15, %c0_16] : memref<2x1x64xf32, #tpu.memory_space<vmem>>, vector<1x1x64xf32>
    %35 = vector.shape_cast %34 : vector<1x1x64xf32> to vector<1x64xf32>
    %36 = vector.broadcast %35 : vector<1x64xf32> to vector<16x64xf32>
    %37 = arith.addf %33, %36 : vector<16x64xf32>
    %cst_17 = arith.constant 0.000000e+00 : f32
    %38 = vector.broadcast %cst_17 : f32 to vector<16x64xf32>
    %39 = arith.subf %38, %37 : vector<16x64xf32>
    %40 = math.exp %39 : vector<16x64xf32>
    %cst_18 = arith.constant 1.000000e+00 : f32
    %41 = vector.broadcast %cst_18 : f32 to vector<16x64xf32>
    %42 = arith.addf %41, %40 : vector<16x64xf32>
    %43 = tpu.reciprocal %42 {approx = true} : vector<16x64xf32> -> vector<16x64xf32>
    %44 = arith.mulf %37, %43 : vector<16x64xf32>
    %c0_19 = arith.constant 0 : index
    %c0_20 = arith.constant 0 : index
    %c0_21 = arith.constant 0 : index
    %45 = vector.load %arg6[%c0_19, %c0_20, %c0_21] : memref<2x64x128xf32, #tpu.memory_space<vmem>>, vector<1x64x128xf32>
    %46 = vector.shape_cast %45 : vector<1x64x128xf32> to vector<64x128xf32>
    %cst_22 = arith.constant dense<0.000000e+00> : vector<16x128xf32>
    %47 = tpu.matmul %44, %46, %cst_22 {dimension_numbers = #tpu.dot_dimension_numbers<[1], [0], [0], [1], [0, 0, 1, 1], [], []>} : vector<16x64xf32>, vector<64x128xf32>, vector<16x128xf32> -> vector<16x128xf32>
    %c0_23 = arith.constant 0 : index
    %c0_24 = arith.constant 0 : index
    %c0_25 = arith.constant 0 : index
    %48 = vector.load %arg7[%c0_23, %c0_24, %c0_25] : memref<2x64x64xf32, #tpu.memory_space<vmem>>, vector<1x64x64xf32>
    %49 = vector.shape_cast %48 : vector<1x64x64xf32> to vector<64x64xf32>
    %cst_26 = arith.constant dense<0.000000e+00> : vector<16x64xf32>
    %50 = tpu.matmul %44, %49, %cst_26 {dimension_numbers = #tpu.dot_dimension_numbers<[1], [0], [0], [1], [0, 0, 1, 1], [], []>} : vector<16x64xf32>, vector<64x64xf32>, vector<16x64xf32> -> vector<16x64xf32>
    %c0_27 = arith.constant 0 : index
    %c0_28 = arith.constant 0 : index
    %c0_29 = arith.constant 0 : index
    %51 = vector.load %arg8[%c0_27, %c0_28, %c0_29] : memref<2x1x64xf32, #tpu.memory_space<vmem>>, vector<1x1x64xf32>
    %52 = vector.shape_cast %51 : vector<1x1x64xf32> to vector<1x64xf32>
    %53 = vector.broadcast %52 : vector<1x64xf32> to vector<16x64xf32>
    %54 = arith.addf %50, %53 : vector<16x64xf32>
    %cst_30 = arith.constant 2.000000e+01 : f32
    %55 = vector.broadcast %cst_30 : f32 to vector<16x64xf32>
    %56 = arith.cmpf ogt, %54, %55 : vector<16x64xf32>
    %cst_31 = arith.constant 2.000000e+01 : f32
    %57 = vector.broadcast %cst_31 : f32 to vector<16x64xf32>
    %58 = arith.minimumf %54, %57 : vector<16x64xf32>
    %59 = math.exp %58 : vector<16x64xf32>
    %60 = math.log1p %59 : vector<16x64xf32>
    %61 = arith.select %56, %54, %60 : vector<16x64xi1>, vector<16x64xf32>
    %62 = vector.shape_cast %44 : vector<16x64xf32> to vector<2x8x64xf32>
    %63 = vector.shape_cast %13 : vector<16x64xf32> to vector<2x8x64xf32>
    %64 = vector.shape_cast %61 : vector<16x64xf32> to vector<2x8x64xf32>
    %65 = arith.mulf %64, %62 : vector<2x8x64xf32>
    %66 = vector.extract_strided_slice %47 {offsets = [0, 0], sizes = [16, 64], strides = [1, 1]} : vector<16x128xf32> to vector<16x64xf32>
    %67 = vector.shape_cast %66 : vector<16x64xf32> to vector<2x8x64xf32>
    %68 = vector.extract_strided_slice %47 {offsets = [0, 64], sizes = [16, 64], strides = [1, 1]} : vector<16x128xf32> to vector<16x64xf32>
    %69 = vector.shape_cast %68 : vector<16x64xf32> to vector<2x8x64xf32>
    %c0_32 = arith.constant 0 : index
    %c0_33 = arith.constant 0 : index
    %c0_34 = arith.constant 0 : index
    %70 = vector.load %arg9[%c0_32, %c0_33, %c0_34] : memref<2x64x128xf32, #tpu.memory_space<vmem>>, vector<1x64x128xf32>
    %71 = vector.shape_cast %70 : vector<1x64x128xf32> to vector<64x128xf32>
    %72 = vector.extract_strided_slice %64 {offsets = [0, 0, 0], sizes = [1, 8, 64], strides = [1, 1, 1]} : vector<2x8x64xf32> to vector<1x8x64xf32>
    %73 = vector.shape_cast %72 : vector<1x8x64xf32> to vector<8x64xf32>
    %74 = vector.shape_cast %73 : vector<8x64xf32> to vector<8x64x1xf32>
    %75 = vector.shape_cast %74 : vector<8x64x1xf32> to vector<8x64x1xf32>
    %76 = vector.broadcast %75 : vector<8x64x1xf32> to vector<8x64x64xf32>
    %77 = vector.extract_strided_slice %64 {offsets = [1, 0, 0], sizes = [1, 8, 64], strides = [1, 1, 1]} : vector<2x8x64xf32> to vector<1x8x64xf32>
    %78 = vector.shape_cast %77 : vector<1x8x64xf32> to vector<8x64xf32>
    %79 = vector.shape_cast %78 : vector<8x64xf32> to vector<8x64x1xf32>
    %80 = vector.shape_cast %79 : vector<8x64x1xf32> to vector<8x64x1xf32>
    %81 = vector.broadcast %80 : vector<8x64x1xf32> to vector<8x64x64xf32>
    %82 = tpu.concatenate %76, %81 in 2 : vector<8x64x64xf32>, vector<8x64x64xf32> -> vector<8x64x128xf32>
    %83 = vector.shape_cast %71 : vector<64x128xf32> to vector<1x64x128xf32>
    %84 = vector.broadcast %83 : vector<1x64x128xf32> to vector<8x64x128xf32>
    %85 = arith.mulf %82, %84 : vector<8x64x128xf32>
    %86 = math.exp %85 : vector<8x64x128xf32>
    %87 = vector.extract_strided_slice %65 {offsets = [0, 0, 0], sizes = [1, 8, 64], strides = [1, 1, 1]} : vector<2x8x64xf32> to vector<1x8x64xf32>
    %88 = vector.shape_cast %87 : vector<1x8x64xf32> to vector<8x64xf32>
    %89 = vector.shape_cast %88 : vector<8x64xf32> to vector<8x64x1xf32>
    %90 = vector.shape_cast %89 : vector<8x64x1xf32> to vector<8x64x1xf32>
    %91 = vector.broadcast %90 : vector<8x64x1xf32> to vector<8x64x64xf32>
    %92 = vector.extract_strided_slice %65 {offsets = [1, 0, 0], sizes = [1, 8, 64], strides = [1, 1, 1]} : vector<2x8x64xf32> to vector<1x8x64xf32>
    %93 = vector.shape_cast %92 : vector<1x8x64xf32> to vector<8x64xf32>
    %94 = vector.shape_cast %93 : vector<8x64xf32> to vector<8x64x1xf32>
    %95 = vector.shape_cast %94 : vector<8x64x1xf32> to vector<8x64x1xf32>
    %96 = vector.broadcast %95 : vector<8x64x1xf32> to vector<8x64x64xf32>
    %97 = tpu.concatenate %91, %96 in 2 : vector<8x64x64xf32>, vector<8x64x64xf32> -> vector<8x64x128xf32>
    %98 = vector.extract_strided_slice %67 {offsets = [0, 0, 0], sizes = [1, 8, 64], strides = [1, 1, 1]} : vector<2x8x64xf32> to vector<1x8x64xf32>
    %99 = vector.shape_cast %98 : vector<1x8x64xf32> to vector<8x64xf32>
    %100 = vector.shape_cast %99 : vector<8x64xf32> to vector<8x1x64xf32>
    %101 = vector.shape_cast %100 : vector<8x1x64xf32> to vector<8x1x64xf32>
    %102 = vector.broadcast %101 : vector<8x1x64xf32> to vector<8x64x64xf32>
    %103 = vector.extract_strided_slice %67 {offsets = [1, 0, 0], sizes = [1, 8, 64], strides = [1, 1, 1]} : vector<2x8x64xf32> to vector<1x8x64xf32>
    %104 = vector.shape_cast %103 : vector<1x8x64xf32> to vector<8x64xf32>
    %105 = vector.shape_cast %104 : vector<8x64xf32> to vector<8x1x64xf32>
    %106 = vector.shape_cast %105 : vector<8x1x64xf32> to vector<8x1x64xf32>
    %107 = vector.broadcast %106 : vector<8x1x64xf32> to vector<8x64x64xf32>
    %108 = tpu.concatenate %102, %107 in 2 : vector<8x64x64xf32>, vector<8x64x64xf32> -> vector<8x64x128xf32>
    %109 = arith.mulf %97, %108 : vector<8x64x128xf32>
    %110 = vector.extract_strided_slice %69 {offsets = [0, 0, 0], sizes = [1, 8, 64], strides = [1, 1, 1]} : vector<2x8x64xf32> to vector<1x8x64xf32>
    %111 = vector.shape_cast %110 : vector<1x8x64xf32> to vector<8x64xf32>
    %112 = vector.shape_cast %111 : vector<8x64xf32> to vector<8x1x64xf32>
    %113 = vector.shape_cast %112 : vector<8x1x64xf32> to vector<8x1x64xf32>
    %114 = vector.broadcast %113 : vector<8x1x64xf32> to vector<8x64x64xf32>
    %115 = vector.extract_strided_slice %69 {offsets = [1, 0, 0], sizes = [1, 8, 64], strides = [1, 1, 1]} : vector<2x8x64xf32> to vector<1x8x64xf32>
    %116 = vector.shape_cast %115 : vector<1x8x64xf32> to vector<8x64xf32>
    %117 = vector.shape_cast %116 : vector<8x64xf32> to vector<8x1x64xf32>
    %118 = vector.shape_cast %117 : vector<8x1x64xf32> to vector<8x1x64xf32>
    %119 = vector.broadcast %118 : vector<8x1x64xf32> to vector<8x64x64xf32>
    %120 = tpu.concatenate %114, %119 in 2 : vector<8x64x64xf32>, vector<8x64x64xf32> -> vector<8x64x128xf32>
    %cst_35 = arith.constant 0.000000e+00 : f32
    %121 = vector.broadcast %cst_35 : f32 to vector<64x128xf32>
    %122 = vector.extract_strided_slice %86 {offsets = [0, 0, 0], sizes = [1, 64, 128], strides = [1, 1, 1]} : vector<8x64x128xf32> to vector<1x64x128xf32>
    %123 = vector.shape_cast %122 : vector<1x64x128xf32> to vector<64x128xf32>
    %124 = arith.mulf %123, %121 : vector<64x128xf32>
    %125 = vector.extract_strided_slice %109 {offsets = [0, 0, 0], sizes = [1, 64, 128], strides = [1, 1, 1]} : vector<8x64x128xf32> to vector<1x64x128xf32>
    %126 = vector.shape_cast %125 : vector<1x64x128xf32> to vector<64x128xf32>
    %127 = arith.addf %124, %126 : vector<64x128xf32>
    %128 = vector.extract_strided_slice %86 {offsets = [1, 0, 0], sizes = [1, 64, 128], strides = [1, 1, 1]} : vector<8x64x128xf32> to vector<1x64x128xf32>
    %129 = vector.shape_cast %128 : vector<1x64x128xf32> to vector<64x128xf32>
    %130 = arith.mulf %129, %127 : vector<64x128xf32>
    %131 = vector.extract_strided_slice %109 {offsets = [1, 0, 0], sizes = [1, 64, 128], strides = [1, 1, 1]} : vector<8x64x128xf32> to vector<1x64x128xf32>
    %132 = vector.shape_cast %131 : vector<1x64x128xf32> to vector<64x128xf32>
    %133 = arith.addf %130, %132 : vector<64x128xf32>
    %134 = vector.extract_strided_slice %86 {offsets = [2, 0, 0], sizes = [1, 64, 128], strides = [1, 1, 1]} : vector<8x64x128xf32> to vector<1x64x128xf32>
    %135 = vector.shape_cast %134 : vector<1x64x128xf32> to vector<64x128xf32>
    %136 = arith.mulf %135, %133 : vector<64x128xf32>
    %137 = vector.extract_strided_slice %109 {offsets = [2, 0, 0], sizes = [1, 64, 128], strides = [1, 1, 1]} : vector<8x64x128xf32> to vector<1x64x128xf32>
    %138 = vector.shape_cast %137 : vector<1x64x128xf32> to vector<64x128xf32>
    %139 = arith.addf %136, %138 : vector<64x128xf32>
    %140 = vector.extract_strided_slice %86 {offsets = [3, 0, 0], sizes = [1, 64, 128], strides = [1, 1, 1]} : vector<8x64x128xf32> to vector<1x64x128xf32>
    %141 = vector.shape_cast %140 : vector<1x64x128xf32> to vector<64x128xf32>
    %142 = arith.mulf %141, %139 : vector<64x128xf32>
    %143 = vector.extract_strided_slice %109 {offsets = [3, 0, 0], sizes = [1, 64, 128], strides = [1, 1, 1]} : vector<8x64x128xf32> to vector<1x64x128xf32>
    %144 = vector.shape_cast %143 : vector<1x64x128xf32> to vector<64x128xf32>
    %145 = arith.addf %142, %144 : vector<64x128xf32>
    %146 = vector.extract_strided_slice %86 {offsets = [4, 0, 0], sizes = [1, 64, 128], strides = [1, 1, 1]} : vector<8x64x128xf32> to vector<1x64x128xf32>
    %147 = vector.shape_cast %146 : vector<1x64x128xf32> to vector<64x128xf32>
    %148 = arith.mulf %147, %145 : vector<64x128xf32>
    %149 = vector.extract_strided_slice %109 {offsets = [4, 0, 0], sizes = [1, 64, 128], strides = [1, 1, 1]} : vector<8x64x128xf32> to vector<1x64x128xf32>
    %150 = vector.shape_cast %149 : vector<1x64x128xf32> to vector<64x128xf32>
    %151 = arith.addf %148, %150 : vector<64x128xf32>
    %152 = vector.extract_strided_slice %86 {offsets = [5, 0, 0], sizes = [1, 64, 128], strides = [1, 1, 1]} : vector<8x64x128xf32> to vector<1x64x128xf32>
    %153 = vector.shape_cast %152 : vector<1x64x128xf32> to vector<64x128xf32>
    %154 = arith.mulf %153, %151 : vector<64x128xf32>
    %155 = vector.extract_strided_slice %109 {offsets = [5, 0, 0], sizes = [1, 64, 128], strides = [1, 1, 1]} : vector<8x64x128xf32> to vector<1x64x128xf32>
    %156 = vector.shape_cast %155 : vector<1x64x128xf32> to vector<64x128xf32>
    %157 = arith.addf %154, %156 : vector<64x128xf32>
    %158 = vector.extract_strided_slice %86 {offsets = [6, 0, 0], sizes = [1, 64, 128], strides = [1, 1, 1]} : vector<8x64x128xf32> to vector<1x64x128xf32>
    %159 = vector.shape_cast %158 : vector<1x64x128xf32> to vector<64x128xf32>
    %160 = arith.mulf %159, %157 : vector<64x128xf32>
    %161 = vector.extract_strided_slice %109 {offsets = [6, 0, 0], sizes = [1, 64, 128], strides = [1, 1, 1]} : vector<8x64x128xf32> to vector<1x64x128xf32>
    %162 = vector.shape_cast %161 : vector<1x64x128xf32> to vector<64x128xf32>
    %163 = arith.addf %160, %162 : vector<64x128xf32>
    %164 = vector.extract_strided_slice %86 {offsets = [7, 0, 0], sizes = [1, 64, 128], strides = [1, 1, 1]} : vector<8x64x128xf32> to vector<1x64x128xf32>
    %165 = vector.shape_cast %164 : vector<1x64x128xf32> to vector<64x128xf32>
    %166 = arith.mulf %165, %163 : vector<64x128xf32>
    %167 = vector.extract_strided_slice %109 {offsets = [7, 0, 0], sizes = [1, 64, 128], strides = [1, 1, 1]} : vector<8x64x128xf32> to vector<1x64x128xf32>
    %168 = vector.shape_cast %167 : vector<1x64x128xf32> to vector<64x128xf32>
    %169 = arith.addf %166, %168 : vector<64x128xf32>
    %170 = vector.shape_cast %127 : vector<64x128xf32> to vector<1x64x128xf32>
    %171 = vector.shape_cast %133 : vector<64x128xf32> to vector<1x64x128xf32>
    %172 = vector.shape_cast %139 : vector<64x128xf32> to vector<1x64x128xf32>
    %173 = vector.shape_cast %145 : vector<64x128xf32> to vector<1x64x128xf32>
    %174 = vector.shape_cast %151 : vector<64x128xf32> to vector<1x64x128xf32>
    %175 = vector.shape_cast %157 : vector<64x128xf32> to vector<1x64x128xf32>
    %176 = vector.shape_cast %163 : vector<64x128xf32> to vector<1x64x128xf32>
    %177 = vector.shape_cast %169 : vector<64x128xf32> to vector<1x64x128xf32>
    %178 = tpu.concatenate %170, %171, %172, %173, %174, %175, %176, %177 in 0 : vector<1x64x128xf32>, vector<1x64x128xf32>, vector<1x64x128xf32>, vector<1x64x128xf32>, vector<1x64x128xf32>, vector<1x64x128xf32>, vector<1x64x128xf32>, vector<1x64x128xf32> -> vector<8x64x128xf32>
    %179 = arith.mulf %178, %120 : vector<8x64x128xf32>
    %180 = vector.extract_strided_slice %179 {offsets = [0, 0, 0], sizes = [8, 64, 64], strides = [1, 1, 1]} : vector<8x64x128xf32> to vector<8x64x64xf32>
    %cst_36 = arith.constant dense<0.000000e+00> : vector<8x64xf32>
    %181 = vector.multi_reduction <add>, %180, %cst_36 [2] : vector<8x64x64xf32> to vector<8x64xf32>
    %182 = vector.extract_strided_slice %179 {offsets = [0, 0, 64], sizes = [8, 64, 64], strides = [1, 1, 1]} : vector<8x64x128xf32> to vector<8x64x64xf32>
    %cst_37 = arith.constant dense<0.000000e+00> : vector<8x64xf32>
    %183 = vector.multi_reduction <add>, %182, %cst_37 [2] : vector<8x64x64xf32> to vector<8x64xf32>
    %184 = vector.shape_cast %181 : vector<8x64xf32> to vector<1x8x64xf32>
    %185 = vector.shape_cast %183 : vector<8x64xf32> to vector<1x8x64xf32>
    %186 = tpu.concatenate %184, %185 in 0 : vector<1x8x64xf32>, vector<1x8x64xf32> -> vector<2x8x64xf32>
    %c0_38 = arith.constant 0 : index
    %c0_39 = arith.constant 0 : index
    %c0_40 = arith.constant 0 : index
    %187 = vector.load %arg10[%c0_38, %c0_39, %c0_40] : memref<2x1x64xf32, #tpu.memory_space<vmem>>, vector<1x1x64xf32>
    %188 = vector.shape_cast %187 : vector<1x1x64xf32> to vector<1x64xf32>
    %189 = vector.shape_cast %188 : vector<1x64xf32> to vector<1x1x64xf32>
    %190 = vector.broadcast %189 : vector<1x1x64xf32> to vector<2x8x64xf32>
    %191 = arith.mulf %62, %190 : vector<2x8x64xf32>
    %192 = arith.addf %186, %191 : vector<2x8x64xf32>
    %cst_41 = arith.constant 0.000000e+00 : f32
    %193 = vector.broadcast %cst_41 : f32 to vector<2x8x64xf32>
    %194 = arith.subf %193, %63 : vector<2x8x64xf32>
    %195 = math.exp %194 : vector<2x8x64xf32>
    %cst_42 = arith.constant 1.000000e+00 : f32
    %196 = vector.broadcast %cst_42 : f32 to vector<2x8x64xf32>
    %197 = arith.addf %196, %195 : vector<2x8x64xf32>
    %198 = tpu.reciprocal %197 {approx = true} : vector<2x8x64xf32> -> vector<2x8x64xf32>
    %199 = arith.mulf %63, %198 : vector<2x8x64xf32>
    %200 = arith.mulf %192, %199 : vector<2x8x64xf32>
    %201 = vector.shape_cast %200 : vector<2x8x64xf32> to vector<16x64xf32>
    %c0_43 = arith.constant 0 : index
    %c0_44 = arith.constant 0 : index
    %c0_45 = arith.constant 0 : index
    %202 = vector.load %arg11[%c0_43, %c0_44, %c0_45] : memref<1x64x32xf32, #tpu.memory_space<vmem>>, vector<1x64x32xf32>
    %203 = vector.shape_cast %202 : vector<1x64x32xf32> to vector<64x32xf32>
    %cst_46 = arith.constant dense<0.000000e+00> : vector<16x32xf32>
    %204 = tpu.matmul %201, %203, %cst_46 {dimension_numbers = #tpu.dot_dimension_numbers<[1], [0], [0], [1], [0, 0, 1, 1], [], []>} : vector<16x64xf32>, vector<64x32xf32>, vector<16x32xf32> -> vector<16x32xf32>
    %c1 = arith.constant 1 : index
    %c0_47 = arith.constant 0 : index
    %c0_48 = arith.constant 0 : index
    %205 = vector.load %arg3[%c1, %c0_47, %c0_48] : memref<2x32x128xf32, #tpu.memory_space<vmem>>, vector<1x32x128xf32>
    %206 = vector.shape_cast %205 : vector<1x32x128xf32> to vector<32x128xf32>
    %cst_49 = arith.constant dense<0.000000e+00> : vector<16x128xf32>
    %207 = tpu.matmul %204, %206, %cst_49 {dimension_numbers = #tpu.dot_dimension_numbers<[1], [0], [0], [1], [0, 0, 1, 1], [], []>} : vector<16x32xf32>, vector<32x128xf32>, vector<16x128xf32> -> vector<16x128xf32>
    %208 = vector.extract_strided_slice %207 {offsets = [0, 0], sizes = [16, 64], strides = [1, 1]} : vector<16x128xf32> to vector<16x64xf32>
    %209 = vector.extract_strided_slice %207 {offsets = [0, 64], sizes = [16, 64], strides = [1, 1]} : vector<16x128xf32> to vector<16x64xf32>
    %c1_50 = arith.constant 1 : index
    %c0_51 = arith.constant 0 : index
    %c0_52 = arith.constant 0 : index
    %210 = vector.load %arg4[%c1_50, %c0_51, %c0_52] : memref<2x2x64xf32, #tpu.memory_space<vmem>>, vector<1x2x64xf32>
    %211 = vector.shape_cast %210 : vector<1x2x64xf32> to vector<2x64xf32>
    %212 = vector.extract_strided_slice %211 {offsets = [1, 0], sizes = [1, 64], strides = [1, 1]} : vector<2x64xf32> to vector<1x64xf32>
    %213 = vector.shape_cast %212 : vector<1x64xf32> to vector<64xf32>
    %214 = vector.shape_cast %213 : vector<64xf32> to vector<1x64xf32>
    %215 = vector.broadcast %214 : vector<1x64xf32> to vector<16x64xf32>
    %216 = arith.mulf %208, %215 : vector<16x64xf32>
    %217 = vector.extract_strided_slice %208 {offsets = [15, 0], sizes = [1, 64], strides = [1, 1]} : vector<16x64xf32> to vector<1x64xf32>
    %218 = vector.extract_strided_slice %208 {offsets = [0, 0], sizes = [15, 64], strides = [1, 1]} : vector<16x64xf32> to vector<15x64xf32>
    %219 = tpu.concatenate %217, %218 in 0 : vector<1x64xf32>, vector<15x64xf32> -> vector<16x64xf32>
    %c1_i32_53 = arith.constant 1 : i32
    %220 = vector.broadcast %c1_i32_53 : i32 to vector<16x64xi32>
    %221 = arith.cmpi sge, %8, %220 : vector<16x64xi32>
    %cst_54 = arith.constant 0.000000e+00 : f32
    %222 = vector.broadcast %cst_54 : f32 to vector<16x64xf32>
    %223 = arith.select %221, %219, %222 : vector<16x64xi1>, vector<16x64xf32>
    %224 = vector.extract_strided_slice %211 {offsets = [0, 0], sizes = [1, 64], strides = [1, 1]} : vector<2x64xf32> to vector<1x64xf32>
    %225 = vector.shape_cast %224 : vector<1x64xf32> to vector<64xf32>
    %226 = vector.shape_cast %225 : vector<64xf32> to vector<1x64xf32>
    %227 = vector.broadcast %226 : vector<1x64xf32> to vector<16x64xf32>
    %228 = arith.mulf %223, %227 : vector<16x64xf32>
    %229 = arith.addf %216, %228 : vector<16x64xf32>
    %c1_55 = arith.constant 1 : index
    %c0_56 = arith.constant 0 : index
    %c0_57 = arith.constant 0 : index
    %230 = vector.load %arg5[%c1_55, %c0_56, %c0_57] : memref<2x1x64xf32, #tpu.memory_space<vmem>>, vector<1x1x64xf32>
    %231 = vector.shape_cast %230 : vector<1x1x64xf32> to vector<1x64xf32>
    %232 = vector.broadcast %231 : vector<1x64xf32> to vector<16x64xf32>
    %233 = arith.addf %229, %232 : vector<16x64xf32>
    %cst_58 = arith.constant 0.000000e+00 : f32
    %234 = vector.broadcast %cst_58 : f32 to vector<16x64xf32>
    %235 = arith.subf %234, %233 : vector<16x64xf32>
    %236 = math.exp %235 : vector<16x64xf32>
    %cst_59 = arith.constant 1.000000e+00 : f32
    %237 = vector.broadcast %cst_59 : f32 to vector<16x64xf32>
    %238 = arith.addf %237, %236 : vector<16x64xf32>
    %239 = tpu.reciprocal %238 {approx = true} : vector<16x64xf32> -> vector<16x64xf32>
    %240 = arith.mulf %233, %239 : vector<16x64xf32>
    %c1_60 = arith.constant 1 : index
    %c0_61 = arith.constant 0 : index
    %c0_62 = arith.constant 0 : index
    %241 = vector.load %arg6[%c1_60, %c0_61, %c0_62] : memref<2x64x128xf32, #tpu.memory_space<vmem>>, vector<1x64x128xf32>
    %242 = vector.shape_cast %241 : vector<1x64x128xf32> to vector<64x128xf32>
    %cst_63 = arith.constant dense<0.000000e+00> : vector<16x128xf32>
    %243 = tpu.matmul %240, %242, %cst_63 {dimension_numbers = #tpu.dot_dimension_numbers<[1], [0], [0], [1], [0, 0, 1, 1], [], []>} : vector<16x64xf32>, vector<64x128xf32>, vector<16x128xf32> -> vector<16x128xf32>
    %c1_64 = arith.constant 1 : index
    %c0_65 = arith.constant 0 : index
    %c0_66 = arith.constant 0 : index
    %244 = vector.load %arg7[%c1_64, %c0_65, %c0_66] : memref<2x64x64xf32, #tpu.memory_space<vmem>>, vector<1x64x64xf32>
    %245 = vector.shape_cast %244 : vector<1x64x64xf32> to vector<64x64xf32>
    %cst_67 = arith.constant dense<0.000000e+00> : vector<16x64xf32>
    %246 = tpu.matmul %240, %245, %cst_67 {dimension_numbers = #tpu.dot_dimension_numbers<[1], [0], [0], [1], [0, 0, 1, 1], [], []>} : vector<16x64xf32>, vector<64x64xf32>, vector<16x64xf32> -> vector<16x64xf32>
    %c1_68 = arith.constant 1 : index
    %c0_69 = arith.constant 0 : index
    %c0_70 = arith.constant 0 : index
    %247 = vector.load %arg8[%c1_68, %c0_69, %c0_70] : memref<2x1x64xf32, #tpu.memory_space<vmem>>, vector<1x1x64xf32>
    %248 = vector.shape_cast %247 : vector<1x1x64xf32> to vector<1x64xf32>
    %249 = vector.broadcast %248 : vector<1x64xf32> to vector<16x64xf32>
    %250 = arith.addf %246, %249 : vector<16x64xf32>
    %cst_71 = arith.constant 2.000000e+01 : f32
    %251 = vector.broadcast %cst_71 : f32 to vector<16x64xf32>
    %252 = arith.cmpf ogt, %250, %251 : vector<16x64xf32>
    %cst_72 = arith.constant 2.000000e+01 : f32
    %253 = vector.broadcast %cst_72 : f32 to vector<16x64xf32>
    %254 = arith.minimumf %250, %253 : vector<16x64xf32>
    %255 = math.exp %254 : vector<16x64xf32>
    %256 = math.log1p %255 : vector<16x64xf32>
    %257 = arith.select %252, %250, %256 : vector<16x64xi1>, vector<16x64xf32>
    %258 = vector.shape_cast %240 : vector<16x64xf32> to vector<2x8x64xf32>
    %259 = vector.shape_cast %209 : vector<16x64xf32> to vector<2x8x64xf32>
    %260 = vector.shape_cast %257 : vector<16x64xf32> to vector<2x8x64xf32>
    %261 = arith.mulf %260, %258 : vector<2x8x64xf32>
    %262 = vector.extract_strided_slice %243 {offsets = [0, 0], sizes = [16, 64], strides = [1, 1]} : vector<16x128xf32> to vector<16x64xf32>
    %263 = vector.shape_cast %262 : vector<16x64xf32> to vector<2x8x64xf32>
    %264 = vector.extract_strided_slice %243 {offsets = [0, 64], sizes = [16, 64], strides = [1, 1]} : vector<16x128xf32> to vector<16x64xf32>
    %265 = vector.shape_cast %264 : vector<16x64xf32> to vector<2x8x64xf32>
    %c1_73 = arith.constant 1 : index
    %c0_74 = arith.constant 0 : index
    %c0_75 = arith.constant 0 : index
    %266 = vector.load %arg9[%c1_73, %c0_74, %c0_75] : memref<2x64x128xf32, #tpu.memory_space<vmem>>, vector<1x64x128xf32>
    %267 = vector.shape_cast %266 : vector<1x64x128xf32> to vector<64x128xf32>
    %268 = vector.extract_strided_slice %260 {offsets = [0, 0, 0], sizes = [1, 8, 64], strides = [1, 1, 1]} : vector<2x8x64xf32> to vector<1x8x64xf32>
    %269 = vector.shape_cast %268 : vector<1x8x64xf32> to vector<8x64xf32>
    %270 = vector.shape_cast %269 : vector<8x64xf32> to vector<8x64x1xf32>
    %271 = vector.shape_cast %270 : vector<8x64x1xf32> to vector<8x64x1xf32>
    %272 = vector.broadcast %271 : vector<8x64x1xf32> to vector<8x64x64xf32>
    %273 = vector.extract_strided_slice %260 {offsets = [1, 0, 0], sizes = [1, 8, 64], strides = [1, 1, 1]} : vector<2x8x64xf32> to vector<1x8x64xf32>
    %274 = vector.shape_cast %273 : vector<1x8x64xf32> to vector<8x64xf32>
    %275 = vector.shape_cast %274 : vector<8x64xf32> to vector<8x64x1xf32>
    %276 = vector.shape_cast %275 : vector<8x64x1xf32> to vector<8x64x1xf32>
    %277 = vector.broadcast %276 : vector<8x64x1xf32> to vector<8x64x64xf32>
    %278 = tpu.concatenate %272, %277 in 2 : vector<8x64x64xf32>, vector<8x64x64xf32> -> vector<8x64x128xf32>
    %279 = vector.shape_cast %267 : vector<64x128xf32> to vector<1x64x128xf32>
    %280 = vector.broadcast %279 : vector<1x64x128xf32> to vector<8x64x128xf32>
    %281 = arith.mulf %278, %280 : vector<8x64x128xf32>
    %282 = math.exp %281 : vector<8x64x128xf32>
    %283 = vector.extract_strided_slice %261 {offsets = [0, 0, 0], sizes = [1, 8, 64], strides = [1, 1, 1]} : vector<2x8x64xf32> to vector<1x8x64xf32>
    %284 = vector.shape_cast %283 : vector<1x8x64xf32> to vector<8x64xf32>
    %285 = vector.shape_cast %284 : vector<8x64xf32> to vector<8x64x1xf32>
    %286 = vector.shape_cast %285 : vector<8x64x1xf32> to vector<8x64x1xf32>
    %287 = vector.broadcast %286 : vector<8x64x1xf32> to vector<8x64x64xf32>
    %288 = vector.extract_strided_slice %261 {offsets = [1, 0, 0], sizes = [1, 8, 64], strides = [1, 1, 1]} : vector<2x8x64xf32> to vector<1x8x64xf32>
    %289 = vector.shape_cast %288 : vector<1x8x64xf32> to vector<8x64xf32>
    %290 = vector.shape_cast %289 : vector<8x64xf32> to vector<8x64x1xf32>
    %291 = vector.shape_cast %290 : vector<8x64x1xf32> to vector<8x64x1xf32>
    %292 = vector.broadcast %291 : vector<8x64x1xf32> to vector<8x64x64xf32>
    %293 = tpu.concatenate %287, %292 in 2 : vector<8x64x64xf32>, vector<8x64x64xf32> -> vector<8x64x128xf32>
    %294 = vector.extract_strided_slice %263 {offsets = [0, 0, 0], sizes = [1, 8, 64], strides = [1, 1, 1]} : vector<2x8x64xf32> to vector<1x8x64xf32>
    %295 = vector.shape_cast %294 : vector<1x8x64xf32> to vector<8x64xf32>
    %296 = vector.shape_cast %295 : vector<8x64xf32> to vector<8x1x64xf32>
    %297 = vector.shape_cast %296 : vector<8x1x64xf32> to vector<8x1x64xf32>
    %298 = vector.broadcast %297 : vector<8x1x64xf32> to vector<8x64x64xf32>
    %299 = vector.extract_strided_slice %263 {offsets = [1, 0, 0], sizes = [1, 8, 64], strides = [1, 1, 1]} : vector<2x8x64xf32> to vector<1x8x64xf32>
    %300 = vector.shape_cast %299 : vector<1x8x64xf32> to vector<8x64xf32>
    %301 = vector.shape_cast %300 : vector<8x64xf32> to vector<8x1x64xf32>
    %302 = vector.shape_cast %301 : vector<8x1x64xf32> to vector<8x1x64xf32>
    %303 = vector.broadcast %302 : vector<8x1x64xf32> to vector<8x64x64xf32>
    %304 = tpu.concatenate %298, %303 in 2 : vector<8x64x64xf32>, vector<8x64x64xf32> -> vector<8x64x128xf32>
    %305 = arith.mulf %293, %304 : vector<8x64x128xf32>
    %306 = vector.extract_strided_slice %265 {offsets = [0, 0, 0], sizes = [1, 8, 64], strides = [1, 1, 1]} : vector<2x8x64xf32> to vector<1x8x64xf32>
    %307 = vector.shape_cast %306 : vector<1x8x64xf32> to vector<8x64xf32>
    %308 = vector.shape_cast %307 : vector<8x64xf32> to vector<8x1x64xf32>
    %309 = vector.shape_cast %308 : vector<8x1x64xf32> to vector<8x1x64xf32>
    %310 = vector.broadcast %309 : vector<8x1x64xf32> to vector<8x64x64xf32>
    %311 = vector.extract_strided_slice %265 {offsets = [1, 0, 0], sizes = [1, 8, 64], strides = [1, 1, 1]} : vector<2x8x64xf32> to vector<1x8x64xf32>
    %312 = vector.shape_cast %311 : vector<1x8x64xf32> to vector<8x64xf32>
    %313 = vector.shape_cast %312 : vector<8x64xf32> to vector<8x1x64xf32>
    %314 = vector.shape_cast %313 : vector<8x1x64xf32> to vector<8x1x64xf32>
    %315 = vector.broadcast %314 : vector<8x1x64xf32> to vector<8x64x64xf32>
    %316 = tpu.concatenate %310, %315 in 2 : vector<8x64x64xf32>, vector<8x64x64xf32> -> vector<8x64x128xf32>
    %cst_76 = arith.constant 0.000000e+00 : f32
    %317 = vector.broadcast %cst_76 : f32 to vector<64x128xf32>
    %318 = vector.extract_strided_slice %282 {offsets = [0, 0, 0], sizes = [1, 64, 128], strides = [1, 1, 1]} : vector<8x64x128xf32> to vector<1x64x128xf32>
    %319 = vector.shape_cast %318 : vector<1x64x128xf32> to vector<64x128xf32>
    %320 = arith.mulf %319, %317 : vector<64x128xf32>
    %321 = vector.extract_strided_slice %305 {offsets = [0, 0, 0], sizes = [1, 64, 128], strides = [1, 1, 1]} : vector<8x64x128xf32> to vector<1x64x128xf32>
    %322 = vector.shape_cast %321 : vector<1x64x128xf32> to vector<64x128xf32>
    %323 = arith.addf %320, %322 : vector<64x128xf32>
    %324 = vector.extract_strided_slice %282 {offsets = [1, 0, 0], sizes = [1, 64, 128], strides = [1, 1, 1]} : vector<8x64x128xf32> to vector<1x64x128xf32>
    %325 = vector.shape_cast %324 : vector<1x64x128xf32> to vector<64x128xf32>
    %326 = arith.mulf %325, %323 : vector<64x128xf32>
    %327 = vector.extract_strided_slice %305 {offsets = [1, 0, 0], sizes = [1, 64, 128], strides = [1, 1, 1]} : vector<8x64x128xf32> to vector<1x64x128xf32>
    %328 = vector.shape_cast %327 : vector<1x64x128xf32> to vector<64x128xf32>
    %329 = arith.addf %326, %328 : vector<64x128xf32>
    %330 = vector.extract_strided_slice %282 {offsets = [2, 0, 0], sizes = [1, 64, 128], strides = [1, 1, 1]} : vector<8x64x128xf32> to vector<1x64x128xf32>
    %331 = vector.shape_cast %330 : vector<1x64x128xf32> to vector<64x128xf32>
    %332 = arith.mulf %331, %329 : vector<64x128xf32>
    %333 = vector.extract_strided_slice %305 {offsets = [2, 0, 0], sizes = [1, 64, 128], strides = [1, 1, 1]} : vector<8x64x128xf32> to vector<1x64x128xf32>
    %334 = vector.shape_cast %333 : vector<1x64x128xf32> to vector<64x128xf32>
    %335 = arith.addf %332, %334 : vector<64x128xf32>
    %336 = vector.extract_strided_slice %282 {offsets = [3, 0, 0], sizes = [1, 64, 128], strides = [1, 1, 1]} : vector<8x64x128xf32> to vector<1x64x128xf32>
    %337 = vector.shape_cast %336 : vector<1x64x128xf32> to vector<64x128xf32>
    %338 = arith.mulf %337, %335 : vector<64x128xf32>
    %339 = vector.extract_strided_slice %305 {offsets = [3, 0, 0], sizes = [1, 64, 128], strides = [1, 1, 1]} : vector<8x64x128xf32> to vector<1x64x128xf32>
    %340 = vector.shape_cast %339 : vector<1x64x128xf32> to vector<64x128xf32>
    %341 = arith.addf %338, %340 : vector<64x128xf32>
    %342 = vector.extract_strided_slice %282 {offsets = [4, 0, 0], sizes = [1, 64, 128], strides = [1, 1, 1]} : vector<8x64x128xf32> to vector<1x64x128xf32>
    %343 = vector.shape_cast %342 : vector<1x64x128xf32> to vector<64x128xf32>
    %344 = arith.mulf %343, %341 : vector<64x128xf32>
    %345 = vector.extract_strided_slice %305 {offsets = [4, 0, 0], sizes = [1, 64, 128], strides = [1, 1, 1]} : vector<8x64x128xf32> to vector<1x64x128xf32>
    %346 = vector.shape_cast %345 : vector<1x64x128xf32> to vector<64x128xf32>
    %347 = arith.addf %344, %346 : vector<64x128xf32>
    %348 = vector.extract_strided_slice %282 {offsets = [5, 0, 0], sizes = [1, 64, 128], strides = [1, 1, 1]} : vector<8x64x128xf32> to vector<1x64x128xf32>
    %349 = vector.shape_cast %348 : vector<1x64x128xf32> to vector<64x128xf32>
    %350 = arith.mulf %349, %347 : vector<64x128xf32>
    %351 = vector.extract_strided_slice %305 {offsets = [5, 0, 0], sizes = [1, 64, 128], strides = [1, 1, 1]} : vector<8x64x128xf32> to vector<1x64x128xf32>
    %352 = vector.shape_cast %351 : vector<1x64x128xf32> to vector<64x128xf32>
    %353 = arith.addf %350, %352 : vector<64x128xf32>
    %354 = vector.extract_strided_slice %282 {offsets = [6, 0, 0], sizes = [1, 64, 128], strides = [1, 1, 1]} : vector<8x64x128xf32> to vector<1x64x128xf32>
    %355 = vector.shape_cast %354 : vector<1x64x128xf32> to vector<64x128xf32>
    %356 = arith.mulf %355, %353 : vector<64x128xf32>
    %357 = vector.extract_strided_slice %305 {offsets = [6, 0, 0], sizes = [1, 64, 128], strides = [1, 1, 1]} : vector<8x64x128xf32> to vector<1x64x128xf32>
    %358 = vector.shape_cast %357 : vector<1x64x128xf32> to vector<64x128xf32>
    %359 = arith.addf %356, %358 : vector<64x128xf32>
    %360 = vector.extract_strided_slice %282 {offsets = [7, 0, 0], sizes = [1, 64, 128], strides = [1, 1, 1]} : vector<8x64x128xf32> to vector<1x64x128xf32>
    %361 = vector.shape_cast %360 : vector<1x64x128xf32> to vector<64x128xf32>
    %362 = arith.mulf %361, %359 : vector<64x128xf32>
    %363 = vector.extract_strided_slice %305 {offsets = [7, 0, 0], sizes = [1, 64, 128], strides = [1, 1, 1]} : vector<8x64x128xf32> to vector<1x64x128xf32>
    %364 = vector.shape_cast %363 : vector<1x64x128xf32> to vector<64x128xf32>
    %365 = arith.addf %362, %364 : vector<64x128xf32>
    %366 = vector.extract_strided_slice %316 {offsets = [7, 0, 0], sizes = [1, 64, 128], strides = [1, 1, 1]} : vector<8x64x128xf32> to vector<1x64x128xf32>
    %367 = vector.shape_cast %366 : vector<1x64x128xf32> to vector<64x128xf32>
    %368 = arith.mulf %365, %367 : vector<64x128xf32>
    %369 = vector.shape_cast %368 : vector<64x128xf32> to vector<1x64x128xf32>
    %370 = vector.extract_strided_slice %369 {offsets = [0, 0, 0], sizes = [1, 64, 64], strides = [1, 1, 1]} : vector<1x64x128xf32> to vector<1x64x64xf32>
    %cst_77 = arith.constant dense<0.000000e+00> : vector<1x64xf32>
    %371 = vector.multi_reduction <add>, %370, %cst_77 [2] : vector<1x64x64xf32> to vector<1x64xf32>
    %372 = vector.extract_strided_slice %369 {offsets = [0, 0, 64], sizes = [1, 64, 64], strides = [1, 1, 1]} : vector<1x64x128xf32> to vector<1x64x64xf32>
    %cst_78 = arith.constant dense<0.000000e+00> : vector<1x64xf32>
    %373 = vector.multi_reduction <add>, %372, %cst_78 [2] : vector<1x64x64xf32> to vector<1x64xf32>
    %374 = tpu.concatenate %371, %373 in 0 : vector<1x64xf32>, vector<1x64xf32> -> vector<2x64xf32>
    %375 = vector.extract_strided_slice %258 {offsets = [0, 7, 0], sizes = [2, 1, 64], strides = [1, 1, 1]} : vector<2x8x64xf32> to vector<2x1x64xf32>
    %376 = vector.shape_cast %375 : vector<2x1x64xf32> to vector<2x64xf32>
    %c1_79 = arith.constant 1 : index
    %c0_80 = arith.constant 0 : index
    %c0_81 = arith.constant 0 : index
    %377 = vector.load %arg10[%c1_79, %c0_80, %c0_81] : memref<2x1x64xf32, #tpu.memory_space<vmem>>, vector<1x1x64xf32>
    %378 = vector.shape_cast %377 : vector<1x1x64xf32> to vector<1x64xf32>
    %379 = vector.broadcast %378 : vector<1x64xf32> to vector<2x64xf32>
    %380 = arith.mulf %376, %379 : vector<2x64xf32>
    %381 = arith.addf %374, %380 : vector<2x64xf32>
    %382 = vector.extract_strided_slice %259 {offsets = [0, 7, 0], sizes = [2, 1, 64], strides = [1, 1, 1]} : vector<2x8x64xf32> to vector<2x1x64xf32>
    %383 = vector.shape_cast %382 : vector<2x1x64xf32> to vector<2x64xf32>
    %cst_82 = arith.constant 0.000000e+00 : f32
    %384 = vector.broadcast %cst_82 : f32 to vector<2x64xf32>
    %385 = arith.subf %384, %383 : vector<2x64xf32>
    %386 = math.exp %385 : vector<2x64xf32>
    %cst_83 = arith.constant 1.000000e+00 : f32
    %387 = vector.broadcast %cst_83 : f32 to vector<2x64xf32>
    %388 = arith.addf %387, %386 : vector<2x64xf32>
    %389 = tpu.reciprocal %388 {approx = true} : vector<2x64xf32> -> vector<2x64xf32>
    %390 = arith.mulf %383, %389 : vector<2x64xf32>
    %391 = arith.mulf %381, %390 : vector<2x64xf32>
    %c0_84 = arith.constant 0 : index
    %c0_85 = arith.constant 0 : index
    %392 = vector.load %arg12[%c0_84, %c0_85] : memref<64x3xf32, #tpu.memory_space<vmem>>, vector<64x3xf32>
    %cst_86 = arith.constant dense<0.000000e+00> : vector<2x3xf32>
    %393 = tpu.matmul %391, %392, %cst_86 {dimension_numbers = #tpu.dot_dimension_numbers<[1], [0], [0], [1], [0, 0, 1, 1], [], []>} : vector<2x64xf32>, vector<64x3xf32>, vector<2x3xf32> -> vector<2x3xf32>
    %c0_87 = arith.constant 0 : index
    %c0_88 = arith.constant 0 : index
    %394 = vector.load %arg13[%c0_87, %c0_88] : memref<1x3xf32, #tpu.memory_space<vmem>>, vector<1x3xf32>
    %395 = vector.broadcast %394 : vector<1x3xf32> to vector<2x3xf32>
    %396 = arith.addf %393, %395 : vector<2x3xf32>
    %c0_89 = arith.constant 0 : index
    %c0_90 = arith.constant 0 : index
    %397 = vector.load %arg14[%c0_89, %c0_90] : memref<2x3xf32, #tpu.memory_space<vmem>>, vector<2x3xf32>
    tpu.vector_store %arg14[%c0_89, %c0_90], %396 {strides = array<i32>} : memref<2x3xf32, #tpu.memory_space<vmem>>, vector<2x3xf32>,
    return
  }
}

</mosaic_0001>

<llo_original>
// kernel: model_forward.1
$region0: #{model_forward.1}
  #allocation0 [shape = 'u32[]', space=smem, size = 0x4, offset = 0x4, fixed_abs, tag = 'smem constant byte address 0x4 - core index']
  #allocation1 [shape = 'u32[144,128]{1,0:T(1,128)}', space=vmem, size = 0x12000, scoped, tag = 'internal scratch']
  %s0 = inlined_call_operand.vmem [shape: f32[2,8,4], index: 0, kind: input, shape index: {}]
  %s1 = inlined_call_operand.vmem [shape: f32[4,32], index: 1, kind: input, shape index: {}]
  %s2 = inlined_call_operand.vmem [shape: f32[1,32], index: 2, kind: input, shape index: {}]
  %s3 = inlined_call_operand.vmem [shape: f32[2,32,128], index: 3, kind: input, shape index: {}]
  %s4 = inlined_call_operand.vmem [shape: f32[2,2,64], index: 4, kind: input, shape index: {}]
  %s5 = inlined_call_operand.vmem [shape: f32[2,1,64], index: 5, kind: input, shape index: {}]
  %s6 = inlined_call_operand.vmem [shape: f32[2,64,128], index: 6, kind: input, shape index: {}]
  %s7 = inlined_call_operand.hbm [shape: f32[2,64,64], index: 7, kind: input, shape index: {}]
  %s8 = inlined_call_operand.vmem [shape: f32[2,1,64], index: 8, kind: input, shape index: {}]
  %s9 = inlined_call_operand.hbm [shape: f32[2,64,128], index: 9, kind: input, shape index: {}]
  %s10 = inlined_call_operand.vmem [shape: f32[2,1,64], index: 10, kind: input, shape index: {}]
  %s11 = inlined_call_operand.vmem [shape: f32[1,64,32], index: 11, kind: input, shape index: {}]
  %s12 = inlined_call_operand.vmem [shape: f32[64,3], index: 12, kind: input, shape index: {}]
  %s13 = inlined_call_operand.vmem [shape: f32[1,3], index: 13, kind: input, shape index: {}]
  %s14 = inlined_call_operand.hbm [shape: f32[2,3], index: 14, kind: output, shape index: {}]
  %s15 = sld [smem:[#allocation0]]
  $region74: #{model_forward.1} parent=0
    _
  %s17 = ssub.s32 1, %s15
  %s18 = scalar_select 0, %s17, %s15
  $region1: #{model_forward.1} parent=0
    #allocation2 [shape = 'u8[65536]{0}', space=vmem, size = 0x10000, scoped, tag = 'input window, operand 7, single buffered']
    #allocation3 [shape = 's32[1]{0}', space=sflag, size = 0x4, scoped, tag = 'scoped memory for model_forward.1']
    #allocation4 [shape = 's32[1]{0}', space=sflag, size = 0x4, scoped, tag = 'scoped memory for model_forward.1']
    #allocation5 [shape = 'u8[65536]{0}', space=vmem, size = 0x10000, scoped, tag = 'input window, operand 9, single buffered']
    #allocation6 [shape = 's32[1]{0}', space=sflag, size = 0x4, scoped, tag = 'scoped memory for model_forward.1']
    #allocation7 [shape = 'u8[1024]{0}', space=vmem, size = 0x400, scoped, tag = 'output window, operand 0, single buffered']
    %19 = vsyncpa [#allocation3], 0
    %20 = vsyncpa [#allocation6], 0
    %21 = vsyncpa [#allocation4], 0
    // Predicated region
    $region2: #{model_forward.1} parent=1 // pred_check
      _
    $region3: #{model_forward.1} parent=1 // pred_check_branch
      %23 = sbr.rel (0) target = $region5
    $region4: #{model_forward.1} parent=1 // pred_region
      _
    $region5: #{model_forward.1} parent=1 // pred_fallthru
      _
    // Predicated region
    $region6: #{model_forward.1} parent=1 // pred_check
      _
    $region7: #{model_forward.1} parent=1 // pred_check_branch
      %25 = sbr.rel (0) target = $region9
    $region8: #{model_forward.1} parent=1 // pred_region
      _
    $region9: #{model_forward.1} parent=1 // pred_fallthru
      _
    // Predicated region
    $region10: #{model_forward.1} parent=1 // pred_check
      _
    $region11: #{model_forward.1} parent=1 // pred_check_branch
      %27 = sbr.rel (0) target = $region13
    $region12: #{model_forward.1} parent=1 // pred_region
      _
    $region13: #{model_forward.1} parent=1 // pred_fallthru
      _
    // Predicated region
    $region14: #{model_forward.1} parent=1 // pred_check
      _
    $region15: #{model_forward.1} parent=1 // pred_check_branch
      %29 = sbr.rel (0) target = $region17
    $region16: #{model_forward.1} parent=1 // pred_region
      _
    $region17: #{model_forward.1} parent=1 // pred_fallthru
      _
    // Predicated region
    $region18: #{model_forward.1} parent=1 // pred_check
      _
    $region19: #{model_forward.1} parent=1 // pred_check_branch
      %31 = sbr.rel (0) target = $region21
    $region20: #{model_forward.1} parent=1 // pred_region
      _
    $region21: #{model_forward.1} parent=1 // pred_fallthru
      _
    // Predicated region
    $region22: #{model_forward.1} parent=1 // pred_check
      _
    $region23: #{model_forward.1} parent=1 // pred_check_branch
      %33 = sbr.rel (0) target = $region25
    $region24: #{model_forward.1} parent=1 // pred_region
      _
    $region25: #{model_forward.1} parent=1 // pred_fallthru
      _
    // Predicated region
    $region26: #{model_forward.1} parent=1 // pred_check
      _
    $region27: #{model_forward.1} parent=1 // pred_check_branch
      %35 = sbr.rel (0) target = $region29
    $region28: #{model_forward.1} parent=1 // pred_region
      _
    $region29: #{model_forward.1} parent=1 // pred_fallthru
      _
    // Predicated region
    $region30: #{model_forward.1} parent=1 // pred_check
      _
    $region31: #{model_forward.1} parent=1 // pred_check_branch
      %37 = sbr.rel (0) target = $region33
    $region32: #{model_forward.1} parent=1 // pred_region
      %s39 = ssub.s32 2048, 2048
      %40 = vsyncadd [#allocation3], %s39
      %s41 = sshll.u32 [#allocation2], 4
      %s42 = int_to_ptr.vmem [resolvable:$true] %s41
      %47 = dma.hbm_to_vmem [thread:$0]  %s7, 2048, %s42, [#allocation3], 128, 128, 8
    $region33: #{model_forward.1} parent=1 // pred_fallthru
      _
    // Predicated region
    $region34: #{model_forward.1} parent=1 // pred_check
      _
    $region35: #{model_forward.1} parent=1 // pred_check_branch
      %49 = sbr.rel (0) target = $region37
    $region36: #{model_forward.1} parent=1 // pred_region
      _
    $region37: #{model_forward.1} parent=1 // pred_fallthru
      _
    // Predicated region
    $region38: #{model_forward.1} parent=1 // pred_check
      _
    $region39: #{model_forward.1} parent=1 // pred_check_branch
      %51 = sbr.rel (0) target = $region41
    $region40: #{model_forward.1} parent=1 // pred_region
      %s53 = ssub.s32 2048, 2048
      %54 = vsyncadd [#allocation6], %s53
      %s55 = sshll.u32 [#allocation5], 4
      %s56 = int_to_ptr.vmem [resolvable:$true] %s55
      %61 = dma.hbm_to_vmem [thread:$0]  %s9, 2048, %s56, [#allocation6], 128, 128, 8
    $region41: #{model_forward.1} parent=1 // pred_fallthru
      _
    // Predicated region
    $region42: #{model_forward.1} parent=1 // pred_check
      _
    $region43: #{model_forward.1} parent=1 // pred_check_branch
      %63 = sbr.rel (0) target = $region45
    $region44: #{model_forward.1} parent=1 // pred_region
      _
    $region45: #{model_forward.1} parent=1 // pred_fallthru
      _
    // Predicated region
    $region46: #{model_forward.1} parent=1 // pred_check
      _
    $region47: #{model_forward.1} parent=1 // pred_check_branch
      %65 = sbr.rel (0) target = $region49
    $region48: #{model_forward.1} parent=1 // pred_region
      _
    $region49: #{model_forward.1} parent=1 // pred_fallthru
      _
    // Predicated region
    $region50: #{model_forward.1} parent=1 // pred_check
      _
    $region51: #{model_forward.1} parent=1 // pred_check_branch
      %67 = sbr.rel (0) target = $region53
    $region52: #{model_forward.1} parent=1 // pred_region
      _
    $region53: #{model_forward.1} parent=1 // pred_fallthru
      _
    // Predicated region
    $region54: #{model_forward.1} parent=1 // pred_check
      _
    $region55: #{model_forward.1} parent=1 // pred_check_branch
      %69 = sbr.rel (0) target = $region57
    $region56: #{model_forward.1} parent=1 // pred_region
      _
    $region57: #{model_forward.1} parent=1 // pred_fallthru
      _
    // Predicated region
    $region58: #{model_forward.1} parent=1 // pred_check
      _
    $region59: #{model_forward.1} parent=1 // pred_check_branch
      %71 = sbr.rel (0) target = $region61
    $region60: #{model_forward.1} parent=1 // pred_region
      %72 = dma.done [#allocation3], 2048
    $region61: #{model_forward.1} parent=1 // pred_fallthru
      _
    // Predicated region
    $region62: #{model_forward.1} parent=1 // pred_check
      _
    $region63: #{model_forward.1} parent=1 // pred_check_branch
      %74 = sbr.rel (0) target = $region65
    $region64: #{model_forward.1} parent=1 // pred_region
      %75 = dma.done [#allocation6], 2048
    $region65: #{model_forward.1} parent=1 // pred_fallthru
      _
    %v76 = vld [vmem:[%s0] sm:$0xff]
    %v77 = vld [vmem:[%s0 + $0x8] sm:$0xff]
    %v78 = vld [vmem:[%s1] sm:$0xf]
    %v79 = vld [vmem:[%s2] sm:$0x1]
    %v81 = vlaneseq
    %v82 = vshrl.u32 %v81, 7
    %v83 = vsub.s32 0, %v82
    %v84 = vrot.slane %v79, %v83
    %vm86 = vcmask 31744
    %v88 = vsel %vm86, %v76, 0
    %v91 = vsel %vm86, %v77, 0
    %vm93 = vcmask 1043456
    %v95 = vsel %vm93, %v78, 0
    %97 = vmatprep.subr.mxu0 0.0
    %98 = vmatpush1.msra.mxu0 %v95
    %99 = vmatprep.subr.mxu0 0.0
    %100 = vmatpush1.msra.mxu0 0.0
    %101 = vmatprep.subr.mxu0 0.0
    %102 = vmatpush1.msra.mxu0 0.0
    %103 = vmatprep.subr.mxu0 0.0
    %104 = vmatpush1.msra.mxu0 0.0
    %105 = vmatprep.subr.mxu0 0.0
    %106 = vmatpush1.msra.mxu0 0.0
    %107 = vmatprep.subr.mxu0 0.0
    %108 = vmatpush1.msra.mxu0 0.0
    %109 = vmatprep.subr.mxu0 0.0
    %110 = vmatpush1.msra.mxu0 0.0
    %111 = vmatprep.subr.mxu0 0.0
    %112 = vmatpush1.msra.mxu0 0.0
    %113 = vmatprep.subr.mxu0 0.0
    %114 = vmatpush1.msra.mxu0 0.0
    %115 = vmatprep.subr.mxu0 0.0
    %116 = vmatpush1.msra.mxu0 0.0
    %117 = vmatprep.subr.mxu0 0.0
    %118 = vmatpush1.msra.mxu0 0.0
    %119 = vmatprep.subr.mxu0 0.0
    %120 = vmatpush1.msra.mxu0 0.0
    %121 = vmatprep.subr.mxu0 0.0
    %122 = vmatpush1.msra.mxu0 0.0
    %123 = vmatprep.subr.mxu0 0.0
    %124 = vmatpush1.msra.mxu0 0.0
    %125 = vmatprep.subr.mxu0 0.0
    %126 = vmatpush1.msra.mxu0 0.0
    %127 = vmatprep.subr.mxu0 0.0
    %128 = vmatpush1.msra.mxu0 0.0
    %129 = vmatprep.subr.mxu0 0.0
    %130 = vmatpush1.msra.mxu0 0.0
    %131 = vmatprep.subr.mxu0 0.0
    %132 = vmatpush1.msra.mxu0 0.0
    %133 = vmatprep.subr.mxu0 0.0
    %134 = vmatpush1.msra.mxu0 0.0
    %135 = vmatprep.subr.mxu0 0.0
    %136 = vmatpush1.msra.mxu0 0.0
    %137 = vmatprep.subr.mxu0 0.0
    %138 = vmatpush1.msra.mxu0 0.0
    %139 = vmatprep.subr.mxu0 0.0
    %140 = vmatpush1.msra.mxu0 0.0
    %141 = vmatprep.subr.mxu0 0.0
    %142 = vmatpush1.msra.mxu0 0.0
    %143 = vmatprep.subr.mxu0 0.0
    %144 = vmatpush1.msra.mxu0 0.0
    %145 = vmatprep.subr.mxu0 0.0
    %146 = vmatpush1.msra.mxu0 0.0
    %147 = vmatprep.subr.mxu0 0.0
    %148 = vmatpush1.msra.mxu0 0.0
    %149 = vmatprep.subr.mxu0 0.0
    %150 = vmatpush1.msra.mxu0 0.0
    %151 = vmatprep.subr.mxu0 0.0
    %152 = vmatpush1.msra.mxu0 0.0
    %153 = vmatprep.subr.mxu0 0.0
    %154 = vmatpush1.msra.mxu0 0.0
    %155 = vmatprep.subr.mxu0 0.0
    %156 = vmatpush1.msra.mxu0 0.0
    %157 = vmatprep.subr.mxu0 0.0
    %158 = vmatpush1.msra.mxu0 0.0
    %159 = vmatprep.subr.mxu0 0.0
    %160 = vmatpush1.msra.mxu0 0.0
    %161 = vmatprep.mubr.f32.mxu0 0.0
    %162 = vmatmul.mubr.f32.gmra.mrb[0].mxu0 %v88
    %v163 = vpop.f32.mrb[0].mxu0
    %v164 = vadd.f32 %v84, %v163
    %v165 = vpop.f32.mrb[0].mxu0
    %166 = vmatprep.mubr.f32.mxu0 0.0
    %167 = vmatmul.mubr.f32.gmra.mrb[0].mxu0 %v91
    %v168 = vpop.f32.mrb[0].mxu0
    %v169 = vadd.f32 %v84, %v168
    %v170 = vpop.f32.mrb[0].mxu0
    %171 = vdwg.mxu0
    %v172 = vlaneseq
    %v173 = vshrl.u32 %v172, 7
    %v174 = vld [vmem:[%s3] sm:$0xff]
    %v175 = vld [vmem:[%s3 + $0x8] sm:$0xff]
    %v176 = vld [vmem:[%s3 + $0x10] sm:$0xff]
    %v177 = vld [vmem:[%s3 + $0x18] sm:$0xff]
    %vm178 = vcmask 261120
    %v180 = vsel %vm178, %v164, 0
    %v183 = vsel %vm178, %v169, 0
    %185 = vmatprep.subr.mxu0 0.0
    %186 = vmatpush1.msra.mxu0 %v174
    %187 = vmatprep.subr.mxu0 0.0
    %188 = vmatpush1.msra.mxu0 %v175
    %189 = vmatprep.subr.mxu0 0.0
    %190 = vmatpush1.msra.mxu0 %v176
    %191 = vmatprep.subr.mxu0 0.0
    %192 = vmatpush1.msra.mxu0 %v177
    %193 = vmatprep.subr.mxu0 0.0
    %194 = vmatpush1.msra.mxu0 0.0
    %195 = vmatprep.subr.mxu0 0.0
    %196 = vmatpush1.msra.mxu0 0.0
    %197 = vmatprep.subr.mxu0 0.0
    %198 = vmatpush1.msra.mxu0 0.0
    %199 = vmatprep.subr.mxu0 0.0
    %200 = vmatpush1.msra.mxu0 0.0
    %201 = vmatprep.subr.mxu0 0.0
    %202 = vmatpush1.msra.mxu0 0.0
    %203 = vmatprep.subr.mxu0 0.0
    %204 = vmatpush1.msra.mxu0 0.0
    %205 = vmatprep.subr.mxu0 0.0
    %206 = vmatpush1.msra.mxu0 0.0
    %207 = vmatprep.subr.mxu0 0.0
    %208 = vmatpush1.msra.mxu0 0.0
    %209 = vmatprep.subr.mxu0 0.0
    %210 = vmatpush1.msra.mxu0 0.0
    %211 = vmatprep.subr.mxu0 0.0
    %212 = vmatpush1.msra.mxu0 0.0
    %213 = vmatprep.subr.mxu0 0.0
    %214 = vmatpush1.msra.mxu0 0.0
    %215 = vmatprep.subr.mxu0 0.0
    %216 = vmatpush1.msra.mxu0 0.0
    %217 = vmatprep.subr.mxu0 0.0
    %218 = vmatpush1.msra.mxu0 0.0
    %219 = vmatprep.subr.mxu0 0.0
    %220 = vmatpush1.msra.mxu0 0.0
    %221 = vmatprep.subr.mxu0 0.0
    %222 = vmatpush1.msra.mxu0 0.0
    %223 = vmatprep.subr.mxu0 0.0
    %224 = vmatpush1.msra.mxu0 0.0
    %225 = vmatprep.subr.mxu0 0.0
    %226 = vmatpush1.msra.mxu0 0.0
    %227 = vmatprep.subr.mxu0 0.0
    %228 = vmatpush1.msra.mxu0 0.0
    %229 = vmatprep.subr.mxu0 0.0
    %230 = vmatpush1.msra.mxu0 0.0
    %231 = vmatprep.subr.mxu0 0.0
    %232 = vmatpush1.msra.mxu0 0.0
    %233 = vmatprep.subr.mxu0 0.0
    %234 = vmatpush1.msra.mxu0 0.0
    %235 = vmatprep.subr.mxu0 0.0
    %236 = vmatpush1.msra.mxu0 0.0
    %237 = vmatprep.subr.mxu0 0.0
    %238 = vmatpush1.msra.mxu0 0.0
    %239 = vmatprep.subr.mxu0 0.0
    %240 = vmatpush1.msra.mxu0 0.0
    %241 = vmatprep.subr.mxu0 0.0
    %242 = vmatpush1.msra.mxu0 0.0
    %243 = vmatprep.subr.mxu0 0.0
    %244 = vmatpush1.msra.mxu0 0.0
    %245 = vmatprep.subr.mxu0 0.0
    %246 = vmatpush1.msra.mxu0 0.0
    %247 = vmatprep.subr.mxu0 0.0
    %248 = vmatpush1.msra.mxu0 0.0
    %249 = vmatprep.mubr.f32.mxu0 0.0
    %250 = vmatmul.mubr.f32.gmra.mrb[0].mxu0 %v180
    %v251 = vpop.f32.mrb[0].mxu0
    %v252 = vadd.f32 0.0, %v251
    %v253 = vpop.f32.mrb[0].mxu0
    %254 = vmatprep.mubr.f32.mxu0 0.0
    %255 = vmatmul.mubr.f32.gmra.mrb[0].mxu0 %v183
    %v256 = vpop.f32.mrb[0].mxu0
    %v257 = vadd.f32 0.0, %v256
    %v258 = vpop.f32.mrb[0].mxu0
    %259 = vdwg.mxu0
    %v260 = vld [vmem:[%s4] sm:$0x3]
    %v261 = vlaneseq
    %v262 = vshrl.u32 %v261, 7
    %v263 = vsub.s32 1, %v262
    %v264 = vrot.slane %v260, %v263
    %v265 = vmul.f32 %v252, %v264
    %v266 = vmul.f32 %v257, %v264
    %v268 = vrot.slane %v257, 7
    %vm271 = vcmask 1040384
    %v272 = vrot.slane %v252, 7
    %v273 = vsel %vm271, %v272, %v268
    %v276 = vsel %vm271, %v268, %v272
    %vm277 = vcmp.ge.s32.totalorder %v173, 1
    %v278 = vsel %vm277, %v276, 0.0
    %v279 = vsel %vm277, %v273, 0.0
    %v280 = vlaneseq
    %v281 = vshrl.u32 %v280, 7
    %v282 = vsub.s32 0, %v281
    %v283 = vrot.slane %v260, %v282
    %v284 = vmul.f32 %v278, %v283
    %v285 = vmul.f32 %v279, %v283
    %v286 = vadd.f32 %v265, %v284
    %v287 = vadd.f32 %v266, %v285
    %v288 = vld [vmem:[%s5] sm:$0x1]
    %v290 = vlaneseq
    %v291 = vshrl.u32 %v290, 7
    %v292 = vsub.s32 0, %v291
    %v293 = vrot.slane %v288, %v292
    %v295 = vadd.f32 %v286, %v293
    %v296 = vadd.f32 %v287, %v293
    %v297 = vsub.f32 0.0, %v295
    %v298 = vsub.f32 0.0, %v296
    %v299 = vmul.f32 %v297, 1.442695
    %v300 = vpow.pop %v299
    %v301 = vmul.f32 %v298, 1.442695
    %v302 = vpow.pop %v301
    %v303 = vadd.f32 %v300, 1.0
    %v304 = vadd.f32 %v302, 1.0
    %v305 = vrcp.pop %v303
    %v306 = vrcp.pop %v304
    %v307 = vmul.f32 %v295, %v305
    %v308 = vmul.f32 %v296, %v306
    %v309 = vld [vmem:[%s6] sm:$0xff]
    %v310 = vld [vmem:[%s6 + $0x8] sm:$0xff]
    %v311 = vld [vmem:[%s6 + $0x10] sm:$0xff]
    %v312 = vld [vmem:[%s6 + $0x18] sm:$0xff]
    %v313 = vld [vmem:[%s6 + $0x20] sm:$0xff]
    %v314 = vld [vmem:[%s6 + $0x28] sm:$0xff]
    %v315 = vld [vmem:[%s6 + $0x30] sm:$0xff]
    %v316 = vld [vmem:[%s6 + $0x38] sm:$0xff]
    %vm317 = vcmask 523264
    %v319 = vsel %vm317, %v307, 0
    %v322 = vsel %vm317, %v308, 0
    %324 = vmatprep.subr.mxu0 0.0
    %325 = vmatpush1.msra.mxu0 %v309
    %326 = vmatprep.subr.mxu0 0.0
    %327 = vmatpush1.msra.mxu0 %v310
    %328 = vmatprep.subr.mxu0 0.0
    %329 = vmatpush1.msra.mxu0 %v311
    %330 = vmatprep.subr.mxu0 0.0
    %331 = vmatpush1.msra.mxu0 %v312
    %332 = vmatprep.subr.mxu0 0.0
    %333 = vmatpush1.msra.mxu0 %v313
    %334 = vmatprep.subr.mxu0 0.0
    %335 = vmatpush1.msra.mxu0 %v314
    %336 = vmatprep.subr.mxu0 0.0
    %337 = vmatpush1.msra.mxu0 %v315
    %338 = vmatprep.subr.mxu0 0.0
    %339 = vmatpush1.msra.mxu0 %v316
    %340 = vmatprep.subr.mxu0 0.0
    %341 = vmatpush1.msra.mxu0 0.0
    %342 = vmatprep.subr.mxu0 0.0
    %343 = vmatpush1.msra.mxu0 0.0
    %344 = vmatprep.subr.mxu0 0.0
    %345 = vmatpush1.msra.mxu0 0.0
    %346 = vmatprep.subr.mxu0 0.0
    %347 = vmatpush1.msra.mxu0 0.0
    %348 = vmatprep.subr.mxu0 0.0
    %349 = vmatpush1.msra.mxu0 0.0
    %350 = vmatprep.subr.mxu0 0.0
    %351 = vmatpush1.msra.mxu0 0.0
    %352 = vmatprep.subr.mxu0 0.0
    %353 = vmatpush1.msra.mxu0 0.0
    %354 = vmatprep.subr.mxu0 0.0
    %355 = vmatpush1.msra.mxu0 0.0
    %356 = vmatprep.subr.mxu0 0.0
    %357 = vmatpush1.msra.mxu0 0.0
    %358 = vmatprep.subr.mxu0 0.0
    %359 = vmatpush1.msra.mxu0 0.0
    %360 = vmatprep.subr.mxu0 0.0
    %361 = vmatpush1.msra.mxu0 0.0
    %362 = vmatprep.subr.mxu0 0.0
    %363 = vmatpush1.msra.mxu0 0.0
    %364 = vmatprep.subr.mxu0 0.0
    %365 = vmatpush1.msra.mxu0 0.0
    %366 = vmatprep.subr.mxu0 0.0
    %367 = vmatpush1.msra.mxu0 0.0
    %368 = vmatprep.subr.mxu0 0.0
    %369 = vmatpush1.msra.mxu0 0.0
    %370 = vmatprep.subr.mxu0 0.0
    %371 = vmatpush1.msra.mxu0 0.0
    %372 = vmatprep.subr.mxu0 0.0
    %373 = vmatpush1.msra.mxu0 0.0
    %374 = vmatprep.subr.mxu0 0.0
    %375 = vmatpush1.msra.mxu0 0.0
    %376 = vmatprep.subr.mxu0 0.0
    %377 = vmatpush1.msra.mxu0 0.0
    %378 = vmatprep.subr.mxu0 0.0
    %379 = vmatpush1.msra.mxu0 0.0
    %380 = vmatprep.subr.mxu0 0.0
    %381 = vmatpush1.msra.mxu0 0.0
    %382 = vmatprep.subr.mxu0 0.0
    %383 = vmatpush1.msra.mxu0 0.0
    %384 = vmatprep.subr.mxu0 0.0
    %385 = vmatpush1.msra.mxu0 0.0
    %386 = vmatprep.subr.mxu0 0.0
    %387 = vmatpush1.msra.mxu0 0.0
    %388 = vmatprep.mubr.f32.mxu0 0.0
    %389 = vmatmul.mubr.f32.gmra.mrb[0].mxu0 %v319
    %v390 = vpop.f32.mrb[0].mxu0
    %v391 = vadd.f32 0.0, %v390
    %v392 = vpop.f32.mrb[0].mxu0
    %393 = vmatprep.mubr.f32.mxu0 0.0
    %394 = vmatmul.mubr.f32.gmra.mrb[0].mxu0 %v322
    %v395 = vpop.f32.mrb[0].mxu0
    %v396 = vadd.f32 0.0, %v395
    %v397 = vpop.f32.mrb[0].mxu0
    %398 = vdwg.mxu0
    %v399 = vld [vmem:[#allocation2] sm:$0xff]
    %v400 = vld [vmem:[#allocation2 + $0x8] sm:$0xff]
    %v401 = vld [vmem:[#allocation2 + $0x10] sm:$0xff]
    %v402 = vld [vmem:[#allocation2 + $0x18] sm:$0xff]
    %v403 = vld [vmem:[#allocation2 + $0x20] sm:$0xff]
    %v404 = vld [vmem:[#allocation2 + $0x28] sm:$0xff]
    %v405 = vld [vmem:[#allocation2 + $0x30] sm:$0xff]
    %v406 = vld [vmem:[#allocation2 + $0x38] sm:$0xff]
    %v407 = vld [vmem:[%s8] sm:$0x1]
    %v409 = vlaneseq
    %v410 = vshrl.u32 %v409, 7
    %v411 = vsub.s32 0, %v410
    %v412 = vrot.slane %v407, %v411
    %414 = vmatprep.subr.mxu0 0.0
    %415 = vmatpush1.msra.mxu0 %v399
    %416 = vmatprep.subr.mxu0 0.0
    %417 = vmatpush1.msra.mxu0 %v400
    %418 = vmatprep.subr.mxu0 0.0
    %419 = vmatpush1.msra.mxu0 %v401
    %420 = vmatprep.subr.mxu0 0.0
    %421 = vmatpush1.msra.mxu0 %v402
    %422 = vmatprep.subr.mxu0 0.0
    %423 = vmatpush1.msra.mxu0 %v403
    %424 = vmatprep.subr.mxu0 0.0
    %425 = vmatpush1.msra.mxu0 %v404
    %426 = vmatprep.subr.mxu0 0.0
    %427 = vmatpush1.msra.mxu0 %v405
    %428 = vmatprep.subr.mxu0 0.0
    %429 = vmatpush1.msra.mxu0 %v406
    %430 = vmatprep.subr.mxu0 0.0
    %431 = vmatpush1.msra.mxu0 0.0
    %432 = vmatprep.subr.mxu0 0.0
    %433 = vmatpush1.msra.mxu0 0.0
    %434 = vmatprep.subr.mxu0 0.0
    %435 = vmatpush1.msra.mxu0 0.0
    %436 = vmatprep.subr.mxu0 0.0
    %437 = vmatpush1.msra.mxu0 0.0
    %438 = vmatprep.subr.mxu0 0.0
    %439 = vmatpush1.msra.mxu0 0.0
    %440 = vmatprep.subr.mxu0 0.0
    %441 = vmatpush1.msra.mxu0 0.0
    %442 = vmatprep.subr.mxu0 0.0
    %443 = vmatpush1.msra.mxu0 0.0
    %444 = vmatprep.subr.mxu0 0.0
    %445 = vmatpush1.msra.mxu0 0.0
    %446 = vmatprep.subr.mxu0 0.0
    %447 = vmatpush1.msra.mxu0 0.0
    %448 = vmatprep.subr.mxu0 0.0
    %449 = vmatpush1.msra.mxu0 0.0
    %450 = vmatprep.subr.mxu0 0.0
    %451 = vmatpush1.msra.mxu0 0.0
    %452 = vmatprep.subr.mxu0 0.0
    %453 = vmatpush1.msra.mxu0 0.0
    %454 = vmatprep.subr.mxu0 0.0
    %455 = vmatpush1.msra.mxu0 0.0
    %456 = vmatprep.subr.mxu0 0.0
    %457 = vmatpush1.msra.mxu0 0.0
    %458 = vmatprep.subr.mxu0 0.0
    %459 = vmatpush1.msra.mxu0 0.0
    %460 = vmatprep.subr.mxu0 0.0
    %461 = vmatpush1.msra.mxu0 0.0
    %462 = vmatprep.subr.mxu0 0.0
    %463 = vmatpush1.msra.mxu0 0.0
    %464 = vmatprep.subr.mxu0 0.0
    %465 = vmatpush1.msra.mxu0 0.0
    %466 = vmatprep.subr.mxu0 0.0
    %467 = vmatpush1.msra.mxu0 0.0
    %468 = vmatprep.subr.mxu0 0.0
    %469 = vmatpush1.msra.mxu0 0.0
    %470 = vmatprep.subr.mxu0 0.0
    %471 = vmatpush1.msra.mxu0 0.0
    %472 = vmatprep.subr.mxu0 0.0
    %473 = vmatpush1.msra.mxu0 0.0
    %474 = vmatprep.subr.mxu0 0.0
    %475 = vmatpush1.msra.mxu0 0.0
    %476 = vmatprep.subr.mxu0 0.0
    %477 = vmatpush1.msra.mxu0 0.0
    %478 = vmatprep.mubr.f32.mxu0 0.0
    %479 = vmatmul.mubr.f32.gmra.mrb[0].mxu0 %v319
    %v480 = vpop.f32.mrb[0].mxu0
    %v481 = vadd.f32 %v412, %v480
    %v482 = vpop.f32.mrb[0].mxu0
    %483 = vmatprep.mubr.f32.mxu0 0.0
    %484 = vmatmul.mubr.f32.gmra.mrb[0].mxu0 %v322
    %v485 = vpop.f32.mrb[0].mxu0
    %v486 = vadd.f32 %v412, %v485
    %v487 = vpop.f32.mrb[0].mxu0
    %488 = vdwg.mxu0
    %vm489 = vcmp.gt.f32.partialorder %v481, 20.0
    %vm490 = vcmp.gt.f32.partialorder %v486, 20.0
    %v491 = vmin.f32 %v481, 20.0
    %v492 = vmin.f32 %v486, 20.0
    %v493 = vmul.f32 %v491, 1.442695
    %v494 = vpow.pop %v493
    %v495 = vmul.f32 %v492, 1.442695
    %v496 = vpow.pop %v495
    %v497 = vadd.f32 %v494, 1.0
    %v498 = vlog2.pop %v497
    %v499 = vmul.f32 %v498, 0.6931472
    %v500 = vmul.f32 -0.5, %v494
    %v501 = vadd.f32 %v500, 1.0
    %v502 = vmul.f32 %v501, %v494
    %v503 = vand.u32 2147483647, %v494
    %vm504 = vcmp.lt.f32.partialorder %v503, 0.0004427343
    %v505 = vsel %vm504, %v502, %v499
    %v506 = vadd.f32 %v496, 1.0
    %v507 = vlog2.pop %v506
    %v508 = vmul.f32 %v507, 0.6931472
    %v509 = vmul.f32 -0.5, %v496
    %v510 = vadd.f32 %v509, 1.0
    %v511 = vmul.f32 %v510, %v496
    %v512 = vand.u32 2147483647, %v496
    %vm513 = vcmp.lt.f32.partialorder %v512, 0.0004427343
    %v514 = vsel %vm513, %v511, %v508
    %v515 = vsel %vm489, %v481, %v505
    %v516 = vsel %vm490, %v486, %v514
    %v517 = vmul.f32 %v515, %v307
    %v518 = vmul.f32 %v516, %v308
    %v519 = vld [vmem:[#allocation5] sm:$0xff]
    %v520 = vld [vmem:[#allocation5 + $0x8] sm:$0xff]
    %v521 = vld [vmem:[#allocation5 + $0x10] sm:$0xff]
    %v522 = vld [vmem:[#allocation5 + $0x18] sm:$0xff]
    %v523 = vld [vmem:[#allocation5 + $0x20] sm:$0xff]
    %v524 = vld [vmem:[#allocation5 + $0x28] sm:$0xff]
    %v525 = vld [vmem:[#allocation5 + $0x30] sm:$0xff]
    %v526 = vld [vmem:[#allocation5 + $0x38] sm:$0xff]
    %v527 = vlaneseq
    %v528 = vshrl.u32 %v527, 7
    %v529 = vsub.s32 0, %v528
    %v530 = vrot.slane %v515, %v529
    %532 = vbcast.lane.b32.xlu0 %v530, 256
    %v533 = vpop.permute.xlu0 %532
    %s535 = sor.u32 256, 8
    %536 = vbcast.lane.b32.xlu0 %v530, %s535
    %v537 = vpop.permute.xlu0 %536
    %s539 = sor.u32 256, 16
    %540 = vbcast.lane.b32.xlu0 %v530, %s539
    %v541 = vpop.permute.xlu0 %540
    %s543 = sor.u32 256, 24
    %544 = vbcast.lane.b32.xlu0 %v530, %s543
    %v545 = vpop.permute.xlu0 %544
    %s547 = sor.u32 256, 32
    %548 = vbcast.lane.b32.xlu0 %v530, %s547
    %v549 = vpop.permute.xlu0 %548
    %s551 = sor.u32 256, 40
    %552 = vbcast.lane.b32.xlu0 %v530, %s551
    %v553 = vpop.permute.xlu0 %552
    %s555 = sor.u32 256, 48
    %556 = vbcast.lane.b32.xlu0 %v530, %s555
    %v557 = vpop.permute.xlu0 %556
    %s559 = sor.u32 256, 56
    %560 = vbcast.lane.b32.xlu0 %v530, %s559
    %v561 = vpop.permute.xlu0 %560
    %v562 = vlaneseq
    %v563 = vshrl.u32 %v562, 7
    %v564 = vsub.s32 1, %v563
    %v565 = vrot.slane %v515, %v564
    %567 = vbcast.lane.b32.xlu0 %v565, 256
    %v568 = vpop.permute.xlu0 %567
    %s570 = sor.u32 256, 8
    %571 = vbcast.lane.b32.xlu0 %v565, %s570
    %v572 = vpop.permute.xlu0 %571
    %s574 = sor.u32 256, 16
    %575 = vbcast.lane.b32.xlu0 %v565, %s574
    %v576 = vpop.permute.xlu0 %575
    %s578 = sor.u32 256, 24
    %579 = vbcast.lane.b32.xlu0 %v565, %s578
    %v580 = vpop.permute.xlu0 %579
    %s582 = sor.u32 256, 32
    %583 = vbcast.lane.b32.xlu0 %v565, %s582
    %v584 = vpop.permute.xlu0 %583
    %s586 = sor.u32 256, 40
    %587 = vbcast.lane.b32.xlu0 %v565, %s586
    %v588 = vpop.permute.xlu0 %587
    %s590 = sor.u32 256, 48
    %591 = vbcast.lane.b32.xlu0 %v565, %s590
    %v592 = vpop.permute.xlu0 %591
    %s594 = sor.u32 256, 56
    %595 = vbcast.lane.b32.xlu0 %v565, %s594
    %v596 = vpop.permute.xlu0 %595
    %v597 = vlaneseq
    %v598 = vshrl.u32 %v597, 7
    %v599 = vsub.s32 2, %v598
    %v600 = vrot.slane %v515, %v599
    %602 = vbcast.lane.b32.xlu0 %v600, 256
    %v603 = vpop.permute.xlu0 %602
    %s605 = sor.u32 256, 8
    %606 = vbcast.lane.b32.xlu0 %v600, %s605
    %v607 = vpop.permute.xlu0 %606
    %s609 = sor.u32 256, 16
    %610 = vbcast.lane.b32.xlu0 %v600, %s609
    %v611 = vpop.permute.xlu0 %610
    %s613 = sor.u32 256, 24
    %614 = vbcast.lane.b32.xlu0 %v600, %s613
    %v615 = vpop.permute.xlu0 %614
    %s617 = sor.u32 256, 32
    %618 = vbcast.lane.b32.xlu0 %v600, %s617
    %v619 = vpop.permute.xlu0 %618
    %s621 = sor.u32 256, 40
    %622 = vbcast.lane.b32.xlu0 %v600, %s621
    %v623 = vpop.permute.xlu0 %622
    %s625 = sor.u32 256, 48
    %626 = vbcast.lane.b32.xlu0 %v600, %s625
    %v627 = vpop.permute.xlu0 %626
    %s629 = sor.u32 256, 56
    %630 = vbcast.lane.b32.xlu0 %v600, %s629
    %v631 = vpop.permute.xlu0 %630
    %v632 = vlaneseq
    %v633 = vshrl.u32 %v632, 7
    %v634 = vsub.s32 3, %v633
    %v635 = vrot.slane %v515, %v634
    %637 = vbcast.lane.b32.xlu0 %v635, 256
    %v638 = vpop.permute.xlu0 %637
    %s640 = sor.u32 256, 8
    %641 = vbcast.lane.b32.xlu0 %v635, %s640
    %v642 = vpop.permute.xlu0 %641
    %s644 = sor.u32 256, 16
    %645 = vbcast.lane.b32.xlu0 %v635, %s644
    %v646 = vpop.permute.xlu0 %645
    %s648 = sor.u32 256, 24
    %649 = vbcast.lane.b32.xlu0 %v635, %s648
    %v650 = vpop.permute.xlu0 %649
    %s652 = sor.u32 256, 32
    %653 = vbcast.lane.b32.xlu0 %v635, %s652
    %v654 = vpop.permute.xlu0 %653
    %s656 = sor.u32 256, 40
    %657 = vbcast.lane.b32.xlu0 %v635, %s656
    %v658 = vpop.permute.xlu0 %657
    %s660 = sor.u32 256, 48
    %661 = vbcast.lane.b32.xlu0 %v635, %s660
    %v662 = vpop.permute.xlu0 %661
    %s664 = sor.u32 256, 56
    %665 = vbcast.lane.b32.xlu0 %v635, %s664
    %v666 = vpop.permute.xlu0 %665
    %v667 = vlaneseq
    %v668 = vshrl.u32 %v667, 7
    %v669 = vsub.s32 4, %v668
    %v670 = vrot.slane %v515, %v669
    %672 = vbcast.lane.b32.xlu0 %v670, 256
    %v673 = vpop.permute.xlu0 %672
    %s675 = sor.u32 256, 8
    %676 = vbcast.lane.b32.xlu0 %v670, %s675
    %v677 = vpop.permute.xlu0 %676
    %s679 = sor.u32 256, 16
    %680 = vbcast.lane.b32.xlu0 %v670, %s679
    %v681 = vpop.permute.xlu0 %680
    %s683 = sor.u32 256, 24
    %684 = vbcast.lane.b32.xlu0 %v670, %s683
    %v685 = vpop.permute.xlu0 %684
    %s687 = sor.u32 256, 32
    %688 = vbcast.lane.b32.xlu0 %v670, %s687
    %v689 = vpop.permute.xlu0 %688
    %s691 = sor.u32 256, 40
    %692 = vbcast.lane.b32.xlu0 %v670, %s691
    %v693 = vpop.permute.xlu0 %692
    %s695 = sor.u32 256, 48
    %696 = vbcast.lane.b32.xlu0 %v670, %s695
    %v697 = vpop.permute.xlu0 %696
    %s699 = sor.u32 256, 56
    %700 = vbcast.lane.b32.xlu0 %v670, %s699
    %v701 = vpop.permute.xlu0 %700
    %v702 = vlaneseq
    %v703 = vshrl.u32 %v702, 7
    %v704 = vsub.s32 5, %v703
    %v705 = vrot.slane %v515, %v704
    %707 = vbcast.lane.b32.xlu0 %v705, 256
    %v708 = vpop.permute.xlu0 %707
    %s710 = sor.u32 256, 8
    %711 = vbcast.lane.b32.xlu0 %v705, %s710
    %v712 = vpop.permute.xlu0 %711
    %s714 = sor.u32 256, 16
    %715 = vbcast.lane.b32.xlu0 %v705, %s714
    %v716 = vpop.permute.xlu0 %715
    %s718 = sor.u32 256, 24
    %719 = vbcast.lane.b32.xlu0 %v705, %s718
    %v720 = vpop.permute.xlu0 %719
    %s722 = sor.u32 256, 32
    %723 = vbcast.lane.b32.xlu0 %v705, %s722
    %v724 = vpop.permute.xlu0 %723
    %s726 = sor.u32 256, 40
    %727 = vbcast.lane.b32.xlu0 %v705, %s726
    %v728 = vpop.permute.xlu0 %727
    %s730 = sor.u32 256, 48
    %731 = vbcast.lane.b32.xlu0 %v705, %s730
    %v732 = vpop.permute.xlu0 %731
    %s734 = sor.u32 256, 56
    %735 = vbcast.lane.b32.xlu0 %v705, %s734
    %v736 = vpop.permute.xlu0 %735
    %v737 = vlaneseq
    %v738 = vshrl.u32 %v737, 7
    %v739 = vsub.s32 6, %v738
    %v740 = vrot.slane %v515, %v739
    %742 = vbcast.lane.b32.xlu0 %v740, 256
    %v743 = vpop.permute.xlu0 %742
    %s745 = sor.u32 256, 8
    %746 = vbcast.lane.b32.xlu0 %v740, %s745
    %v747 = vpop.permute.xlu0 %746
    %s749 = sor.u32 256, 16
    %750 = vbcast.lane.b32.xlu0 %v740, %s749
    %v751 = vpop.permute.xlu0 %750
    %s753 = sor.u32 256, 24
    %754 = vbcast.lane.b32.xlu0 %v740, %s753
    %v755 = vpop.permute.xlu0 %754
    %s757 = sor.u32 256, 32
    %758 = vbcast.lane.b32.xlu0 %v740, %s757
    %v759 = vpop.permute.xlu0 %758
    %s761 = sor.u32 256, 40
    %762 = vbcast.lane.b32.xlu0 %v740, %s761
    %v763 = vpop.permute.xlu0 %762
    %s765 = sor.u32 256, 48
    %766 = vbcast.lane.b32.xlu0 %v740, %s765
    %v767 = vpop.permute.xlu0 %766
    %s769 = sor.u32 256, 56
    %770 = vbcast.lane.b32.xlu0 %v740, %s769
    %v771 = vpop.permute.xlu0 %770
    %v772 = vlaneseq
    %v773 = vshrl.u32 %v772, 7
    %v774 = vsub.s32 7, %v773
    %v775 = vrot.slane %v515, %v774
    %777 = vbcast.lane.b32.xlu0 %v775, 256
    %v778 = vpop.permute.xlu0 %777
    %s780 = sor.u32 256, 8
    %781 = vbcast.lane.b32.xlu0 %v775, %s780
    %v782 = vpop.permute.xlu0 %781
    %s784 = sor.u32 256, 16
    %785 = vbcast.lane.b32.xlu0 %v775, %s784
    %v786 = vpop.permute.xlu0 %785
    %s788 = sor.u32 256, 24
    %789 = vbcast.lane.b32.xlu0 %v775, %s788
    %v790 = vpop.permute.xlu0 %789
    %s792 = sor.u32 256, 32
    %793 = vbcast.lane.b32.xlu0 %v775, %s792
    %v794 = vpop.permute.xlu0 %793
    %s796 = sor.u32 256, 40
    %797 = vbcast.lane.b32.xlu0 %v775, %s796
    %v798 = vpop.permute.xlu0 %797
    %s800 = sor.u32 256, 48
    %801 = vbcast.lane.b32.xlu0 %v775, %s800
    %v802 = vpop.permute.xlu0 %801
    %s804 = sor.u32 256, 56
    %805 = vbcast.lane.b32.xlu0 %v775, %s804
    %v806 = vpop.permute.xlu0 %805
    %v807 = vlaneseq
    %v808 = vshrl.u32 %v807, 7
    %v809 = vsub.s32 0, %v808
    %v810 = vrot.slane %v516, %v809
    %812 = vbcast.lane.b32.xlu0 %v810, 256
    %v813 = vpop.permute.xlu0 %812
    %s815 = sor.u32 256, 8
    %816 = vbcast.lane.b32.xlu0 %v810, %s815
    %v817 = vpop.permute.xlu0 %816
    %s819 = sor.u32 256, 16
    %820 = vbcast.lane.b32.xlu0 %v810, %s819
    %v821 = vpop.permute.xlu0 %820
    %s823 = sor.u32 256, 24
    %824 = vbcast.lane.b32.xlu0 %v810, %s823
    %v825 = vpop.permute.xlu0 %824
    %s827 = sor.u32 256, 32
    %828 = vbcast.lane.b32.xlu0 %v810, %s827
    %v829 = vpop.permute.xlu0 %828
    %s831 = sor.u32 256, 40
    %832 = vbcast.lane.b32.xlu0 %v810, %s831
    %v833 = vpop.permute.xlu0 %832
    %s835 = sor.u32 256, 48
    %836 = vbcast.lane.b32.xlu0 %v810, %s835
    %v837 = vpop.permute.xlu0 %836
    %s839 = sor.u32 256, 56
    %840 = vbcast.lane.b32.xlu0 %v810, %s839
    %v841 = vpop.permute.xlu0 %840
    %v842 = vlaneseq
    %v843 = vshrl.u32 %v842, 7
    %v844 = vsub.s32 1, %v843
    %v845 = vrot.slane %v516, %v844
    %847 = vbcast.lane.b32.xlu0 %v845, 256
    %v848 = vpop.permute.xlu0 %847
    %s850 = sor.u32 256, 8
    %851 = vbcast.lane.b32.xlu0 %v845, %s850
    %v852 = vpop.permute.xlu0 %851
    %s854 = sor.u32 256, 16
    %855 = vbcast.lane.b32.xlu0 %v845, %s854
    %v856 = vpop.permute.xlu0 %855
    %s858 = sor.u32 256, 24
    %859 = vbcast.lane.b32.xlu0 %v845, %s858
    %v860 = vpop.permute.xlu0 %859
    %s862 = sor.u32 256, 32
    %863 = vbcast.lane.b32.xlu0 %v845, %s862
    %v864 = vpop.permute.xlu0 %863
    %s866 = sor.u32 256, 40
    %867 = vbcast.lane.b32.xlu0 %v845, %s866
    %v868 = vpop.permute.xlu0 %867
    %s870 = sor.u32 256, 48
    %871 = vbcast.lane.b32.xlu0 %v845, %s870
    %v872 = vpop.permute.xlu0 %871
    %s874 = sor.u32 256, 56
    %875 = vbcast.lane.b32.xlu0 %v845, %s874
    %v876 = vpop.permute.xlu0 %875
    %v877 = vlaneseq
    %v878 = vshrl.u32 %v877, 7
    %v879 = vsub.s32 2, %v878
    %v880 = vrot.slane %v516, %v879
    %882 = vbcast.lane.b32.xlu0 %v880, 256
    %v883 = vpop.permute.xlu0 %882
    %s885 = sor.u32 256, 8
    %886 = vbcast.lane.b32.xlu0 %v880, %s885
    %v887 = vpop.permute.xlu0 %886
    %s889 = sor.u32 256, 16
    %890 = vbcast.lane.b32.xlu0 %v880, %s889
    %v891 = vpop.permute.xlu0 %890
    %s893 = sor.u32 256, 24
    %894 = vbcast.lane.b32.xlu0 %v880, %s893
    %v895 = vpop.permute.xlu0 %894
    %s897 = sor.u32 256, 32
    %898 = vbcast.lane.b32.xlu0 %v880, %s897
    %v899 = vpop.permute.xlu0 %898
    %s901 = sor.u32 256, 40
    %902 = vbcast.lane.b32.xlu0 %v880, %s901
    %v903 = vpop.permute.xlu0 %902
    %s905 = sor.u32 256, 48
    %906 = vbcast.lane.b32.xlu0 %v880, %s905
    %v907 = vpop.permute.xlu0 %906
    %s909 = sor.u32 256, 56
    %910 = vbcast.lane.b32.xlu0 %v880, %s909
    %v911 = vpop.permute.xlu0 %910
    %v912 = vlaneseq
    %v913 = vshrl.u32 %v912, 7
    %v914 = vsub.s32 3, %v913
    %v915 = vrot.slane %v516, %v914
    %917 = vbcast.lane.b32.xlu0 %v915, 256
    %v918 = vpop.permute.xlu0 %917
    %s920 = sor.u32 256, 8
    %921 = vbcast.lane.b32.xlu0 %v915, %s920
    %v922 = vpop.permute.xlu0 %921
    %s924 = sor.u32 256, 16
    %925 = vbcast.lane.b32.xlu0 %v915, %s924
    %v926 = vpop.permute.xlu0 %925
    %s928 = sor.u32 256, 24
    %929 = vbcast.lane.b32.xlu0 %v915, %s928
    %v930 = vpop.permute.xlu0 %929
    %s932 = sor.u32 256, 32
    %933 = vbcast.lane.b32.xlu0 %v915, %s932
    %v934 = vpop.permute.xlu0 %933
    %s936 = sor.u32 256, 40
    %937 = vbcast.lane.b32.xlu0 %v915, %s936
    %v938 = vpop.permute.xlu0 %937
    %s940 = sor.u32 256, 48
    %941 = vbcast.lane.b32.xlu0 %v915, %s940
    %v942 = vpop.permute.xlu0 %941
    %s944 = sor.u32 256, 56
    %945 = vbcast.lane.b32.xlu0 %v915, %s944
    %v946 = vpop.permute.xlu0 %945
    %v947 = vlaneseq
    %v948 = vshrl.u32 %v947, 7
    %v949 = vsub.s32 4, %v948
    %v950 = vrot.slane %v516, %v949
    %952 = vbcast.lane.b32.xlu0 %v950, 256
    %v953 = vpop.permute.xlu0 %952
    %s955 = sor.u32 256, 8
    %956 = vbcast.lane.b32.xlu0 %v950, %s955
    %v957 = vpop.permute.xlu0 %956
    %s959 = sor.u32 256, 16
    %960 = vbcast.lane.b32.xlu0 %v950, %s959
    %v961 = vpop.permute.xlu0 %960
    %s963 = sor.u32 256, 24
    %964 = vbcast.lane.b32.xlu0 %v950, %s963
    %v965 = vpop.permute.xlu0 %964
    %s967 = sor.u32 256, 32
    %968 = vbcast.lane.b32.xlu0 %v950, %s967
    %v969 = vpop.permute.xlu0 %968
    %s971 = sor.u32 256, 40
    %972 = vbcast.lane.b32.xlu0 %v950, %s971
    %v973 = vpop.permute.xlu0 %972
    %s975 = sor.u32 256, 48
    %976 = vbcast.lane.b32.xlu0 %v950, %s975
    %v977 = vpop.permute.xlu0 %976
    %s979 = sor.u32 256, 56
    %980 = vbcast.lane.b32.xlu0 %v950, %s979
    %v981 = vpop.permute.xlu0 %980
    %v982 = vlaneseq
    %v983 = vshrl.u32 %v982, 7
    %v984 = vsub.s32 5, %v983
    %v985 = vrot.slane %v516, %v984
    %987 = vbcast.lane.b32.xlu0 %v985, 256
    %v988 = vpop.permute.xlu0 %987
    %s990 = sor.u32 256, 8
    %991 = vbcast.lane.b32.xlu0 %v985, %s990
    %v992 = vpop.permute.xlu0 %991
    %s994 = sor.u32 256, 16
    %995 = vbcast.lane.b32.xlu0 %v985, %s994
    %v996 = vpop.permute.xlu0 %995
    %s998 = sor.u32 256, 24
    %999 = vbcast.lane.b32.xlu0 %v985, %s998
    %v1000 = vpop.permute.xlu0 %999
    %s1002 = sor.u32 256, 32
    %1003 = vbcast.lane.b32.xlu0 %v985, %s1002
    %v1004 = vpop.permute.xlu0 %1003
    %s1006 = sor.u32 256, 40
    %1007 = vbcast.lane.b32.xlu0 %v985, %s1006
    %v1008 = vpop.permute.xlu0 %1007
    %s1010 = sor.u32 256, 48
    %1011 = vbcast.lane.b32.xlu0 %v985, %s1010
    %v1012 = vpop.permute.xlu0 %1011
    %s1014 = sor.u32 256, 56
    %1015 = vbcast.lane.b32.xlu0 %v985, %s1014
    %v1016 = vpop.permute.xlu0 %1015
    %v1017 = vlaneseq
    %v1018 = vshrl.u32 %v1017, 7
    %v1019 = vsub.s32 6, %v1018
    %v1020 = vrot.slane %v516, %v1019
    %1022 = vbcast.lane.b32.xlu0 %v1020, 256
    %v1023 = vpop.permute.xlu0 %1022
    %s1025 = sor.u32 256, 8
    %1026 = vbcast.lane.b32.xlu0 %v1020, %s1025
    %v1027 = vpop.permute.xlu0 %1026
    %s1029 = sor.u32 256, 16
    %1030 = vbcast.lane.b32.xlu0 %v1020, %s1029
    %v1031 = vpop.permute.xlu0 %1030
    %s1033 = sor.u32 256, 24
    %1034 = vbcast.lane.b32.xlu0 %v1020, %s1033
    %v1035 = vpop.permute.xlu0 %1034
    %s1037 = sor.u32 256, 32
    %1038 = vbcast.lane.b32.xlu0 %v1020, %s1037
    %v1039 = vpop.permute.xlu0 %1038
    %s1041 = sor.u32 256, 40
    %1042 = vbcast.lane.b32.xlu0 %v1020, %s1041
    %v1043 = vpop.permute.xlu0 %1042
    %s1045 = sor.u32 256, 48
    %1046 = vbcast.lane.b32.xlu0 %v1020, %s1045
    %v1047 = vpop.permute.xlu0 %1046
    %s1049 = sor.u32 256, 56
    %1050 = vbcast.lane.b32.xlu0 %v1020, %s1049
    %v1051 = vpop.permute.xlu0 %1050
    %v1052 = vlaneseq
    %v1053 = vshrl.u32 %v1052, 7
    %v1054 = vsub.s32 7, %v1053
    %v1055 = vrot.slane %v516, %v1054
    %1057 = vbcast.lane.b32.xlu0 %v1055, 256
    %v1058 = vpop.permute.xlu0 %1057
    %s1060 = sor.u32 256, 8
    %1061 = vbcast.lane.b32.xlu0 %v1055, %s1060
    %v1062 = vpop.permute.xlu0 %1061
    %s1064 = sor.u32 256, 16
    %1065 = vbcast.lane.b32.xlu0 %v1055, %s1064
    %v1066 = vpop.permute.xlu0 %1065
    %s1068 = sor.u32 256, 24
    %1069 = vbcast.lane.b32.xlu0 %v1055, %s1068
    %v1070 = vpop.permute.xlu0 %1069
    %s1072 = sor.u32 256, 32
    %1073 = vbcast.lane.b32.xlu0 %v1055, %s1072
    %v1074 = vpop.permute.xlu0 %1073
    %s1076 = sor.u32 256, 40
    %1077 = vbcast.lane.b32.xlu0 %v1055, %s1076
    %v1078 = vpop.permute.xlu0 %1077
    %s1080 = sor.u32 256, 48
    %1081 = vbcast.lane.b32.xlu0 %v1055, %s1080
    %v1082 = vpop.permute.xlu0 %1081
    %s1084 = sor.u32 256, 56
    %1085 = vbcast.lane.b32.xlu0 %v1055, %s1084
    %v1086 = vpop.permute.xlu0 %1085
    %v1087 = vsel %vm317, %v533, %v813
    %v1088 = vsel %vm317, %v537, %v817
    %v1089 = vsel %vm317, %v541, %v821
    %v1090 = vsel %vm317, %v545, %v825
    %v1091 = vsel %vm317, %v549, %v829
    %v1092 = vsel %vm317, %v553, %v833
    %v1093 = vsel %vm317, %v557, %v837
    %v1094 = vsel %vm317, %v561, %v841
    %v1095 = vsel %vm317, %v568, %v848
    %v1096 = vsel %vm317, %v572, %v852
    %v1097 = vsel %vm317, %v576, %v856
    %v1098 = vsel %vm317, %v580, %v860
    %v1099 = vsel %vm317, %v584, %v864
    %v1100 = vsel %vm317, %v588, %v868
    %v1101 = vsel %vm317, %v592, %v872
    %v1102 = vsel %vm317, %v596, %v876
    %v1103 = vsel %vm317, %v603, %v883
    %v1104 = vsel %vm317, %v607, %v887
    %v1105 = vsel %vm317, %v611, %v891
    %v1106 = vsel %vm317, %v615, %v895
    %v1107 = vsel %vm317, %v619, %v899
    %v1108 = vsel %vm317, %v623, %v903
    %v1109 = vsel %vm317, %v627, %v907
    %v1110 = vsel %vm317, %v631, %v911
    %v1111 = vsel %vm317, %v638, %v918
    %v1112 = vsel %vm317, %v642, %v922
    %v1113 = vsel %vm317, %v646, %v926
    %v1114 = vsel %vm317, %v650, %v930
    %v1115 = vsel %vm317, %v654, %v934
    %v1116 = vsel %vm317, %v658, %v938
    %v1117 = vsel %vm317, %v662, %v942
    %v1118 = vsel %vm317, %v666, %v946
    %v1119 = vsel %vm317, %v673, %v953
    %v1120 = vsel %vm317, %v677, %v957
    %v1121 = vsel %vm317, %v681, %v961
    %v1122 = vsel %vm317, %v685, %v965
    %v1123 = vsel %vm317, %v689, %v969
    %v1124 = vsel %vm317, %v693, %v973
    %v1125 = vsel %vm317, %v697, %v977
    %v1126 = vsel %vm317, %v701, %v981
    %v1127 = vsel %vm317, %v708, %v988
    %v1128 = vsel %vm317, %v712, %v992
    %v1129 = vsel %vm317, %v716, %v996
    %v1130 = vsel %vm317, %v720, %v1000
    %v1131 = vsel %vm317, %v724, %v1004
    %v1132 = vsel %vm317, %v728, %v1008
    %v1133 = vsel %vm317, %v732, %v1012
    %v1134 = vsel %vm317, %v736, %v1016
    %v1135 = vsel %vm317, %v743, %v1023
    %v1136 = vsel %vm317, %v747, %v1027
    %v1137 = vsel %vm317, %v751, %v1031
    %v1138 = vsel %vm317, %v755, %v1035
    %v1139 = vsel %vm317, %v759, %v1039
    %v1140 = vsel %vm317, %v763, %v1043
    %v1141 = vsel %vm317, %v767, %v1047
    %v1142 = vsel %vm317, %v771, %v1051
    %v1143 = vsel %vm317, %v778, %v1058
    %v1144 = vsel %vm317, %v782, %v1062
    %v1145 = vsel %vm317, %v786, %v1066
    %v1146 = vsel %vm317, %v790, %v1070
    %v1147 = vsel %vm317, %v794, %v1074
    %v1148 = vsel %vm317, %v798, %v1078
    %v1149 = vsel %vm317, %v802, %v1082
    %v1150 = vsel %vm317, %v806, %v1086
    %v1151 = vmul.f32 %v1087, %v519
    %v1152 = vmul.f32 %v1088, %v520
    %v1153 = vmul.f32 %v1089, %v521
    %v1154 = vmul.f32 %v1090, %v522
    %v1155 = vmul.f32 %v1091, %v523
    %v1156 = vmul.f32 %v1092, %v524
    %v1157 = vmul.f32 %v1093, %v525
    %v1158 = vmul.f32 %v1094, %v526
    %v1159 = vmul.f32 %v1095, %v519
    %v1160 = vmul.f32 %v1096, %v520
    %v1161 = vmul.f32 %v1097, %v521
    %v1162 = vmul.f32 %v1098, %v522
    %v1163 = vmul.f32 %v1099, %v523
    %v1164 = vmul.f32 %v1100, %v524
    %v1165 = vmul.f32 %v1101, %v525
    %v1166 = vmul.f32 %v1102, %v526
    %v1167 = vmul.f32 %v1103, %v519
    %v1168 = vmul.f32 %v1104, %v520
    %v1169 = vmul.f32 %v1105, %v521
    %v1170 = vmul.f32 %v1106, %v522
    %v1171 = vmul.f32 %v1107, %v523
    %v1172 = vmul.f32 %v1108, %v524
    %v1173 = vmul.f32 %v1109, %v525
    %v1174 = vmul.f32 %v1110, %v526
    %v1175 = vmul.f32 %v1111, %v519
    %v1176 = vmul.f32 %v1112, %v520
    %v1177 = vmul.f32 %v1113, %v521
    %v1178 = vmul.f32 %v1114, %v522
    %v1179 = vmul.f32 %v1115, %v523
    %v1180 = vmul.f32 %v1116, %v524
    %v1181 = vmul.f32 %v1117, %v525
    %v1182 = vmul.f32 %v1118, %v526
    %v1183 = vmul.f32 %v1119, %v519
    %v1184 = vmul.f32 %v1120, %v520
    %v1185 = vmul.f32 %v1121, %v521
    %v1186 = vmul.f32 %v1122, %v522
    %v1187 = vmul.f32 %v1123, %v523
    %v1188 = vmul.f32 %v1124, %v524
    %v1189 = vmul.f32 %v1125, %v525
    %v1190 = vmul.f32 %v1126, %v526
    %v1191 = vmul.f32 %v1127, %v519
    %v1192 = vmul.f32 %v1128, %v520
    %v1193 = vmul.f32 %v1129, %v521
    %v1194 = vmul.f32 %v1130, %v522
    %v1195 = vmul.f32 %v1131, %v523
    %v1196 = vmul.f32 %v1132, %v524
    %v1197 = vmul.f32 %v1133, %v525
    %v1198 = vmul.f32 %v1134, %v526
    %v1199 = vmul.f32 %v1135, %v519
    %v1200 = vmul.f32 %v1136, %v520
    %v1201 = vmul.f32 %v1137, %v521
    %v1202 = vmul.f32 %v1138, %v522
    %v1203 = vmul.f32 %v1139, %v523
    %v1204 = vmul.f32 %v1140, %v524
    %v1205 = vmul.f32 %v1141, %v525
    %v1206 = vmul.f32 %v1142, %v526
    %v1207 = vmul.f32 %v1143, %v519
    %v1208 = vmul.f32 %v1144, %v520
    %v1209 = vmul.f32 %v1145, %v521
    %v1210 = vmul.f32 %v1146, %v522
    %v1211 = vmul.f32 %v1147, %v523
    %v1212 = vmul.f32 %v1148, %v524
    %v1213 = vmul.f32 %v1149, %v525
    %v1214 = vmul.f32 %v1150, %v526
    %v1215 = vmul.f32 %v1151, 1.442695
    %v1216 = vpow.pop %v1215
    %v1217 = vmul.f32 %v1152, 1.442695
    %v1218 = vpow.pop %v1217
    %v1219 = vmul.f32 %v1153, 1.442695
    %v1220 = vpow.pop %v1219
    %v1221 = vmul.f32 %v1154, 1.442695
    %v1222 = vpow.pop %v1221
    %v1223 = vmul.f32 %v1155, 1.442695
    %v1224 = vpow.pop %v1223
    %v1225 = vmul.f32 %v1156, 1.442695
    %v1226 = vpow.pop %v1225
    %v1227 = vmul.f32 %v1157, 1.442695
    %v1228 = vpow.pop %v1227
    %v1229 = vmul.f32 %v1158, 1.442695
    %v1230 = vpow.pop %v1229
    %v1231 = vmul.f32 %v1159, 1.442695
    %v1232 = vpow.pop %v1231
    %v1233 = vmul.f32 %v1160, 1.442695
    %v1234 = vpow.pop %v1233
    %v1235 = vmul.f32 %v1161, 1.442695
    %v1236 = vpow.pop %v1235
    %v1237 = vmul.f32 %v1162, 1.442695
    %v1238 = vpow.pop %v1237
    %v1239 = vmul.f32 %v1163, 1.442695
    %v1240 = vpow.pop %v1239
    %v1241 = vmul.f32 %v1164, 1.442695
    %v1242 = vpow.pop %v1241
    %v1243 = vmul.f32 %v1165, 1.442695
    %v1244 = vpow.pop %v1243
    %v1245 = vmul.f32 %v1166, 1.442695
    %v1246 = vpow.pop %v1245
    %v1247 = vmul.f32 %v1167, 1.442695
    %v1248 = vpow.pop %v1247
    %v1249 = vmul.f32 %v1168, 1.442695
    %v1250 = vpow.pop %v1249
    %v1251 = vmul.f32 %v1169, 1.442695
    %v1252 = vpow.pop %v1251
    %v1253 = vmul.f32 %v1170, 1.442695
    %v1254 = vpow.pop %v1253
    %v1255 = vmul.f32 %v1171, 1.442695
    %v1256 = vpow.pop %v1255
    %v1257 = vmul.f32 %v1172, 1.442695
    %v1258 = vpow.pop %v1257
    %v1259 = vmul.f32 %v1173, 1.442695
    %v1260 = vpow.pop %v1259
    %v1261 = vmul.f32 %v1174, 1.442695
    %v1262 = vpow.pop %v1261
    %v1263 = vmul.f32 %v1175, 1.442695
    %v1264 = vpow.pop %v1263
    %v1265 = vmul.f32 %v1176, 1.442695
    %v1266 = vpow.pop %v1265
    %v1267 = vmul.f32 %v1177, 1.442695
    %v1268 = vpow.pop %v1267
    %v1269 = vmul.f32 %v1178, 1.442695
    %v1270 = vpow.pop %v1269
    %v1271 = vmul.f32 %v1179, 1.442695
    %v1272 = vpow.pop %v1271
    %v1273 = vmul.f32 %v1180, 1.442695
    %v1274 = vpow.pop %v1273
    %v1275 = vmul.f32 %v1181, 1.442695
    %v1276 = vpow.pop %v1275
    %v1277 = vmul.f32 %v1182, 1.442695
    %v1278 = vpow.pop %v1277
    %v1279 = vmul.f32 %v1183, 1.442695
    %v1280 = vpow.pop %v1279
    %v1281 = vmul.f32 %v1184, 1.442695
    %v1282 = vpow.pop %v1281
    %v1283 = vmul.f32 %v1185, 1.442695
    %v1284 = vpow.pop %v1283
    %v1285 = vmul.f32 %v1186, 1.442695
    %v1286 = vpow.pop %v1285
    %v1287 = vmul.f32 %v1187, 1.442695
    %v1288 = vpow.pop %v1287
    %v1289 = vmul.f32 %v1188, 1.442695
    %v1290 = vpow.pop %v1289
    %v1291 = vmul.f32 %v1189, 1.442695
    %v1292 = vpow.pop %v1291
    %v1293 = vmul.f32 %v1190, 1.442695
    %v1294 = vpow.pop %v1293
    %v1295 = vmul.f32 %v1191, 1.442695
    %v1296 = vpow.pop %v1295
    %v1297 = vmul.f32 %v1192, 1.442695
    %v1298 = vpow.pop %v1297
    %v1299 = vmul.f32 %v1193, 1.442695
    %v1300 = vpow.pop %v1299
    %v1301 = vmul.f32 %v1194, 1.442695
    %v1302 = vpow.pop %v1301
    %v1303 = vmul.f32 %v1195, 1.442695
    %v1304 = vpow.pop %v1303
    %v1305 = vmul.f32 %v1196, 1.442695
    %v1306 = vpow.pop %v1305
    %v1307 = vmul.f32 %v1197, 1.442695
    %v1308 = vpow.pop %v1307
    %v1309 = vmul.f32 %v1198, 1.442695
    %v1310 = vpow.pop %v1309
    %v1311 = vmul.f32 %v1199, 1.442695
    %v1312 = vpow.pop %v1311
    %v1313 = vmul.f32 %v1200, 1.442695
    %v1314 = vpow.pop %v1313
    %v1315 = vmul.f32 %v1201, 1.442695
    %v1316 = vpow.pop %v1315
    %v1317 = vmul.f32 %v1202, 1.442695
    %v1318 = vpow.pop %v1317
    %v1319 = vmul.f32 %v1203, 1.442695
    %v1320 = vpow.pop %v1319
    %v1321 = vmul.f32 %v1204, 1.442695
    %v1322 = vpow.pop %v1321
    %v1323 = vmul.f32 %v1205, 1.442695
    %v1324 = vpow.pop %v1323
    %v1325 = vmul.f32 %v1206, 1.442695
    %v1326 = vpow.pop %v1325
    %v1327 = vmul.f32 %v1207, 1.442695
    %v1328 = vpow.pop %v1327
    %v1329 = vmul.f32 %v1208, 1.442695
    %v1330 = vpow.pop %v1329
    %v1331 = vmul.f32 %v1209, 1.442695
    %v1332 = vpow.pop %v1331
    %v1333 = vmul.f32 %v1210, 1.442695
    %v1334 = vpow.pop %v1333
    %v1335 = vmul.f32 %v1211, 1.442695
    %v1336 = vpow.pop %v1335
    %v1337 = vmul.f32 %v1212, 1.442695
    %v1338 = vpow.pop %v1337
    %v1339 = vmul.f32 %v1213, 1.442695
    %v1340 = vpow.pop %v1339
    %v1341 = vmul.f32 %v1214, 1.442695
    %v1342 = vpow.pop %v1341
    %v1343 = vlaneseq
    %v1344 = vshrl.u32 %v1343, 7
    %v1345 = vsub.s32 0, %v1344
    %v1346 = vrot.slane %v517, %v1345
    %1348 = vbcast.lane.b32.xlu0 %v1346, 256
    %v1349 = vpop.permute.xlu0 %1348
    %s1351 = sor.u32 256, 8
    %1352 = vbcast.lane.b32.xlu0 %v1346, %s1351
    %v1353 = vpop.permute.xlu0 %1352
    %s1355 = sor.u32 256, 16
    %1356 = vbcast.lane.b32.xlu0 %v1346, %s1355
    %v1357 = vpop.permute.xlu0 %1356
    %s1359 = sor.u32 256, 24
    %1360 = vbcast.lane.b32.xlu0 %v1346, %s1359
    %v1361 = vpop.permute.xlu0 %1360
    %s1363 = sor.u32 256, 32
    %1364 = vbcast.lane.b32.xlu0 %v1346, %s1363
    %v1365 = vpop.permute.xlu0 %1364
    %s1367 = sor.u32 256, 40
    %1368 = vbcast.lane.b32.xlu0 %v1346, %s1367
    %v1369 = vpop.permute.xlu0 %1368
    %s1371 = sor.u32 256, 48
    %1372 = vbcast.lane.b32.xlu0 %v1346, %s1371
    %v1373 = vpop.permute.xlu0 %1372
    %s1375 = sor.u32 256, 56
    %1376 = vbcast.lane.b32.xlu0 %v1346, %s1375
    %v1377 = vpop.permute.xlu0 %1376
    %v1378 = vlaneseq
    %v1379 = vshrl.u32 %v1378, 7
    %v1380 = vsub.s32 1, %v1379
    %v1381 = vrot.slane %v517, %v1380
    %1383 = vbcast.lane.b32.xlu0 %v1381, 256
    %v1384 = vpop.permute.xlu0 %1383
    %s1386 = sor.u32 256, 8
    %1387 = vbcast.lane.b32.xlu0 %v1381, %s1386
    %v1388 = vpop.permute.xlu0 %1387
    %s1390 = sor.u32 256, 16
    %1391 = vbcast.lane.b32.xlu0 %v1381, %s1390
    %v1392 = vpop.permute.xlu0 %1391
    %s1394 = sor.u32 256, 24
    %1395 = vbcast.lane.b32.xlu0 %v1381, %s1394
    %v1396 = vpop.permute.xlu0 %1395
    %s1398 = sor.u32 256, 32
    %1399 = vbcast.lane.b32.xlu0 %v1381, %s1398
    %v1400 = vpop.permute.xlu0 %1399
    %s1402 = sor.u32 256, 40
    %1403 = vbcast.lane.b32.xlu0 %v1381, %s1402
    %v1404 = vpop.permute.xlu0 %1403
    %s1406 = sor.u32 256, 48
    %1407 = vbcast.lane.b32.xlu0 %v1381, %s1406
    %v1408 = vpop.permute.xlu0 %1407
    %s1410 = sor.u32 256, 56
    %1411 = vbcast.lane.b32.xlu0 %v1381, %s1410
    %v1412 = vpop.permute.xlu0 %1411
    %v1413 = vlaneseq
    %v1414 = vshrl.u32 %v1413, 7
    %v1415 = vsub.s32 2, %v1414
    %v1416 = vrot.slane %v517, %v1415
    %1418 = vbcast.lane.b32.xlu0 %v1416, 256
    %v1419 = vpop.permute.xlu0 %1418
    %s1421 = sor.u32 256, 8
    %1422 = vbcast.lane.b32.xlu0 %v1416, %s1421
    %v1423 = vpop.permute.xlu0 %1422
    %s1425 = sor.u32 256, 16
    %1426 = vbcast.lane.b32.xlu0 %v1416, %s1425
    %v1427 = vpop.permute.xlu0 %1426
    %s1429 = sor.u32 256, 24
    %1430 = vbcast.lane.b32.xlu0 %v1416, %s1429
    %v1431 = vpop.permute.xlu0 %1430
    %s1433 = sor.u32 256, 32
    %1434 = vbcast.lane.b32.xlu0 %v1416, %s1433
    %v1435 = vpop.permute.xlu0 %1434
    %s1437 = sor.u32 256, 40
    %1438 = vbcast.lane.b32.xlu0 %v1416, %s1437
    %v1439 = vpop.permute.xlu0 %1438
    %s1441 = sor.u32 256, 48
    %1442 = vbcast.lane.b32.xlu0 %v1416, %s1441
    %v1443 = vpop.permute.xlu0 %1442
    %s1445 = sor.u32 256, 56
    %1446 = vbcast.lane.b32.xlu0 %v1416, %s1445
    %v1447 = vpop.permute.xlu0 %1446
    %v1448 = vlaneseq
    %v1449 = vshrl.u32 %v1448, 7
    %v1450 = vsub.s32 3, %v1449
    %v1451 = vrot.slane %v517, %v1450
    %1453 = vbcast.lane.b32.xlu0 %v1451, 256
    %v1454 = vpop.permute.xlu0 %1453
    %s1456 = sor.u32 256, 8
    %1457 = vbcast.lane.b32.xlu0 %v1451, %s1456
    %v1458 = vpop.permute.xlu0 %1457
    %s1460 = sor.u32 256, 16
    %1461 = vbcast.lane.b32.xlu0 %v1451, %s1460
    %v1462 = vpop.permute.xlu0 %1461
    %s1464 = sor.u32 256, 24
    %1465 = vbcast.lane.b32.xlu0 %v1451, %s1464
    %v1466 = vpop.permute.xlu0 %1465
    %s1468 = sor.u32 256, 32
    %1469 = vbcast.lane.b32.xlu0 %v1451, %s1468
    %v1470 = vpop.permute.xlu0 %1469
    %s1472 = sor.u32 256, 40
    %1473 = vbcast.lane.b32.xlu0 %v1451, %s1472
    %v1474 = vpop.permute.xlu0 %1473
    %s1476 = sor.u32 256, 48
    %1477 = vbcast.lane.b32.xlu0 %v1451, %s1476
    %v1478 = vpop.permute.xlu0 %1477
    %s1480 = sor.u32 256, 56
    %1481 = vbcast.lane.b32.xlu0 %v1451, %s1480
    %v1482 = vpop.permute.xlu0 %1481
    %v1483 = vlaneseq
    %v1484 = vshrl.u32 %v1483, 7
    %v1485 = vsub.s32 4, %v1484
    %v1486 = vrot.slane %v517, %v1485
    %1488 = vbcast.lane.b32.xlu0 %v1486, 256
    %v1489 = vpop.permute.xlu0 %1488
    %s1491 = sor.u32 256, 8
    %1492 = vbcast.lane.b32.xlu0 %v1486, %s1491
    %v1493 = vpop.permute.xlu0 %1492
    %s1495 = sor.u32 256, 16
    %1496 = vbcast.lane.b32.xlu0 %v1486, %s1495
    %v1497 = vpop.permute.xlu0 %1496
    %s1499 = sor.u32 256, 24
    %1500 = vbcast.lane.b32.xlu0 %v1486, %s1499
    %v1501 = vpop.permute.xlu0 %1500
    %s1503 = sor.u32 256, 32
    %1504 = vbcast.lane.b32.xlu0 %v1486, %s1503
    %v1505 = vpop.permute.xlu0 %1504
    %s1507 = sor.u32 256, 40
    %1508 = vbcast.lane.b32.xlu0 %v1486, %s1507
    %v1509 = vpop.permute.xlu0 %1508
    %s1511 = sor.u32 256, 48
    %1512 = vbcast.lane.b32.xlu0 %v1486, %s1511
    %v1513 = vpop.permute.xlu0 %1512
    %s1515 = sor.u32 256, 56
    %1516 = vbcast.lane.b32.xlu0 %v1486, %s1515
    %v1517 = vpop.permute.xlu0 %1516
    %v1518 = vlaneseq
    %v1519 = vshrl.u32 %v1518, 7
    %v1520 = vsub.s32 5, %v1519
    %v1521 = vrot.slane %v517, %v1520
    %1523 = vbcast.lane.b32.xlu0 %v1521, 256
    %v1524 = vpop.permute.xlu0 %1523
    %s1526 = sor.u32 256, 8
    %1527 = vbcast.lane.b32.xlu0 %v1521, %s1526
    %v1528 = vpop.permute.xlu0 %1527
    %s1530 = sor.u32 256, 16
    %1531 = vbcast.lane.b32.xlu0 %v1521, %s1530
    %v1532 = vpop.permute.xlu0 %1531
    %s1534 = sor.u32 256, 24
    %1535 = vbcast.lane.b32.xlu0 %v1521, %s1534
    %v1536 = vpop.permute.xlu0 %1535
    %s1538 = sor.u32 256, 32
    %1539 = vbcast.lane.b32.xlu0 %v1521, %s1538
    %v1540 = vpop.permute.xlu0 %1539
    %s1542 = sor.u32 256, 40
    %1543 = vbcast.lane.b32.xlu0 %v1521, %s1542
    %v1544 = vpop.permute.xlu0 %1543
    %s1546 = sor.u32 256, 48
    %1547 = vbcast.lane.b32.xlu0 %v1521, %s1546
    %v1548 = vpop.permute.xlu0 %1547
    %s1550 = sor.u32 256, 56
    %1551 = vbcast.lane.b32.xlu0 %v1521, %s1550
    %v1552 = vpop.permute.xlu0 %1551
    %v1553 = vlaneseq
    %v1554 = vshrl.u32 %v1553, 7
    %v1555 = vsub.s32 6, %v1554
    %v1556 = vrot.slane %v517, %v1555
    %1558 = vbcast.lane.b32.xlu0 %v1556, 256
    %v1559 = vpop.permute.xlu0 %1558
    %s1561 = sor.u32 256, 8
    %1562 = vbcast.lane.b32.xlu0 %v1556, %s1561
    %v1563 = vpop.permute.xlu0 %1562
    %s1565 = sor.u32 256, 16
    %1566 = vbcast.lane.b32.xlu0 %v1556, %s1565
    %v1567 = vpop.permute.xlu0 %1566
    %s1569 = sor.u32 256, 24
    %1570 = vbcast.lane.b32.xlu0 %v1556, %s1569
    %v1571 = vpop.permute.xlu0 %1570
    %s1573 = sor.u32 256, 32
    %1574 = vbcast.lane.b32.xlu0 %v1556, %s1573
    %v1575 = vpop.permute.xlu0 %1574
    %s1577 = sor.u32 256, 40
    %1578 = vbcast.lane.b32.xlu0 %v1556, %s1577
    %v1579 = vpop.permute.xlu0 %1578
    %s1581 = sor.u32 256, 48
    %1582 = vbcast.lane.b32.xlu0 %v1556, %s1581
    %v1583 = vpop.permute.xlu0 %1582
    %s1585 = sor.u32 256, 56
    %1586 = vbcast.lane.b32.xlu0 %v1556, %s1585
    %v1587 = vpop.permute.xlu0 %1586
    %v1588 = vlaneseq
    %v1589 = vshrl.u32 %v1588, 7
    %v1590 = vsub.s32 7, %v1589
    %v1591 = vrot.slane %v517, %v1590
    %1593 = vbcast.lane.b32.xlu0 %v1591, 256
    %v1594 = vpop.permute.xlu0 %1593
    %s1596 = sor.u32 256, 8
    %1597 = vbcast.lane.b32.xlu0 %v1591, %s1596
    %v1598 = vpop.permute.xlu0 %1597
    %s1600 = sor.u32 256, 16
    %1601 = vbcast.lane.b32.xlu0 %v1591, %s1600
    %v1602 = vpop.permute.xlu0 %1601
    %s1604 = sor.u32 256, 24
    %1605 = vbcast.lane.b32.xlu0 %v1591, %s1604
    %v1606 = vpop.permute.xlu0 %1605
    %s1608 = sor.u32 256, 32
    %1609 = vbcast.lane.b32.xlu0 %v1591, %s1608
    %v1610 = vpop.permute.xlu0 %1609
    %s1612 = sor.u32 256, 40
    %1613 = vbcast.lane.b32.xlu0 %v1591, %s1612
    %v1614 = vpop.permute.xlu0 %1613
    %s1616 = sor.u32 256, 48
    %1617 = vbcast.lane.b32.xlu0 %v1591, %s1616
    %v1618 = vpop.permute.xlu0 %1617
    %s1620 = sor.u32 256, 56
    %1621 = vbcast.lane.b32.xlu0 %v1591, %s1620
    %v1622 = vpop.permute.xlu0 %1621
    %v1623 = vlaneseq
    %v1624 = vshrl.u32 %v1623, 7
    %v1625 = vsub.s32 0, %v1624
    %v1626 = vrot.slane %v518, %v1625
    %1628 = vbcast.lane.b32.xlu0 %v1626, 256
    %v1629 = vpop.permute.xlu0 %1628
    %s1631 = sor.u32 256, 8
    %1632 = vbcast.lane.b32.xlu0 %v1626, %s1631
    %v1633 = vpop.permute.xlu0 %1632
    %s1635 = sor.u32 256, 16
    %1636 = vbcast.lane.b32.xlu0 %v1626, %s1635
    %v1637 = vpop.permute.xlu0 %1636
    %s1639 = sor.u32 256, 24
    %1640 = vbcast.lane.b32.xlu0 %v1626, %s1639
    %v1641 = vpop.permute.xlu0 %1640
    %s1643 = sor.u32 256, 32
    %1644 = vbcast.lane.b32.xlu0 %v1626, %s1643
    %v1645 = vpop.permute.xlu0 %1644
    %s1647 = sor.u32 256, 40
    %1648 = vbcast.lane.b32.xlu0 %v1626, %s1647
    %v1649 = vpop.permute.xlu0 %1648
    %s1651 = sor.u32 256, 48
    %1652 = vbcast.lane.b32.xlu0 %v1626, %s1651
    %v1653 = vpop.permute.xlu0 %1652
    %s1655 = sor.u32 256, 56
    %1656 = vbcast.lane.b32.xlu0 %v1626, %s1655
    %v1657 = vpop.permute.xlu0 %1656
    %v1658 = vlaneseq
    %v1659 = vshrl.u32 %v1658, 7
    %v1660 = vsub.s32 1, %v1659
    %v1661 = vrot.slane %v518, %v1660
    %1663 = vbcast.lane.b32.xlu0 %v1661, 256
    %v1664 = vpop.permute.xlu0 %1663
    %s1666 = sor.u32 256, 8
    %1667 = vbcast.lane.b32.xlu0 %v1661, %s1666
    %v1668 = vpop.permute.xlu0 %1667
    %s1670 = sor.u32 256, 16
    %1671 = vbcast.lane.b32.xlu0 %v1661, %s1670
    %v1672 = vpop.permute.xlu0 %1671
    %s1674 = sor.u32 256, 24
    %1675 = vbcast.lane.b32.xlu0 %v1661, %s1674
    %v1676 = vpop.permute.xlu0 %1675
    %s1678 = sor.u32 256, 32
    %1679 = vbcast.lane.b32.xlu0 %v1661, %s1678
    %v1680 = vpop.permute.xlu0 %1679
    %s1682 = sor.u32 256, 40
    %1683 = vbcast.lane.b32.xlu0 %v1661, %s1682
    %v1684 = vpop.permute.xlu0 %1683
    %s1686 = sor.u32 256, 48
    %1687 = vbcast.lane.b32.xlu0 %v1661, %s1686
    %v1688 = vpop.permute.xlu0 %1687
    %s1690 = sor.u32 256, 56
    %1691 = vbcast.lane.b32.xlu0 %v1661, %s1690
    %v1692 = vpop.permute.xlu0 %1691
    %v1693 = vlaneseq
    %v1694 = vshrl.u32 %v1693, 7
    %v1695 = vsub.s32 2, %v1694
    %v1696 = vrot.slane %v518, %v1695
    %1698 = vbcast.lane.b32.xlu0 %v1696, 256
    %v1699 = vpop.permute.xlu0 %1698
    %s1701 = sor.u32 256, 8
    %1702 = vbcast.lane.b32.xlu0 %v1696, %s1701
    %v1703 = vpop.permute.xlu0 %1702
    %s1705 = sor.u32 256, 16
    %1706 = vbcast.lane.b32.xlu0 %v1696, %s1705
    %v1707 = vpop.permute.xlu0 %1706
    %s1709 = sor.u32 256, 24
    %1710 = vbcast.lane.b32.xlu0 %v1696, %s1709
    %v1711 = vpop.permute.xlu0 %1710
    %s1713 = sor.u32 256, 32
    %1714 = vbcast.lane.b32.xlu0 %v1696, %s1713
    %v1715 = vpop.permute.xlu0 %1714
    %s1717 = sor.u32 256, 40
    %1718 = vbcast.lane.b32.xlu0 %v1696, %s1717
    %v1719 = vpop.permute.xlu0 %1718
    %s1721 = sor.u32 256, 48
    %1722 = vbcast.lane.b32.xlu0 %v1696, %s1721
    %v1723 = vpop.permute.xlu0 %1722
    %s1725 = sor.u32 256, 56
    %1726 = vbcast.lane.b32.xlu0 %v1696, %s1725
    %v1727 = vpop.permute.xlu0 %1726
    %v1728 = vlaneseq
    %v1729 = vshrl.u32 %v1728, 7
    %v1730 = vsub.s32 3, %v1729
    %v1731 = vrot.slane %v518, %v1730
    %1733 = vbcast.lane.b32.xlu0 %v1731, 256
    %v1734 = vpop.permute.xlu0 %1733
    %s1736 = sor.u32 256, 8
    %1737 = vbcast.lane.b32.xlu0 %v1731, %s1736
    %v1738 = vpop.permute.xlu0 %1737
    %s1740 = sor.u32 256, 16
    %1741 = vbcast.lane.b32.xlu0 %v1731, %s1740
    %v1742 = vpop.permute.xlu0 %1741
    %s1744 = sor.u32 256, 24
    %1745 = vbcast.lane.b32.xlu0 %v1731, %s1744
    %v1746 = vpop.permute.xlu0 %1745
    %s1748 = sor.u32 256, 32
    %1749 = vbcast.lane.b32.xlu0 %v1731, %s1748
    %v1750 = vpop.permute.xlu0 %1749
    %s1752 = sor.u32 256, 40
    %1753 = vbcast.lane.b32.xlu0 %v1731, %s1752
    %v1754 = vpop.permute.xlu0 %1753
    %s1756 = sor.u32 256, 48
    %1757 = vbcast.lane.b32.xlu0 %v1731, %s1756
    %v1758 = vpop.permute.xlu0 %1757
    %s1760 = sor.u32 256, 56
    %1761 = vbcast.lane.b32.xlu0 %v1731, %s1760
    %v1762 = vpop.permute.xlu0 %1761
    %v1763 = vlaneseq
    %v1764 = vshrl.u32 %v1763, 7
    %v1765 = vsub.s32 4, %v1764
    %v1766 = vrot.slane %v518, %v1765
    %1768 = vbcast.lane.b32.xlu0 %v1766, 256
    %v1769 = vpop.permute.xlu0 %1768
    %s1771 = sor.u32 256, 8
    %1772 = vbcast.lane.b32.xlu0 %v1766, %s1771
    %v1773 = vpop.permute.xlu0 %1772
    %s1775 = sor.u32 256, 16
    %1776 = vbcast.lane.b32.xlu0 %v1766, %s1775
    %v1777 = vpop.permute.xlu0 %1776
    %s1779 = sor.u32 256, 24
    %1780 = vbcast.lane.b32.xlu0 %v1766, %s1779
    %v1781 = vpop.permute.xlu0 %1780
    %s1783 = sor.u32 256, 32
    %1784 = vbcast.lane.b32.xlu0 %v1766, %s1783
    %v1785 = vpop.permute.xlu0 %1784
    %s1787 = sor.u32 256, 40
    %1788 = vbcast.lane.b32.xlu0 %v1766, %s1787
    %v1789 = vpop.permute.xlu0 %1788
    %s1791 = sor.u32 256, 48
    %1792 = vbcast.lane.b32.xlu0 %v1766, %s1791
    %v1793 = vpop.permute.xlu0 %1792
    %s1795 = sor.u32 256, 56
    %1796 = vbcast.lane.b32.xlu0 %v1766, %s1795
    %v1797 = vpop.permute.xlu0 %1796
    %v1798 = vlaneseq
    %v1799 = vshrl.u32 %v1798, 7
    %v1800 = vsub.s32 5, %v1799
    %v1801 = vrot.slane %v518, %v1800
    %1803 = vbcast.lane.b32.xlu0 %v1801, 256
    %v1804 = vpop.permute.xlu0 %1803
    %s1806 = sor.u32 256, 8
    %1807 = vbcast.lane.b32.xlu0 %v1801, %s1806
    %v1808 = vpop.permute.xlu0 %1807
    %s1810 = sor.u32 256, 16
    %1811 = vbcast.lane.b32.xlu0 %v1801, %s1810
    %v1812 = vpop.permute.xlu0 %1811
    %s1814 = sor.u32 256, 24
    %1815 = vbcast.lane.b32.xlu0 %v1801, %s1814
    %v1816 = vpop.permute.xlu0 %1815
    %s1818 = sor.u32 256, 32
    %1819 = vbcast.lane.b32.xlu0 %v1801, %s1818
    %v1820 = vpop.permute.xlu0 %1819
    %s1822 = sor.u32 256, 40
    %1823 = vbcast.lane.b32.xlu0 %v1801, %s1822
    %v1824 = vpop.permute.xlu0 %1823
    %s1826 = sor.u32 256, 48
    %1827 = vbcast.lane.b32.xlu0 %v1801, %s1826
    %v1828 = vpop.permute.xlu0 %1827
    %s1830 = sor.u32 256, 56
    %1831 = vbcast.lane.b32.xlu0 %v1801, %s1830
    %v1832 = vpop.permute.xlu0 %1831
    %v1833 = vlaneseq
    %v1834 = vshrl.u32 %v1833, 7
    %v1835 = vsub.s32 6, %v1834
    %v1836 = vrot.slane %v518, %v1835
    %1838 = vbcast.lane.b32.xlu0 %v1836, 256
    %v1839 = vpop.permute.xlu0 %1838
    %s1841 = sor.u32 256, 8
    %1842 = vbcast.lane.b32.xlu0 %v1836, %s1841
    %v1843 = vpop.permute.xlu0 %1842
    %s1845 = sor.u32 256, 16
    %1846 = vbcast.lane.b32.xlu0 %v1836, %s1845
    %v1847 = vpop.permute.xlu0 %1846
    %s1849 = sor.u32 256, 24
    %1850 = vbcast.lane.b32.xlu0 %v1836, %s1849
    %v1851 = vpop.permute.xlu0 %1850
    %s1853 = sor.u32 256, 32
    %1854 = vbcast.lane.b32.xlu0 %v1836, %s1853
    %v1855 = vpop.permute.xlu0 %1854
    %s1857 = sor.u32 256, 40
    %1858 = vbcast.lane.b32.xlu0 %v1836, %s1857
    %v1859 = vpop.permute.xlu0 %1858
    %s1861 = sor.u32 256, 48
    %1862 = vbcast.lane.b32.xlu0 %v1836, %s1861
    %v1863 = vpop.permute.xlu0 %1862
    %s1865 = sor.u32 256, 56
    %1866 = vbcast.lane.b32.xlu0 %v1836, %s1865
    %v1867 = vpop.permute.xlu0 %1866
    %v1868 = vlaneseq
    %v1869 = vshrl.u32 %v1868, 7
    %v1870 = vsub.s32 7, %v1869
    %v1871 = vrot.slane %v518, %v1870
    %1873 = vbcast.lane.b32.xlu0 %v1871, 256
    %v1874 = vpop.permute.xlu0 %1873
    %s1876 = sor.u32 256, 8
    %1877 = vbcast.lane.b32.xlu0 %v1871, %s1876
    %v1878 = vpop.permute.xlu0 %1877
    %s1880 = sor.u32 256, 16
    %1881 = vbcast.lane.b32.xlu0 %v1871, %s1880
    %v1882 = vpop.permute.xlu0 %1881
    %s1884 = sor.u32 256, 24
    %1885 = vbcast.lane.b32.xlu0 %v1871, %s1884
    %v1886 = vpop.permute.xlu0 %1885
    %s1888 = sor.u32 256, 32
    %1889 = vbcast.lane.b32.xlu0 %v1871, %s1888
    %v1890 = vpop.permute.xlu0 %1889
    %s1892 = sor.u32 256, 40
    %1893 = vbcast.lane.b32.xlu0 %v1871, %s1892
    %v1894 = vpop.permute.xlu0 %1893
    %s1896 = sor.u32 256, 48
    %1897 = vbcast.lane.b32.xlu0 %v1871, %s1896
    %v1898 = vpop.permute.xlu0 %1897
    %s1900 = sor.u32 256, 56
    %1901 = vbcast.lane.b32.xlu0 %v1871, %s1900
    %v1902 = vpop.permute.xlu0 %1901
    %v1903 = vsel %vm317, %v1349, %v1629
    %v1904 = vsel %vm317, %v1353, %v1633
    %v1905 = vsel %vm317, %v1357, %v1637
    %v1906 = vsel %vm317, %v1361, %v1641
    %v1907 = vsel %vm317, %v1365, %v1645
    %v1908 = vsel %vm317, %v1369, %v1649
    %v1909 = vsel %vm317, %v1373, %v1653
    %v1910 = vsel %vm317, %v1377, %v1657
    %v1911 = vsel %vm317, %v1384, %v1664
    %v1912 = vsel %vm317, %v1388, %v1668
    %v1913 = vsel %vm317, %v1392, %v1672
    %v1914 = vsel %vm317, %v1396, %v1676
    %v1915 = vsel %vm317, %v1400, %v1680
    %v1916 = vsel %vm317, %v1404, %v1684
    %v1917 = vsel %vm317, %v1408, %v1688
    %v1918 = vsel %vm317, %v1412, %v1692
    %v1919 = vsel %vm317, %v1419, %v1699
    %v1920 = vsel %vm317, %v1423, %v1703
    %v1921 = vsel %vm317, %v1427, %v1707
    %v1922 = vsel %vm317, %v1431, %v1711
    %v1923 = vsel %vm317, %v1435, %v1715
    %v1924 = vsel %vm317, %v1439, %v1719
    %v1925 = vsel %vm317, %v1443, %v1723
    %v1926 = vsel %vm317, %v1447, %v1727
    %v1927 = vsel %vm317, %v1454, %v1734
    %v1928 = vsel %vm317, %v1458, %v1738
    %v1929 = vsel %vm317, %v1462, %v1742
    %v1930 = vsel %vm317, %v1466, %v1746
    %v1931 = vsel %vm317, %v1470, %v1750
    %v1932 = vsel %vm317, %v1474, %v1754
    %v1933 = vsel %vm317, %v1478, %v1758
    %v1934 = vsel %vm317, %v1482, %v1762
    %v1935 = vsel %vm317, %v1489, %v1769
    %v1936 = vsel %vm317, %v1493, %v1773
    %v1937 = vsel %vm317, %v1497, %v1777
    %v1938 = vsel %vm317, %v1501, %v1781
    %v1939 = vsel %vm317, %v1505, %v1785
    %v1940 = vsel %vm317, %v1509, %v1789
    %v1941 = vsel %vm317, %v1513, %v1793
    %v1942 = vsel %vm317, %v1517, %v1797
    %v1943 = vsel %vm317, %v1524, %v1804
    %v1944 = vsel %vm317, %v1528, %v1808
    %v1945 = vsel %vm317, %v1532, %v1812
    %v1946 = vsel %vm317, %v1536, %v1816
    %v1947 = vsel %vm317, %v1540, %v1820
    %v1948 = vsel %vm317, %v1544, %v1824
    %v1949 = vsel %vm317, %v1548, %v1828
    %v1950 = vsel %vm317, %v1552, %v1832
    %v1951 = vsel %vm317, %v1559, %v1839
    %v1952 = vsel %vm317, %v1563, %v1843
    %v1953 = vsel %vm317, %v1567, %v1847
    %v1954 = vsel %vm317, %v1571, %v1851
    %v1955 = vsel %vm317, %v1575, %v1855
    %v1956 = vsel %vm317, %v1579, %v1859
    %v1957 = vsel %vm317, %v1583, %v1863
    %v1958 = vsel %vm317, %v1587, %v1867
    %v1959 = vsel %vm317, %v1594, %v1874
    %v1960 = vsel %vm317, %v1598, %v1878
    %v1961 = vsel %vm317, %v1602, %v1882
    %v1962 = vsel %vm317, %v1606, %v1886
    %v1963 = vsel %vm317, %v1610, %v1890
    %v1964 = vsel %vm317, %v1614, %v1894
    %v1965 = vsel %vm317, %v1618, %v1898
    %v1966 = vsel %vm317, %v1622, %v1902
    %v1968 = vcombine.high %v391, %v391
    %v1970 = vunpack.c.l.s4 1966171168
    %v1971 = vunpack.c.0.s8 %v1970
    %v1972 = vlaneseq
    %v1973 = vshrl.u32 %v1972, 7
    %v1974 = vsub.s32 %v1971, %v1973
    %v1975 = vrot.slane %v391, %v1974
    %v1977 = vunpack.c.l.s4 1966171168
    %v1978 = vunpack.c.0.s8 %v1977
    %v1979 = vlaneseq
    %v1980 = vshrl.u32 %v1979, 7
    %v1981 = vsub.s32 %v1978, %v1980
    %v1982 = vrot.slane %v1968, %v1981
    %v1983 = vcombine.high %v1975, %v1975
    %v1984 = vcombine.high %v1982, %v1982
    %v1986 = vunpack.c.l.s4 1966171168
    %v1987 = vunpack.c.0.s8 %v1986
    %v1988 = vlaneseq
    %v1989 = vshrl.u32 %v1988, 7
    %v1990 = vsub.s32 %v1987, %v1989
    %v1991 = vrot.slane %v1975, %v1990
    %v1993 = vunpack.c.l.s4 1966171168
    %v1994 = vunpack.c.0.s8 %v1993
    %v1995 = vlaneseq
    %v1996 = vshrl.u32 %v1995, 7
    %v1997 = vsub.s32 %v1994, %v1996
    %v1998 = vrot.slane %v1982, %v1997
    %v2000 = vunpack.c.l.s4 1966171168
    %v2001 = vunpack.c.0.s8 %v2000
    %v2002 = vlaneseq
    %v2003 = vshrl.u32 %v2002, 7
    %v2004 = vsub.s32 %v2001, %v2003
    %v2005 = vrot.slane %v1983, %v2004
    %v2007 = vunpack.c.l.s4 1966171168
    %v2008 = vunpack.c.0.s8 %v2007
    %v2009 = vlaneseq
    %v2010 = vshrl.u32 %v2009, 7
    %v2011 = vsub.s32 %v2008, %v2010
    %v2012 = vrot.slane %v1984, %v2011
    %v2013 = vcombine.high %v1991, %v1991
    %v2014 = vcombine.high %v1998, %v1998
    %v2015 = vcombine.high %v2005, %v2005
    %v2016 = vcombine.high %v2012, %v2012
    %v2017 = vlaneseq
    %v2018 = vshrl.u32 %v2017, 7
    %v2019 = vsub.s32 0, %v2018
    %v2020 = vrot.slane %v1991, %v2019
    %v2021 = vlaneseq
    %v2022 = vshrl.u32 %v2021, 7
    %v2023 = vsub.s32 0, %v2022
    %v2024 = vrot.slane %v2005, %v2023
    %v2025 = vlaneseq
    %v2026 = vshrl.u32 %v2025, 7
    %v2027 = vsub.s32 0, %v2026
    %v2028 = vrot.slane %v2013, %v2027
    %v2029 = vlaneseq
    %v2030 = vshrl.u32 %v2029, 7
    %v2031 = vsub.s32 0, %v2030
    %v2032 = vrot.slane %v2015, %v2031
    %v2033 = vlaneseq
    %v2034 = vshrl.u32 %v2033, 7
    %v2035 = vsub.s32 0, %v2034
    %v2036 = vrot.slane %v1998, %v2035
    %v2037 = vlaneseq
    %v2038 = vshrl.u32 %v2037, 7
    %v2039 = vsub.s32 0, %v2038
    %v2040 = vrot.slane %v2012, %v2039
    %v2041 = vlaneseq
    %v2042 = vshrl.u32 %v2041, 7
    %v2043 = vsub.s32 0, %v2042
    %v2044 = vrot.slane %v2014, %v2043
    %v2045 = vlaneseq
    %v2046 = vshrl.u32 %v2045, 7
    %v2047 = vsub.s32 0, %v2046
    %v2048 = vrot.slane %v2016, %v2047
    %v2058 = vcombine.high %v396, %v396
    %v2060 = vunpack.c.l.s4 1966171168
    %v2061 = vunpack.c.0.s8 %v2060
    %v2062 = vlaneseq
    %v2063 = vshrl.u32 %v2062, 7
    %v2064 = vsub.s32 %v2061, %v2063
    %v2065 = vrot.slane %v396, %v2064
    %v2067 = vunpack.c.l.s4 1966171168
    %v2068 = vunpack.c.0.s8 %v2067
    %v2069 = vlaneseq
    %v2070 = vshrl.u32 %v2069, 7
    %v2071 = vsub.s32 %v2068, %v2070
    %v2072 = vrot.slane %v2058, %v2071
    %v2073 = vcombine.high %v2065, %v2065
    %v2074 = vcombine.high %v2072, %v2072
    %v2076 = vunpack.c.l.s4 1966171168
    %v2077 = vunpack.c.0.s8 %v2076
    %v2078 = vlaneseq
    %v2079 = vshrl.u32 %v2078, 7
    %v2080 = vsub.s32 %v2077, %v2079
    %v2081 = vrot.slane %v2065, %v2080
    %v2083 = vunpack.c.l.s4 1966171168
    %v2084 = vunpack.c.0.s8 %v2083
    %v2085 = vlaneseq
    %v2086 = vshrl.u32 %v2085, 7
    %v2087 = vsub.s32 %v2084, %v2086
    %v2088 = vrot.slane %v2072, %v2087
    %v2090 = vunpack.c.l.s4 1966171168
    %v2091 = vunpack.c.0.s8 %v2090
    %v2092 = vlaneseq
    %v2093 = vshrl.u32 %v2092, 7
    %v2094 = vsub.s32 %v2091, %v2093
    %v2095 = vrot.slane %v2073, %v2094
    %v2097 = vunpack.c.l.s4 1966171168
    %v2098 = vunpack.c.0.s8 %v2097
    %v2099 = vlaneseq
    %v2100 = vshrl.u32 %v2099, 7
    %v2101 = vsub.s32 %v2098, %v2100
    %v2102 = vrot.slane %v2074, %v2101
    %v2103 = vcombine.high %v2081, %v2081
    %v2104 = vcombine.high %v2088, %v2088
    %v2105 = vcombine.high %v2095, %v2095
    %v2106 = vcombine.high %v2102, %v2102
    %v2107 = vlaneseq
    %v2108 = vshrl.u32 %v2107, 7
    %v2109 = vsub.s32 0, %v2108
    %v2110 = vrot.slane %v2081, %v2109
    %v2111 = vlaneseq
    %v2112 = vshrl.u32 %v2111, 7
    %v2113 = vsub.s32 0, %v2112
    %v2114 = vrot.slane %v2095, %v2113
    %v2115 = vlaneseq
    %v2116 = vshrl.u32 %v2115, 7
    %v2117 = vsub.s32 0, %v2116
    %v2118 = vrot.slane %v2103, %v2117
    %v2119 = vlaneseq
    %v2120 = vshrl.u32 %v2119, 7
    %v2121 = vsub.s32 0, %v2120
    %v2122 = vrot.slane %v2105, %v2121
    %v2123 = vlaneseq
    %v2124 = vshrl.u32 %v2123, 7
    %v2125 = vsub.s32 0, %v2124
    %v2126 = vrot.slane %v2088, %v2125
    %v2127 = vlaneseq
    %v2128 = vshrl.u32 %v2127, 7
    %v2129 = vsub.s32 0, %v2128
    %v2130 = vrot.slane %v2102, %v2129
    %v2131 = vlaneseq
    %v2132 = vshrl.u32 %v2131, 7
    %v2133 = vsub.s32 0, %v2132
    %v2134 = vrot.slane %v2104, %v2133
    %v2135 = vlaneseq
    %v2136 = vshrl.u32 %v2135, 7
    %v2137 = vsub.s32 0, %v2136
    %v2138 = vrot.slane %v2106, %v2137
    %2139 = vrot.lane.b32.xlu0 %v2110, 64
    %v2140 = vpop.permute.xlu0 %2139
    %2141 = vrot.lane.b32.xlu0 %v2114, 64
    %v2142 = vpop.permute.xlu0 %2141
    %2143 = vrot.lane.b32.xlu0 %v2118, 64
    %v2144 = vpop.permute.xlu0 %2143
    %2145 = vrot.lane.b32.xlu0 %v2122, 64
    %v2146 = vpop.permute.xlu0 %2145
    %2147 = vrot.lane.b32.xlu0 %v2126, 64
    %v2148 = vpop.permute.xlu0 %2147
    %2149 = vrot.lane.b32.xlu0 %v2130, 64
    %v2150 = vpop.permute.xlu0 %2149
    %2151 = vrot.lane.b32.xlu0 %v2134, 64
    %v2152 = vpop.permute.xlu0 %2151
    %2153 = vrot.lane.b32.xlu0 %v2138, 64
    %v2154 = vpop.permute.xlu0 %2153
    %v2163 = vsel %vm317, %v2020, %v2140
    %v2164 = vsel %vm317, %v2024, %v2142
    %v2165 = vsel %vm317, %v2028, %v2144
    %v2166 = vsel %vm317, %v2032, %v2146
    %v2167 = vsel %vm317, %v2036, %v2148
    %v2168 = vsel %vm317, %v2040, %v2150
    %v2169 = vsel %vm317, %v2044, %v2152
    %v2170 = vsel %vm317, %v2048, %v2154
    %v2171 = vmul.f32 %v1903, %v2163
    %v2172 = vmul.f32 %v1904, %v2163
    %v2173 = vmul.f32 %v1905, %v2163
    %v2174 = vmul.f32 %v1906, %v2163
    %v2175 = vmul.f32 %v1907, %v2163
    %v2176 = vmul.f32 %v1908, %v2163
    %v2177 = vmul.f32 %v1909, %v2163
    %v2178 = vmul.f32 %v1910, %v2163
    %v2179 = vmul.f32 %v1911, %v2164
    %v2180 = vmul.f32 %v1912, %v2164
    %v2181 = vmul.f32 %v1913, %v2164
    %v2182 = vmul.f32 %v1914, %v2164
    %v2183 = vmul.f32 %v1915, %v2164
    %v2184 = vmul.f32 %v1916, %v2164
    %v2185 = vmul.f32 %v1917, %v2164
    %v2186 = vmul.f32 %v1918, %v2164
    %v2187 = vmul.f32 %v1919, %v2165
    %v2188 = vmul.f32 %v1920, %v2165
    %v2189 = vmul.f32 %v1921, %v2165
    %v2190 = vmul.f32 %v1922, %v2165
    %v2191 = vmul.f32 %v1923, %v2165
    %v2192 = vmul.f32 %v1924, %v2165
    %v2193 = vmul.f32 %v1925, %v2165
    %v2194 = vmul.f32 %v1926, %v2165
    %v2195 = vmul.f32 %v1927, %v2166
    %v2196 = vmul.f32 %v1928, %v2166
    %v2197 = vmul.f32 %v1929, %v2166
    %v2198 = vmul.f32 %v1930, %v2166
    %v2199 = vmul.f32 %v1931, %v2166
    %v2200 = vmul.f32 %v1932, %v2166
    %v2201 = vmul.f32 %v1933, %v2166
    %v2202 = vmul.f32 %v1934, %v2166
    %v2203 = vmul.f32 %v1935, %v2167
    %v2204 = vmul.f32 %v1936, %v2167
    %v2205 = vmul.f32 %v1937, %v2167
    %v2206 = vmul.f32 %v1938, %v2167
    %v2207 = vmul.f32 %v1939, %v2167
    %v2208 = vmul.f32 %v1940, %v2167
    %v2209 = vmul.f32 %v1941, %v2167
    %v2210 = vmul.f32 %v1942, %v2167
    %v2211 = vmul.f32 %v1943, %v2168
    %v2212 = vmul.f32 %v1944, %v2168
    %v2213 = vmul.f32 %v1945, %v2168
    %v2214 = vmul.f32 %v1946, %v2168
    %v2215 = vmul.f32 %v1947, %v2168
    %v2216 = vmul.f32 %v1948, %v2168
    %v2217 = vmul.f32 %v1949, %v2168
    %v2218 = vmul.f32 %v1950, %v2168
    %v2219 = vmul.f32 %v1951, %v2169
    %v2220 = vmul.f32 %v1952, %v2169
    %v2221 = vmul.f32 %v1953, %v2169
    %v2222 = vmul.f32 %v1954, %v2169
    %v2223 = vmul.f32 %v1955, %v2169
    %v2224 = vmul.f32 %v1956, %v2169
    %v2225 = vmul.f32 %v1957, %v2169
    %v2226 = vmul.f32 %v1958, %v2169
    %v2227 = vmul.f32 %v1959, %v2170
    %v2228 = vmul.f32 %v1960, %v2170
    %v2229 = vmul.f32 %v1961, %v2170
    %v2230 = vmul.f32 %v1962, %v2170
    %v2231 = vmul.f32 %v1963, %v2170
    %v2232 = vmul.f32 %v1964, %v2170
    %v2233 = vmul.f32 %v1965, %v2170
    %v2234 = vmul.f32 %v1966, %v2170
    %2243 = vrot.lane.b32.xlu0 %v2020, 64
    %v2244 = vpop.permute.xlu0 %2243
    %2245 = vrot.lane.b32.xlu0 %v2024, 64
    %v2246 = vpop.permute.xlu0 %2245
    %2247 = vrot.lane.b32.xlu0 %v2028, 64
    %v2248 = vpop.permute.xlu0 %2247
    %2249 = vrot.lane.b32.xlu0 %v2032, 64
    %v2250 = vpop.permute.xlu0 %2249
    %2251 = vrot.lane.b32.xlu0 %v2036, 64
    %v2252 = vpop.permute.xlu0 %2251
    %2253 = vrot.lane.b32.xlu0 %v2040, 64
    %v2254 = vpop.permute.xlu0 %2253
    %2255 = vrot.lane.b32.xlu0 %v2044, 64
    %v2256 = vpop.permute.xlu0 %2255
    %2257 = vrot.lane.b32.xlu0 %v2048, 64
    %v2258 = vpop.permute.xlu0 %2257
    %v2267 = vsel %vm317, %v2244, %v2110
    %v2268 = vsel %vm317, %v2246, %v2114
    %v2269 = vsel %vm317, %v2248, %v2118
    %v2270 = vsel %vm317, %v2250, %v2122
    %v2271 = vsel %vm317, %v2252, %v2126
    %v2272 = vsel %vm317, %v2254, %v2130
    %v2273 = vsel %vm317, %v2256, %v2134
    %v2274 = vsel %vm317, %v2258, %v2138
    %v2275 = vmul.f32 %v1216, 0.0
    %v2276 = vmul.f32 %v1218, 0.0
    %v2277 = vmul.f32 %v1220, 0.0
    %v2278 = vmul.f32 %v1222, 0.0
    %v2279 = vmul.f32 %v1224, 0.0
    %v2280 = vmul.f32 %v1226, 0.0
    %v2281 = vmul.f32 %v1228, 0.0
    %v2282 = vmul.f32 %v1230, 0.0
    %v2283 = vadd.f32 %v2275, %v2171
    %v2284 = vadd.f32 %v2276, %v2172
    %v2285 = vadd.f32 %v2277, %v2173
    %v2286 = vadd.f32 %v2278, %v2174
    %v2287 = vadd.f32 %v2279, %v2175
    %v2288 = vadd.f32 %v2280, %v2176
    %v2289 = vadd.f32 %v2281, %v2177
    %v2290 = vadd.f32 %v2282, %v2178
    %v2291 = vmul.f32 %v1232, %v2283
    %v2292 = vmul.f32 %v1234, %v2284
    %v2293 = vmul.f32 %v1236, %v2285
    %v2294 = vmul.f32 %v1238, %v2286
    %v2295 = vmul.f32 %v1240, %v2287
    %v2296 = vmul.f32 %v1242, %v2288
    %v2297 = vmul.f32 %v1244, %v2289
    %v2298 = vmul.f32 %v1246, %v2290
    %v2299 = vadd.f32 %v2291, %v2179
    %v2300 = vadd.f32 %v2292, %v2180
    %v2301 = vadd.f32 %v2293, %v2181
    %v2302 = vadd.f32 %v2294, %v2182
    %v2303 = vadd.f32 %v2295, %v2183
    %v2304 = vadd.f32 %v2296, %v2184
    %v2305 = vadd.f32 %v2297, %v2185
    %v2306 = vadd.f32 %v2298, %v2186
    %v2307 = vmul.f32 %v1248, %v2299
    %v2308 = vmul.f32 %v1250, %v2300
    %v2309 = vmul.f32 %v1252, %v2301
    %v2310 = vmul.f32 %v1254, %v2302
    %v2311 = vmul.f32 %v1256, %v2303
    %v2312 = vmul.f32 %v1258, %v2304
    %v2313 = vmul.f32 %v1260, %v2305
    %v2314 = vmul.f32 %v1262, %v2306
    %v2315 = vadd.f32 %v2307, %v2187
    %v2316 = vadd.f32 %v2308, %v2188
    %v2317 = vadd.f32 %v2309, %v2189
    %v2318 = vadd.f32 %v2310, %v2190
    %v2319 = vadd.f32 %v2311, %v2191
    %v2320 = vadd.f32 %v2312, %v2192
    %v2321 = vadd.f32 %v2313, %v2193
    %v2322 = vadd.f32 %v2314, %v2194
    %v2323 = vmul.f32 %v1264, %v2315
    %v2324 = vmul.f32 %v1266, %v2316
    %v2325 = vmul.f32 %v1268, %v2317
    %v2326 = vmul.f32 %v1270, %v2318
    %v2327 = vmul.f32 %v1272, %v2319
    %v2328 = vmul.f32 %v1274, %v2320
    %v2329 = vmul.f32 %v1276, %v2321
    %v2330 = vmul.f32 %v1278, %v2322
    %v2331 = vadd.f32 %v2323, %v2195
    %v2332 = vadd.f32 %v2324, %v2196
    %v2333 = vadd.f32 %v2325, %v2197
    %v2334 = vadd.f32 %v2326, %v2198
    %v2335 = vadd.f32 %v2327, %v2199
    %v2336 = vadd.f32 %v2328, %v2200
    %v2337 = vadd.f32 %v2329, %v2201
    %v2338 = vadd.f32 %v2330, %v2202
    %v2339 = vmul.f32 %v1280, %v2331
    %v2340 = vmul.f32 %v1282, %v2332
    %v2341 = vmul.f32 %v1284, %v2333
    %v2342 = vmul.f32 %v1286, %v2334
    %v2343 = vmul.f32 %v1288, %v2335
    %v2344 = vmul.f32 %v1290, %v2336
    %v2345 = vmul.f32 %v1292, %v2337
    %v2346 = vmul.f32 %v1294, %v2338
    %v2347 = vadd.f32 %v2339, %v2203
    %v2348 = vadd.f32 %v2340, %v2204
    %v2349 = vadd.f32 %v2341, %v2205
    %v2350 = vadd.f32 %v2342, %v2206
    %v2351 = vadd.f32 %v2343, %v2207
    %v2352 = vadd.f32 %v2344, %v2208
    %v2353 = vadd.f32 %v2345, %v2209
    %v2354 = vadd.f32 %v2346, %v2210
    %v2355 = vmul.f32 %v1296, %v2347
    %v2356 = vmul.f32 %v1298, %v2348
    %v2357 = vmul.f32 %v1300, %v2349
    %v2358 = vmul.f32 %v1302, %v2350
    %v2359 = vmul.f32 %v1304, %v2351
    %v2360 = vmul.f32 %v1306, %v2352
    %v2361 = vmul.f32 %v1308, %v2353
    %v2362 = vmul.f32 %v1310, %v2354
    %v2363 = vadd.f32 %v2355, %v2211
    %v2364 = vadd.f32 %v2356, %v2212
    %v2365 = vadd.f32 %v2357, %v2213
    %v2366 = vadd.f32 %v2358, %v2214
    %v2367 = vadd.f32 %v2359, %v2215
    %v2368 = vadd.f32 %v2360, %v2216
    %v2369 = vadd.f32 %v2361, %v2217
    %v2370 = vadd.f32 %v2362, %v2218
    %v2371 = vmul.f32 %v1312, %v2363
    %v2372 = vmul.f32 %v1314, %v2364
    %v2373 = vmul.f32 %v1316, %v2365
    %v2374 = vmul.f32 %v1318, %v2366
    %v2375 = vmul.f32 %v1320, %v2367
    %v2376 = vmul.f32 %v1322, %v2368
    %v2377 = vmul.f32 %v1324, %v2369
    %v2378 = vmul.f32 %v1326, %v2370
    %v2379 = vadd.f32 %v2371, %v2219
    %v2380 = vadd.f32 %v2372, %v2220
    %v2381 = vadd.f32 %v2373, %v2221
    %v2382 = vadd.f32 %v2374, %v2222
    %v2383 = vadd.f32 %v2375, %v2223
    %v2384 = vadd.f32 %v2376, %v2224
    %v2385 = vadd.f32 %v2377, %v2225
    %v2386 = vadd.f32 %v2378, %v2226
    %v2387 = vmul.f32 %v1328, %v2379
    %v2388 = vmul.f32 %v1330, %v2380
    %v2389 = vmul.f32 %v1332, %v2381
    %v2390 = vmul.f32 %v1334, %v2382
    %v2391 = vmul.f32 %v1336, %v2383
    %v2392 = vmul.f32 %v1338, %v2384
    %v2393 = vmul.f32 %v1340, %v2385
    %v2394 = vmul.f32 %v1342, %v2386
    %v2395 = vadd.f32 %v2387, %v2227
    %v2396 = vadd.f32 %v2388, %v2228
    %v2397 = vadd.f32 %v2389, %v2229
    %v2398 = vadd.f32 %v2390, %v2230
    %v2399 = vadd.f32 %v2391, %v2231
    %v2400 = vadd.f32 %v2392, %v2232
    %v2401 = vadd.f32 %v2393, %v2233
    %v2402 = vadd.f32 %v2394, %v2234
    %v2403 = vmul.f32 %v2283, %v2267
    %v2404 = vmul.f32 %v2284, %v2267
    %v2405 = vmul.f32 %v2285, %v2267
    %v2406 = vmul.f32 %v2286, %v2267
    %v2407 = vmul.f32 %v2287, %v2267
    %v2408 = vmul.f32 %v2288, %v2267
    %v2409 = vmul.f32 %v2289, %v2267
    %v2410 = vmul.f32 %v2290, %v2267
    %v2411 = vmul.f32 %v2299, %v2268
    %v2412 = vmul.f32 %v2300, %v2268
    %v2413 = vmul.f32 %v2301, %v2268
    %v2414 = vmul.f32 %v2302, %v2268
    %v2415 = vmul.f32 %v2303, %v2268
    %v2416 = vmul.f32 %v2304, %v2268
    %v2417 = vmul.f32 %v2305, %v2268
    %v2418 = vmul.f32 %v2306, %v2268
    %v2419 = vmul.f32 %v2315, %v2269
    %v2420 = vmul.f32 %v2316, %v2269
    %v2421 = vmul.f32 %v2317, %v2269
    %v2422 = vmul.f32 %v2318, %v2269
    %v2423 = vmul.f32 %v2319, %v2269
    %v2424 = vmul.f32 %v2320, %v2269
    %v2425 = vmul.f32 %v2321, %v2269
    %v2426 = vmul.f32 %v2322, %v2269
    %v2427 = vmul.f32 %v2331, %v2270
    %v2428 = vmul.f32 %v2332, %v2270
    %v2429 = vmul.f32 %v2333, %v2270
    %v2430 = vmul.f32 %v2334, %v2270
    %v2431 = vmul.f32 %v2335, %v2270
    %v2432 = vmul.f32 %v2336, %v2270
    %v2433 = vmul.f32 %v2337, %v2270
    %v2434 = vmul.f32 %v2338, %v2270
    %v2435 = vmul.f32 %v2347, %v2271
    %v2436 = vmul.f32 %v2348, %v2271
    %v2437 = vmul.f32 %v2349, %v2271
    %v2438 = vmul.f32 %v2350, %v2271
    %v2439 = vmul.f32 %v2351, %v2271
    %v2440 = vmul.f32 %v2352, %v2271
    %v2441 = vmul.f32 %v2353, %v2271
    %v2442 = vmul.f32 %v2354, %v2271
    %v2443 = vmul.f32 %v2363, %v2272
    %v2444 = vmul.f32 %v2364, %v2272
    %v2445 = vmul.f32 %v2365, %v2272
    %v2446 = vmul.f32 %v2366, %v2272
    %v2447 = vmul.f32 %v2367, %v2272
    %v2448 = vmul.f32 %v2368, %v2272
    %v2449 = vmul.f32 %v2369, %v2272
    %v2450 = vmul.f32 %v2370, %v2272
    %v2451 = vmul.f32 %v2379, %v2273
    %v2452 = vmul.f32 %v2380, %v2273
    %v2453 = vmul.f32 %v2381, %v2273
    %v2454 = vmul.f32 %v2382, %v2273
    %v2455 = vmul.f32 %v2383, %v2273
    %v2456 = vmul.f32 %v2384, %v2273
    %v2457 = vmul.f32 %v2385, %v2273
    %v2458 = vmul.f32 %v2386, %v2273
    %v2459 = vmul.f32 %v2395, %v2274
    %v2460 = vmul.f32 %v2396, %v2274
    %v2461 = vmul.f32 %v2397, %v2274
    %v2462 = vmul.f32 %v2398, %v2274
    %v2463 = vmul.f32 %v2399, %v2274
    %v2464 = vmul.f32 %v2400, %v2274
    %v2465 = vmul.f32 %v2401, %v2274
    %v2466 = vmul.f32 %v2402, %v2274
    %v2467 = vsel %vm317, %v2403, 0.0
    %2468 = vadd.xlane.f32.xlu0 %v2467
    %v2469 = vpop.xlane.xlu0 %2468
    %v2470 = vsel %vm317, %v2404, 0.0
    %2471 = vadd.xlane.f32.xlu0 %v2470
    %v2472 = vpop.xlane.xlu0 %2471
    %v2473 = vsel %vm317, %v2405, 0.0
    %2474 = vadd.xlane.f32.xlu0 %v2473
    %v2475 = vpop.xlane.xlu0 %2474
    %v2476 = vsel %vm317, %v2406, 0.0
    %2477 = vadd.xlane.f32.xlu0 %v2476
    %v2478 = vpop.xlane.xlu0 %2477
    %v2479 = vsel %vm317, %v2407, 0.0
    %2480 = vadd.xlane.f32.xlu0 %v2479
    %v2481 = vpop.xlane.xlu0 %2480
    %v2482 = vsel %vm317, %v2408, 0.0
    %2483 = vadd.xlane.f32.xlu0 %v2482
    %v2484 = vpop.xlane.xlu0 %2483
    %v2485 = vsel %vm317, %v2409, 0.0
    %2486 = vadd.xlane.f32.xlu0 %v2485
    %v2487 = vpop.xlane.xlu0 %2486
    %v2488 = vsel %vm317, %v2410, 0.0
    %2489 = vadd.xlane.f32.xlu0 %v2488
    %v2490 = vpop.xlane.xlu0 %2489
    %v2491 = vsel %vm317, %v2411, 0.0
    %2492 = vadd.xlane.f32.xlu0 %v2491
    %v2493 = vpop.xlane.xlu0 %2492
    %v2494 = vsel %vm317, %v2412, 0.0
    %2495 = vadd.xlane.f32.xlu0 %v2494
    %v2496 = vpop.xlane.xlu0 %2495
    %v2497 = vsel %vm317, %v2413, 0.0
    %2498 = vadd.xlane.f32.xlu0 %v2497
    %v2499 = vpop.xlane.xlu0 %2498
    %v2500 = vsel %vm317, %v2414, 0.0
    %2501 = vadd.xlane.f32.xlu0 %v2500
    %v2502 = vpop.xlane.xlu0 %2501
    %v2503 = vsel %vm317, %v2415, 0.0
    %2504 = vadd.xlane.f32.xlu0 %v2503
    %v2505 = vpop.xlane.xlu0 %2504
    %v2506 = vsel %vm317, %v2416, 0.0
    %2507 = vadd.xlane.f32.xlu0 %v2506
    %v2508 = vpop.xlane.xlu0 %2507
    %v2509 = vsel %vm317, %v2417, 0.0
    %2510 = vadd.xlane.f32.xlu0 %v2509
    %v2511 = vpop.xlane.xlu0 %2510
    %v2512 = vsel %vm317, %v2418, 0.0
    %2513 = vadd.xlane.f32.xlu0 %v2512
    %v2514 = vpop.xlane.xlu0 %2513
    %v2515 = vsel %vm317, %v2419, 0.0
    %2516 = vadd.xlane.f32.xlu0 %v2515
    %v2517 = vpop.xlane.xlu0 %2516
    %v2518 = vsel %vm317, %v2420, 0.0
    %2519 = vadd.xlane.f32.xlu0 %v2518
    %v2520 = vpop.xlane.xlu0 %2519
    %v2521 = vsel %vm317, %v2421, 0.0
    %2522 = vadd.xlane.f32.xlu0 %v2521
    %v2523 = vpop.xlane.xlu0 %2522
    %v2524 = vsel %vm317, %v2422, 0.0
    %2525 = vadd.xlane.f32.xlu0 %v2524
    %v2526 = vpop.xlane.xlu0 %2525
    %v2527 = vsel %vm317, %v2423, 0.0
    %2528 = vadd.xlane.f32.xlu0 %v2527
    %v2529 = vpop.xlane.xlu0 %2528
    %v2530 = vsel %vm317, %v2424, 0.0
    %2531 = vadd.xlane.f32.xlu0 %v2530
    %v2532 = vpop.xlane.xlu0 %2531
    %v2533 = vsel %vm317, %v2425, 0.0
    %2534 = vadd.xlane.f32.xlu0 %v2533
    %v2535 = vpop.xlane.xlu0 %2534
    %v2536 = vsel %vm317, %v2426, 0.0
    %2537 = vadd.xlane.f32.xlu0 %v2536
    %v2538 = vpop.xlane.xlu0 %2537
    %v2539 = vsel %vm317, %v2427, 0.0
    %2540 = vadd.xlane.f32.xlu0 %v2539
    %v2541 = vpop.xlane.xlu0 %2540
    %v2542 = vsel %vm317, %v2428, 0.0
    %2543 = vadd.xlane.f32.xlu0 %v2542
    %v2544 = vpop.xlane.xlu0 %2543
    %v2545 = vsel %vm317, %v2429, 0.0
    %2546 = vadd.xlane.f32.xlu0 %v2545
    %v2547 = vpop.xlane.xlu0 %2546
    %v2548 = vsel %vm317, %v2430, 0.0
    %2549 = vadd.xlane.f32.xlu0 %v2548
    %v2550 = vpop.xlane.xlu0 %2549
    %v2551 = vsel %vm317, %v2431, 0.0
    %2552 = vadd.xlane.f32.xlu0 %v2551
    %v2553 = vpop.xlane.xlu0 %2552
    %v2554 = vsel %vm317, %v2432, 0.0
    %2555 = vadd.xlane.f32.xlu0 %v2554
    %v2556 = vpop.xlane.xlu0 %2555
    %v2557 = vsel %vm317, %v2433, 0.0
    %2558 = vadd.xlane.f32.xlu0 %v2557
    %v2559 = vpop.xlane.xlu0 %2558
    %v2560 = vsel %vm317, %v2434, 0.0
    %2561 = vadd.xlane.f32.xlu0 %v2560
    %v2562 = vpop.xlane.xlu0 %2561
    %v2563 = vsel %vm317, %v2435, 0.0
    %2564 = vadd.xlane.f32.xlu0 %v2563
    %v2565 = vpop.xlane.xlu0 %2564
    %v2566 = vsel %vm317, %v2436, 0.0
    %2567 = vadd.xlane.f32.xlu0 %v2566
    %v2568 = vpop.xlane.xlu0 %2567
    %v2569 = vsel %vm317, %v2437, 0.0
    %2570 = vadd.xlane.f32.xlu0 %v2569
    %v2571 = vpop.xlane.xlu0 %2570
    %v2572 = vsel %vm317, %v2438, 0.0
    %2573 = vadd.xlane.f32.xlu0 %v2572
    %v2574 = vpop.xlane.xlu0 %2573
    %v2575 = vsel %vm317, %v2439, 0.0
    %2576 = vadd.xlane.f32.xlu0 %v2575
    %v2577 = vpop.xlane.xlu0 %2576
    %v2578 = vsel %vm317, %v2440, 0.0
    %2579 = vadd.xlane.f32.xlu0 %v2578
    %v2580 = vpop.xlane.xlu0 %2579
    %v2581 = vsel %vm317, %v2441, 0.0
    %2582 = vadd.xlane.f32.xlu0 %v2581
    %v2583 = vpop.xlane.xlu0 %2582
    %v2584 = vsel %vm317, %v2442, 0.0
    %2585 = vadd.xlane.f32.xlu0 %v2584
    %v2586 = vpop.xlane.xlu0 %2585
    %v2587 = vsel %vm317, %v2443, 0.0
    %2588 = vadd.xlane.f32.xlu0 %v2587
    %v2589 = vpop.xlane.xlu0 %2588
    %v2590 = vsel %vm317, %v2444, 0.0
    %2591 = vadd.xlane.f32.xlu0 %v2590
    %v2592 = vpop.xlane.xlu0 %2591
    %v2593 = vsel %vm317, %v2445, 0.0
    %2594 = vadd.xlane.f32.xlu0 %v2593
    %v2595 = vpop.xlane.xlu0 %2594
    %v2596 = vsel %vm317, %v2446, 0.0
    %2597 = vadd.xlane.f32.xlu0 %v2596
    %v2598 = vpop.xlane.xlu0 %2597
    %v2599 = vsel %vm317, %v2447, 0.0
    %2600 = vadd.xlane.f32.xlu0 %v2599
    %v2601 = vpop.xlane.xlu0 %2600
    %v2602 = vsel %vm317, %v2448, 0.0
    %2603 = vadd.xlane.f32.xlu0 %v2602
    %v2604 = vpop.xlane.xlu0 %2603
    %v2605 = vsel %vm317, %v2449, 0.0
    %2606 = vadd.xlane.f32.xlu0 %v2605
    %v2607 = vpop.xlane.xlu0 %2606
    %v2608 = vsel %vm317, %v2450, 0.0
    %2609 = vadd.xlane.f32.xlu0 %v2608
    %v2610 = vpop.xlane.xlu0 %2609
    %v2611 = vsel %vm317, %v2451, 0.0
    %2612 = vadd.xlane.f32.xlu0 %v2611
    %v2613 = vpop.xlane.xlu0 %2612
    %v2614 = vsel %vm317, %v2452, 0.0
    %2615 = vadd.xlane.f32.xlu0 %v2614
    %v2616 = vpop.xlane.xlu0 %2615
    %v2617 = vsel %vm317, %v2453, 0.0
    %2618 = vadd.xlane.f32.xlu0 %v2617
    %v2619 = vpop.xlane.xlu0 %2618
    %v2620 = vsel %vm317, %v2454, 0.0
    %2621 = vadd.xlane.f32.xlu0 %v2620
    %v2622 = vpop.xlane.xlu0 %2621
    %v2623 = vsel %vm317, %v2455, 0.0
    %2624 = vadd.xlane.f32.xlu0 %v2623
    %v2625 = vpop.xlane.xlu0 %2624
    %v2626 = vsel %vm317, %v2456, 0.0
    %2627 = vadd.xlane.f32.xlu0 %v2626
    %v2628 = vpop.xlane.xlu0 %2627
    %v2629 = vsel %vm317, %v2457, 0.0
    %2630 = vadd.xlane.f32.xlu0 %v2629
    %v2631 = vpop.xlane.xlu0 %2630
    %v2632 = vsel %vm317, %v2458, 0.0
    %2633 = vadd.xlane.f32.xlu0 %v2632
    %v2634 = vpop.xlane.xlu0 %2633
    %v2635 = vsel %vm317, %v2459, 0.0
    %2636 = vadd.xlane.f32.xlu0 %v2635
    %v2637 = vpop.xlane.xlu0 %2636
    %v2638 = vsel %vm317, %v2460, 0.0
    %2639 = vadd.xlane.f32.xlu0 %v2638
    %v2640 = vpop.xlane.xlu0 %2639
    %v2641 = vsel %vm317, %v2461, 0.0
    %2642 = vadd.xlane.f32.xlu0 %v2641
    %v2643 = vpop.xlane.xlu0 %2642
    %v2644 = vsel %vm317, %v2462, 0.0
    %2645 = vadd.xlane.f32.xlu0 %v2644
    %v2646 = vpop.xlane.xlu0 %2645
    %v2647 = vsel %vm317, %v2463, 0.0
    %2648 = vadd.xlane.f32.xlu0 %v2647
    %v2649 = vpop.xlane.xlu0 %2648
    %v2650 = vsel %vm317, %v2464, 0.0
    %2651 = vadd.xlane.f32.xlu0 %v2650
    %v2652 = vpop.xlane.xlu0 %2651
    %v2653 = vsel %vm317, %v2465, 0.0
    %2654 = vadd.xlane.f32.xlu0 %v2653
    %v2655 = vpop.xlane.xlu0 %2654
    %v2656 = vsel %vm317, %v2466, 0.0
    %2657 = vadd.xlane.f32.xlu0 %v2656
    %v2658 = vpop.xlane.xlu0 %2657
    %2723 = vrot.lane.b32.xlu0 %v2403, 64
    %v2724 = vpop.permute.xlu0 %2723
    %2725 = vrot.lane.b32.xlu0 %v2404, 64
    %v2726 = vpop.permute.xlu0 %2725
    %2727 = vrot.lane.b32.xlu0 %v2405, 64
    %v2728 = vpop.permute.xlu0 %2727
    %2729 = vrot.lane.b32.xlu0 %v2406, 64
    %v2730 = vpop.permute.xlu0 %2729
    %2731 = vrot.lane.b32.xlu0 %v2407, 64
    %v2732 = vpop.permute.xlu0 %2731
    %2733 = vrot.lane.b32.xlu0 %v2408, 64
    %v2734 = vpop.permute.xlu0 %2733
    %2735 = vrot.lane.b32.xlu0 %v2409, 64
    %v2736 = vpop.permute.xlu0 %2735
    %2737 = vrot.lane.b32.xlu0 %v2410, 64
    %v2738 = vpop.permute.xlu0 %2737
    %2739 = vrot.lane.b32.xlu0 %v2411, 64
    %v2740 = vpop.permute.xlu0 %2739
    %2741 = vrot.lane.b32.xlu0 %v2412, 64
    %v2742 = vpop.permute.xlu0 %2741
    %2743 = vrot.lane.b32.xlu0 %v2413, 64
    %v2744 = vpop.permute.xlu0 %2743
    %2745 = vrot.lane.b32.xlu0 %v2414, 64
    %v2746 = vpop.permute.xlu0 %2745
    %2747 = vrot.lane.b32.xlu0 %v2415, 64
    %v2748 = vpop.permute.xlu0 %2747
    %2749 = vrot.lane.b32.xlu0 %v2416, 64
    %v2750 = vpop.permute.xlu0 %2749
    %2751 = vrot.lane.b32.xlu0 %v2417, 64
    %v2752 = vpop.permute.xlu0 %2751
    %2753 = vrot.lane.b32.xlu0 %v2418, 64
    %v2754 = vpop.permute.xlu0 %2753
    %2755 = vrot.lane.b32.xlu0 %v2419, 64
    %v2756 = vpop.permute.xlu0 %2755
    %2757 = vrot.lane.b32.xlu0 %v2420, 64
    %v2758 = vpop.permute.xlu0 %2757
    %2759 = vrot.lane.b32.xlu0 %v2421, 64
    %v2760 = vpop.permute.xlu0 %2759
    %2761 = vrot.lane.b32.xlu0 %v2422, 64
    %v2762 = vpop.permute.xlu0 %2761
    %2763 = vrot.lane.b32.xlu0 %v2423, 64
    %v2764 = vpop.permute.xlu0 %2763
    %2765 = vrot.lane.b32.xlu0 %v2424, 64
    %v2766 = vpop.permute.xlu0 %2765
    %2767 = vrot.lane.b32.xlu0 %v2425, 64
    %v2768 = vpop.permute.xlu0 %2767
    %2769 = vrot.lane.b32.xlu0 %v2426, 64
    %v2770 = vpop.permute.xlu0 %2769
    %2771 = vrot.lane.b32.xlu0 %v2427, 64
    %v2772 = vpop.permute.xlu0 %2771
    %2773 = vrot.lane.b32.xlu0 %v2428, 64
    %v2774 = vpop.permute.xlu0 %2773
    %2775 = vrot.lane.b32.xlu0 %v2429, 64
    %v2776 = vpop.permute.xlu0 %2775
    %2777 = vrot.lane.b32.xlu0 %v2430, 64
    %v2778 = vpop.permute.xlu0 %2777
    %2779 = vrot.lane.b32.xlu0 %v2431, 64
    %v2780 = vpop.permute.xlu0 %2779
    %2781 = vrot.lane.b32.xlu0 %v2432, 64
    %v2782 = vpop.permute.xlu0 %2781
    %2783 = vrot.lane.b32.xlu0 %v2433, 64
    %v2784 = vpop.permute.xlu0 %2783
    %2785 = vrot.lane.b32.xlu0 %v2434, 64
    %v2786 = vpop.permute.xlu0 %2785
    %2787 = vrot.lane.b32.xlu0 %v2435, 64
    %v2788 = vpop.permute.xlu0 %2787
    %2789 = vrot.lane.b32.xlu0 %v2436, 64
    %v2790 = vpop.permute.xlu0 %2789
    %2791 = vrot.lane.b32.xlu0 %v2437, 64
    %v2792 = vpop.permute.xlu0 %2791
    %2793 = vrot.lane.b32.xlu0 %v2438, 64
    %v2794 = vpop.permute.xlu0 %2793
    %2795 = vrot.lane.b32.xlu0 %v2439, 64
    %v2796 = vpop.permute.xlu0 %2795
    %2797 = vrot.lane.b32.xlu0 %v2440, 64
    %v2798 = vpop.permute.xlu0 %2797
    %2799 = vrot.lane.b32.xlu0 %v2441, 64
    %v2800 = vpop.permute.xlu0 %2799
    %2801 = vrot.lane.b32.xlu0 %v2442, 64
    %v2802 = vpop.permute.xlu0 %2801
    %2803 = vrot.lane.b32.xlu0 %v2443, 64
    %v2804 = vpop.permute.xlu0 %2803
    %2805 = vrot.lane.b32.xlu0 %v2444, 64
    %v2806 = vpop.permute.xlu0 %2805
    %2807 = vrot.lane.b32.xlu0 %v2445, 64
    %v2808 = vpop.permute.xlu0 %2807
    %2809 = vrot.lane.b32.xlu0 %v2446, 64
    %v2810 = vpop.permute.xlu0 %2809
    %2811 = vrot.lane.b32.xlu0 %v2447, 64
    %v2812 = vpop.permute.xlu0 %2811
    %2813 = vrot.lane.b32.xlu0 %v2448, 64
    %v2814 = vpop.permute.xlu0 %2813
    %2815 = vrot.lane.b32.xlu0 %v2449, 64
    %v2816 = vpop.permute.xlu0 %2815
    %2817 = vrot.lane.b32.xlu0 %v2450, 64
    %v2818 = vpop.permute.xlu0 %2817
    %2819 = vrot.lane.b32.xlu0 %v2451, 64
    %v2820 = vpop.permute.xlu0 %2819
    %2821 = vrot.lane.b32.xlu0 %v2452, 64
    %v2822 = vpop.permute.xlu0 %2821
    %2823 = vrot.lane.b32.xlu0 %v2453, 64
    %v2824 = vpop.permute.xlu0 %2823
    %2825 = vrot.lane.b32.xlu0 %v2454, 64
    %v2826 = vpop.permute.xlu0 %2825
    %2827 = vrot.lane.b32.xlu0 %v2455, 64
    %v2828 = vpop.permute.xlu0 %2827
    %2829 = vrot.lane.b32.xlu0 %v2456, 64
    %v2830 = vpop.permute.xlu0 %2829
    %2831 = vrot.lane.b32.xlu0 %v2457, 64
    %v2832 = vpop.permute.xlu0 %2831
    %2833 = vrot.lane.b32.xlu0 %v2458, 64
    %v2834 = vpop.permute.xlu0 %2833
    %2835 = vrot.lane.b32.xlu0 %v2459, 64
    %v2836 = vpop.permute.xlu0 %2835
    %2837 = vrot.lane.b32.xlu0 %v2460, 64
    %v2838 = vpop.permute.xlu0 %2837
    %2839 = vrot.lane.b32.xlu0 %v2461, 64
    %v2840 = vpop.permute.xlu0 %2839
    %2841 = vrot.lane.b32.xlu0 %v2462, 64
    %v2842 = vpop.permute.xlu0 %2841
    %2843 = vrot.lane.b32.xlu0 %v2463, 64
    %v2844 = vpop.permute.xlu0 %2843
    %2845 = vrot.lane.b32.xlu0 %v2464, 64
    %v2846 = vpop.permute.xlu0 %2845
    %2847 = vrot.lane.b32.xlu0 %v2465, 64
    %v2848 = vpop.permute.xlu0 %2847
    %2849 = vrot.lane.b32.xlu0 %v2466, 64
    %v2850 = vpop.permute.xlu0 %2849
    %v2915 = vsel %vm317, %v2724, 0.0
    %2916 = vadd.xlane.f32.xlu0 %v2915
    %v2917 = vpop.xlane.xlu0 %2916
    %v2918 = vsel %vm317, %v2726, 0.0
    %2919 = vadd.xlane.f32.xlu0 %v2918
    %v2920 = vpop.xlane.xlu0 %2919
    %v2921 = vsel %vm317, %v2728, 0.0
    %2922 = vadd.xlane.f32.xlu0 %v2921
    %v2923 = vpop.xlane.xlu0 %2922
    %v2924 = vsel %vm317, %v2730, 0.0
    %2925 = vadd.xlane.f32.xlu0 %v2924
    %v2926 = vpop.xlane.xlu0 %2925
    %v2927 = vsel %vm317, %v2732, 0.0
    %2928 = vadd.xlane.f32.xlu0 %v2927
    %v2929 = vpop.xlane.xlu0 %2928
    %v2930 = vsel %vm317, %v2734, 0.0
    %2931 = vadd.xlane.f32.xlu0 %v2930
    %v2932 = vpop.xlane.xlu0 %2931
    %v2933 = vsel %vm317, %v2736, 0.0
    %2934 = vadd.xlane.f32.xlu0 %v2933
    %v2935 = vpop.xlane.xlu0 %2934
    %v2936 = vsel %vm317, %v2738, 0.0
    %2937 = vadd.xlane.f32.xlu0 %v2936
    %v2938 = vpop.xlane.xlu0 %2937
    %v2939 = vsel %vm317, %v2740, 0.0
    %2940 = vadd.xlane.f32.xlu0 %v2939
    %v2941 = vpop.xlane.xlu0 %2940
    %v2942 = vsel %vm317, %v2742, 0.0
    %2943 = vadd.xlane.f32.xlu0 %v2942
    %v2944 = vpop.xlane.xlu0 %2943
    %v2945 = vsel %vm317, %v2744, 0.0
    %2946 = vadd.xlane.f32.xlu0 %v2945
    %v2947 = vpop.xlane.xlu0 %2946
    %v2948 = vsel %vm317, %v2746, 0.0
    %2949 = vadd.xlane.f32.xlu0 %v2948
    %v2950 = vpop.xlane.xlu0 %2949
    %v2951 = vsel %vm317, %v2748, 0.0
    %2952 = vadd.xlane.f32.xlu0 %v2951
    %v2953 = vpop.xlane.xlu0 %2952
    %v2954 = vsel %vm317, %v2750, 0.0
    %2955 = vadd.xlane.f32.xlu0 %v2954
    %v2956 = vpop.xlane.xlu0 %2955
    %v2957 = vsel %vm317, %v2752, 0.0
    %2958 = vadd.xlane.f32.xlu0 %v2957
    %v2959 = vpop.xlane.xlu0 %2958
    %v2960 = vsel %vm317, %v2754, 0.0
    %2961 = vadd.xlane.f32.xlu0 %v2960
    %v2962 = vpop.xlane.xlu0 %2961
    %v2963 = vsel %vm317, %v2756, 0.0
    %2964 = vadd.xlane.f32.xlu0 %v2963
    %v2965 = vpop.xlane.xlu0 %2964
    %v2966 = vsel %vm317, %v2758, 0.0
    %2967 = vadd.xlane.f32.xlu0 %v2966
    %v2968 = vpop.xlane.xlu0 %2967
    %v2969 = vsel %vm317, %v2760, 0.0
    %2970 = vadd.xlane.f32.xlu0 %v2969
    %v2971 = vpop.xlane.xlu0 %2970
    %v2972 = vsel %vm317, %v2762, 0.0
    %2973 = vadd.xlane.f32.xlu0 %v2972
    %v2974 = vpop.xlane.xlu0 %2973
    %v2975 = vsel %vm317, %v2764, 0.0
    %2976 = vadd.xlane.f32.xlu0 %v2975
    %v2977 = vpop.xlane.xlu0 %2976
    %v2978 = vsel %vm317, %v2766, 0.0
    %2979 = vadd.xlane.f32.xlu0 %v2978
    %v2980 = vpop.xlane.xlu0 %2979
    %v2981 = vsel %vm317, %v2768, 0.0
    %2982 = vadd.xlane.f32.xlu0 %v2981
    %v2983 = vpop.xlane.xlu0 %2982
    %v2984 = vsel %vm317, %v2770, 0.0
    %2985 = vadd.xlane.f32.xlu0 %v2984
    %v2986 = vpop.xlane.xlu0 %2985
    %v2987 = vsel %vm317, %v2772, 0.0
    %2988 = vadd.xlane.f32.xlu0 %v2987
    %v2989 = vpop.xlane.xlu0 %2988
    %v2990 = vsel %vm317, %v2774, 0.0
    %2991 = vadd.xlane.f32.xlu0 %v2990
    %v2992 = vpop.xlane.xlu0 %2991
    %v2993 = vsel %vm317, %v2776, 0.0
    %2994 = vadd.xlane.f32.xlu0 %v2993
    %v2995 = vpop.xlane.xlu0 %2994
    %v2996 = vsel %vm317, %v2778, 0.0
    %2997 = vadd.xlane.f32.xlu0 %v2996
    %v2998 = vpop.xlane.xlu0 %2997
    %v2999 = vsel %vm317, %v2780, 0.0
    %3000 = vadd.xlane.f32.xlu0 %v2999
    %v3001 = vpop.xlane.xlu0 %3000
    %v3002 = vsel %vm317, %v2782, 0.0
    %3003 = vadd.xlane.f32.xlu0 %v3002
    %v3004 = vpop.xlane.xlu0 %3003
    %v3005 = vsel %vm317, %v2784, 0.0
    %3006 = vadd.xlane.f32.xlu0 %v3005
    %v3007 = vpop.xlane.xlu0 %3006
    %v3008 = vsel %vm317, %v2786, 0.0
    %3009 = vadd.xlane.f32.xlu0 %v3008
    %v3010 = vpop.xlane.xlu0 %3009
    %v3011 = vsel %vm317, %v2788, 0.0
    %3012 = vadd.xlane.f32.xlu0 %v3011
    %v3013 = vpop.xlane.xlu0 %3012
    %v3014 = vsel %vm317, %v2790, 0.0
    %3015 = vadd.xlane.f32.xlu0 %v3014
    %v3016 = vpop.xlane.xlu0 %3015
    %v3017 = vsel %vm317, %v2792, 0.0
    %3018 = vadd.xlane.f32.xlu0 %v3017
    %v3019 = vpop.xlane.xlu0 %3018
    %v3020 = vsel %vm317, %v2794, 0.0
    %3021 = vadd.xlane.f32.xlu0 %v3020
    %v3022 = vpop.xlane.xlu0 %3021
    %v3023 = vsel %vm317, %v2796, 0.0
    %3024 = vadd.xlane.f32.xlu0 %v3023
    %v3025 = vpop.xlane.xlu0 %3024
    %v3026 = vsel %vm317, %v2798, 0.0
    %3027 = vadd.xlane.f32.xlu0 %v3026
    %v3028 = vpop.xlane.xlu0 %3027
    %v3029 = vsel %vm317, %v2800, 0.0
    %3030 = vadd.xlane.f32.xlu0 %v3029
    %v3031 = vpop.xlane.xlu0 %3030
    %v3032 = vsel %vm317, %v2802, 0.0
    %3033 = vadd.xlane.f32.xlu0 %v3032
    %v3034 = vpop.xlane.xlu0 %3033
    %v3035 = vsel %vm317, %v2804, 0.0
    %3036 = vadd.xlane.f32.xlu0 %v3035
    %v3037 = vpop.xlane.xlu0 %3036
    %v3038 = vsel %vm317, %v2806, 0.0
    %3039 = vadd.xlane.f32.xlu0 %v3038
    %v3040 = vpop.xlane.xlu0 %3039
    %v3041 = vsel %vm317, %v2808, 0.0
    %3042 = vadd.xlane.f32.xlu0 %v3041
    %v3043 = vpop.xlane.xlu0 %3042
    %v3044 = vsel %vm317, %v2810, 0.0
    %3045 = vadd.xlane.f32.xlu0 %v3044
    %v3046 = vpop.xlane.xlu0 %3045
    %v3047 = vsel %vm317, %v2812, 0.0
    %3048 = vadd.xlane.f32.xlu0 %v3047
    %v3049 = vpop.xlane.xlu0 %3048
    %v3050 = vsel %vm317, %v2814, 0.0
    %3051 = vadd.xlane.f32.xlu0 %v3050
    %v3052 = vpop.xlane.xlu0 %3051
    %v3053 = vsel %vm317, %v2816, 0.0
    %3054 = vadd.xlane.f32.xlu0 %v3053
    %v3055 = vpop.xlane.xlu0 %3054
    %v3056 = vsel %vm317, %v2818, 0.0
    %3057 = vadd.xlane.f32.xlu0 %v3056
    %v3058 = vpop.xlane.xlu0 %3057
    %v3059 = vsel %vm317, %v2820, 0.0
    %3060 = vadd.xlane.f32.xlu0 %v3059
    %v3061 = vpop.xlane.xlu0 %3060
    %v3062 = vsel %vm317, %v2822, 0.0
    %3063 = vadd.xlane.f32.xlu0 %v3062
    %v3064 = vpop.xlane.xlu0 %3063
    %v3065 = vsel %vm317, %v2824, 0.0
    %3066 = vadd.xlane.f32.xlu0 %v3065
    %v3067 = vpop.xlane.xlu0 %3066
    %v3068 = vsel %vm317, %v2826, 0.0
    %3069 = vadd.xlane.f32.xlu0 %v3068
    %v3070 = vpop.xlane.xlu0 %3069
    %v3071 = vsel %vm317, %v2828, 0.0
    %3072 = vadd.xlane.f32.xlu0 %v3071
    %v3073 = vpop.xlane.xlu0 %3072
    %v3074 = vsel %vm317, %v2830, 0.0
    %3075 = vadd.xlane.f32.xlu0 %v3074
    %v3076 = vpop.xlane.xlu0 %3075
    %v3077 = vsel %vm317, %v2832, 0.0
    %3078 = vadd.xlane.f32.xlu0 %v3077
    %v3079 = vpop.xlane.xlu0 %3078
    %v3080 = vsel %vm317, %v2834, 0.0
    %3081 = vadd.xlane.f32.xlu0 %v3080
    %v3082 = vpop.xlane.xlu0 %3081
    %v3083 = vsel %vm317, %v2836, 0.0
    %3084 = vadd.xlane.f32.xlu0 %v3083
    %v3085 = vpop.xlane.xlu0 %3084
    %v3086 = vsel %vm317, %v2838, 0.0
    %3087 = vadd.xlane.f32.xlu0 %v3086
    %v3088 = vpop.xlane.xlu0 %3087
    %v3089 = vsel %vm317, %v2840, 0.0
    %3090 = vadd.xlane.f32.xlu0 %v3089
    %v3091 = vpop.xlane.xlu0 %3090
    %v3092 = vsel %vm317, %v2842, 0.0
    %3093 = vadd.xlane.f32.xlu0 %v3092
    %v3094 = vpop.xlane.xlu0 %3093
    %v3095 = vsel %vm317, %v2844, 0.0
    %3096 = vadd.xlane.f32.xlu0 %v3095
    %v3097 = vpop.xlane.xlu0 %3096
    %v3098 = vsel %vm317, %v2846, 0.0
    %3099 = vadd.xlane.f32.xlu0 %v3098
    %v3100 = vpop.xlane.xlu0 %3099
    %v3101 = vsel %vm317, %v2848, 0.0
    %3102 = vadd.xlane.f32.xlu0 %v3101
    %v3103 = vpop.xlane.xlu0 %3102
    %v3104 = vsel %vm317, %v2850, 0.0
    %3105 = vadd.xlane.f32.xlu0 %v3104
    %v3106 = vpop.xlane.xlu0 %3105
    %v3107 = vld [vmem:[%s10] sm:$0x1]
    %v3109 = vlaneseq
    %v3110 = vshrl.u32 %v3109, 7
    %v3111 = vsub.s32 0, %v3110
    %v3112 = vrot.slane %v3107, %v3111
    %v3114 = vmul.f32 %v307, %v3112
    %v3115 = vmul.f32 %v308, %v3112
    %v3118 = vlaneseq
    %v3119 = vshrl.u32 %v3118, 7
    %v3120 = vsub.s32 0, %v3119
    %v3121 = vrot.slane %v3114, %v3120
    %3123 = vbcast.lane.b32.xlu0 %v3121, 256
    %v3124 = vpop.permute.xlu0 %3123
    %s3126 = sor.u32 256, 8
    %3127 = vbcast.lane.b32.xlu0 %v3121, %s3126
    %v3128 = vpop.permute.xlu0 %3127
    %s3130 = sor.u32 256, 16
    %3131 = vbcast.lane.b32.xlu0 %v3121, %s3130
    %v3132 = vpop.permute.xlu0 %3131
    %s3134 = sor.u32 256, 24
    %3135 = vbcast.lane.b32.xlu0 %v3121, %s3134
    %v3136 = vpop.permute.xlu0 %3135
    %s3138 = sor.u32 256, 32
    %3139 = vbcast.lane.b32.xlu0 %v3121, %s3138
    %v3140 = vpop.permute.xlu0 %3139
    %s3142 = sor.u32 256, 40
    %3143 = vbcast.lane.b32.xlu0 %v3121, %s3142
    %v3144 = vpop.permute.xlu0 %3143
    %s3146 = sor.u32 256, 48
    %3147 = vbcast.lane.b32.xlu0 %v3121, %s3146
    %v3148 = vpop.permute.xlu0 %3147
    %s3150 = sor.u32 256, 56
    %3151 = vbcast.lane.b32.xlu0 %v3121, %s3150
    %v3152 = vpop.permute.xlu0 %3151
    %v3153 = vlaneseq
    %v3154 = vshrl.u32 %v3153, 7
    %v3155 = vsub.s32 1, %v3154
    %v3156 = vrot.slane %v3114, %v3155
    %3158 = vbcast.lane.b32.xlu0 %v3156, 256
    %v3159 = vpop.permute.xlu0 %3158
    %s3161 = sor.u32 256, 8
    %3162 = vbcast.lane.b32.xlu0 %v3156, %s3161
    %v3163 = vpop.permute.xlu0 %3162
    %s3165 = sor.u32 256, 16
    %3166 = vbcast.lane.b32.xlu0 %v3156, %s3165
    %v3167 = vpop.permute.xlu0 %3166
    %s3169 = sor.u32 256, 24
    %3170 = vbcast.lane.b32.xlu0 %v3156, %s3169
    %v3171 = vpop.permute.xlu0 %3170
    %s3173 = sor.u32 256, 32
    %3174 = vbcast.lane.b32.xlu0 %v3156, %s3173
    %v3175 = vpop.permute.xlu0 %3174
    %s3177 = sor.u32 256, 40
    %3178 = vbcast.lane.b32.xlu0 %v3156, %s3177
    %v3179 = vpop.permute.xlu0 %3178
    %s3181 = sor.u32 256, 48
    %3182 = vbcast.lane.b32.xlu0 %v3156, %s3181
    %v3183 = vpop.permute.xlu0 %3182
    %s3185 = sor.u32 256, 56
    %3186 = vbcast.lane.b32.xlu0 %v3156, %s3185
    %v3187 = vpop.permute.xlu0 %3186
    %v3188 = vlaneseq
    %v3189 = vshrl.u32 %v3188, 7
    %v3190 = vsub.s32 2, %v3189
    %v3191 = vrot.slane %v3114, %v3190
    %3193 = vbcast.lane.b32.xlu0 %v3191, 256
    %v3194 = vpop.permute.xlu0 %3193
    %s3196 = sor.u32 256, 8
    %3197 = vbcast.lane.b32.xlu0 %v3191, %s3196
    %v3198 = vpop.permute.xlu0 %3197
    %s3200 = sor.u32 256, 16
    %3201 = vbcast.lane.b32.xlu0 %v3191, %s3200
    %v3202 = vpop.permute.xlu0 %3201
    %s3204 = sor.u32 256, 24
    %3205 = vbcast.lane.b32.xlu0 %v3191, %s3204
    %v3206 = vpop.permute.xlu0 %3205
    %s3208 = sor.u32 256, 32
    %3209 = vbcast.lane.b32.xlu0 %v3191, %s3208
    %v3210 = vpop.permute.xlu0 %3209
    %s3212 = sor.u32 256, 40
    %3213 = vbcast.lane.b32.xlu0 %v3191, %s3212
    %v3214 = vpop.permute.xlu0 %3213
    %s3216 = sor.u32 256, 48
    %3217 = vbcast.lane.b32.xlu0 %v3191, %s3216
    %v3218 = vpop.permute.xlu0 %3217
    %s3220 = sor.u32 256, 56
    %3221 = vbcast.lane.b32.xlu0 %v3191, %s3220
    %v3222 = vpop.permute.xlu0 %3221
    %v3223 = vlaneseq
    %v3224 = vshrl.u32 %v3223, 7
    %v3225 = vsub.s32 3, %v3224
    %v3226 = vrot.slane %v3114, %v3225
    %3228 = vbcast.lane.b32.xlu0 %v3226, 256
    %v3229 = vpop.permute.xlu0 %3228
    %s3231 = sor.u32 256, 8
    %3232 = vbcast.lane.b32.xlu0 %v3226, %s3231
    %v3233 = vpop.permute.xlu0 %3232
    %s3235 = sor.u32 256, 16
    %3236 = vbcast.lane.b32.xlu0 %v3226, %s3235
    %v3237 = vpop.permute.xlu0 %3236
    %s3239 = sor.u32 256, 24
    %3240 = vbcast.lane.b32.xlu0 %v3226, %s3239
    %v3241 = vpop.permute.xlu0 %3240
    %s3243 = sor.u32 256, 32
    %3244 = vbcast.lane.b32.xlu0 %v3226, %s3243
    %v3245 = vpop.permute.xlu0 %3244
    %s3247 = sor.u32 256, 40
    %3248 = vbcast.lane.b32.xlu0 %v3226, %s3247
    %v3249 = vpop.permute.xlu0 %3248
    %s3251 = sor.u32 256, 48
    %3252 = vbcast.lane.b32.xlu0 %v3226, %s3251
    %v3253 = vpop.permute.xlu0 %3252
    %s3255 = sor.u32 256, 56
    %3256 = vbcast.lane.b32.xlu0 %v3226, %s3255
    %v3257 = vpop.permute.xlu0 %3256
    %v3258 = vlaneseq
    %v3259 = vshrl.u32 %v3258, 7
    %v3260 = vsub.s32 4, %v3259
    %v3261 = vrot.slane %v3114, %v3260
    %3263 = vbcast.lane.b32.xlu0 %v3261, 256
    %v3264 = vpop.permute.xlu0 %3263
    %s3266 = sor.u32 256, 8
    %3267 = vbcast.lane.b32.xlu0 %v3261, %s3266
    %v3268 = vpop.permute.xlu0 %3267
    %s3270 = sor.u32 256, 16
    %3271 = vbcast.lane.b32.xlu0 %v3261, %s3270
    %v3272 = vpop.permute.xlu0 %3271
    %s3274 = sor.u32 256, 24
    %3275 = vbcast.lane.b32.xlu0 %v3261, %s3274
    %v3276 = vpop.permute.xlu0 %3275
    %s3278 = sor.u32 256, 32
    %3279 = vbcast.lane.b32.xlu0 %v3261, %s3278
    %v3280 = vpop.permute.xlu0 %3279
    %s3282 = sor.u32 256, 40
    %3283 = vbcast.lane.b32.xlu0 %v3261, %s3282
    %v3284 = vpop.permute.xlu0 %3283
    %s3286 = sor.u32 256, 48
    %3287 = vbcast.lane.b32.xlu0 %v3261, %s3286
    %v3288 = vpop.permute.xlu0 %3287
    %s3290 = sor.u32 256, 56
    %3291 = vbcast.lane.b32.xlu0 %v3261, %s3290
    %v3292 = vpop.permute.xlu0 %3291
    %v3293 = vlaneseq
    %v3294 = vshrl.u32 %v3293, 7
    %v3295 = vsub.s32 5, %v3294
    %v3296 = vrot.slane %v3114, %v3295
    %3298 = vbcast.lane.b32.xlu0 %v3296, 256
    %v3299 = vpop.permute.xlu0 %3298
    %s3301 = sor.u32 256, 8
    %3302 = vbcast.lane.b32.xlu0 %v3296, %s3301
    %v3303 = vpop.permute.xlu0 %3302
    %s3305 = sor.u32 256, 16
    %3306 = vbcast.lane.b32.xlu0 %v3296, %s3305
    %v3307 = vpop.permute.xlu0 %3306
    %s3309 = sor.u32 256, 24
    %3310 = vbcast.lane.b32.xlu0 %v3296, %s3309
    %v3311 = vpop.permute.xlu0 %3310
    %s3313 = sor.u32 256, 32
    %3314 = vbcast.lane.b32.xlu0 %v3296, %s3313
    %v3315 = vpop.permute.xlu0 %3314
    %s3317 = sor.u32 256, 40
    %3318 = vbcast.lane.b32.xlu0 %v3296, %s3317
    %v3319 = vpop.permute.xlu0 %3318
    %s3321 = sor.u32 256, 48
    %3322 = vbcast.lane.b32.xlu0 %v3296, %s3321
    %v3323 = vpop.permute.xlu0 %3322
    %s3325 = sor.u32 256, 56
    %3326 = vbcast.lane.b32.xlu0 %v3296, %s3325
    %v3327 = vpop.permute.xlu0 %3326
    %v3328 = vlaneseq
    %v3329 = vshrl.u32 %v3328, 7
    %v3330 = vsub.s32 6, %v3329
    %v3331 = vrot.slane %v3114, %v3330
    %3333 = vbcast.lane.b32.xlu0 %v3331, 256
    %v3334 = vpop.permute.xlu0 %3333
    %s3336 = sor.u32 256, 8
    %3337 = vbcast.lane.b32.xlu0 %v3331, %s3336
    %v3338 = vpop.permute.xlu0 %3337
    %s3340 = sor.u32 256, 16
    %3341 = vbcast.lane.b32.xlu0 %v3331, %s3340
    %v3342 = vpop.permute.xlu0 %3341
    %s3344 = sor.u32 256, 24
    %3345 = vbcast.lane.b32.xlu0 %v3331, %s3344
    %v3346 = vpop.permute.xlu0 %3345
    %s3348 = sor.u32 256, 32
    %3349 = vbcast.lane.b32.xlu0 %v3331, %s3348
    %v3350 = vpop.permute.xlu0 %3349
    %s3352 = sor.u32 256, 40
    %3353 = vbcast.lane.b32.xlu0 %v3331, %s3352
    %v3354 = vpop.permute.xlu0 %3353
    %s3356 = sor.u32 256, 48
    %3357 = vbcast.lane.b32.xlu0 %v3331, %s3356
    %v3358 = vpop.permute.xlu0 %3357
    %s3360 = sor.u32 256, 56
    %3361 = vbcast.lane.b32.xlu0 %v3331, %s3360
    %v3362 = vpop.permute.xlu0 %3361
    %v3363 = vlaneseq
    %v3364 = vshrl.u32 %v3363, 7
    %v3365 = vsub.s32 7, %v3364
    %v3366 = vrot.slane %v3114, %v3365
    %3368 = vbcast.lane.b32.xlu0 %v3366, 256
    %v3369 = vpop.permute.xlu0 %3368
    %s3371 = sor.u32 256, 8
    %3372 = vbcast.lane.b32.xlu0 %v3366, %s3371
    %v3373 = vpop.permute.xlu0 %3372
    %s3375 = sor.u32 256, 16
    %3376 = vbcast.lane.b32.xlu0 %v3366, %s3375
    %v3377 = vpop.permute.xlu0 %3376
    %s3379 = sor.u32 256, 24
    %3380 = vbcast.lane.b32.xlu0 %v3366, %s3379
    %v3381 = vpop.permute.xlu0 %3380
    %s3383 = sor.u32 256, 32
    %3384 = vbcast.lane.b32.xlu0 %v3366, %s3383
    %v3385 = vpop.permute.xlu0 %3384
    %s3387 = sor.u32 256, 40
    %3388 = vbcast.lane.b32.xlu0 %v3366, %s3387
    %v3389 = vpop.permute.xlu0 %3388
    %s3391 = sor.u32 256, 48
    %3392 = vbcast.lane.b32.xlu0 %v3366, %s3391
    %v3393 = vpop.permute.xlu0 %3392
    %s3395 = sor.u32 256, 56
    %3396 = vbcast.lane.b32.xlu0 %v3366, %s3395
    %v3397 = vpop.permute.xlu0 %3396
    %v3398 = vlaneseq
    %v3399 = vshrl.u32 %v3398, 7
    %v3400 = vsub.s32 0, %v3399
    %v3401 = vrot.slane %v3115, %v3400
    %3403 = vbcast.lane.b32.xlu0 %v3401, 256
    %v3404 = vpop.permute.xlu0 %3403
    %s3406 = sor.u32 256, 8
    %3407 = vbcast.lane.b32.xlu0 %v3401, %s3406
    %v3408 = vpop.permute.xlu0 %3407
    %s3410 = sor.u32 256, 16
    %3411 = vbcast.lane.b32.xlu0 %v3401, %s3410
    %v3412 = vpop.permute.xlu0 %3411
    %s3414 = sor.u32 256, 24
    %3415 = vbcast.lane.b32.xlu0 %v3401, %s3414
    %v3416 = vpop.permute.xlu0 %3415
    %s3418 = sor.u32 256, 32
    %3419 = vbcast.lane.b32.xlu0 %v3401, %s3418
    %v3420 = vpop.permute.xlu0 %3419
    %s3422 = sor.u32 256, 40
    %3423 = vbcast.lane.b32.xlu0 %v3401, %s3422
    %v3424 = vpop.permute.xlu0 %3423
    %s3426 = sor.u32 256, 48
    %3427 = vbcast.lane.b32.xlu0 %v3401, %s3426
    %v3428 = vpop.permute.xlu0 %3427
    %s3430 = sor.u32 256, 56
    %3431 = vbcast.lane.b32.xlu0 %v3401, %s3430
    %v3432 = vpop.permute.xlu0 %3431
    %v3433 = vlaneseq
    %v3434 = vshrl.u32 %v3433, 7
    %v3435 = vsub.s32 1, %v3434
    %v3436 = vrot.slane %v3115, %v3435
    %3438 = vbcast.lane.b32.xlu0 %v3436, 256
    %v3439 = vpop.permute.xlu0 %3438
    %s3441 = sor.u32 256, 8
    %3442 = vbcast.lane.b32.xlu0 %v3436, %s3441
    %v3443 = vpop.permute.xlu0 %3442
    %s3445 = sor.u32 256, 16
    %3446 = vbcast.lane.b32.xlu0 %v3436, %s3445
    %v3447 = vpop.permute.xlu0 %3446
    %s3449 = sor.u32 256, 24
    %3450 = vbcast.lane.b32.xlu0 %v3436, %s3449
    %v3451 = vpop.permute.xlu0 %3450
    %s3453 = sor.u32 256, 32
    %3454 = vbcast.lane.b32.xlu0 %v3436, %s3453
    %v3455 = vpop.permute.xlu0 %3454
    %s3457 = sor.u32 256, 40
    %3458 = vbcast.lane.b32.xlu0 %v3436, %s3457
    %v3459 = vpop.permute.xlu0 %3458
    %s3461 = sor.u32 256, 48
    %3462 = vbcast.lane.b32.xlu0 %v3436, %s3461
    %v3463 = vpop.permute.xlu0 %3462
    %s3465 = sor.u32 256, 56
    %3466 = vbcast.lane.b32.xlu0 %v3436, %s3465
    %v3467 = vpop.permute.xlu0 %3466
    %v3468 = vlaneseq
    %v3469 = vshrl.u32 %v3468, 7
    %v3470 = vsub.s32 2, %v3469
    %v3471 = vrot.slane %v3115, %v3470
    %3473 = vbcast.lane.b32.xlu0 %v3471, 256
    %v3474 = vpop.permute.xlu0 %3473
    %s3476 = sor.u32 256, 8
    %3477 = vbcast.lane.b32.xlu0 %v3471, %s3476
    %v3478 = vpop.permute.xlu0 %3477
    %s3480 = sor.u32 256, 16
    %3481 = vbcast.lane.b32.xlu0 %v3471, %s3480
    %v3482 = vpop.permute.xlu0 %3481
    %s3484 = sor.u32 256, 24
    %3485 = vbcast.lane.b32.xlu0 %v3471, %s3484
    %v3486 = vpop.permute.xlu0 %3485
    %s3488 = sor.u32 256, 32
    %3489 = vbcast.lane.b32.xlu0 %v3471, %s3488
    %v3490 = vpop.permute.xlu0 %3489
    %s3492 = sor.u32 256, 40
    %3493 = vbcast.lane.b32.xlu0 %v3471, %s3492
    %v3494 = vpop.permute.xlu0 %3493
    %s3496 = sor.u32 256, 48
    %3497 = vbcast.lane.b32.xlu0 %v3471, %s3496
    %v3498 = vpop.permute.xlu0 %3497
    %s3500 = sor.u32 256, 56
    %3501 = vbcast.lane.b32.xlu0 %v3471, %s3500
    %v3502 = vpop.permute.xlu0 %3501
    %v3503 = vlaneseq
    %v3504 = vshrl.u32 %v3503, 7
    %v3505 = vsub.s32 3, %v3504
    %v3506 = vrot.slane %v3115, %v3505
    %3508 = vbcast.lane.b32.xlu0 %v3506, 256
    %v3509 = vpop.permute.xlu0 %3508
    %s3511 = sor.u32 256, 8
    %3512 = vbcast.lane.b32.xlu0 %v3506, %s3511
    %v3513 = vpop.permute.xlu0 %3512
    %s3515 = sor.u32 256, 16
    %3516 = vbcast.lane.b32.xlu0 %v3506, %s3515
    %v3517 = vpop.permute.xlu0 %3516
    %s3519 = sor.u32 256, 24
    %3520 = vbcast.lane.b32.xlu0 %v3506, %s3519
    %v3521 = vpop.permute.xlu0 %3520
    %s3523 = sor.u32 256, 32
    %3524 = vbcast.lane.b32.xlu0 %v3506, %s3523
    %v3525 = vpop.permute.xlu0 %3524
    %s3527 = sor.u32 256, 40
    %3528 = vbcast.lane.b32.xlu0 %v3506, %s3527
    %v3529 = vpop.permute.xlu0 %3528
    %s3531 = sor.u32 256, 48
    %3532 = vbcast.lane.b32.xlu0 %v3506, %s3531
    %v3533 = vpop.permute.xlu0 %3532
    %s3535 = sor.u32 256, 56
    %3536 = vbcast.lane.b32.xlu0 %v3506, %s3535
    %v3537 = vpop.permute.xlu0 %3536
    %v3538 = vlaneseq
    %v3539 = vshrl.u32 %v3538, 7
    %v3540 = vsub.s32 4, %v3539
    %v3541 = vrot.slane %v3115, %v3540
    %3543 = vbcast.lane.b32.xlu0 %v3541, 256
    %v3544 = vpop.permute.xlu0 %3543
    %s3546 = sor.u32 256, 8
    %3547 = vbcast.lane.b32.xlu0 %v3541, %s3546
    %v3548 = vpop.permute.xlu0 %3547
    %s3550 = sor.u32 256, 16
    %3551 = vbcast.lane.b32.xlu0 %v3541, %s3550
    %v3552 = vpop.permute.xlu0 %3551
    %s3554 = sor.u32 256, 24
    %3555 = vbcast.lane.b32.xlu0 %v3541, %s3554
    %v3556 = vpop.permute.xlu0 %3555
    %s3558 = sor.u32 256, 32
    %3559 = vbcast.lane.b32.xlu0 %v3541, %s3558
    %v3560 = vpop.permute.xlu0 %3559
    %s3562 = sor.u32 256, 40
    %3563 = vbcast.lane.b32.xlu0 %v3541, %s3562
    %v3564 = vpop.permute.xlu0 %3563
    %s3566 = sor.u32 256, 48
    %3567 = vbcast.lane.b32.xlu0 %v3541, %s3566
    %v3568 = vpop.permute.xlu0 %3567
    %s3570 = sor.u32 256, 56
    %3571 = vbcast.lane.b32.xlu0 %v3541, %s3570
    %v3572 = vpop.permute.xlu0 %3571
    %v3573 = vlaneseq
    %v3574 = vshrl.u32 %v3573, 7
    %v3575 = vsub.s32 5, %v3574
    %v3576 = vrot.slane %v3115, %v3575
    %3578 = vbcast.lane.b32.xlu0 %v3576, 256
    %v3579 = vpop.permute.xlu0 %3578
    %s3581 = sor.u32 256, 8
    %3582 = vbcast.lane.b32.xlu0 %v3576, %s3581
    %v3583 = vpop.permute.xlu0 %3582
    %s3585 = sor.u32 256, 16
    %3586 = vbcast.lane.b32.xlu0 %v3576, %s3585
    %v3587 = vpop.permute.xlu0 %3586
    %s3589 = sor.u32 256, 24
    %3590 = vbcast.lane.b32.xlu0 %v3576, %s3589
    %v3591 = vpop.permute.xlu0 %3590
    %s3593 = sor.u32 256, 32
    %3594 = vbcast.lane.b32.xlu0 %v3576, %s3593
    %v3595 = vpop.permute.xlu0 %3594
    %s3597 = sor.u32 256, 40
    %3598 = vbcast.lane.b32.xlu0 %v3576, %s3597
    %v3599 = vpop.permute.xlu0 %3598
    %s3601 = sor.u32 256, 48
    %3602 = vbcast.lane.b32.xlu0 %v3576, %s3601
    %v3603 = vpop.permute.xlu0 %3602
    %s3605 = sor.u32 256, 56
    %3606 = vbcast.lane.b32.xlu0 %v3576, %s3605
    %v3607 = vpop.permute.xlu0 %3606
    %v3608 = vlaneseq
    %v3609 = vshrl.u32 %v3608, 7
    %v3610 = vsub.s32 6, %v3609
    %v3611 = vrot.slane %v3115, %v3610
    %3613 = vbcast.lane.b32.xlu0 %v3611, 256
    %v3614 = vpop.permute.xlu0 %3613
    %s3616 = sor.u32 256, 8
    %3617 = vbcast.lane.b32.xlu0 %v3611, %s3616
    %v3618 = vpop.permute.xlu0 %3617
    %s3620 = sor.u32 256, 16
    %3621 = vbcast.lane.b32.xlu0 %v3611, %s3620
    %v3622 = vpop.permute.xlu0 %3621
    %s3624 = sor.u32 256, 24
    %3625 = vbcast.lane.b32.xlu0 %v3611, %s3624
    %v3626 = vpop.permute.xlu0 %3625
    %s3628 = sor.u32 256, 32
    %3629 = vbcast.lane.b32.xlu0 %v3611, %s3628
    %v3630 = vpop.permute.xlu0 %3629
    %s3632 = sor.u32 256, 40
    %3633 = vbcast.lane.b32.xlu0 %v3611, %s3632
    %v3634 = vpop.permute.xlu0 %3633
    %s3636 = sor.u32 256, 48
    %3637 = vbcast.lane.b32.xlu0 %v3611, %s3636
    %v3638 = vpop.permute.xlu0 %3637
    %s3640 = sor.u32 256, 56
    %3641 = vbcast.lane.b32.xlu0 %v3611, %s3640
    %v3642 = vpop.permute.xlu0 %3641
    %v3643 = vlaneseq
    %v3644 = vshrl.u32 %v3643, 7
    %v3645 = vsub.s32 7, %v3644
    %v3646 = vrot.slane %v3115, %v3645
    %3648 = vbcast.lane.b32.xlu0 %v3646, 256
    %v3649 = vpop.permute.xlu0 %3648
    %s3651 = sor.u32 256, 8
    %3652 = vbcast.lane.b32.xlu0 %v3646, %s3651
    %v3653 = vpop.permute.xlu0 %3652
    %s3655 = sor.u32 256, 16
    %3656 = vbcast.lane.b32.xlu0 %v3646, %s3655
    %v3657 = vpop.permute.xlu0 %3656
    %s3659 = sor.u32 256, 24
    %3660 = vbcast.lane.b32.xlu0 %v3646, %s3659
    %v3661 = vpop.permute.xlu0 %3660
    %s3663 = sor.u32 256, 32
    %3664 = vbcast.lane.b32.xlu0 %v3646, %s3663
    %v3665 = vpop.permute.xlu0 %3664
    %s3667 = sor.u32 256, 40
    %3668 = vbcast.lane.b32.xlu0 %v3646, %s3667
    %v3669 = vpop.permute.xlu0 %3668
    %s3671 = sor.u32 256, 48
    %3672 = vbcast.lane.b32.xlu0 %v3646, %s3671
    %v3673 = vpop.permute.xlu0 %3672
    %s3675 = sor.u32 256, 56
    %3676 = vbcast.lane.b32.xlu0 %v3646, %s3675
    %v3677 = vpop.permute.xlu0 %3676
    %v3806 = vadd.f32 %v2469, %v3124
    %v3807 = vadd.f32 %v2472, %v3128
    %v3808 = vadd.f32 %v2475, %v3132
    %v3809 = vadd.f32 %v2478, %v3136
    %v3810 = vadd.f32 %v2481, %v3140
    %v3811 = vadd.f32 %v2484, %v3144
    %v3812 = vadd.f32 %v2487, %v3148
    %v3813 = vadd.f32 %v2490, %v3152
    %v3814 = vadd.f32 %v2493, %v3159
    %v3815 = vadd.f32 %v2496, %v3163
    %v3816 = vadd.f32 %v2499, %v3167
    %v3817 = vadd.f32 %v2502, %v3171
    %v3818 = vadd.f32 %v2505, %v3175
    %v3819 = vadd.f32 %v2508, %v3179
    %v3820 = vadd.f32 %v2511, %v3183
    %v3821 = vadd.f32 %v2514, %v3187
    %v3822 = vadd.f32 %v2517, %v3194
    %v3823 = vadd.f32 %v2520, %v3198
    %v3824 = vadd.f32 %v2523, %v3202
    %v3825 = vadd.f32 %v2526, %v3206
    %v3826 = vadd.f32 %v2529, %v3210
    %v3827 = vadd.f32 %v2532, %v3214
    %v3828 = vadd.f32 %v2535, %v3218
    %v3829 = vadd.f32 %v2538, %v3222
    %v3830 = vadd.f32 %v2541, %v3229
    %v3831 = vadd.f32 %v2544, %v3233
    %v3832 = vadd.f32 %v2547, %v3237
    %v3833 = vadd.f32 %v2550, %v3241
    %v3834 = vadd.f32 %v2553, %v3245
    %v3835 = vadd.f32 %v2556, %v3249
    %v3836 = vadd.f32 %v2559, %v3253
    %v3837 = vadd.f32 %v2562, %v3257
    %v3838 = vadd.f32 %v2565, %v3264
    %v3839 = vadd.f32 %v2568, %v3268
    %v3840 = vadd.f32 %v2571, %v3272
    %v3841 = vadd.f32 %v2574, %v3276
    %v3842 = vadd.f32 %v2577, %v3280
    %v3843 = vadd.f32 %v2580, %v3284
    %v3844 = vadd.f32 %v2583, %v3288
    %v3845 = vadd.f32 %v2586, %v3292
    %v3846 = vadd.f32 %v2589, %v3299
    %v3847 = vadd.f32 %v2592, %v3303
    %v3848 = vadd.f32 %v2595, %v3307
    %v3849 = vadd.f32 %v2598, %v3311
    %v3850 = vadd.f32 %v2601, %v3315
    %v3851 = vadd.f32 %v2604, %v3319
    %v3852 = vadd.f32 %v2607, %v3323
    %v3853 = vadd.f32 %v2610, %v3327
    %v3854 = vadd.f32 %v2613, %v3334
    %v3855 = vadd.f32 %v2616, %v3338
    %v3856 = vadd.f32 %v2619, %v3342
    %v3857 = vadd.f32 %v2622, %v3346
    %v3858 = vadd.f32 %v2625, %v3350
    %v3859 = vadd.f32 %v2628, %v3354
    %v3860 = vadd.f32 %v2631, %v3358
    %v3861 = vadd.f32 %v2634, %v3362
    %v3862 = vadd.f32 %v2637, %v3369
    %v3863 = vadd.f32 %v2640, %v3373
    %v3864 = vadd.f32 %v2643, %v3377
    %v3865 = vadd.f32 %v2646, %v3381
    %v3866 = vadd.f32 %v2649, %v3385
    %v3867 = vadd.f32 %v2652, %v3389
    %v3868 = vadd.f32 %v2655, %v3393
    %v3869 = vadd.f32 %v2658, %v3397
    %v3870 = vadd.f32 %v2917, %v3404
    %v3871 = vadd.f32 %v2920, %v3408
    %v3872 = vadd.f32 %v2923, %v3412
    %v3873 = vadd.f32 %v2926, %v3416
    %v3874 = vadd.f32 %v2929, %v3420
    %v3875 = vadd.f32 %v2932, %v3424
    %v3876 = vadd.f32 %v2935, %v3428
    %v3877 = vadd.f32 %v2938, %v3432
    %v3878 = vadd.f32 %v2941, %v3439
    %v3879 = vadd.f32 %v2944, %v3443
    %v3880 = vadd.f32 %v2947, %v3447
    %v3881 = vadd.f32 %v2950, %v3451
    %v3882 = vadd.f32 %v2953, %v3455
    %v3883 = vadd.f32 %v2956, %v3459
    %v3884 = vadd.f32 %v2959, %v3463
    %v3885 = vadd.f32 %v2962, %v3467
    %v3886 = vadd.f32 %v2965, %v3474
    %v3887 = vadd.f32 %v2968, %v3478
    %v3888 = vadd.f32 %v2971, %v3482
    %v3889 = vadd.f32 %v2974, %v3486
    %v3890 = vadd.f32 %v2977, %v3490
    %v3891 = vadd.f32 %v2980, %v3494
    %v3892 = vadd.f32 %v2983, %v3498
    %v3893 = vadd.f32 %v2986, %v3502
    %v3894 = vadd.f32 %v2989, %v3509
    %v3895 = vadd.f32 %v2992, %v3513
    %v3896 = vadd.f32 %v2995, %v3517
    %v3897 = vadd.f32 %v2998, %v3521
    %v3898 = vadd.f32 %v3001, %v3525
    %v3899 = vadd.f32 %v3004, %v3529
    %v3900 = vadd.f32 %v3007, %v3533
    %v3901 = vadd.f32 %v3010, %v3537
    %v3902 = vadd.f32 %v3013, %v3544
    %v3903 = vadd.f32 %v3016, %v3548
    %v3904 = vadd.f32 %v3019, %v3552
    %v3905 = vadd.f32 %v3022, %v3556
    %v3906 = vadd.f32 %v3025, %v3560
    %v3907 = vadd.f32 %v3028, %v3564
    %v3908 = vadd.f32 %v3031, %v3568
    %v3909 = vadd.f32 %v3034, %v3572
    %v3910 = vadd.f32 %v3037, %v3579
    %v3911 = vadd.f32 %v3040, %v3583
    %v3912 = vadd.f32 %v3043, %v3587
    %v3913 = vadd.f32 %v3046, %v3591
    %v3914 = vadd.f32 %v3049, %v3595
    %v3915 = vadd.f32 %v3052, %v3599
    %v3916 = vadd.f32 %v3055, %v3603
    %v3917 = vadd.f32 %v3058, %v3607
    %v3918 = vadd.f32 %v3061, %v3614
    %v3919 = vadd.f32 %v3064, %v3618
    %v3920 = vadd.f32 %v3067, %v3622
    %v3921 = vadd.f32 %v3070, %v3626
    %v3922 = vadd.f32 %v3073, %v3630
    %v3923 = vadd.f32 %v3076, %v3634
    %v3924 = vadd.f32 %v3079, %v3638
    %v3925 = vadd.f32 %v3082, %v3642
    %v3926 = vadd.f32 %v3085, %v3649
    %v3927 = vadd.f32 %v3088, %v3653
    %v3928 = vadd.f32 %v3091, %v3657
    %v3929 = vadd.f32 %v3094, %v3661
    %v3930 = vadd.f32 %v3097, %v3665
    %v3931 = vadd.f32 %v3100, %v3669
    %v3932 = vadd.f32 %v3103, %v3673
    %v3933 = vadd.f32 %v3106, %v3677
    %v3934 = vsub.f32 0.0, %v252
    %v3935 = vsub.f32 0.0, %v257
    %v3936 = vmul.f32 %v3934, 1.442695
    %v3937 = vpow.pop %v3936
    %v3938 = vmul.f32 %v3935, 1.442695
    %v3939 = vpow.pop %v3938
    %v3940 = vadd.f32 %v3937, 1.0
    %v3941 = vadd.f32 %v3939, 1.0
    %v3942 = vrcp.pop %v3940
    %v3943 = vrcp.pop %v3941
    %v3944 = vmul.f32 %v252, %v3942
    %v3945 = vmul.f32 %v257, %v3943
    %v3948 = vlaneseq
    %v3949 = vshrl.u32 %v3948, 7
    %v3950 = vsub.s32 0, %v3949
    %v3951 = vrot.slane %v3944, %v3950
    %s3953 = sor.u32 256, 64
    %3954 = vbcast.lane.b32.xlu0 %v3951, %s3953
    %v3955 = vpop.permute.xlu0 %3954
    %s3957 = sor.u32 256, 72
    %3958 = vbcast.lane.b32.xlu0 %v3951, %s3957
    %v3959 = vpop.permute.xlu0 %3958
    %s3961 = sor.u32 256, 80
    %3962 = vbcast.lane.b32.xlu0 %v3951, %s3961
    %v3963 = vpop.permute.xlu0 %3962
    %s3965 = sor.u32 256, 88
    %3966 = vbcast.lane.b32.xlu0 %v3951, %s3965
    %v3967 = vpop.permute.xlu0 %3966
    %s3969 = sor.u32 256, 96
    %3970 = vbcast.lane.b32.xlu0 %v3951, %s3969
    %v3971 = vpop.permute.xlu0 %3970
    %s3973 = sor.u32 256, 104
    %3974 = vbcast.lane.b32.xlu0 %v3951, %s3973
    %v3975 = vpop.permute.xlu0 %3974
    %s3977 = sor.u32 256, 112
    %3978 = vbcast.lane.b32.xlu0 %v3951, %s3977
    %v3979 = vpop.permute.xlu0 %3978
    %s3981 = sor.u32 256, 120
    %3982 = vbcast.lane.b32.xlu0 %v3951, %s3981
    %v3983 = vpop.permute.xlu0 %3982
    %v3984 = vlaneseq
    %v3985 = vshrl.u32 %v3984, 7
    %v3986 = vsub.s32 1, %v3985
    %v3987 = vrot.slane %v3944, %v3986
    %s3989 = sor.u32 256, 64
    %3990 = vbcast.lane.b32.xlu0 %v3987, %s3989
    %v3991 = vpop.permute.xlu0 %3990
    %s3993 = sor.u32 256, 72
    %3994 = vbcast.lane.b32.xlu0 %v3987, %s3993
    %v3995 = vpop.permute.xlu0 %3994
    %s3997 = sor.u32 256, 80
    %3998 = vbcast.lane.b32.xlu0 %v3987, %s3997
    %v3999 = vpop.permute.xlu0 %3998
    %s4001 = sor.u32 256, 88
    %4002 = vbcast.lane.b32.xlu0 %v3987, %s4001
    %v4003 = vpop.permute.xlu0 %4002
    %s4005 = sor.u32 256, 96
    %4006 = vbcast.lane.b32.xlu0 %v3987, %s4005
    %v4007 = vpop.permute.xlu0 %4006
    %s4009 = sor.u32 256, 104
    %4010 = vbcast.lane.b32.xlu0 %v3987, %s4009
    %v4011 = vpop.permute.xlu0 %4010
    %s4013 = sor.u32 256, 112
    %4014 = vbcast.lane.b32.xlu0 %v3987, %s4013
    %v4015 = vpop.permute.xlu0 %4014
    %s4017 = sor.u32 256, 120
    %4018 = vbcast.lane.b32.xlu0 %v3987, %s4017
    %v4019 = vpop.permute.xlu0 %4018
    %v4020 = vlaneseq
    %v4021 = vshrl.u32 %v4020, 7
    %v4022 = vsub.s32 2, %v4021
    %v4023 = vrot.slane %v3944, %v4022
    %s4025 = sor.u32 256, 64
    %4026 = vbcast.lane.b32.xlu0 %v4023, %s4025
    %v4027 = vpop.permute.xlu0 %4026
    %s4029 = sor.u32 256, 72
    %4030 = vbcast.lane.b32.xlu0 %v4023, %s4029
    %v4031 = vpop.permute.xlu0 %4030
    %s4033 = sor.u32 256, 80
    %4034 = vbcast.lane.b32.xlu0 %v4023, %s4033
    %v4035 = vpop.permute.xlu0 %4034
    %s4037 = sor.u32 256, 88
    %4038 = vbcast.lane.b32.xlu0 %v4023, %s4037
    %v4039 = vpop.permute.xlu0 %4038
    %s4041 = sor.u32 256, 96
    %4042 = vbcast.lane.b32.xlu0 %v4023, %s4041
    %v4043 = vpop.permute.xlu0 %4042
    %s4045 = sor.u32 256, 104
    %4046 = vbcast.lane.b32.xlu0 %v4023, %s4045
    %v4047 = vpop.permute.xlu0 %4046
    %s4049 = sor.u32 256, 112
    %4050 = vbcast.lane.b32.xlu0 %v4023, %s4049
    %v4051 = vpop.permute.xlu0 %4050
    %s4053 = sor.u32 256, 120
    %4054 = vbcast.lane.b32.xlu0 %v4023, %s4053
    %v4055 = vpop.permute.xlu0 %4054
    %v4056 = vlaneseq
    %v4057 = vshrl.u32 %v4056, 7
    %v4058 = vsub.s32 3, %v4057
    %v4059 = vrot.slane %v3944, %v4058
    %s4061 = sor.u32 256, 64
    %4062 = vbcast.lane.b32.xlu0 %v4059, %s4061
    %v4063 = vpop.permute.xlu0 %4062
    %s4065 = sor.u32 256, 72
    %4066 = vbcast.lane.b32.xlu0 %v4059, %s4065
    %v4067 = vpop.permute.xlu0 %4066
    %s4069 = sor.u32 256, 80
    %4070 = vbcast.lane.b32.xlu0 %v4059, %s4069
    %v4071 = vpop.permute.xlu0 %4070
    %s4073 = sor.u32 256, 88
    %4074 = vbcast.lane.b32.xlu0 %v4059, %s4073
    %v4075 = vpop.permute.xlu0 %4074
    %s4077 = sor.u32 256, 96
    %4078 = vbcast.lane.b32.xlu0 %v4059, %s4077
    %v4079 = vpop.permute.xlu0 %4078
    %s4081 = sor.u32 256, 104
    %4082 = vbcast.lane.b32.xlu0 %v4059, %s4081
    %v4083 = vpop.permute.xlu0 %4082
    %s4085 = sor.u32 256, 112
    %4086 = vbcast.lane.b32.xlu0 %v4059, %s4085
    %v4087 = vpop.permute.xlu0 %4086
    %s4089 = sor.u32 256, 120
    %4090 = vbcast.lane.b32.xlu0 %v4059, %s4089
    %v4091 = vpop.permute.xlu0 %4090
    %v4092 = vlaneseq
    %v4093 = vshrl.u32 %v4092, 7
    %v4094 = vsub.s32 4, %v4093
    %v4095 = vrot.slane %v3944, %v4094
    %s4097 = sor.u32 256, 64
    %4098 = vbcast.lane.b32.xlu0 %v4095, %s4097
    %v4099 = vpop.permute.xlu0 %4098
    %s4101 = sor.u32 256, 72
    %4102 = vbcast.lane.b32.xlu0 %v4095, %s4101
    %v4103 = vpop.permute.xlu0 %4102
    %s4105 = sor.u32 256, 80
    %4106 = vbcast.lane.b32.xlu0 %v4095, %s4105
    %v4107 = vpop.permute.xlu0 %4106
    %s4109 = sor.u32 256, 88
    %4110 = vbcast.lane.b32.xlu0 %v4095, %s4109
    %v4111 = vpop.permute.xlu0 %4110
    %s4113 = sor.u32 256, 96
    %4114 = vbcast.lane.b32.xlu0 %v4095, %s4113
    %v4115 = vpop.permute.xlu0 %4114
    %s4117 = sor.u32 256, 104
    %4118 = vbcast.lane.b32.xlu0 %v4095, %s4117
    %v4119 = vpop.permute.xlu0 %4118
    %s4121 = sor.u32 256, 112
    %4122 = vbcast.lane.b32.xlu0 %v4095, %s4121
    %v4123 = vpop.permute.xlu0 %4122
    %s4125 = sor.u32 256, 120
    %4126 = vbcast.lane.b32.xlu0 %v4095, %s4125
    %v4127 = vpop.permute.xlu0 %4126
    %v4128 = vlaneseq
    %v4129 = vshrl.u32 %v4128, 7
    %v4130 = vsub.s32 5, %v4129
    %v4131 = vrot.slane %v3944, %v4130
    %s4133 = sor.u32 256, 64
    %4134 = vbcast.lane.b32.xlu0 %v4131, %s4133
    %v4135 = vpop.permute.xlu0 %4134
    %s4137 = sor.u32 256, 72
    %4138 = vbcast.lane.b32.xlu0 %v4131, %s4137
    %v4139 = vpop.permute.xlu0 %4138
    %s4141 = sor.u32 256, 80
    %4142 = vbcast.lane.b32.xlu0 %v4131, %s4141
    %v4143 = vpop.permute.xlu0 %4142
    %s4145 = sor.u32 256, 88
    %4146 = vbcast.lane.b32.xlu0 %v4131, %s4145
    %v4147 = vpop.permute.xlu0 %4146
    %s4149 = sor.u32 256, 96
    %4150 = vbcast.lane.b32.xlu0 %v4131, %s4149
    %v4151 = vpop.permute.xlu0 %4150
    %s4153 = sor.u32 256, 104
    %4154 = vbcast.lane.b32.xlu0 %v4131, %s4153
    %v4155 = vpop.permute.xlu0 %4154
    %s4157 = sor.u32 256, 112
    %4158 = vbcast.lane.b32.xlu0 %v4131, %s4157
    %v4159 = vpop.permute.xlu0 %4158
    %s4161 = sor.u32 256, 120
    %4162 = vbcast.lane.b32.xlu0 %v4131, %s4161
    %v4163 = vpop.permute.xlu0 %4162
    %v4164 = vlaneseq
    %v4165 = vshrl.u32 %v4164, 7
    %v4166 = vsub.s32 6, %v4165
    %v4167 = vrot.slane %v3944, %v4166
    %s4169 = sor.u32 256, 64
    %4170 = vbcast.lane.b32.xlu0 %v4167, %s4169
    %v4171 = vpop.permute.xlu0 %4170
    %s4173 = sor.u32 256, 72
    %4174 = vbcast.lane.b32.xlu0 %v4167, %s4173
    %v4175 = vpop.permute.xlu0 %4174
    %s4177 = sor.u32 256, 80
    %4178 = vbcast.lane.b32.xlu0 %v4167, %s4177
    %v4179 = vpop.permute.xlu0 %4178
    %s4181 = sor.u32 256, 88
    %4182 = vbcast.lane.b32.xlu0 %v4167, %s4181
    %v4183 = vpop.permute.xlu0 %4182
    %s4185 = sor.u32 256, 96
    %4186 = vbcast.lane.b32.xlu0 %v4167, %s4185
    %v4187 = vpop.permute.xlu0 %4186
    %s4189 = sor.u32 256, 104
    %4190 = vbcast.lane.b32.xlu0 %v4167, %s4189
    %v4191 = vpop.permute.xlu0 %4190
    %s4193 = sor.u32 256, 112
    %4194 = vbcast.lane.b32.xlu0 %v4167, %s4193
    %v4195 = vpop.permute.xlu0 %4194
    %s4197 = sor.u32 256, 120
    %4198 = vbcast.lane.b32.xlu0 %v4167, %s4197
    %v4199 = vpop.permute.xlu0 %4198
    %v4200 = vlaneseq
    %v4201 = vshrl.u32 %v4200, 7
    %v4202 = vsub.s32 7, %v4201
    %v4203 = vrot.slane %v3944, %v4202
    %s4205 = sor.u32 256, 64
    %4206 = vbcast.lane.b32.xlu0 %v4203, %s4205
    %v4207 = vpop.permute.xlu0 %4206
    %s4209 = sor.u32 256, 72
    %4210 = vbcast.lane.b32.xlu0 %v4203, %s4209
    %v4211 = vpop.permute.xlu0 %4210
    %s4213 = sor.u32 256, 80
    %4214 = vbcast.lane.b32.xlu0 %v4203, %s4213
    %v4215 = vpop.permute.xlu0 %4214
    %s4217 = sor.u32 256, 88
    %4218 = vbcast.lane.b32.xlu0 %v4203, %s4217
    %v4219 = vpop.permute.xlu0 %4218
    %s4221 = sor.u32 256, 96
    %4222 = vbcast.lane.b32.xlu0 %v4203, %s4221
    %v4223 = vpop.permute.xlu0 %4222
    %s4225 = sor.u32 256, 104
    %4226 = vbcast.lane.b32.xlu0 %v4203, %s4225
    %v4227 = vpop.permute.xlu0 %4226
    %s4229 = sor.u32 256, 112
    %4230 = vbcast.lane.b32.xlu0 %v4203, %s4229
    %v4231 = vpop.permute.xlu0 %4230
    %s4233 = sor.u32 256, 120
    %4234 = vbcast.lane.b32.xlu0 %v4203, %s4233
    %v4235 = vpop.permute.xlu0 %4234
    %v4236 = vlaneseq
    %v4237 = vshrl.u32 %v4236, 7
    %v4238 = vsub.s32 0, %v4237
    %v4239 = vrot.slane %v3945, %v4238
    %s4241 = sor.u32 256, 64
    %4242 = vbcast.lane.b32.xlu0 %v4239, %s4241
    %v4243 = vpop.permute.xlu0 %4242
    %s4245 = sor.u32 256, 72
    %4246 = vbcast.lane.b32.xlu0 %v4239, %s4245
    %v4247 = vpop.permute.xlu0 %4246
    %s4249 = sor.u32 256, 80
    %4250 = vbcast.lane.b32.xlu0 %v4239, %s4249
    %v4251 = vpop.permute.xlu0 %4250
    %s4253 = sor.u32 256, 88
    %4254 = vbcast.lane.b32.xlu0 %v4239, %s4253
    %v4255 = vpop.permute.xlu0 %4254
    %s4257 = sor.u32 256, 96
    %4258 = vbcast.lane.b32.xlu0 %v4239, %s4257
    %v4259 = vpop.permute.xlu0 %4258
    %s4261 = sor.u32 256, 104
    %4262 = vbcast.lane.b32.xlu0 %v4239, %s4261
    %v4263 = vpop.permute.xlu0 %4262
    %s4265 = sor.u32 256, 112
    %4266 = vbcast.lane.b32.xlu0 %v4239, %s4265
    %v4267 = vpop.permute.xlu0 %4266
    %s4269 = sor.u32 256, 120
    %4270 = vbcast.lane.b32.xlu0 %v4239, %s4269
    %v4271 = vpop.permute.xlu0 %4270
    %v4272 = vlaneseq
    %v4273 = vshrl.u32 %v4272, 7
    %v4274 = vsub.s32 1, %v4273
    %v4275 = vrot.slane %v3945, %v4274
    %s4277 = sor.u32 256, 64
    %4278 = vbcast.lane.b32.xlu0 %v4275, %s4277
    %v4279 = vpop.permute.xlu0 %4278
    %s4281 = sor.u32 256, 72
    %4282 = vbcast.lane.b32.xlu0 %v4275, %s4281
    %v4283 = vpop.permute.xlu0 %4282
    %s4285 = sor.u32 256, 80
    %4286 = vbcast.lane.b32.xlu0 %v4275, %s4285
    %v4287 = vpop.permute.xlu0 %4286
    %s4289 = sor.u32 256, 88
    %4290 = vbcast.lane.b32.xlu0 %v4275, %s4289
    %v4291 = vpop.permute.xlu0 %4290
    %s4293 = sor.u32 256, 96
    %4294 = vbcast.lane.b32.xlu0 %v4275, %s4293
    %v4295 = vpop.permute.xlu0 %4294
    %s4297 = sor.u32 256, 104
    %4298 = vbcast.lane.b32.xlu0 %v4275, %s4297
    %v4299 = vpop.permute.xlu0 %4298
    %s4301 = sor.u32 256, 112
    %4302 = vbcast.lane.b32.xlu0 %v4275, %s4301
    %v4303 = vpop.permute.xlu0 %4302
    %s4305 = sor.u32 256, 120
    %4306 = vbcast.lane.b32.xlu0 %v4275, %s4305
    %v4307 = vpop.permute.xlu0 %4306
    %v4308 = vlaneseq
    %v4309 = vshrl.u32 %v4308, 7
    %v4310 = vsub.s32 2, %v4309
    %v4311 = vrot.slane %v3945, %v4310
    %s4313 = sor.u32 256, 64
    %4314 = vbcast.lane.b32.xlu0 %v4311, %s4313
    %v4315 = vpop.permute.xlu0 %4314
    %s4317 = sor.u32 256, 72
    %4318 = vbcast.lane.b32.xlu0 %v4311, %s4317
    %v4319 = vpop.permute.xlu0 %4318
    %s4321 = sor.u32 256, 80
    %4322 = vbcast.lane.b32.xlu0 %v4311, %s4321
    %v4323 = vpop.permute.xlu0 %4322
    %s4325 = sor.u32 256, 88
    %4326 = vbcast.lane.b32.xlu0 %v4311, %s4325
    %v4327 = vpop.permute.xlu0 %4326
    %s4329 = sor.u32 256, 96
    %4330 = vbcast.lane.b32.xlu0 %v4311, %s4329
    %v4331 = vpop.permute.xlu0 %4330
    %s4333 = sor.u32 256, 104
    %4334 = vbcast.lane.b32.xlu0 %v4311, %s4333
    %v4335 = vpop.permute.xlu0 %4334
    %s4337 = sor.u32 256, 112
    %4338 = vbcast.lane.b32.xlu0 %v4311, %s4337
    %v4339 = vpop.permute.xlu0 %4338
    %s4341 = sor.u32 256, 120
    %4342 = vbcast.lane.b32.xlu0 %v4311, %s4341
    %v4343 = vpop.permute.xlu0 %4342
    %v4344 = vlaneseq
    %v4345 = vshrl.u32 %v4344, 7
    %v4346 = vsub.s32 3, %v4345
    %v4347 = vrot.slane %v3945, %v4346
    %s4349 = sor.u32 256, 64
    %4350 = vbcast.lane.b32.xlu0 %v4347, %s4349
    %v4351 = vpop.permute.xlu0 %4350
    %s4353 = sor.u32 256, 72
    %4354 = vbcast.lane.b32.xlu0 %v4347, %s4353
    %v4355 = vpop.permute.xlu0 %4354
    %s4357 = sor.u32 256, 80
    %4358 = vbcast.lane.b32.xlu0 %v4347, %s4357
    %v4359 = vpop.permute.xlu0 %4358
    %s4361 = sor.u32 256, 88
    %4362 = vbcast.lane.b32.xlu0 %v4347, %s4361
    %v4363 = vpop.permute.xlu0 %4362
    %s4365 = sor.u32 256, 96
    %4366 = vbcast.lane.b32.xlu0 %v4347, %s4365
    %v4367 = vpop.permute.xlu0 %4366
    %s4369 = sor.u32 256, 104
    %4370 = vbcast.lane.b32.xlu0 %v4347, %s4369
    %v4371 = vpop.permute.xlu0 %4370
    %s4373 = sor.u32 256, 112
    %4374 = vbcast.lane.b32.xlu0 %v4347, %s4373
    %v4375 = vpop.permute.xlu0 %4374
    %s4377 = sor.u32 256, 120
    %4378 = vbcast.lane.b32.xlu0 %v4347, %s4377
    %v4379 = vpop.permute.xlu0 %4378
    %v4380 = vlaneseq
    %v4381 = vshrl.u32 %v4380, 7
    %v4382 = vsub.s32 4, %v4381
    %v4383 = vrot.slane %v3945, %v4382
    %s4385 = sor.u32 256, 64
    %4386 = vbcast.lane.b32.xlu0 %v4383, %s4385
    %v4387 = vpop.permute.xlu0 %4386
    %s4389 = sor.u32 256, 72
    %4390 = vbcast.lane.b32.xlu0 %v4383, %s4389
    %v4391 = vpop.permute.xlu0 %4390
    %s4393 = sor.u32 256, 80
    %4394 = vbcast.lane.b32.xlu0 %v4383, %s4393
    %v4395 = vpop.permute.xlu0 %4394
    %s4397 = sor.u32 256, 88
    %4398 = vbcast.lane.b32.xlu0 %v4383, %s4397
    %v4399 = vpop.permute.xlu0 %4398
    %s4401 = sor.u32 256, 96
    %4402 = vbcast.lane.b32.xlu0 %v4383, %s4401
    %v4403 = vpop.permute.xlu0 %4402
    %s4405 = sor.u32 256, 104
    %4406 = vbcast.lane.b32.xlu0 %v4383, %s4405
    %v4407 = vpop.permute.xlu0 %4406
    %s4409 = sor.u32 256, 112
    %4410 = vbcast.lane.b32.xlu0 %v4383, %s4409
    %v4411 = vpop.permute.xlu0 %4410
    %s4413 = sor.u32 256, 120
    %4414 = vbcast.lane.b32.xlu0 %v4383, %s4413
    %v4415 = vpop.permute.xlu0 %4414
    %v4416 = vlaneseq
    %v4417 = vshrl.u32 %v4416, 7
    %v4418 = vsub.s32 5, %v4417
    %v4419 = vrot.slane %v3945, %v4418
    %s4421 = sor.u32 256, 64
    %4422 = vbcast.lane.b32.xlu0 %v4419, %s4421
    %v4423 = vpop.permute.xlu0 %4422
    %s4425 = sor.u32 256, 72
    %4426 = vbcast.lane.b32.xlu0 %v4419, %s4425
    %v4427 = vpop.permute.xlu0 %4426
    %s4429 = sor.u32 256, 80
    %4430 = vbcast.lane.b32.xlu0 %v4419, %s4429
    %v4431 = vpop.permute.xlu0 %4430
    %s4433 = sor.u32 256, 88
    %4434 = vbcast.lane.b32.xlu0 %v4419, %s4433
    %v4435 = vpop.permute.xlu0 %4434
    %s4437 = sor.u32 256, 96
    %4438 = vbcast.lane.b32.xlu0 %v4419, %s4437
    %v4439 = vpop.permute.xlu0 %4438
    %s4441 = sor.u32 256, 104
    %4442 = vbcast.lane.b32.xlu0 %v4419, %s4441
    %v4443 = vpop.permute.xlu0 %4442
    %s4445 = sor.u32 256, 112
    %4446 = vbcast.lane.b32.xlu0 %v4419, %s4445
    %v4447 = vpop.permute.xlu0 %4446
    %s4449 = sor.u32 256, 120
    %4450 = vbcast.lane.b32.xlu0 %v4419, %s4449
    %v4451 = vpop.permute.xlu0 %4450
    %v4452 = vlaneseq
    %v4453 = vshrl.u32 %v4452, 7
    %v4454 = vsub.s32 6, %v4453
    %v4455 = vrot.slane %v3945, %v4454
    %s4457 = sor.u32 256, 64
    %4458 = vbcast.lane.b32.xlu0 %v4455, %s4457
    %v4459 = vpop.permute.xlu0 %4458
    %s4461 = sor.u32 256, 72
    %4462 = vbcast.lane.b32.xlu0 %v4455, %s4461
    %v4463 = vpop.permute.xlu0 %4462
    %s4465 = sor.u32 256, 80
    %4466 = vbcast.lane.b32.xlu0 %v4455, %s4465
    %v4467 = vpop.permute.xlu0 %4466
    %s4469 = sor.u32 256, 88
    %4470 = vbcast.lane.b32.xlu0 %v4455, %s4469
    %v4471 = vpop.permute.xlu0 %4470
    %s4473 = sor.u32 256, 96
    %4474 = vbcast.lane.b32.xlu0 %v4455, %s4473
    %v4475 = vpop.permute.xlu0 %4474
    %s4477 = sor.u32 256, 104
    %4478 = vbcast.lane.b32.xlu0 %v4455, %s4477
    %v4479 = vpop.permute.xlu0 %4478
    %s4481 = sor.u32 256, 112
    %4482 = vbcast.lane.b32.xlu0 %v4455, %s4481
    %v4483 = vpop.permute.xlu0 %4482
    %s4485 = sor.u32 256, 120
    %4486 = vbcast.lane.b32.xlu0 %v4455, %s4485
    %v4487 = vpop.permute.xlu0 %4486
    %v4488 = vlaneseq
    %v4489 = vshrl.u32 %v4488, 7
    %v4490 = vsub.s32 7, %v4489
    %v4491 = vrot.slane %v3945, %v4490
    %s4493 = sor.u32 256, 64
    %4494 = vbcast.lane.b32.xlu0 %v4491, %s4493
    %v4495 = vpop.permute.xlu0 %4494
    %s4497 = sor.u32 256, 72
    %4498 = vbcast.lane.b32.xlu0 %v4491, %s4497
    %v4499 = vpop.permute.xlu0 %4498
    %s4501 = sor.u32 256, 80
    %4502 = vbcast.lane.b32.xlu0 %v4491, %s4501
    %v4503 = vpop.permute.xlu0 %4502
    %s4505 = sor.u32 256, 88
    %4506 = vbcast.lane.b32.xlu0 %v4491, %s4505
    %v4507 = vpop.permute.xlu0 %4506
    %s4509 = sor.u32 256, 96
    %4510 = vbcast.lane.b32.xlu0 %v4491, %s4509
    %v4511 = vpop.permute.xlu0 %4510
    %s4513 = sor.u32 256, 104
    %4514 = vbcast.lane.b32.xlu0 %v4491, %s4513
    %v4515 = vpop.permute.xlu0 %4514
    %s4517 = sor.u32 256, 112
    %4518 = vbcast.lane.b32.xlu0 %v4491, %s4517
    %v4519 = vpop.permute.xlu0 %4518
    %s4521 = sor.u32 256, 120
    %4522 = vbcast.lane.b32.xlu0 %v4491, %s4521
    %v4523 = vpop.permute.xlu0 %4522
    %v4652 = vmul.f32 %v3806, %v3955
    %v4653 = vmul.f32 %v3807, %v3959
    %v4654 = vmul.f32 %v3808, %v3963
    %v4655 = vmul.f32 %v3809, %v3967
    %v4656 = vmul.f32 %v3810, %v3971
    %v4657 = vmul.f32 %v3811, %v3975
    %v4658 = vmul.f32 %v3812, %v3979
    %v4659 = vmul.f32 %v3813, %v3983
    %v4660 = vmul.f32 %v3814, %v3991
    %v4661 = vmul.f32 %v3815, %v3995
    %v4662 = vmul.f32 %v3816, %v3999
    %v4663 = vmul.f32 %v3817, %v4003
    %v4664 = vmul.f32 %v3818, %v4007
    %v4665 = vmul.f32 %v3819, %v4011
    %v4666 = vmul.f32 %v3820, %v4015
    %v4667 = vmul.f32 %v3821, %v4019
    %v4668 = vmul.f32 %v3822, %v4027
    %v4669 = vmul.f32 %v3823, %v4031
    %v4670 = vmul.f32 %v3824, %v4035
    %v4671 = vmul.f32 %v3825, %v4039
    %v4672 = vmul.f32 %v3826, %v4043
    %v4673 = vmul.f32 %v3827, %v4047
    %v4674 = vmul.f32 %v3828, %v4051
    %v4675 = vmul.f32 %v3829, %v4055
    %v4676 = vmul.f32 %v3830, %v4063
    %v4677 = vmul.f32 %v3831, %v4067
    %v4678 = vmul.f32 %v3832, %v4071
    %v4679 = vmul.f32 %v3833, %v4075
    %v4680 = vmul.f32 %v3834, %v4079
    %v4681 = vmul.f32 %v3835, %v4083
    %v4682 = vmul.f32 %v3836, %v4087
    %v4683 = vmul.f32 %v3837, %v4091
    %v4684 = vmul.f32 %v3838, %v4099
    %v4685 = vmul.f32 %v3839, %v4103
    %v4686 = vmul.f32 %v3840, %v4107
    %v4687 = vmul.f32 %v3841, %v4111
    %v4688 = vmul.f32 %v3842, %v4115
    %v4689 = vmul.f32 %v3843, %v4119
    %v4690 = vmul.f32 %v3844, %v4123
    %v4691 = vmul.f32 %v3845, %v4127
    %v4692 = vmul.f32 %v3846, %v4135
    %v4693 = vmul.f32 %v3847, %v4139
    %v4694 = vmul.f32 %v3848, %v4143
    %v4695 = vmul.f32 %v3849, %v4147
    %v4696 = vmul.f32 %v3850, %v4151
    %v4697 = vmul.f32 %v3851, %v4155
    %v4698 = vmul.f32 %v3852, %v4159
    %v4699 = vmul.f32 %v3853, %v4163
    %v4700 = vmul.f32 %v3854, %v4171
    %v4701 = vmul.f32 %v3855, %v4175
    %v4702 = vmul.f32 %v3856, %v4179
    %v4703 = vmul.f32 %v3857, %v4183
    %v4704 = vmul.f32 %v3858, %v4187
    %v4705 = vmul.f32 %v3859, %v4191
    %v4706 = vmul.f32 %v3860, %v4195
    %v4707 = vmul.f32 %v3861, %v4199
    %v4708 = vmul.f32 %v3862, %v4207
    %v4709 = vmul.f32 %v3863, %v4211
    %v4710 = vmul.f32 %v3864, %v4215
    %v4711 = vmul.f32 %v3865, %v4219
    %v4712 = vmul.f32 %v3866, %v4223
    %v4713 = vmul.f32 %v3867, %v4227
    %v4714 = vmul.f32 %v3868, %v4231
    %v4715 = vmul.f32 %v3869, %v4235
    %v4716 = vmul.f32 %v3870, %v4243
    %v4717 = vmul.f32 %v3871, %v4247
    %v4718 = vmul.f32 %v3872, %v4251
    %v4719 = vmul.f32 %v3873, %v4255
    %v4720 = vmul.f32 %v3874, %v4259
    %v4721 = vmul.f32 %v3875, %v4263
    %v4722 = vmul.f32 %v3876, %v4267
    %v4723 = vmul.f32 %v3877, %v4271
    %v4724 = vmul.f32 %v3878, %v4279
    %v4725 = vmul.f32 %v3879, %v4283
    %v4726 = vmul.f32 %v3880, %v4287
    %v4727 = vmul.f32 %v3881, %v4291
    %v4728 = vmul.f32 %v3882, %v4295
    %v4729 = vmul.f32 %v3883, %v4299
    %v4730 = vmul.f32 %v3884, %v4303
    %v4731 = vmul.f32 %v3885, %v4307
    %v4732 = vmul.f32 %v3886, %v4315
    %v4733 = vmul.f32 %v3887, %v4319
    %v4734 = vmul.f32 %v3888, %v4323
    %v4735 = vmul.f32 %v3889, %v4327
    %v4736 = vmul.f32 %v3890, %v4331
    %v4737 = vmul.f32 %v3891, %v4335
    %v4738 = vmul.f32 %v3892, %v4339
    %v4739 = vmul.f32 %v3893, %v4343
    %v4740 = vmul.f32 %v3894, %v4351
    %v4741 = vmul.f32 %v3895, %v4355
    %v4742 = vmul.f32 %v3896, %v4359
    %v4743 = vmul.f32 %v3897, %v4363
    %v4744 = vmul.f32 %v3898, %v4367
    %v4745 = vmul.f32 %v3899, %v4371
    %v4746 = vmul.f32 %v3900, %v4375
    %v4747 = vmul.f32 %v3901, %v4379
    %v4748 = vmul.f32 %v3902, %v4387
    %v4749 = vmul.f32 %v3903, %v4391
    %v4750 = vmul.f32 %v3904, %v4395
    %v4751 = vmul.f32 %v3905, %v4399
    %v4752 = vmul.f32 %v3906, %v4403
    %v4753 = vmul.f32 %v3907, %v4407
    %v4754 = vmul.f32 %v3908, %v4411
    %v4755 = vmul.f32 %v3909, %v4415
    %v4756 = vmul.f32 %v3910, %v4423
    %v4757 = vmul.f32 %v3911, %v4427
    %v4758 = vmul.f32 %v3912, %v4431
    %v4759 = vmul.f32 %v3913, %v4435
    %v4760 = vmul.f32 %v3914, %v4439
    %v4761 = vmul.f32 %v3915, %v4443
    %v4762 = vmul.f32 %v3916, %v4447
    %v4763 = vmul.f32 %v3917, %v4451
    %v4764 = vmul.f32 %v3918, %v4459
    %v4765 = vmul.f32 %v3919, %v4463
    %v4766 = vmul.f32 %v3920, %v4467
    %v4767 = vmul.f32 %v3921, %v4471
    %v4768 = vmul.f32 %v3922, %v4475
    %v4769 = vmul.f32 %v3923, %v4479
    %v4770 = vmul.f32 %v3924, %v4483
    %v4771 = vmul.f32 %v3925, %v4487
    %v4772 = vmul.f32 %v3926, %v4495
    %v4773 = vmul.f32 %v3927, %v4499
    %v4774 = vmul.f32 %v3928, %v4503
    %v4775 = vmul.f32 %v3929, %v4507
    %v4776 = vmul.f32 %v3930, %v4511
    %v4777 = vmul.f32 %v3931, %v4515
    %v4778 = vmul.f32 %v3932, %v4519
    %v4779 = vmul.f32 %v3933, %v4523
    %v4780 = vld [vmem:[%s11] sm:$0xff]
    %v4781 = vld [vmem:[%s11 + $0x8] sm:$0xff]
    %v4782 = vld [vmem:[%s11 + $0x10] sm:$0xff]
    %v4783 = vld [vmem:[%s11 + $0x18] sm:$0xff]
    %v4784 = vld [vmem:[%s11 + $0x20] sm:$0xff]
    %v4785 = vld [vmem:[%s11 + $0x28] sm:$0xff]
    %v4786 = vld [vmem:[%s11 + $0x30] sm:$0xff]
    %v4787 = vld [vmem:[%s11 + $0x38] sm:$0xff]
    %4916 = vset.pattern.permute.xlu0 0
    %4917 = vperm.xlu0 %4916, %v4652
    %v4918 = vpop.permute.xlu0 %4917
    %4919 = vset.pattern.permute.xlu0 0
    %4920 = vperm.xlu0 %4919, %v4653
    %v4921 = vpop.permute.xlu0 %4920
    %4922 = vset.pattern.permute.xlu0 0
    %4923 = vperm.xlu0 %4922, %v4654
    %v4924 = vpop.permute.xlu0 %4923
    %4925 = vset.pattern.permute.xlu0 0
    %4926 = vperm.xlu0 %4925, %v4655
    %v4927 = vpop.permute.xlu0 %4926
    %4928 = vset.pattern.permute.xlu0 0
    %4929 = vperm.xlu0 %4928, %v4656
    %v4930 = vpop.permute.xlu0 %4929
    %4931 = vset.pattern.permute.xlu0 0
    %4932 = vperm.xlu0 %4931, %v4657
    %v4933 = vpop.permute.xlu0 %4932
    %4934 = vset.pattern.permute.xlu0 0
    %4935 = vperm.xlu0 %4934, %v4658
    %v4936 = vpop.permute.xlu0 %4935
    %4937 = vset.pattern.permute.xlu0 0
    %4938 = vperm.xlu0 %4937, %v4659
    %v4939 = vpop.permute.xlu0 %4938
    %4940 = vset.pattern.permute.xlu0 0
    %4941 = vperm.xlu0 %4940, %v4660
    %v4942 = vpop.permute.xlu0 %4941
    %4943 = vset.pattern.permute.xlu0 0
    %4944 = vperm.xlu0 %4943, %v4661
    %v4945 = vpop.permute.xlu0 %4944
    %4946 = vset.pattern.permute.xlu0 0
    %4947 = vperm.xlu0 %4946, %v4662
    %v4948 = vpop.permute.xlu0 %4947
    %4949 = vset.pattern.permute.xlu0 0
    %4950 = vperm.xlu0 %4949, %v4663
    %v4951 = vpop.permute.xlu0 %4950
    %4952 = vset.pattern.permute.xlu0 0
    %4953 = vperm.xlu0 %4952, %v4664
    %v4954 = vpop.permute.xlu0 %4953
    %4955 = vset.pattern.permute.xlu0 0
    %4956 = vperm.xlu0 %4955, %v4665
    %v4957 = vpop.permute.xlu0 %4956
    %4958 = vset.pattern.permute.xlu0 0
    %4959 = vperm.xlu0 %4958, %v4666
    %v4960 = vpop.permute.xlu0 %4959
    %4961 = vset.pattern.permute.xlu0 0
    %4962 = vperm.xlu0 %4961, %v4667
    %v4963 = vpop.permute.xlu0 %4962
    %4964 = vset.pattern.permute.xlu0 0
    %4965 = vperm.xlu0 %4964, %v4668
    %v4966 = vpop.permute.xlu0 %4965
    %4967 = vset.pattern.permute.xlu0 0
    %4968 = vperm.xlu0 %4967, %v4669
    %v4969 = vpop.permute.xlu0 %4968
    %4970 = vset.pattern.permute.xlu0 0
    %4971 = vperm.xlu0 %4970, %v4670
    %v4972 = vpop.permute.xlu0 %4971
    %4973 = vset.pattern.permute.xlu0 0
    %4974 = vperm.xlu0 %4973, %v4671
    %v4975 = vpop.permute.xlu0 %4974
    %4976 = vset.pattern.permute.xlu0 0
    %4977 = vperm.xlu0 %4976, %v4672
    %v4978 = vpop.permute.xlu0 %4977
    %4979 = vset.pattern.permute.xlu0 0
    %4980 = vperm.xlu0 %4979, %v4673
    %v4981 = vpop.permute.xlu0 %4980
    %4982 = vset.pattern.permute.xlu0 0
    %4983 = vperm.xlu0 %4982, %v4674
    %v4984 = vpop.permute.xlu0 %4983
    %4985 = vset.pattern.permute.xlu0 0
    %4986 = vperm.xlu0 %4985, %v4675
    %v4987 = vpop.permute.xlu0 %4986
    %4988 = vset.pattern.permute.xlu0 0
    %4989 = vperm.xlu0 %4988, %v4676
    %v4990 = vpop.permute.xlu0 %4989
    %4991 = vset.pattern.permute.xlu0 0
    %4992 = vperm.xlu0 %4991, %v4677
    %v4993 = vpop.permute.xlu0 %4992
    %4994 = vset.pattern.permute.xlu0 0
    %4995 = vperm.xlu0 %4994, %v4678
    %v4996 = vpop.permute.xlu0 %4995
    %4997 = vset.pattern.permute.xlu0 0
    %4998 = vperm.xlu0 %4997, %v4679
    %v4999 = vpop.permute.xlu0 %4998
    %5000 = vset.pattern.permute.xlu0 0
    %5001 = vperm.xlu0 %5000, %v4680
    %v5002 = vpop.permute.xlu0 %5001
    %5003 = vset.pattern.permute.xlu0 0
    %5004 = vperm.xlu0 %5003, %v4681
    %v5005 = vpop.permute.xlu0 %5004
    %5006 = vset.pattern.permute.xlu0 0
    %5007 = vperm.xlu0 %5006, %v4682
    %v5008 = vpop.permute.xlu0 %5007
    %5009 = vset.pattern.permute.xlu0 0
    %5010 = vperm.xlu0 %5009, %v4683
    %v5011 = vpop.permute.xlu0 %5010
    %5012 = vset.pattern.permute.xlu0 0
    %5013 = vperm.xlu0 %5012, %v4684
    %v5014 = vpop.permute.xlu0 %5013
    %5015 = vset.pattern.permute.xlu0 0
    %5016 = vperm.xlu0 %5015, %v4685
    %v5017 = vpop.permute.xlu0 %5016
    %5018 = vset.pattern.permute.xlu0 0
    %5019 = vperm.xlu0 %5018, %v4686
    %v5020 = vpop.permute.xlu0 %5019
    %5021 = vset.pattern.permute.xlu0 0
    %5022 = vperm.xlu0 %5021, %v4687
    %v5023 = vpop.permute.xlu0 %5022
    %5024 = vset.pattern.permute.xlu0 0
    %5025 = vperm.xlu0 %5024, %v4688
    %v5026 = vpop.permute.xlu0 %5025
    %5027 = vset.pattern.permute.xlu0 0
    %5028 = vperm.xlu0 %5027, %v4689
    %v5029 = vpop.permute.xlu0 %5028
    %5030 = vset.pattern.permute.xlu0 0
    %5031 = vperm.xlu0 %5030, %v4690
    %v5032 = vpop.permute.xlu0 %5031
    %5033 = vset.pattern.permute.xlu0 0
    %5034 = vperm.xlu0 %5033, %v4691
    %v5035 = vpop.permute.xlu0 %5034
    %5036 = vset.pattern.permute.xlu0 0
    %5037 = vperm.xlu0 %5036, %v4692
    %v5038 = vpop.permute.xlu0 %5037
    %5039 = vset.pattern.permute.xlu0 0
    %5040 = vperm.xlu0 %5039, %v4693
    %v5041 = vpop.permute.xlu0 %5040
    %5042 = vset.pattern.permute.xlu0 0
    %5043 = vperm.xlu0 %5042, %v4694
    %v5044 = vpop.permute.xlu0 %5043
    %5045 = vset.pattern.permute.xlu0 0
    %5046 = vperm.xlu0 %5045, %v4695
    %v5047 = vpop.permute.xlu0 %5046
    %5048 = vset.pattern.permute.xlu0 0
    %5049 = vperm.xlu0 %5048, %v4696
    %v5050 = vpop.permute.xlu0 %5049
    %5051 = vset.pattern.permute.xlu0 0
    %5052 = vperm.xlu0 %5051, %v4697
    %v5053 = vpop.permute.xlu0 %5052
    %5054 = vset.pattern.permute.xlu0 0
    %5055 = vperm.xlu0 %5054, %v4698
    %v5056 = vpop.permute.xlu0 %5055
    %5057 = vset.pattern.permute.xlu0 0
    %5058 = vperm.xlu0 %5057, %v4699
    %v5059 = vpop.permute.xlu0 %5058
    %5060 = vset.pattern.permute.xlu0 0
    %5061 = vperm.xlu0 %5060, %v4700
    %v5062 = vpop.permute.xlu0 %5061
    %5063 = vset.pattern.permute.xlu0 0
    %5064 = vperm.xlu0 %5063, %v4701
    %v5065 = vpop.permute.xlu0 %5064
    %5066 = vset.pattern.permute.xlu0 0
    %5067 = vperm.xlu0 %5066, %v4702
    %v5068 = vpop.permute.xlu0 %5067
    %5069 = vset.pattern.permute.xlu0 0
    %5070 = vperm.xlu0 %5069, %v4703
    %v5071 = vpop.permute.xlu0 %5070
    %5072 = vset.pattern.permute.xlu0 0
    %5073 = vperm.xlu0 %5072, %v4704
    %v5074 = vpop.permute.xlu0 %5073
    %5075 = vset.pattern.permute.xlu0 0
    %5076 = vperm.xlu0 %5075, %v4705
    %v5077 = vpop.permute.xlu0 %5076
    %5078 = vset.pattern.permute.xlu0 0
    %5079 = vperm.xlu0 %5078, %v4706
    %v5080 = vpop.permute.xlu0 %5079
    %5081 = vset.pattern.permute.xlu0 0
    %5082 = vperm.xlu0 %5081, %v4707
    %v5083 = vpop.permute.xlu0 %5082
    %5084 = vset.pattern.permute.xlu0 0
    %5085 = vperm.xlu0 %5084, %v4708
    %v5086 = vpop.permute.xlu0 %5085
    %5087 = vset.pattern.permute.xlu0 0
    %5088 = vperm.xlu0 %5087, %v4709
    %v5089 = vpop.permute.xlu0 %5088
    %5090 = vset.pattern.permute.xlu0 0
    %5091 = vperm.xlu0 %5090, %v4710
    %v5092 = vpop.permute.xlu0 %5091
    %5093 = vset.pattern.permute.xlu0 0
    %5094 = vperm.xlu0 %5093, %v4711
    %v5095 = vpop.permute.xlu0 %5094
    %5096 = vset.pattern.permute.xlu0 0
    %5097 = vperm.xlu0 %5096, %v4712
    %v5098 = vpop.permute.xlu0 %5097
    %5099 = vset.pattern.permute.xlu0 0
    %5100 = vperm.xlu0 %5099, %v4713
    %v5101 = vpop.permute.xlu0 %5100
    %5102 = vset.pattern.permute.xlu0 0
    %5103 = vperm.xlu0 %5102, %v4714
    %v5104 = vpop.permute.xlu0 %5103
    %5105 = vset.pattern.permute.xlu0 0
    %5106 = vperm.xlu0 %5105, %v4715
    %v5107 = vpop.permute.xlu0 %5106
    %5108 = vset.pattern.permute.xlu0 0
    %5109 = vperm.xlu0 %5108, %v4716
    %v5110 = vpop.permute.xlu0 %5109
    %5111 = vset.pattern.permute.xlu0 0
    %5112 = vperm.xlu0 %5111, %v4717
    %v5113 = vpop.permute.xlu0 %5112
    %5114 = vset.pattern.permute.xlu0 0
    %5115 = vperm.xlu0 %5114, %v4718
    %v5116 = vpop.permute.xlu0 %5115
    %5117 = vset.pattern.permute.xlu0 0
    %5118 = vperm.xlu0 %5117, %v4719
    %v5119 = vpop.permute.xlu0 %5118
    %5120 = vset.pattern.permute.xlu0 0
    %5121 = vperm.xlu0 %5120, %v4720
    %v5122 = vpop.permute.xlu0 %5121
    %5123 = vset.pattern.permute.xlu0 0
    %5124 = vperm.xlu0 %5123, %v4721
    %v5125 = vpop.permute.xlu0 %5124
    %5126 = vset.pattern.permute.xlu0 0
    %5127 = vperm.xlu0 %5126, %v4722
    %v5128 = vpop.permute.xlu0 %5127
    %5129 = vset.pattern.permute.xlu0 0
    %5130 = vperm.xlu0 %5129, %v4723
    %v5131 = vpop.permute.xlu0 %5130
    %5132 = vset.pattern.permute.xlu0 0
    %5133 = vperm.xlu0 %5132, %v4724
    %v5134 = vpop.permute.xlu0 %5133
    %5135 = vset.pattern.permute.xlu0 0
    %5136 = vperm.xlu0 %5135, %v4725
    %v5137 = vpop.permute.xlu0 %5136
    %5138 = vset.pattern.permute.xlu0 0
    %5139 = vperm.xlu0 %5138, %v4726
    %v5140 = vpop.permute.xlu0 %5139
    %5141 = vset.pattern.permute.xlu0 0
    %5142 = vperm.xlu0 %5141, %v4727
    %v5143 = vpop.permute.xlu0 %5142
    %5144 = vset.pattern.permute.xlu0 0
    %5145 = vperm.xlu0 %5144, %v4728
    %v5146 = vpop.permute.xlu0 %5145
    %5147 = vset.pattern.permute.xlu0 0
    %5148 = vperm.xlu0 %5147, %v4729
    %v5149 = vpop.permute.xlu0 %5148
    %5150 = vset.pattern.permute.xlu0 0
    %5151 = vperm.xlu0 %5150, %v4730
    %v5152 = vpop.permute.xlu0 %5151
    %5153 = vset.pattern.permute.xlu0 0
    %5154 = vperm.xlu0 %5153, %v4731
    %v5155 = vpop.permute.xlu0 %5154
    %5156 = vset.pattern.permute.xlu0 0
    %5157 = vperm.xlu0 %5156, %v4732
    %v5158 = vpop.permute.xlu0 %5157
    %5159 = vset.pattern.permute.xlu0 0
    %5160 = vperm.xlu0 %5159, %v4733
    %v5161 = vpop.permute.xlu0 %5160
    %5162 = vset.pattern.permute.xlu0 0
    %5163 = vperm.xlu0 %5162, %v4734
    %v5164 = vpop.permute.xlu0 %5163
    %5165 = vset.pattern.permute.xlu0 0
    %5166 = vperm.xlu0 %5165, %v4735
    %v5167 = vpop.permute.xlu0 %5166
    %5168 = vset.pattern.permute.xlu0 0
    %5169 = vperm.xlu0 %5168, %v4736
    %v5170 = vpop.permute.xlu0 %5169
    %5171 = vset.pattern.permute.xlu0 0
    %5172 = vperm.xlu0 %5171, %v4737
    %v5173 = vpop.permute.xlu0 %5172
    %5174 = vset.pattern.permute.xlu0 0
    %5175 = vperm.xlu0 %5174, %v4738
    %v5176 = vpop.permute.xlu0 %5175
    %5177 = vset.pattern.permute.xlu0 0
    %5178 = vperm.xlu0 %5177, %v4739
    %v5179 = vpop.permute.xlu0 %5178
    %5180 = vset.pattern.permute.xlu0 0
    %5181 = vperm.xlu0 %5180, %v4740
    %v5182 = vpop.permute.xlu0 %5181
    %5183 = vset.pattern.permute.xlu0 0
    %5184 = vperm.xlu0 %5183, %v4741
    %v5185 = vpop.permute.xlu0 %5184
    %5186 = vset.pattern.permute.xlu0 0
    %5187 = vperm.xlu0 %5186, %v4742
    %v5188 = vpop.permute.xlu0 %5187
    %5189 = vset.pattern.permute.xlu0 0
    %5190 = vperm.xlu0 %5189, %v4743
    %v5191 = vpop.permute.xlu0 %5190
    %5192 = vset.pattern.permute.xlu0 0
    %5193 = vperm.xlu0 %5192, %v4744
    %v5194 = vpop.permute.xlu0 %5193
    %5195 = vset.pattern.permute.xlu0 0
    %5196 = vperm.xlu0 %5195, %v4745
    %v5197 = vpop.permute.xlu0 %5196
    %5198 = vset.pattern.permute.xlu0 0
    %5199 = vperm.xlu0 %5198, %v4746
    %v5200 = vpop.permute.xlu0 %5199
    %5201 = vset.pattern.permute.xlu0 0
    %5202 = vperm.xlu0 %5201, %v4747
    %v5203 = vpop.permute.xlu0 %5202
    %5204 = vset.pattern.permute.xlu0 0
    %5205 = vperm.xlu0 %5204, %v4748
    %v5206 = vpop.permute.xlu0 %5205
    %5207 = vset.pattern.permute.xlu0 0
    %5208 = vperm.xlu0 %5207, %v4749
    %v5209 = vpop.permute.xlu0 %5208
    %5210 = vset.pattern.permute.xlu0 0
    %5211 = vperm.xlu0 %5210, %v4750
    %v5212 = vpop.permute.xlu0 %5211
    %5213 = vset.pattern.permute.xlu0 0
    %5214 = vperm.xlu0 %5213, %v4751
    %v5215 = vpop.permute.xlu0 %5214
    %5216 = vset.pattern.permute.xlu0 0
    %5217 = vperm.xlu0 %5216, %v4752
    %v5218 = vpop.permute.xlu0 %5217
    %5219 = vset.pattern.permute.xlu0 0
    %5220 = vperm.xlu0 %5219, %v4753
    %v5221 = vpop.permute.xlu0 %5220
    %5222 = vset.pattern.permute.xlu0 0
    %5223 = vperm.xlu0 %5222, %v4754
    %v5224 = vpop.permute.xlu0 %5223
    %5225 = vset.pattern.permute.xlu0 0
    %5226 = vperm.xlu0 %5225, %v4755
    %v5227 = vpop.permute.xlu0 %5226
    %5228 = vset.pattern.permute.xlu0 0
    %5229 = vperm.xlu0 %5228, %v4756
    %v5230 = vpop.permute.xlu0 %5229
    %5231 = vset.pattern.permute.xlu0 0
    %5232 = vperm.xlu0 %5231, %v4757
    %v5233 = vpop.permute.xlu0 %5232
    %5234 = vset.pattern.permute.xlu0 0
    %5235 = vperm.xlu0 %5234, %v4758
    %v5236 = vpop.permute.xlu0 %5235
    %5237 = vset.pattern.permute.xlu0 0
    %5238 = vperm.xlu0 %5237, %v4759
    %v5239 = vpop.permute.xlu0 %5238
    %5240 = vset.pattern.permute.xlu0 0
    %5241 = vperm.xlu0 %5240, %v4760
    %v5242 = vpop.permute.xlu0 %5241
    %5243 = vset.pattern.permute.xlu0 0
    %5244 = vperm.xlu0 %5243, %v4761
    %v5245 = vpop.permute.xlu0 %5244
    %5246 = vset.pattern.permute.xlu0 0
    %5247 = vperm.xlu0 %5246, %v4762
    %v5248 = vpop.permute.xlu0 %5247
    %5249 = vset.pattern.permute.xlu0 0
    %5250 = vperm.xlu0 %5249, %v4763
    %v5251 = vpop.permute.xlu0 %5250
    %5252 = vset.pattern.permute.xlu0 0
    %5253 = vperm.xlu0 %5252, %v4764
    %v5254 = vpop.permute.xlu0 %5253
    %5255 = vset.pattern.permute.xlu0 0
    %5256 = vperm.xlu0 %5255, %v4765
    %v5257 = vpop.permute.xlu0 %5256
    %5258 = vset.pattern.permute.xlu0 0
    %5259 = vperm.xlu0 %5258, %v4766
    %v5260 = vpop.permute.xlu0 %5259
    %5261 = vset.pattern.permute.xlu0 0
    %5262 = vperm.xlu0 %5261, %v4767
    %v5263 = vpop.permute.xlu0 %5262
    %5264 = vset.pattern.permute.xlu0 0
    %5265 = vperm.xlu0 %5264, %v4768
    %v5266 = vpop.permute.xlu0 %5265
    %5267 = vset.pattern.permute.xlu0 0
    %5268 = vperm.xlu0 %5267, %v4769
    %v5269 = vpop.permute.xlu0 %5268
    %5270 = vset.pattern.permute.xlu0 0
    %5271 = vperm.xlu0 %5270, %v4770
    %v5272 = vpop.permute.xlu0 %5271
    %5273 = vset.pattern.permute.xlu0 0
    %5274 = vperm.xlu0 %5273, %v4771
    %v5275 = vpop.permute.xlu0 %5274
    %5276 = vset.pattern.permute.xlu0 0
    %5277 = vperm.xlu0 %5276, %v4772
    %v5278 = vpop.permute.xlu0 %5277
    %5279 = vset.pattern.permute.xlu0 0
    %5280 = vperm.xlu0 %5279, %v4773
    %v5281 = vpop.permute.xlu0 %5280
    %5282 = vset.pattern.permute.xlu0 0
    %5283 = vperm.xlu0 %5282, %v4774
    %v5284 = vpop.permute.xlu0 %5283
    %5285 = vset.pattern.permute.xlu0 0
    %5286 = vperm.xlu0 %5285, %v4775
    %v5287 = vpop.permute.xlu0 %5286
    %5288 = vset.pattern.permute.xlu0 0
    %5289 = vperm.xlu0 %5288, %v4776
    %v5290 = vpop.permute.xlu0 %5289
    %5291 = vset.pattern.permute.xlu0 0
    %5292 = vperm.xlu0 %5291, %v4777
    %v5293 = vpop.permute.xlu0 %5292
    %5294 = vset.pattern.permute.xlu0 0
    %5295 = vperm.xlu0 %5294, %v4778
    %v5296 = vpop.permute.xlu0 %5295
    %5297 = vset.pattern.permute.xlu0 0
    %5298 = vperm.xlu0 %5297, %v4779
    %v5299 = vpop.permute.xlu0 %5298
    %v5300 = vlaneseq
    %v5301 = vand.u32 %v5300, 127
    %v5302 = vlaneseq
    %v5303 = vshrl.u32 %v5302, 7
    %v5304 = vsub.s32 %v5301, %v5303
    %v5305 = vrot.slane %v4918, %v5304
    %v5306 = vadd.s32 %v5301, 4294967288
    %v5307 = vlaneseq
    %v5308 = vshrl.u32 %v5307, 7
    %v5309 = vsub.s32 %v5306, %v5308
    %v5310 = vrot.slane %v4921, %v5309
    %vm5311 = vcmask 130112
    %v5312 = vsel %vm5311, %v5310, %v5305
    %v5313 = vadd.s32 %v5301, 4294967280
    %v5314 = vlaneseq
    %v5315 = vshrl.u32 %v5314, 7
    %v5316 = vsub.s32 %v5313, %v5315
    %v5317 = vrot.slane %v4924, %v5316
    %vm5318 = vcmask 195712
    %v5319 = vsel %vm5318, %v5317, %v5312
    %v5320 = vadd.s32 %v5301, 4294967272
    %v5321 = vlaneseq
    %v5322 = vshrl.u32 %v5321, 7
    %v5323 = vsub.s32 %v5320, %v5322
    %v5324 = vrot.slane %v4927, %v5323
    %vm5325 = vcmask 261312
    %v5326 = vsel %vm5325, %v5324, %v5319
    %v5327 = vadd.s32 %v5301, 4294967264
    %v5328 = vlaneseq
    %v5329 = vshrl.u32 %v5328, 7
    %v5330 = vsub.s32 %v5327, %v5329
    %v5331 = vrot.slane %v4930, %v5330
    %vm5332 = vcmask 326912
    %v5333 = vsel %vm5332, %v5331, %v5326
    %v5334 = vadd.s32 %v5301, 4294967256
    %v5335 = vlaneseq
    %v5336 = vshrl.u32 %v5335, 7
    %v5337 = vsub.s32 %v5334, %v5336
    %v5338 = vrot.slane %v4933, %v5337
    %vm5339 = vcmask 392512
    %v5340 = vsel %vm5339, %v5338, %v5333
    %v5341 = vadd.s32 %v5301, 4294967248
    %v5342 = vlaneseq
    %v5343 = vshrl.u32 %v5342, 7
    %v5344 = vsub.s32 %v5341, %v5343
    %v5345 = vrot.slane %v4936, %v5344
    %vm5346 = vcmask 458112
    %v5347 = vsel %vm5346, %v5345, %v5340
    %v5348 = vadd.s32 %v5301, 4294967240
    %v5349 = vlaneseq
    %v5350 = vshrl.u32 %v5349, 7
    %v5351 = vsub.s32 %v5348, %v5350
    %v5352 = vrot.slane %v4939, %v5351
    %vm5353 = vcmask 523712
    %v5354 = vsel %vm5353, %v5352, %v5347
    %v5355 = vlaneseq
    %v5356 = vshrl.u32 %v5355, 7
    %v5357 = vsub.s32 %v5301, %v5356
    %v5358 = vrot.slane %v4942, %v5357
    %v5359 = vlaneseq
    %v5360 = vshrl.u32 %v5359, 7
    %v5361 = vsub.s32 %v5306, %v5360
    %v5362 = vrot.slane %v4945, %v5361
    %v5363 = vsel %vm5311, %v5362, %v5358
    %v5364 = vlaneseq
    %v5365 = vshrl.u32 %v5364, 7
    %v5366 = vsub.s32 %v5313, %v5365
    %v5367 = vrot.slane %v4948, %v5366
    %v5368 = vsel %vm5318, %v5367, %v5363
    %v5369 = vlaneseq
    %v5370 = vshrl.u32 %v5369, 7
    %v5371 = vsub.s32 %v5320, %v5370
    %v5372 = vrot.slane %v4951, %v5371
    %v5373 = vsel %vm5325, %v5372, %v5368
    %v5374 = vlaneseq
    %v5375 = vshrl.u32 %v5374, 7
    %v5376 = vsub.s32 %v5327, %v5375
    %v5377 = vrot.slane %v4954, %v5376
    %v5378 = vsel %vm5332, %v5377, %v5373
    %v5379 = vlaneseq
    %v5380 = vshrl.u32 %v5379, 7
    %v5381 = vsub.s32 %v5334, %v5380
    %v5382 = vrot.slane %v4957, %v5381
    %v5383 = vsel %vm5339, %v5382, %v5378
    %v5384 = vlaneseq
    %v5385 = vshrl.u32 %v5384, 7
    %v5386 = vsub.s32 %v5341, %v5385
    %v5387 = vrot.slane %v4960, %v5386
    %v5388 = vsel %vm5346, %v5387, %v5383
    %v5389 = vlaneseq
    %v5390 = vshrl.u32 %v5389, 7
    %v5391 = vsub.s32 %v5348, %v5390
    %v5392 = vrot.slane %v4963, %v5391
    %v5393 = vsel %vm5353, %v5392, %v5388
    %v5394 = vlaneseq
    %v5395 = vshrl.u32 %v5394, 7
    %v5396 = vsub.s32 %v5301, %v5395
    %v5397 = vrot.slane %v4966, %v5396
    %v5398 = vlaneseq
    %v5399 = vshrl.u32 %v5398, 7
    %v5400 = vsub.s32 %v5306, %v5399
    %v5401 = vrot.slane %v4969, %v5400
    %v5402 = vsel %vm5311, %v5401, %v5397
    %v5403 = vlaneseq
    %v5404 = vshrl.u32 %v5403, 7
    %v5405 = vsub.s32 %v5313, %v5404
    %v5406 = vrot.slane %v4972, %v5405
    %v5407 = vsel %vm5318, %v5406, %v5402
    %v5408 = vlaneseq
    %v5409 = vshrl.u32 %v5408, 7
    %v5410 = vsub.s32 %v5320, %v5409
    %v5411 = vrot.slane %v4975, %v5410
    %v5412 = vsel %vm5325, %v5411, %v5407
    %v5413 = vlaneseq
    %v5414 = vshrl.u32 %v5413, 7
    %v5415 = vsub.s32 %v5327, %v5414
    %v5416 = vrot.slane %v4978, %v5415
    %v5417 = vsel %vm5332, %v5416, %v5412
    %v5418 = vlaneseq
    %v5419 = vshrl.u32 %v5418, 7
    %v5420 = vsub.s32 %v5334, %v5419
    %v5421 = vrot.slane %v4981, %v5420
    %v5422 = vsel %vm5339, %v5421, %v5417
    %v5423 = vlaneseq
    %v5424 = vshrl.u32 %v5423, 7
    %v5425 = vsub.s32 %v5341, %v5424
    %v5426 = vrot.slane %v4984, %v5425
    %v5427 = vsel %vm5346, %v5426, %v5422
    %v5428 = vlaneseq
    %v5429 = vshrl.u32 %v5428, 7
    %v5430 = vsub.s32 %v5348, %v5429
    %v5431 = vrot.slane %v4987, %v5430
    %v5432 = vsel %vm5353, %v5431, %v5427
    %v5433 = vlaneseq
    %v5434 = vshrl.u32 %v5433, 7
    %v5435 = vsub.s32 %v5301, %v5434
    %v5436 = vrot.slane %v4990, %v5435
    %v5437 = vlaneseq
    %v5438 = vshrl.u32 %v5437, 7
    %v5439 = vsub.s32 %v5306, %v5438
    %v5440 = vrot.slane %v4993, %v5439
    %v5441 = vsel %vm5311, %v5440, %v5436
    %v5442 = vlaneseq
    %v5443 = vshrl.u32 %v5442, 7
    %v5444 = vsub.s32 %v5313, %v5443
    %v5445 = vrot.slane %v4996, %v5444
    %v5446 = vsel %vm5318, %v5445, %v5441
    %v5447 = vlaneseq
    %v5448 = vshrl.u32 %v5447, 7
    %v5449 = vsub.s32 %v5320, %v5448
    %v5450 = vrot.slane %v4999, %v5449
    %v5451 = vsel %vm5325, %v5450, %v5446
    %v5452 = vlaneseq
    %v5453 = vshrl.u32 %v5452, 7
    %v5454 = vsub.s32 %v5327, %v5453
    %v5455 = vrot.slane %v5002, %v5454
    %v5456 = vsel %vm5332, %v5455, %v5451
    %v5457 = vlaneseq
    %v5458 = vshrl.u32 %v5457, 7
    %v5459 = vsub.s32 %v5334, %v5458
    %v5460 = vrot.slane %v5005, %v5459
    %v5461 = vsel %vm5339, %v5460, %v5456
    %v5462 = vlaneseq
    %v5463 = vshrl.u32 %v5462, 7
    %v5464 = vsub.s32 %v5341, %v5463
    %v5465 = vrot.slane %v5008, %v5464
    %v5466 = vsel %vm5346, %v5465, %v5461
    %v5467 = vlaneseq
    %v5468 = vshrl.u32 %v5467, 7
    %v5469 = vsub.s32 %v5348, %v5468
    %v5470 = vrot.slane %v5011, %v5469
    %v5471 = vsel %vm5353, %v5470, %v5466
    %v5472 = vlaneseq
    %v5473 = vshrl.u32 %v5472, 7
    %v5474 = vsub.s32 %v5301, %v5473
    %v5475 = vrot.slane %v5014, %v5474
    %v5476 = vlaneseq
    %v5477 = vshrl.u32 %v5476, 7
    %v5478 = vsub.s32 %v5306, %v5477
    %v5479 = vrot.slane %v5017, %v5478
    %v5480 = vsel %vm5311, %v5479, %v5475
    %v5481 = vlaneseq
    %v5482 = vshrl.u32 %v5481, 7
    %v5483 = vsub.s32 %v5313, %v5482
    %v5484 = vrot.slane %v5020, %v5483
    %v5485 = vsel %vm5318, %v5484, %v5480
    %v5486 = vlaneseq
    %v5487 = vshrl.u32 %v5486, 7
    %v5488 = vsub.s32 %v5320, %v5487
    %v5489 = vrot.slane %v5023, %v5488
    %v5490 = vsel %vm5325, %v5489, %v5485
    %v5491 = vlaneseq
    %v5492 = vshrl.u32 %v5491, 7
    %v5493 = vsub.s32 %v5327, %v5492
    %v5494 = vrot.slane %v5026, %v5493
    %v5495 = vsel %vm5332, %v5494, %v5490
    %v5496 = vlaneseq
    %v5497 = vshrl.u32 %v5496, 7
    %v5498 = vsub.s32 %v5334, %v5497
    %v5499 = vrot.slane %v5029, %v5498
    %v5500 = vsel %vm5339, %v5499, %v5495
    %v5501 = vlaneseq
    %v5502 = vshrl.u32 %v5501, 7
    %v5503 = vsub.s32 %v5341, %v5502
    %v5504 = vrot.slane %v5032, %v5503
    %v5505 = vsel %vm5346, %v5504, %v5500
    %v5506 = vlaneseq
    %v5507 = vshrl.u32 %v5506, 7
    %v5508 = vsub.s32 %v5348, %v5507
    %v5509 = vrot.slane %v5035, %v5508
    %v5510 = vsel %vm5353, %v5509, %v5505
    %v5511 = vlaneseq
    %v5512 = vshrl.u32 %v5511, 7
    %v5513 = vsub.s32 %v5301, %v5512
    %v5514 = vrot.slane %v5038, %v5513
    %v5515 = vlaneseq
    %v5516 = vshrl.u32 %v5515, 7
    %v5517 = vsub.s32 %v5306, %v5516
    %v5518 = vrot.slane %v5041, %v5517
    %v5519 = vsel %vm5311, %v5518, %v5514
    %v5520 = vlaneseq
    %v5521 = vshrl.u32 %v5520, 7
    %v5522 = vsub.s32 %v5313, %v5521
    %v5523 = vrot.slane %v5044, %v5522
    %v5524 = vsel %vm5318, %v5523, %v5519
    %v5525 = vlaneseq
    %v5526 = vshrl.u32 %v5525, 7
    %v5527 = vsub.s32 %v5320, %v5526
    %v5528 = vrot.slane %v5047, %v5527
    %v5529 = vsel %vm5325, %v5528, %v5524
    %v5530 = vlaneseq
    %v5531 = vshrl.u32 %v5530, 7
    %v5532 = vsub.s32 %v5327, %v5531
    %v5533 = vrot.slane %v5050, %v5532
    %v5534 = vsel %vm5332, %v5533, %v5529
    %v5535 = vlaneseq
    %v5536 = vshrl.u32 %v5535, 7
    %v5537 = vsub.s32 %v5334, %v5536
    %v5538 = vrot.slane %v5053, %v5537
    %v5539 = vsel %vm5339, %v5538, %v5534
    %v5540 = vlaneseq
    %v5541 = vshrl.u32 %v5540, 7
    %v5542 = vsub.s32 %v5341, %v5541
    %v5543 = vrot.slane %v5056, %v5542
    %v5544 = vsel %vm5346, %v5543, %v5539
    %v5545 = vlaneseq
    %v5546 = vshrl.u32 %v5545, 7
    %v5547 = vsub.s32 %v5348, %v5546
    %v5548 = vrot.slane %v5059, %v5547
    %v5549 = vsel %vm5353, %v5548, %v5544
    %v5550 = vlaneseq
    %v5551 = vshrl.u32 %v5550, 7
    %v5552 = vsub.s32 %v5301, %v5551
    %v5553 = vrot.slane %v5062, %v5552
    %v5554 = vlaneseq
    %v5555 = vshrl.u32 %v5554, 7
    %v5556 = vsub.s32 %v5306, %v5555
    %v5557 = vrot.slane %v5065, %v5556
    %v5558 = vsel %vm5311, %v5557, %v5553
    %v5559 = vlaneseq
    %v5560 = vshrl.u32 %v5559, 7
    %v5561 = vsub.s32 %v5313, %v5560
    %v5562 = vrot.slane %v5068, %v5561
    %v5563 = vsel %vm5318, %v5562, %v5558
    %v5564 = vlaneseq
    %v5565 = vshrl.u32 %v5564, 7
    %v5566 = vsub.s32 %v5320, %v5565
    %v5567 = vrot.slane %v5071, %v5566
    %v5568 = vsel %vm5325, %v5567, %v5563
    %v5569 = vlaneseq
    %v5570 = vshrl.u32 %v5569, 7
    %v5571 = vsub.s32 %v5327, %v5570
    %v5572 = vrot.slane %v5074, %v5571
    %v5573 = vsel %vm5332, %v5572, %v5568
    %v5574 = vlaneseq
    %v5575 = vshrl.u32 %v5574, 7
    %v5576 = vsub.s32 %v5334, %v5575
    %v5577 = vrot.slane %v5077, %v5576
    %v5578 = vsel %vm5339, %v5577, %v5573
    %v5579 = vlaneseq
    %v5580 = vshrl.u32 %v5579, 7
    %v5581 = vsub.s32 %v5341, %v5580
    %v5582 = vrot.slane %v5080, %v5581
    %v5583 = vsel %vm5346, %v5582, %v5578
    %v5584 = vlaneseq
    %v5585 = vshrl.u32 %v5584, 7
    %v5586 = vsub.s32 %v5348, %v5585
    %v5587 = vrot.slane %v5083, %v5586
    %v5588 = vsel %vm5353, %v5587, %v5583
    %v5589 = vlaneseq
    %v5590 = vshrl.u32 %v5589, 7
    %v5591 = vsub.s32 %v5301, %v5590
    %v5592 = vrot.slane %v5086, %v5591
    %v5593 = vlaneseq
    %v5594 = vshrl.u32 %v5593, 7
    %v5595 = vsub.s32 %v5306, %v5594
    %v5596 = vrot.slane %v5089, %v5595
    %v5597 = vsel %vm5311, %v5596, %v5592
    %v5598 = vlaneseq
    %v5599 = vshrl.u32 %v5598, 7
    %v5600 = vsub.s32 %v5313, %v5599
    %v5601 = vrot.slane %v5092, %v5600
    %v5602 = vsel %vm5318, %v5601, %v5597
    %v5603 = vlaneseq
    %v5604 = vshrl.u32 %v5603, 7
    %v5605 = vsub.s32 %v5320, %v5604
    %v5606 = vrot.slane %v5095, %v5605
    %v5607 = vsel %vm5325, %v5606, %v5602
    %v5608 = vlaneseq
    %v5609 = vshrl.u32 %v5608, 7
    %v5610 = vsub.s32 %v5327, %v5609
    %v5611 = vrot.slane %v5098, %v5610
    %v5612 = vsel %vm5332, %v5611, %v5607
    %v5613 = vlaneseq
    %v5614 = vshrl.u32 %v5613, 7
    %v5615 = vsub.s32 %v5334, %v5614
    %v5616 = vrot.slane %v5101, %v5615
    %v5617 = vsel %vm5339, %v5616, %v5612
    %v5618 = vlaneseq
    %v5619 = vshrl.u32 %v5618, 7
    %v5620 = vsub.s32 %v5341, %v5619
    %v5621 = vrot.slane %v5104, %v5620
    %v5622 = vsel %vm5346, %v5621, %v5617
    %v5623 = vlaneseq
    %v5624 = vshrl.u32 %v5623, 7
    %v5625 = vsub.s32 %v5348, %v5624
    %v5626 = vrot.slane %v5107, %v5625
    %v5627 = vsel %vm5353, %v5626, %v5622
    %v5628 = vlaneseq
    %v5629 = vshrl.u32 %v5628, 7
    %v5630 = vsub.s32 %v5301, %v5629
    %v5631 = vrot.slane %v5110, %v5630
    %v5632 = vlaneseq
    %v5633 = vshrl.u32 %v5632, 7
    %v5634 = vsub.s32 %v5306, %v5633
    %v5635 = vrot.slane %v5113, %v5634
    %v5636 = vsel %vm5311, %v5635, %v5631
    %v5637 = vlaneseq
    %v5638 = vshrl.u32 %v5637, 7
    %v5639 = vsub.s32 %v5313, %v5638
    %v5640 = vrot.slane %v5116, %v5639
    %v5641 = vsel %vm5318, %v5640, %v5636
    %v5642 = vlaneseq
    %v5643 = vshrl.u32 %v5642, 7
    %v5644 = vsub.s32 %v5320, %v5643
    %v5645 = vrot.slane %v5119, %v5644
    %v5646 = vsel %vm5325, %v5645, %v5641
    %v5647 = vlaneseq
    %v5648 = vshrl.u32 %v5647, 7
    %v5649 = vsub.s32 %v5327, %v5648
    %v5650 = vrot.slane %v5122, %v5649
    %v5651 = vsel %vm5332, %v5650, %v5646
    %v5652 = vlaneseq
    %v5653 = vshrl.u32 %v5652, 7
    %v5654 = vsub.s32 %v5334, %v5653
    %v5655 = vrot.slane %v5125, %v5654
    %v5656 = vsel %vm5339, %v5655, %v5651
    %v5657 = vlaneseq
    %v5658 = vshrl.u32 %v5657, 7
    %v5659 = vsub.s32 %v5341, %v5658
    %v5660 = vrot.slane %v5128, %v5659
    %v5661 = vsel %vm5346, %v5660, %v5656
    %v5662 = vlaneseq
    %v5663 = vshrl.u32 %v5662, 7
    %v5664 = vsub.s32 %v5348, %v5663
    %v5665 = vrot.slane %v5131, %v5664
    %v5666 = vsel %vm5353, %v5665, %v5661
    %v5667 = vlaneseq
    %v5668 = vshrl.u32 %v5667, 7
    %v5669 = vsub.s32 %v5301, %v5668
    %v5670 = vrot.slane %v5134, %v5669
    %v5671 = vlaneseq
    %v5672 = vshrl.u32 %v5671, 7
    %v5673 = vsub.s32 %v5306, %v5672
    %v5674 = vrot.slane %v5137, %v5673
    %v5675 = vsel %vm5311, %v5674, %v5670
    %v5676 = vlaneseq
    %v5677 = vshrl.u32 %v5676, 7
    %v5678 = vsub.s32 %v5313, %v5677
    %v5679 = vrot.slane %v5140, %v5678
    %v5680 = vsel %vm5318, %v5679, %v5675
    %v5681 = vlaneseq
    %v5682 = vshrl.u32 %v5681, 7
    %v5683 = vsub.s32 %v5320, %v5682
    %v5684 = vrot.slane %v5143, %v5683
    %v5685 = vsel %vm5325, %v5684, %v5680
    %v5686 = vlaneseq
    %v5687 = vshrl.u32 %v5686, 7
    %v5688 = vsub.s32 %v5327, %v5687
    %v5689 = vrot.slane %v5146, %v5688
    %v5690 = vsel %vm5332, %v5689, %v5685
    %v5691 = vlaneseq
    %v5692 = vshrl.u32 %v5691, 7
    %v5693 = vsub.s32 %v5334, %v5692
    %v5694 = vrot.slane %v5149, %v5693
    %v5695 = vsel %vm5339, %v5694, %v5690
    %v5696 = vlaneseq
    %v5697 = vshrl.u32 %v5696, 7
    %v5698 = vsub.s32 %v5341, %v5697
    %v5699 = vrot.slane %v5152, %v5698
    %v5700 = vsel %vm5346, %v5699, %v5695
    %v5701 = vlaneseq
    %v5702 = vshrl.u32 %v5701, 7
    %v5703 = vsub.s32 %v5348, %v5702
    %v5704 = vrot.slane %v5155, %v5703
    %v5705 = vsel %vm5353, %v5704, %v5700
    %v5706 = vlaneseq
    %v5707 = vshrl.u32 %v5706, 7
    %v5708 = vsub.s32 %v5301, %v5707
    %v5709 = vrot.slane %v5158, %v5708
    %v5710 = vlaneseq
    %v5711 = vshrl.u32 %v5710, 7
    %v5712 = vsub.s32 %v5306, %v5711
    %v5713 = vrot.slane %v5161, %v5712
    %v5714 = vsel %vm5311, %v5713, %v5709
    %v5715 = vlaneseq
    %v5716 = vshrl.u32 %v5715, 7
    %v5717 = vsub.s32 %v5313, %v5716
    %v5718 = vrot.slane %v5164, %v5717
    %v5719 = vsel %vm5318, %v5718, %v5714
    %v5720 = vlaneseq
    %v5721 = vshrl.u32 %v5720, 7
    %v5722 = vsub.s32 %v5320, %v5721
    %v5723 = vrot.slane %v5167, %v5722
    %v5724 = vsel %vm5325, %v5723, %v5719
    %v5725 = vlaneseq
    %v5726 = vshrl.u32 %v5725, 7
    %v5727 = vsub.s32 %v5327, %v5726
    %v5728 = vrot.slane %v5170, %v5727
    %v5729 = vsel %vm5332, %v5728, %v5724
    %v5730 = vlaneseq
    %v5731 = vshrl.u32 %v5730, 7
    %v5732 = vsub.s32 %v5334, %v5731
    %v5733 = vrot.slane %v5173, %v5732
    %v5734 = vsel %vm5339, %v5733, %v5729
    %v5735 = vlaneseq
    %v5736 = vshrl.u32 %v5735, 7
    %v5737 = vsub.s32 %v5341, %v5736
    %v5738 = vrot.slane %v5176, %v5737
    %v5739 = vsel %vm5346, %v5738, %v5734
    %v5740 = vlaneseq
    %v5741 = vshrl.u32 %v5740, 7
    %v5742 = vsub.s32 %v5348, %v5741
    %v5743 = vrot.slane %v5179, %v5742
    %v5744 = vsel %vm5353, %v5743, %v5739
    %v5745 = vlaneseq
    %v5746 = vshrl.u32 %v5745, 7
    %v5747 = vsub.s32 %v5301, %v5746
    %v5748 = vrot.slane %v5182, %v5747
    %v5749 = vlaneseq
    %v5750 = vshrl.u32 %v5749, 7
    %v5751 = vsub.s32 %v5306, %v5750
    %v5752 = vrot.slane %v5185, %v5751
    %v5753 = vsel %vm5311, %v5752, %v5748
    %v5754 = vlaneseq
    %v5755 = vshrl.u32 %v5754, 7
    %v5756 = vsub.s32 %v5313, %v5755
    %v5757 = vrot.slane %v5188, %v5756
    %v5758 = vsel %vm5318, %v5757, %v5753
    %v5759 = vlaneseq
    %v5760 = vshrl.u32 %v5759, 7
    %v5761 = vsub.s32 %v5320, %v5760
    %v5762 = vrot.slane %v5191, %v5761
    %v5763 = vsel %vm5325, %v5762, %v5758
    %v5764 = vlaneseq
    %v5765 = vshrl.u32 %v5764, 7
    %v5766 = vsub.s32 %v5327, %v5765
    %v5767 = vrot.slane %v5194, %v5766
    %v5768 = vsel %vm5332, %v5767, %v5763
    %v5769 = vlaneseq
    %v5770 = vshrl.u32 %v5769, 7
    %v5771 = vsub.s32 %v5334, %v5770
    %v5772 = vrot.slane %v5197, %v5771
    %v5773 = vsel %vm5339, %v5772, %v5768
    %v5774 = vlaneseq
    %v5775 = vshrl.u32 %v5774, 7
    %v5776 = vsub.s32 %v5341, %v5775
    %v5777 = vrot.slane %v5200, %v5776
    %v5778 = vsel %vm5346, %v5777, %v5773
    %v5779 = vlaneseq
    %v5780 = vshrl.u32 %v5779, 7
    %v5781 = vsub.s32 %v5348, %v5780
    %v5782 = vrot.slane %v5203, %v5781
    %v5783 = vsel %vm5353, %v5782, %v5778
    %v5784 = vlaneseq
    %v5785 = vshrl.u32 %v5784, 7
    %v5786 = vsub.s32 %v5301, %v5785
    %v5787 = vrot.slane %v5206, %v5786
    %v5788 = vlaneseq
    %v5789 = vshrl.u32 %v5788, 7
    %v5790 = vsub.s32 %v5306, %v5789
    %v5791 = vrot.slane %v5209, %v5790
    %v5792 = vsel %vm5311, %v5791, %v5787
    %v5793 = vlaneseq
    %v5794 = vshrl.u32 %v5793, 7
    %v5795 = vsub.s32 %v5313, %v5794
    %v5796 = vrot.slane %v5212, %v5795
    %v5797 = vsel %vm5318, %v5796, %v5792
    %v5798 = vlaneseq
    %v5799 = vshrl.u32 %v5798, 7
    %v5800 = vsub.s32 %v5320, %v5799
    %v5801 = vrot.slane %v5215, %v5800
    %v5802 = vsel %vm5325, %v5801, %v5797
    %v5803 = vlaneseq
    %v5804 = vshrl.u32 %v5803, 7
    %v5805 = vsub.s32 %v5327, %v5804
    %v5806 = vrot.slane %v5218, %v5805
    %v5807 = vsel %vm5332, %v5806, %v5802
    %v5808 = vlaneseq
    %v5809 = vshrl.u32 %v5808, 7
    %v5810 = vsub.s32 %v5334, %v5809
    %v5811 = vrot.slane %v5221, %v5810
    %v5812 = vsel %vm5339, %v5811, %v5807
    %v5813 = vlaneseq
    %v5814 = vshrl.u32 %v5813, 7
    %v5815 = vsub.s32 %v5341, %v5814
    %v5816 = vrot.slane %v5224, %v5815
    %v5817 = vsel %vm5346, %v5816, %v5812
    %v5818 = vlaneseq
    %v5819 = vshrl.u32 %v5818, 7
    %v5820 = vsub.s32 %v5348, %v5819
    %v5821 = vrot.slane %v5227, %v5820
    %v5822 = vsel %vm5353, %v5821, %v5817
    %v5823 = vlaneseq
    %v5824 = vshrl.u32 %v5823, 7
    %v5825 = vsub.s32 %v5301, %v5824
    %v5826 = vrot.slane %v5230, %v5825
    %v5827 = vlaneseq
    %v5828 = vshrl.u32 %v5827, 7
    %v5829 = vsub.s32 %v5306, %v5828
    %v5830 = vrot.slane %v5233, %v5829
    %v5831 = vsel %vm5311, %v5830, %v5826
    %v5832 = vlaneseq
    %v5833 = vshrl.u32 %v5832, 7
    %v5834 = vsub.s32 %v5313, %v5833
    %v5835 = vrot.slane %v5236, %v5834
    %v5836 = vsel %vm5318, %v5835, %v5831
    %v5837 = vlaneseq
    %v5838 = vshrl.u32 %v5837, 7
    %v5839 = vsub.s32 %v5320, %v5838
    %v5840 = vrot.slane %v5239, %v5839
    %v5841 = vsel %vm5325, %v5840, %v5836
    %v5842 = vlaneseq
    %v5843 = vshrl.u32 %v5842, 7
    %v5844 = vsub.s32 %v5327, %v5843
    %v5845 = vrot.slane %v5242, %v5844
    %v5846 = vsel %vm5332, %v5845, %v5841
    %v5847 = vlaneseq
    %v5848 = vshrl.u32 %v5847, 7
    %v5849 = vsub.s32 %v5334, %v5848
    %v5850 = vrot.slane %v5245, %v5849
    %v5851 = vsel %vm5339, %v5850, %v5846
    %v5852 = vlaneseq
    %v5853 = vshrl.u32 %v5852, 7
    %v5854 = vsub.s32 %v5341, %v5853
    %v5855 = vrot.slane %v5248, %v5854
    %v5856 = vsel %vm5346, %v5855, %v5851
    %v5857 = vlaneseq
    %v5858 = vshrl.u32 %v5857, 7
    %v5859 = vsub.s32 %v5348, %v5858
    %v5860 = vrot.slane %v5251, %v5859
    %v5861 = vsel %vm5353, %v5860, %v5856
    %v5862 = vlaneseq
    %v5863 = vshrl.u32 %v5862, 7
    %v5864 = vsub.s32 %v5301, %v5863
    %v5865 = vrot.slane %v5254, %v5864
    %v5866 = vlaneseq
    %v5867 = vshrl.u32 %v5866, 7
    %v5868 = vsub.s32 %v5306, %v5867
    %v5869 = vrot.slane %v5257, %v5868
    %v5870 = vsel %vm5311, %v5869, %v5865
    %v5871 = vlaneseq
    %v5872 = vshrl.u32 %v5871, 7
    %v5873 = vsub.s32 %v5313, %v5872
    %v5874 = vrot.slane %v5260, %v5873
    %v5875 = vsel %vm5318, %v5874, %v5870
    %v5876 = vlaneseq
    %v5877 = vshrl.u32 %v5876, 7
    %v5878 = vsub.s32 %v5320, %v5877
    %v5879 = vrot.slane %v5263, %v5878
    %v5880 = vsel %vm5325, %v5879, %v5875
    %v5881 = vlaneseq
    %v5882 = vshrl.u32 %v5881, 7
    %v5883 = vsub.s32 %v5327, %v5882
    %v5884 = vrot.slane %v5266, %v5883
    %v5885 = vsel %vm5332, %v5884, %v5880
    %v5886 = vlaneseq
    %v5887 = vshrl.u32 %v5886, 7
    %v5888 = vsub.s32 %v5334, %v5887
    %v5889 = vrot.slane %v5269, %v5888
    %v5890 = vsel %vm5339, %v5889, %v5885
    %v5891 = vlaneseq
    %v5892 = vshrl.u32 %v5891, 7
    %v5893 = vsub.s32 %v5341, %v5892
    %v5894 = vrot.slane %v5272, %v5893
    %v5895 = vsel %vm5346, %v5894, %v5890
    %v5896 = vlaneseq
    %v5897 = vshrl.u32 %v5896, 7
    %v5898 = vsub.s32 %v5348, %v5897
    %v5899 = vrot.slane %v5275, %v5898
    %v5900 = vsel %vm5353, %v5899, %v5895
    %v5901 = vlaneseq
    %v5902 = vshrl.u32 %v5901, 7
    %v5903 = vsub.s32 %v5301, %v5902
    %v5904 = vrot.slane %v5278, %v5903
    %v5905 = vlaneseq
    %v5906 = vshrl.u32 %v5905, 7
    %v5907 = vsub.s32 %v5306, %v5906
    %v5908 = vrot.slane %v5281, %v5907
    %v5909 = vsel %vm5311, %v5908, %v5904
    %v5910 = vlaneseq
    %v5911 = vshrl.u32 %v5910, 7
    %v5912 = vsub.s32 %v5313, %v5911
    %v5913 = vrot.slane %v5284, %v5912
    %v5914 = vsel %vm5318, %v5913, %v5909
    %v5915 = vlaneseq
    %v5916 = vshrl.u32 %v5915, 7
    %v5917 = vsub.s32 %v5320, %v5916
    %v5918 = vrot.slane %v5287, %v5917
    %v5919 = vsel %vm5325, %v5918, %v5914
    %v5920 = vlaneseq
    %v5921 = vshrl.u32 %v5920, 7
    %v5922 = vsub.s32 %v5327, %v5921
    %v5923 = vrot.slane %v5290, %v5922
    %v5924 = vsel %vm5332, %v5923, %v5919
    %v5925 = vlaneseq
    %v5926 = vshrl.u32 %v5925, 7
    %v5927 = vsub.s32 %v5334, %v5926
    %v5928 = vrot.slane %v5293, %v5927
    %v5929 = vsel %vm5339, %v5928, %v5924
    %v5930 = vlaneseq
    %v5931 = vshrl.u32 %v5930, 7
    %v5932 = vsub.s32 %v5341, %v5931
    %v5933 = vrot.slane %v5296, %v5932
    %v5934 = vsel %vm5346, %v5933, %v5929
    %v5935 = vlaneseq
    %v5936 = vshrl.u32 %v5935, 7
    %v5937 = vsub.s32 %v5348, %v5936
    %v5938 = vrot.slane %v5299, %v5937
    %v5939 = vsel %vm5353, %v5938, %v5934
    %vm5940 = vcmask 1041409
    %v5941 = vsel %vm5940, %v5393, %v5354
    %vm5942 = vcmask 1042434
    %v5943 = vsel %vm5942, %v5432, %v5941
    %vm5944 = vcmask 1043459
    %v5945 = vsel %vm5944, %v5471, %v5943
    %vm5946 = vcmask 1044484
    %v5947 = vsel %vm5946, %v5510, %v5945
    %vm5948 = vcmask 1045509
    %v5949 = vsel %vm5948, %v5549, %v5947
    %vm5950 = vcmask 1046534
    %v5951 = vsel %vm5950, %v5588, %v5949
    %vm5952 = vcmask 1047559
    %v5953 = vsel %vm5952, %v5627, %v5951
    %v5954 = vsel %vm5940, %v5705, %v5666
    %v5955 = vsel %vm5942, %v5744, %v5954
    %v5956 = vsel %vm5944, %v5783, %v5955
    %v5957 = vsel %vm5946, %v5822, %v5956
    %v5958 = vsel %vm5948, %v5861, %v5957
    %v5959 = vsel %vm5950, %v5900, %v5958
    %v5960 = vsel %vm5952, %v5939, %v5959
    %v5961 = vsel %vm317, %v5953, 0
    %v5963 = vsel %vm317, %v5960, 0
    %5965 = vmatprep.subr.mxu0 0.0
    %5966 = vmatpush1.msra.mxu0 %v4780
    %5967 = vmatprep.subr.mxu0 0.0
    %5968 = vmatpush1.msra.mxu0 %v4781
    %5969 = vmatprep.subr.mxu0 0.0
    %5970 = vmatpush1.msra.mxu0 %v4782
    %5971 = vmatprep.subr.mxu0 0.0
    %5972 = vmatpush1.msra.mxu0 %v4783
    %5973 = vmatprep.subr.mxu0 0.0
    %5974 = vmatpush1.msra.mxu0 %v4784
    %5975 = vmatprep.subr.mxu0 0.0
    %5976 = vmatpush1.msra.mxu0 %v4785
    %5977 = vmatprep.subr.mxu0 0.0
    %5978 = vmatpush1.msra.mxu0 %v4786
    %5979 = vmatprep.subr.mxu0 0.0
    %5980 = vmatpush1.msra.mxu0 %v4787
    %5981 = vmatprep.subr.mxu0 0.0
    %5982 = vmatpush1.msra.mxu0 0.0
    %5983 = vmatprep.subr.mxu0 0.0
    %5984 = vmatpush1.msra.mxu0 0.0
    %5985 = vmatprep.subr.mxu0 0.0
    %5986 = vmatpush1.msra.mxu0 0.0
    %5987 = vmatprep.subr.mxu0 0.0
    %5988 = vmatpush1.msra.mxu0 0.0
    %5989 = vmatprep.subr.mxu0 0.0
    %5990 = vmatpush1.msra.mxu0 0.0
    %5991 = vmatprep.subr.mxu0 0.0
    %5992 = vmatpush1.msra.mxu0 0.0
    %5993 = vmatprep.subr.mxu0 0.0
    %5994 = vmatpush1.msra.mxu0 0.0
    %5995 = vmatprep.subr.mxu0 0.0
    %5996 = vmatpush1.msra.mxu0 0.0
    %5997 = vmatprep.subr.mxu0 0.0
    %5998 = vmatpush1.msra.mxu0 0.0
    %5999 = vmatprep.subr.mxu0 0.0
    %6000 = vmatpush1.msra.mxu0 0.0
    %6001 = vmatprep.subr.mxu0 0.0
    %6002 = vmatpush1.msra.mxu0 0.0
    %6003 = vmatprep.subr.mxu0 0.0
    %6004 = vmatpush1.msra.mxu0 0.0
    %6005 = vmatprep.subr.mxu0 0.0
    %6006 = vmatpush1.msra.mxu0 0.0
    %6007 = vmatprep.subr.mxu0 0.0
    %6008 = vmatpush1.msra.mxu0 0.0
    %6009 = vmatprep.subr.mxu0 0.0
    %6010 = vmatpush1.msra.mxu0 0.0
    %6011 = vmatprep.subr.mxu0 0.0
    %6012 = vmatpush1.msra.mxu0 0.0
    %6013 = vmatprep.subr.mxu0 0.0
    %6014 = vmatpush1.msra.mxu0 0.0
    %6015 = vmatprep.subr.mxu0 0.0
    %6016 = vmatpush1.msra.mxu0 0.0
    %6017 = vmatprep.subr.mxu0 0.0
    %6018 = vmatpush1.msra.mxu0 0.0
    %6019 = vmatprep.subr.mxu0 0.0
    %6020 = vmatpush1.msra.mxu0 0.0
    %6021 = vmatprep.subr.mxu0 0.0
    %6022 = vmatpush1.msra.mxu0 0.0
    %6023 = vmatprep.subr.mxu0 0.0
    %6024 = vmatpush1.msra.mxu0 0.0
    %6025 = vmatprep.subr.mxu0 0.0
    %6026 = vmatpush1.msra.mxu0 0.0
    %6027 = vmatprep.subr.mxu0 0.0
    %6028 = vmatpush1.msra.mxu0 0.0
    %6029 = vmatprep.mubr.f32.mxu0 0.0
    %6030 = vmatmul.mubr.f32.gmra.mrb[0].mxu0 %v5961
    %v6031 = vpop.f32.mrb[0].mxu0
    %v6032 = vadd.f32 0.0, %v6031
    %v6033 = vpop.f32.mrb[0].mxu0
    %6034 = vmatprep.mubr.f32.mxu0 0.0
    %6035 = vmatmul.mubr.f32.gmra.mrb[0].mxu0 %v5963
    %v6036 = vpop.f32.mrb[0].mxu0
    %v6037 = vadd.f32 0.0, %v6036
    %v6038 = vpop.f32.mrb[0].mxu0
    %6039 = vdwg.mxu0
    %s6040 = scalar_lea.vmem %s3, 32
    %v6041 = vld [vmem:[%s6040] sm:$0xff]
    %v6042 = vld [vmem:[%s6040 + $0x8] sm:$0xff]
    %v6043 = vld [vmem:[%s6040 + $0x10] sm:$0xff]
    %v6044 = vld [vmem:[%s6040 + $0x18] sm:$0xff]
    %v6046 = vsel %vm178, %v6032, 0
    %v6049 = vsel %vm178, %v6037, 0
    %6051 = vmatprep.subr.mxu0 0.0
    %6052 = vmatpush1.msra.mxu0 %v6041
    %6053 = vmatprep.subr.mxu0 0.0
    %6054 = vmatpush1.msra.mxu0 %v6042
    %6055 = vmatprep.subr.mxu0 0.0
    %6056 = vmatpush1.msra.mxu0 %v6043
    %6057 = vmatprep.subr.mxu0 0.0
    %6058 = vmatpush1.msra.mxu0 %v6044
    %6059 = vmatprep.subr.mxu0 0.0
    %6060 = vmatpush1.msra.mxu0 0.0
    %6061 = vmatprep.subr.mxu0 0.0
    %6062 = vmatpush1.msra.mxu0 0.0
    %6063 = vmatprep.subr.mxu0 0.0
    %6064 = vmatpush1.msra.mxu0 0.0
    %6065 = vmatprep.subr.mxu0 0.0
    %6066 = vmatpush1.msra.mxu0 0.0
    %6067 = vmatprep.subr.mxu0 0.0
    %6068 = vmatpush1.msra.mxu0 0.0
    %6069 = vmatprep.subr.mxu0 0.0
    %6070 = vmatpush1.msra.mxu0 0.0
    %6071 = vmatprep.subr.mxu0 0.0
    %6072 = vmatpush1.msra.mxu0 0.0
    %6073 = vmatprep.subr.mxu0 0.0
    %6074 = vmatpush1.msra.mxu0 0.0
    %6075 = vmatprep.subr.mxu0 0.0
    %6076 = vmatpush1.msra.mxu0 0.0
    %6077 = vmatprep.subr.mxu0 0.0
    %6078 = vmatpush1.msra.mxu0 0.0
    %6079 = vmatprep.subr.mxu0 0.0
    %6080 = vmatpush1.msra.mxu0 0.0
    %6081 = vmatprep.subr.mxu0 0.0
    %6082 = vmatpush1.msra.mxu0 0.0
    %6083 = vmatprep.subr.mxu0 0.0
    %6084 = vmatpush1.msra.mxu0 0.0
    %6085 = vmatprep.subr.mxu0 0.0
    %6086 = vmatpush1.msra.mxu0 0.0
    %6087 = vmatprep.subr.mxu0 0.0
    %6088 = vmatpush1.msra.mxu0 0.0
    %6089 = vmatprep.subr.mxu0 0.0
    %6090 = vmatpush1.msra.mxu0 0.0
    %6091 = vmatprep.subr.mxu0 0.0
    %6092 = vmatpush1.msra.mxu0 0.0
    %6093 = vmatprep.subr.mxu0 0.0
    %6094 = vmatpush1.msra.mxu0 0.0
    %6095 = vmatprep.subr.mxu0 0.0
    %6096 = vmatpush1.msra.mxu0 0.0
    %6097 = vmatprep.subr.mxu0 0.0
    %6098 = vmatpush1.msra.mxu0 0.0
    %6099 = vmatprep.subr.mxu0 0.0
    %6100 = vmatpush1.msra.mxu0 0.0
    %6101 = vmatprep.subr.mxu0 0.0
    %6102 = vmatpush1.msra.mxu0 0.0
    %6103 = vmatprep.subr.mxu0 0.0
    %6104 = vmatpush1.msra.mxu0 0.0
    %6105 = vmatprep.subr.mxu0 0.0
    %6106 = vmatpush1.msra.mxu0 0.0
    %6107 = vmatprep.subr.mxu0 0.0
    %6108 = vmatpush1.msra.mxu0 0.0
    %6109 = vmatprep.subr.mxu0 0.0
    %6110 = vmatpush1.msra.mxu0 0.0
    %6111 = vmatprep.subr.mxu0 0.0
    %6112 = vmatpush1.msra.mxu0 0.0
    %6113 = vmatprep.subr.mxu0 0.0
    %6114 = vmatpush1.msra.mxu0 0.0
    %6115 = vmatprep.mubr.f32.mxu0 0.0
    %6116 = vmatmul.mubr.f32.gmra.mrb[0].mxu0 %v6046
    %v6117 = vpop.f32.mrb[0].mxu0
    %v6118 = vadd.f32 0.0, %v6117
    %v6119 = vpop.f32.mrb[0].mxu0
    %6120 = vmatprep.mubr.f32.mxu0 0.0
    %6121 = vmatmul.mubr.f32.gmra.mrb[0].mxu0 %v6049
    %v6122 = vpop.f32.mrb[0].mxu0
    %v6123 = vadd.f32 0.0, %v6122
    %v6124 = vpop.f32.mrb[0].mxu0
    %6125 = vdwg.mxu0
    %s6126 = scalar_lea.vmem %s4, 2
    %v6127 = vld [vmem:[%s6126] sm:$0x3]
    %v6128 = vlaneseq
    %v6129 = vshrl.u32 %v6128, 7
    %v6130 = vsub.s32 1, %v6129
    %v6131 = vrot.slane %v6127, %v6130
    %v6132 = vmul.f32 %v6118, %v6131
    %v6133 = vmul.f32 %v6123, %v6131
    %v6135 = vrot.slane %v6123, 7
    %v6138 = vrot.slane %v6118, 7
    %v6139 = vsel %vm271, %v6138, %v6135
    %v6142 = vsel %vm271, %v6135, %v6138
    %v6143 = vsel %vm277, %v6142, 0.0
    %v6144 = vsel %vm277, %v6139, 0.0
    %v6145 = vlaneseq
    %v6146 = vshrl.u32 %v6145, 7
    %v6147 = vsub.s32 0, %v6146
    %v6148 = vrot.slane %v6127, %v6147
    %v6149 = vmul.f32 %v6143, %v6148
    %v6150 = vmul.f32 %v6144, %v6148
    %v6151 = vadd.f32 %v6132, %v6149
    %v6152 = vadd.f32 %v6133, %v6150
    %s6153 = scalar_lea.vmem %s5, 1
    %v6154 = vld [vmem:[%s6153] sm:$0x1]
    %v6156 = vlaneseq
    %v6157 = vshrl.u32 %v6156, 7
    %v6158 = vsub.s32 0, %v6157
    %v6159 = vrot.slane %v6154, %v6158
    %v6161 = vadd.f32 %v6151, %v6159
    %v6162 = vadd.f32 %v6152, %v6159
    %v6163 = vsub.f32 0.0, %v6161
    %v6164 = vsub.f32 0.0, %v6162
    %v6165 = vmul.f32 %v6163, 1.442695
    %v6166 = vpow.pop %v6165
    %v6167 = vmul.f32 %v6164, 1.442695
    %v6168 = vpow.pop %v6167
    %v6169 = vadd.f32 %v6166, 1.0
    %v6170 = vadd.f32 %v6168, 1.0
    %v6171 = vrcp.pop %v6169
    %v6172 = vrcp.pop %v6170
    %v6173 = vmul.f32 %v6161, %v6171
    %v6174 = vmul.f32 %v6162, %v6172
    %s6175 = scalar_lea.vmem %s6, 64
    %v6176 = vld [vmem:[%s6175] sm:$0xff]
    %v6177 = vld [vmem:[%s6175 + $0x8] sm:$0xff]
    %v6178 = vld [vmem:[%s6175 + $0x10] sm:$0xff]
    %v6179 = vld [vmem:[%s6175 + $0x18] sm:$0xff]
    %v6180 = vld [vmem:[%s6175 + $0x20] sm:$0xff]
    %v6181 = vld [vmem:[%s6175 + $0x28] sm:$0xff]
    %v6182 = vld [vmem:[%s6175 + $0x30] sm:$0xff]
    %v6183 = vld [vmem:[%s6175 + $0x38] sm:$0xff]
    %v6185 = vsel %vm317, %v6173, 0
    %v6188 = vsel %vm317, %v6174, 0
    %6190 = vmatprep.subr.mxu0 0.0
    %6191 = vmatpush1.msra.mxu0 %v6176
    %6192 = vmatprep.subr.mxu0 0.0
    %6193 = vmatpush1.msra.mxu0 %v6177
    %6194 = vmatprep.subr.mxu0 0.0
    %6195 = vmatpush1.msra.mxu0 %v6178
    %6196 = vmatprep.subr.mxu0 0.0
    %6197 = vmatpush1.msra.mxu0 %v6179
    %6198 = vmatprep.subr.mxu0 0.0
    %6199 = vmatpush1.msra.mxu0 %v6180
    %6200 = vmatprep.subr.mxu0 0.0
    %6201 = vmatpush1.msra.mxu0 %v6181
    %6202 = vmatprep.subr.mxu0 0.0
    %6203 = vmatpush1.msra.mxu0 %v6182
    %6204 = vmatprep.subr.mxu0 0.0
    %6205 = vmatpush1.msra.mxu0 %v6183
    %6206 = vmatprep.subr.mxu0 0.0
    %6207 = vmatpush1.msra.mxu0 0.0
    %6208 = vmatprep.subr.mxu0 0.0
    %6209 = vmatpush1.msra.mxu0 0.0
    %6210 = vmatprep.subr.mxu0 0.0
    %6211 = vmatpush1.msra.mxu0 0.0
    %6212 = vmatprep.subr.mxu0 0.0
    %6213 = vmatpush1.msra.mxu0 0.0
    %6214 = vmatprep.subr.mxu0 0.0
    %6215 = vmatpush1.msra.mxu0 0.0
    %6216 = vmatprep.subr.mxu0 0.0
    %6217 = vmatpush1.msra.mxu0 0.0
    %6218 = vmatprep.subr.mxu0 0.0
    %6219 = vmatpush1.msra.mxu0 0.0
    %6220 = vmatprep.subr.mxu0 0.0
    %6221 = vmatpush1.msra.mxu0 0.0
    %6222 = vmatprep.subr.mxu0 0.0
    %6223 = vmatpush1.msra.mxu0 0.0
    %6224 = vmatprep.subr.mxu0 0.0
    %6225 = vmatpush1.msra.mxu0 0.0
    %6226 = vmatprep.subr.mxu0 0.0
    %6227 = vmatpush1.msra.mxu0 0.0
    %6228 = vmatprep.subr.mxu0 0.0
    %6229 = vmatpush1.msra.mxu0 0.0
    %6230 = vmatprep.subr.mxu0 0.0
    %6231 = vmatpush1.msra.mxu0 0.0
    %6232 = vmatprep.subr.mxu0 0.0
    %6233 = vmatpush1.msra.mxu0 0.0
    %6234 = vmatprep.subr.mxu0 0.0
    %6235 = vmatpush1.msra.mxu0 0.0
    %6236 = vmatprep.subr.mxu0 0.0
    %6237 = vmatpush1.msra.mxu0 0.0
    %6238 = vmatprep.subr.mxu0 0.0
    %6239 = vmatpush1.msra.mxu0 0.0
    %6240 = vmatprep.subr.mxu0 0.0
    %6241 = vmatpush1.msra.mxu0 0.0
    %6242 = vmatprep.subr.mxu0 0.0
    %6243 = vmatpush1.msra.mxu0 0.0
    %6244 = vmatprep.subr.mxu0 0.0
    %6245 = vmatpush1.msra.mxu0 0.0
    %6246 = vmatprep.subr.mxu0 0.0
    %6247 = vmatpush1.msra.mxu0 0.0
    %6248 = vmatprep.subr.mxu0 0.0
    %6249 = vmatpush1.msra.mxu0 0.0
    %6250 = vmatprep.subr.mxu0 0.0
    %6251 = vmatpush1.msra.mxu0 0.0
    %6252 = vmatprep.subr.mxu0 0.0
    %6253 = vmatpush1.msra.mxu0 0.0
    %6254 = vmatprep.mubr.f32.mxu0 0.0
    %6255 = vmatmul.mubr.f32.gmra.mrb[0].mxu0 %v6185
    %v6256 = vpop.f32.mrb[0].mxu0
    %v6257 = vadd.f32 0.0, %v6256
    %v6258 = vpop.f32.mrb[0].mxu0
    %6259 = vmatprep.mubr.f32.mxu0 0.0
    %6260 = vmatmul.mubr.f32.gmra.mrb[0].mxu0 %v6188
    %v6261 = vpop.f32.mrb[0].mxu0
    %v6262 = vadd.f32 0.0, %v6261
    %v6263 = vpop.f32.mrb[0].mxu0
    %6264 = vdwg.mxu0
    %s6265 = scalar_lea.vmem [#allocation2], 64
    %v6266 = vld [vmem:[%s6265] sm:$0xff]
    %v6267 = vld [vmem:[%s6265 + $0x8] sm:$0xff]
    %v6268 = vld [vmem:[%s6265 + $0x10] sm:$0xff]
    %v6269 = vld [vmem:[%s6265 + $0x18] sm:$0xff]
    %v6270 = vld [vmem:[%s6265 + $0x20] sm:$0xff]
    %v6271 = vld [vmem:[%s6265 + $0x28] sm:$0xff]
    %v6272 = vld [vmem:[%s6265 + $0x30] sm:$0xff]
    %v6273 = vld [vmem:[%s6265 + $0x38] sm:$0xff]
    %s6274 = scalar_lea.vmem %s8, 1
    %v6275 = vld [vmem:[%s6274] sm:$0x1]
    %v6277 = vlaneseq
    %v6278 = vshrl.u32 %v6277, 7
    %v6279 = vsub.s32 0, %v6278
    %v6280 = vrot.slane %v6275, %v6279
    %6282 = vmatprep.subr.mxu0 0.0
    %6283 = vmatpush1.msra.mxu0 %v6266
    %6284 = vmatprep.subr.mxu0 0.0
    %6285 = vmatpush1.msra.mxu0 %v6267
    %6286 = vmatprep.subr.mxu0 0.0
    %6287 = vmatpush1.msra.mxu0 %v6268
    %6288 = vmatprep.subr.mxu0 0.0
    %6289 = vmatpush1.msra.mxu0 %v6269
    %6290 = vmatprep.subr.mxu0 0.0
    %6291 = vmatpush1.msra.mxu0 %v6270
    %6292 = vmatprep.subr.mxu0 0.0
    %6293 = vmatpush1.msra.mxu0 %v6271
    %6294 = vmatprep.subr.mxu0 0.0
    %6295 = vmatpush1.msra.mxu0 %v6272
    %6296 = vmatprep.subr.mxu0 0.0
    %6297 = vmatpush1.msra.mxu0 %v6273
    %6298 = vmatprep.subr.mxu0 0.0
    %6299 = vmatpush1.msra.mxu0 0.0
    %6300 = vmatprep.subr.mxu0 0.0
    %6301 = vmatpush1.msra.mxu0 0.0
    %6302 = vmatprep.subr.mxu0 0.0
    %6303 = vmatpush1.msra.mxu0 0.0
    %6304 = vmatprep.subr.mxu0 0.0
    %6305 = vmatpush1.msra.mxu0 0.0
    %6306 = vmatprep.subr.mxu0 0.0
    %6307 = vmatpush1.msra.mxu0 0.0
    %6308 = vmatprep.subr.mxu0 0.0
    %6309 = vmatpush1.msra.mxu0 0.0
    %6310 = vmatprep.subr.mxu0 0.0
    %6311 = vmatpush1.msra.mxu0 0.0
    %6312 = vmatprep.subr.mxu0 0.0
    %6313 = vmatpush1.msra.mxu0 0.0
    %6314 = vmatprep.subr.mxu0 0.0
    %6315 = vmatpush1.msra.mxu0 0.0
    %6316 = vmatprep.subr.mxu0 0.0
    %6317 = vmatpush1.msra.mxu0 0.0
    %6318 = vmatprep.subr.mxu0 0.0
    %6319 = vmatpush1.msra.mxu0 0.0
    %6320 = vmatprep.subr.mxu0 0.0
    %6321 = vmatpush1.msra.mxu0 0.0
    %6322 = vmatprep.subr.mxu0 0.0
    %6323 = vmatpush1.msra.mxu0 0.0
    %6324 = vmatprep.subr.mxu0 0.0
    %6325 = vmatpush1.msra.mxu0 0.0
    %6326 = vmatprep.subr.mxu0 0.0
    %6327 = vmatpush1.msra.mxu0 0.0
    %6328 = vmatprep.subr.mxu0 0.0
    %6329 = vmatpush1.msra.mxu0 0.0
    %6330 = vmatprep.subr.mxu0 0.0
    %6331 = vmatpush1.msra.mxu0 0.0
    %6332 = vmatprep.subr.mxu0 0.0
    %6333 = vmatpush1.msra.mxu0 0.0
    %6334 = vmatprep.subr.mxu0 0.0
    %6335 = vmatpush1.msra.mxu0 0.0
    %6336 = vmatprep.subr.mxu0 0.0
    %6337 = vmatpush1.msra.mxu0 0.0
    %6338 = vmatprep.subr.mxu0 0.0
    %6339 = vmatpush1.msra.mxu0 0.0
    %6340 = vmatprep.subr.mxu0 0.0
    %6341 = vmatpush1.msra.mxu0 0.0
    %6342 = vmatprep.subr.mxu0 0.0
    %6343 = vmatpush1.msra.mxu0 0.0
    %6344 = vmatprep.subr.mxu0 0.0
    %6345 = vmatpush1.msra.mxu0 0.0
    %6346 = vmatprep.mubr.f32.mxu0 0.0
    %6347 = vmatmul.mubr.f32.gmra.mrb[0].mxu0 %v6185
    %v6348 = vpop.f32.mrb[0].mxu0
    %v6349 = vadd.f32 %v6280, %v6348
    %v6350 = vpop.f32.mrb[0].mxu0
    %6351 = vmatprep.mubr.f32.mxu0 0.0
    %6352 = vmatmul.mubr.f32.gmra.mrb[0].mxu0 %v6188
    %v6353 = vpop.f32.mrb[0].mxu0
    %v6354 = vadd.f32 %v6280, %v6353
    %v6355 = vpop.f32.mrb[0].mxu0
    %6356 = vdwg.mxu0
    %vm6357 = vcmp.gt.f32.partialorder %v6349, 20.0
    %vm6358 = vcmp.gt.f32.partialorder %v6354, 20.0
    %v6359 = vmin.f32 %v6349, 20.0
    %v6360 = vmin.f32 %v6354, 20.0
    %v6361 = vmul.f32 %v6359, 1.442695
    %v6362 = vpow.pop %v6361
    %v6363 = vmul.f32 %v6360, 1.442695
    %v6364 = vpow.pop %v6363
    %v6365 = vadd.f32 %v6362, 1.0
    %v6366 = vlog2.pop %v6365
    %v6367 = vmul.f32 %v6366, 0.6931472
    %v6368 = vmul.f32 -0.5, %v6362
    %v6369 = vadd.f32 %v6368, 1.0
    %v6370 = vmul.f32 %v6369, %v6362
    %v6371 = vand.u32 2147483647, %v6362
    %vm6372 = vcmp.lt.f32.partialorder %v6371, 0.0004427343
    %v6373 = vsel %vm6372, %v6370, %v6367
    %v6374 = vadd.f32 %v6364, 1.0
    %v6375 = vlog2.pop %v6374
    %v6376 = vmul.f32 %v6375, 0.6931472
    %v6377 = vmul.f32 -0.5, %v6364
    %v6378 = vadd.f32 %v6377, 1.0
    %v6379 = vmul.f32 %v6378, %v6364
    %v6380 = vand.u32 2147483647, %v6364
    %vm6381 = vcmp.lt.f32.partialorder %v6380, 0.0004427343
    %v6382 = vsel %vm6381, %v6379, %v6376
    %v6383 = vsel %vm6357, %v6349, %v6373
    %v6384 = vsel %vm6358, %v6354, %v6382
    %v6385 = vmul.f32 %v6383, %v6173
    %v6386 = vmul.f32 %v6384, %v6174
    %s6387 = scalar_lea.vmem [#allocation5], 64
    %v6388 = vld [vmem:[%s6387] sm:$0xff]
    %v6389 = vld [vmem:[%s6387 + $0x8] sm:$0xff]
    %v6390 = vld [vmem:[%s6387 + $0x10] sm:$0xff]
    %v6391 = vld [vmem:[%s6387 + $0x18] sm:$0xff]
    %v6392 = vld [vmem:[%s6387 + $0x20] sm:$0xff]
    %v6393 = vld [vmem:[%s6387 + $0x28] sm:$0xff]
    %v6394 = vld [vmem:[%s6387 + $0x30] sm:$0xff]
    %v6395 = vld [vmem:[%s6387 + $0x38] sm:$0xff]
    %v6396 = vlaneseq
    %v6397 = vshrl.u32 %v6396, 7
    %v6398 = vsub.s32 0, %v6397
    %v6399 = vrot.slane %v6383, %v6398
    %6401 = vbcast.lane.b32.xlu0 %v6399, 256
    %v6402 = vpop.permute.xlu0 %6401
    %s6404 = sor.u32 256, 8
    %6405 = vbcast.lane.b32.xlu0 %v6399, %s6404
    %v6406 = vpop.permute.xlu0 %6405
    %s6408 = sor.u32 256, 16
    %6409 = vbcast.lane.b32.xlu0 %v6399, %s6408
    %v6410 = vpop.permute.xlu0 %6409
    %s6412 = sor.u32 256, 24
    %6413 = vbcast.lane.b32.xlu0 %v6399, %s6412
    %v6414 = vpop.permute.xlu0 %6413
    %s6416 = sor.u32 256, 32
    %6417 = vbcast.lane.b32.xlu0 %v6399, %s6416
    %v6418 = vpop.permute.xlu0 %6417
    %s6420 = sor.u32 256, 40
    %6421 = vbcast.lane.b32.xlu0 %v6399, %s6420
    %v6422 = vpop.permute.xlu0 %6421
    %s6424 = sor.u32 256, 48
    %6425 = vbcast.lane.b32.xlu0 %v6399, %s6424
    %v6426 = vpop.permute.xlu0 %6425
    %s6428 = sor.u32 256, 56
    %6429 = vbcast.lane.b32.xlu0 %v6399, %s6428
    %v6430 = vpop.permute.xlu0 %6429
    %v6431 = vlaneseq
    %v6432 = vshrl.u32 %v6431, 7
    %v6433 = vsub.s32 1, %v6432
    %v6434 = vrot.slane %v6383, %v6433
    %6436 = vbcast.lane.b32.xlu0 %v6434, 256
    %v6437 = vpop.permute.xlu0 %6436
    %s6439 = sor.u32 256, 8
    %6440 = vbcast.lane.b32.xlu0 %v6434, %s6439
    %v6441 = vpop.permute.xlu0 %6440
    %s6443 = sor.u32 256, 16
    %6444 = vbcast.lane.b32.xlu0 %v6434, %s6443
    %v6445 = vpop.permute.xlu0 %6444
    %s6447 = sor.u32 256, 24
    %6448 = vbcast.lane.b32.xlu0 %v6434, %s6447
    %v6449 = vpop.permute.xlu0 %6448
    %s6451 = sor.u32 256, 32
    %6452 = vbcast.lane.b32.xlu0 %v6434, %s6451
    %v6453 = vpop.permute.xlu0 %6452
    %s6455 = sor.u32 256, 40
    %6456 = vbcast.lane.b32.xlu0 %v6434, %s6455
    %v6457 = vpop.permute.xlu0 %6456
    %s6459 = sor.u32 256, 48
    %6460 = vbcast.lane.b32.xlu0 %v6434, %s6459
    %v6461 = vpop.permute.xlu0 %6460
    %s6463 = sor.u32 256, 56
    %6464 = vbcast.lane.b32.xlu0 %v6434, %s6463
    %v6465 = vpop.permute.xlu0 %6464
    %v6466 = vlaneseq
    %v6467 = vshrl.u32 %v6466, 7
    %v6468 = vsub.s32 2, %v6467
    %v6469 = vrot.slane %v6383, %v6468
    %6471 = vbcast.lane.b32.xlu0 %v6469, 256
    %v6472 = vpop.permute.xlu0 %6471
    %s6474 = sor.u32 256, 8
    %6475 = vbcast.lane.b32.xlu0 %v6469, %s6474
    %v6476 = vpop.permute.xlu0 %6475
    %s6478 = sor.u32 256, 16
    %6479 = vbcast.lane.b32.xlu0 %v6469, %s6478
    %v6480 = vpop.permute.xlu0 %6479
    %s6482 = sor.u32 256, 24
    %6483 = vbcast.lane.b32.xlu0 %v6469, %s6482
    %v6484 = vpop.permute.xlu0 %6483
    %s6486 = sor.u32 256, 32
    %6487 = vbcast.lane.b32.xlu0 %v6469, %s6486
    %v6488 = vpop.permute.xlu0 %6487
    %s6490 = sor.u32 256, 40
    %6491 = vbcast.lane.b32.xlu0 %v6469, %s6490
    %v6492 = vpop.permute.xlu0 %6491
    %s6494 = sor.u32 256, 48
    %6495 = vbcast.lane.b32.xlu0 %v6469, %s6494
    %v6496 = vpop.permute.xlu0 %6495
    %s6498 = sor.u32 256, 56
    %6499 = vbcast.lane.b32.xlu0 %v6469, %s6498
    %v6500 = vpop.permute.xlu0 %6499
    %v6501 = vlaneseq
    %v6502 = vshrl.u32 %v6501, 7
    %v6503 = vsub.s32 3, %v6502
    %v6504 = vrot.slane %v6383, %v6503
    %6506 = vbcast.lane.b32.xlu0 %v6504, 256
    %v6507 = vpop.permute.xlu0 %6506
    %s6509 = sor.u32 256, 8
    %6510 = vbcast.lane.b32.xlu0 %v6504, %s6509
    %v6511 = vpop.permute.xlu0 %6510
    %s6513 = sor.u32 256, 16
    %6514 = vbcast.lane.b32.xlu0 %v6504, %s6513
    %v6515 = vpop.permute.xlu0 %6514
    %s6517 = sor.u32 256, 24
    %6518 = vbcast.lane.b32.xlu0 %v6504, %s6517
    %v6519 = vpop.permute.xlu0 %6518
    %s6521 = sor.u32 256, 32
    %6522 = vbcast.lane.b32.xlu0 %v6504, %s6521
    %v6523 = vpop.permute.xlu0 %6522
    %s6525 = sor.u32 256, 40
    %6526 = vbcast.lane.b32.xlu0 %v6504, %s6525
    %v6527 = vpop.permute.xlu0 %6526
    %s6529 = sor.u32 256, 48
    %6530 = vbcast.lane.b32.xlu0 %v6504, %s6529
    %v6531 = vpop.permute.xlu0 %6530
    %s6533 = sor.u32 256, 56
    %6534 = vbcast.lane.b32.xlu0 %v6504, %s6533
    %v6535 = vpop.permute.xlu0 %6534
    %v6536 = vlaneseq
    %v6537 = vshrl.u32 %v6536, 7
    %v6538 = vsub.s32 4, %v6537
    %v6539 = vrot.slane %v6383, %v6538
    %6541 = vbcast.lane.b32.xlu0 %v6539, 256
    %v6542 = vpop.permute.xlu0 %6541
    %s6544 = sor.u32 256, 8
    %6545 = vbcast.lane.b32.xlu0 %v6539, %s6544
    %v6546 = vpop.permute.xlu0 %6545
    %s6548 = sor.u32 256, 16
    %6549 = vbcast.lane.b32.xlu0 %v6539, %s6548
    %v6550 = vpop.permute.xlu0 %6549
    %s6552 = sor.u32 256, 24
    %6553 = vbcast.lane.b32.xlu0 %v6539, %s6552
    %v6554 = vpop.permute.xlu0 %6553
    %s6556 = sor.u32 256, 32
    %6557 = vbcast.lane.b32.xlu0 %v6539, %s6556
    %v6558 = vpop.permute.xlu0 %6557
    %s6560 = sor.u32 256, 40
    %6561 = vbcast.lane.b32.xlu0 %v6539, %s6560
    %v6562 = vpop.permute.xlu0 %6561
    %s6564 = sor.u32 256, 48
    %6565 = vbcast.lane.b32.xlu0 %v6539, %s6564
    %v6566 = vpop.permute.xlu0 %6565
    %s6568 = sor.u32 256, 56
    %6569 = vbcast.lane.b32.xlu0 %v6539, %s6568
    %v6570 = vpop.permute.xlu0 %6569
    %v6571 = vlaneseq
    %v6572 = vshrl.u32 %v6571, 7
    %v6573 = vsub.s32 5, %v6572
    %v6574 = vrot.slane %v6383, %v6573
    %6576 = vbcast.lane.b32.xlu0 %v6574, 256
    %v6577 = vpop.permute.xlu0 %6576
    %s6579 = sor.u32 256, 8
    %6580 = vbcast.lane.b32.xlu0 %v6574, %s6579
    %v6581 = vpop.permute.xlu0 %6580
    %s6583 = sor.u32 256, 16
    %6584 = vbcast.lane.b32.xlu0 %v6574, %s6583
    %v6585 = vpop.permute.xlu0 %6584
    %s6587 = sor.u32 256, 24
    %6588 = vbcast.lane.b32.xlu0 %v6574, %s6587
    %v6589 = vpop.permute.xlu0 %6588
    %s6591 = sor.u32 256, 32
    %6592 = vbcast.lane.b32.xlu0 %v6574, %s6591
    %v6593 = vpop.permute.xlu0 %6592
    %s6595 = sor.u32 256, 40
    %6596 = vbcast.lane.b32.xlu0 %v6574, %s6595
    %v6597 = vpop.permute.xlu0 %6596
    %s6599 = sor.u32 256, 48
    %6600 = vbcast.lane.b32.xlu0 %v6574, %s6599
    %v6601 = vpop.permute.xlu0 %6600
    %s6603 = sor.u32 256, 56
    %6604 = vbcast.lane.b32.xlu0 %v6574, %s6603
    %v6605 = vpop.permute.xlu0 %6604
    %v6606 = vlaneseq
    %v6607 = vshrl.u32 %v6606, 7
    %v6608 = vsub.s32 6, %v6607
    %v6609 = vrot.slane %v6383, %v6608
    %6611 = vbcast.lane.b32.xlu0 %v6609, 256
    %v6612 = vpop.permute.xlu0 %6611
    %s6614 = sor.u32 256, 8
    %6615 = vbcast.lane.b32.xlu0 %v6609, %s6614
    %v6616 = vpop.permute.xlu0 %6615
    %s6618 = sor.u32 256, 16
    %6619 = vbcast.lane.b32.xlu0 %v6609, %s6618
    %v6620 = vpop.permute.xlu0 %6619
    %s6622 = sor.u32 256, 24
    %6623 = vbcast.lane.b32.xlu0 %v6609, %s6622
    %v6624 = vpop.permute.xlu0 %6623
    %s6626 = sor.u32 256, 32
    %6627 = vbcast.lane.b32.xlu0 %v6609, %s6626
    %v6628 = vpop.permute.xlu0 %6627
    %s6630 = sor.u32 256, 40
    %6631 = vbcast.lane.b32.xlu0 %v6609, %s6630
    %v6632 = vpop.permute.xlu0 %6631
    %s6634 = sor.u32 256, 48
    %6635 = vbcast.lane.b32.xlu0 %v6609, %s6634
    %v6636 = vpop.permute.xlu0 %6635
    %s6638 = sor.u32 256, 56
    %6639 = vbcast.lane.b32.xlu0 %v6609, %s6638
    %v6640 = vpop.permute.xlu0 %6639
    %v6641 = vlaneseq
    %v6642 = vshrl.u32 %v6641, 7
    %v6643 = vsub.s32 7, %v6642
    %v6644 = vrot.slane %v6383, %v6643
    %6646 = vbcast.lane.b32.xlu0 %v6644, 256
    %v6647 = vpop.permute.xlu0 %6646
    %s6649 = sor.u32 256, 8
    %6650 = vbcast.lane.b32.xlu0 %v6644, %s6649
    %v6651 = vpop.permute.xlu0 %6650
    %s6653 = sor.u32 256, 16
    %6654 = vbcast.lane.b32.xlu0 %v6644, %s6653
    %v6655 = vpop.permute.xlu0 %6654
    %s6657 = sor.u32 256, 24
    %6658 = vbcast.lane.b32.xlu0 %v6644, %s6657
    %v6659 = vpop.permute.xlu0 %6658
    %s6661 = sor.u32 256, 32
    %6662 = vbcast.lane.b32.xlu0 %v6644, %s6661
    %v6663 = vpop.permute.xlu0 %6662
    %s6665 = sor.u32 256, 40
    %6666 = vbcast.lane.b32.xlu0 %v6644, %s6665
    %v6667 = vpop.permute.xlu0 %6666
    %s6669 = sor.u32 256, 48
    %6670 = vbcast.lane.b32.xlu0 %v6644, %s6669
    %v6671 = vpop.permute.xlu0 %6670
    %s6673 = sor.u32 256, 56
    %6674 = vbcast.lane.b32.xlu0 %v6644, %s6673
    %v6675 = vpop.permute.xlu0 %6674
    %v6676 = vlaneseq
    %v6677 = vshrl.u32 %v6676, 7
    %v6678 = vsub.s32 0, %v6677
    %v6679 = vrot.slane %v6384, %v6678
    %6681 = vbcast.lane.b32.xlu0 %v6679, 256
    %v6682 = vpop.permute.xlu0 %6681
    %s6684 = sor.u32 256, 8
    %6685 = vbcast.lane.b32.xlu0 %v6679, %s6684
    %v6686 = vpop.permute.xlu0 %6685
    %s6688 = sor.u32 256, 16
    %6689 = vbcast.lane.b32.xlu0 %v6679, %s6688
    %v6690 = vpop.permute.xlu0 %6689
    %s6692 = sor.u32 256, 24
    %6693 = vbcast.lane.b32.xlu0 %v6679, %s6692
    %v6694 = vpop.permute.xlu0 %6693
    %s6696 = sor.u32 256, 32
    %6697 = vbcast.lane.b32.xlu0 %v6679, %s6696
    %v6698 = vpop.permute.xlu0 %6697
    %s6700 = sor.u32 256, 40
    %6701 = vbcast.lane.b32.xlu0 %v6679, %s6700
    %v6702 = vpop.permute.xlu0 %6701
    %s6704 = sor.u32 256, 48
    %6705 = vbcast.lane.b32.xlu0 %v6679, %s6704
    %v6706 = vpop.permute.xlu0 %6705
    %s6708 = sor.u32 256, 56
    %6709 = vbcast.lane.b32.xlu0 %v6679, %s6708
    %v6710 = vpop.permute.xlu0 %6709
    %v6711 = vlaneseq
    %v6712 = vshrl.u32 %v6711, 7
    %v6713 = vsub.s32 1, %v6712
    %v6714 = vrot.slane %v6384, %v6713
    %6716 = vbcast.lane.b32.xlu0 %v6714, 256
    %v6717 = vpop.permute.xlu0 %6716
    %s6719 = sor.u32 256, 8
    %6720 = vbcast.lane.b32.xlu0 %v6714, %s6719
    %v6721 = vpop.permute.xlu0 %6720
    %s6723 = sor.u32 256, 16
    %6724 = vbcast.lane.b32.xlu0 %v6714, %s6723
    %v6725 = vpop.permute.xlu0 %6724
    %s6727 = sor.u32 256, 24
    %6728 = vbcast.lane.b32.xlu0 %v6714, %s6727
    %v6729 = vpop.permute.xlu0 %6728
    %s6731 = sor.u32 256, 32
    %6732 = vbcast.lane.b32.xlu0 %v6714, %s6731
    %v6733 = vpop.permute.xlu0 %6732
    %s6735 = sor.u32 256, 40
    %6736 = vbcast.lane.b32.xlu0 %v6714, %s6735
    %v6737 = vpop.permute.xlu0 %6736
    %s6739 = sor.u32 256, 48
    %6740 = vbcast.lane.b32.xlu0 %v6714, %s6739
    %v6741 = vpop.permute.xlu0 %6740
    %s6743 = sor.u32 256, 56
    %6744 = vbcast.lane.b32.xlu0 %v6714, %s6743
    %v6745 = vpop.permute.xlu0 %6744
    %v6746 = vlaneseq
    %v6747 = vshrl.u32 %v6746, 7
    %v6748 = vsub.s32 2, %v6747
    %v6749 = vrot.slane %v6384, %v6748
    %6751 = vbcast.lane.b32.xlu0 %v6749, 256
    %v6752 = vpop.permute.xlu0 %6751
    %s6754 = sor.u32 256, 8
    %6755 = vbcast.lane.b32.xlu0 %v6749, %s6754
    %v6756 = vpop.permute.xlu0 %6755
    %s6758 = sor.u32 256, 16
    %6759 = vbcast.lane.b32.xlu0 %v6749, %s6758
    %v6760 = vpop.permute.xlu0 %6759
    %s6762 = sor.u32 256, 24
    %6763 = vbcast.lane.b32.xlu0 %v6749, %s6762
    %v6764 = vpop.permute.xlu0 %6763
    %s6766 = sor.u32 256, 32
    %6767 = vbcast.lane.b32.xlu0 %v6749, %s6766
    %v6768 = vpop.permute.xlu0 %6767
    %s6770 = sor.u32 256, 40
    %6771 = vbcast.lane.b32.xlu0 %v6749, %s6770
    %v6772 = vpop.permute.xlu0 %6771
    %s6774 = sor.u32 256, 48
    %6775 = vbcast.lane.b32.xlu0 %v6749, %s6774
    %v6776 = vpop.permute.xlu0 %6775
    %s6778 = sor.u32 256, 56
    %6779 = vbcast.lane.b32.xlu0 %v6749, %s6778
    %v6780 = vpop.permute.xlu0 %6779
    %v6781 = vlaneseq
    %v6782 = vshrl.u32 %v6781, 7
    %v6783 = vsub.s32 3, %v6782
    %v6784 = vrot.slane %v6384, %v6783
    %6786 = vbcast.lane.b32.xlu0 %v6784, 256
    %v6787 = vpop.permute.xlu0 %6786
    %s6789 = sor.u32 256, 8
    %6790 = vbcast.lane.b32.xlu0 %v6784, %s6789
    %v6791 = vpop.permute.xlu0 %6790
    %s6793 = sor.u32 256, 16
    %6794 = vbcast.lane.b32.xlu0 %v6784, %s6793
    %v6795 = vpop.permute.xlu0 %6794
    %s6797 = sor.u32 256, 24
    %6798 = vbcast.lane.b32.xlu0 %v6784, %s6797
    %v6799 = vpop.permute.xlu0 %6798
    %s6801 = sor.u32 256, 32
    %6802 = vbcast.lane.b32.xlu0 %v6784, %s6801
    %v6803 = vpop.permute.xlu0 %6802
    %s6805 = sor.u32 256, 40
    %6806 = vbcast.lane.b32.xlu0 %v6784, %s6805
    %v6807 = vpop.permute.xlu0 %6806
    %s6809 = sor.u32 256, 48
    %6810 = vbcast.lane.b32.xlu0 %v6784, %s6809
    %v6811 = vpop.permute.xlu0 %6810
    %s6813 = sor.u32 256, 56
    %6814 = vbcast.lane.b32.xlu0 %v6784, %s6813
    %v6815 = vpop.permute.xlu0 %6814
    %v6816 = vlaneseq
    %v6817 = vshrl.u32 %v6816, 7
    %v6818 = vsub.s32 4, %v6817
    %v6819 = vrot.slane %v6384, %v6818
    %6821 = vbcast.lane.b32.xlu0 %v6819, 256
    %v6822 = vpop.permute.xlu0 %6821
    %s6824 = sor.u32 256, 8
    %6825 = vbcast.lane.b32.xlu0 %v6819, %s6824
    %v6826 = vpop.permute.xlu0 %6825
    %s6828 = sor.u32 256, 16
    %6829 = vbcast.lane.b32.xlu0 %v6819, %s6828
    %v6830 = vpop.permute.xlu0 %6829
    %s6832 = sor.u32 256, 24
    %6833 = vbcast.lane.b32.xlu0 %v6819, %s6832
    %v6834 = vpop.permute.xlu0 %6833
    %s6836 = sor.u32 256, 32
    %6837 = vbcast.lane.b32.xlu0 %v6819, %s6836
    %v6838 = vpop.permute.xlu0 %6837
    %s6840 = sor.u32 256, 40
    %6841 = vbcast.lane.b32.xlu0 %v6819, %s6840
    %v6842 = vpop.permute.xlu0 %6841
    %s6844 = sor.u32 256, 48
    %6845 = vbcast.lane.b32.xlu0 %v6819, %s6844
    %v6846 = vpop.permute.xlu0 %6845
    %s6848 = sor.u32 256, 56
    %6849 = vbcast.lane.b32.xlu0 %v6819, %s6848
    %v6850 = vpop.permute.xlu0 %6849
    %v6851 = vlaneseq
    %v6852 = vshrl.u32 %v6851, 7
    %v6853 = vsub.s32 5, %v6852
    %v6854 = vrot.slane %v6384, %v6853
    %6856 = vbcast.lane.b32.xlu0 %v6854, 256
    %v6857 = vpop.permute.xlu0 %6856
    %s6859 = sor.u32 256, 8
    %6860 = vbcast.lane.b32.xlu0 %v6854, %s6859
    %v6861 = vpop.permute.xlu0 %6860
    %s6863 = sor.u32 256, 16
    %6864 = vbcast.lane.b32.xlu0 %v6854, %s6863
    %v6865 = vpop.permute.xlu0 %6864
    %s6867 = sor.u32 256, 24
    %6868 = vbcast.lane.b32.xlu0 %v6854, %s6867
    %v6869 = vpop.permute.xlu0 %6868
    %s6871 = sor.u32 256, 32
    %6872 = vbcast.lane.b32.xlu0 %v6854, %s6871
    %v6873 = vpop.permute.xlu0 %6872
    %s6875 = sor.u32 256, 40
    %6876 = vbcast.lane.b32.xlu0 %v6854, %s6875
    %v6877 = vpop.permute.xlu0 %6876
    %s6879 = sor.u32 256, 48
    %6880 = vbcast.lane.b32.xlu0 %v6854, %s6879
    %v6881 = vpop.permute.xlu0 %6880
    %s6883 = sor.u32 256, 56
    %6884 = vbcast.lane.b32.xlu0 %v6854, %s6883
    %v6885 = vpop.permute.xlu0 %6884
    %v6886 = vlaneseq
    %v6887 = vshrl.u32 %v6886, 7
    %v6888 = vsub.s32 6, %v6887
    %v6889 = vrot.slane %v6384, %v6888
    %6891 = vbcast.lane.b32.xlu0 %v6889, 256
    %v6892 = vpop.permute.xlu0 %6891
    %s6894 = sor.u32 256, 8
    %6895 = vbcast.lane.b32.xlu0 %v6889, %s6894
    %v6896 = vpop.permute.xlu0 %6895
    %s6898 = sor.u32 256, 16
    %6899 = vbcast.lane.b32.xlu0 %v6889, %s6898
    %v6900 = vpop.permute.xlu0 %6899
    %s6902 = sor.u32 256, 24
    %6903 = vbcast.lane.b32.xlu0 %v6889, %s6902
    %v6904 = vpop.permute.xlu0 %6903
    %s6906 = sor.u32 256, 32
    %6907 = vbcast.lane.b32.xlu0 %v6889, %s6906
    %v6908 = vpop.permute.xlu0 %6907
    %s6910 = sor.u32 256, 40
    %6911 = vbcast.lane.b32.xlu0 %v6889, %s6910
    %v6912 = vpop.permute.xlu0 %6911
    %s6914 = sor.u32 256, 48
    %6915 = vbcast.lane.b32.xlu0 %v6889, %s6914
    %v6916 = vpop.permute.xlu0 %6915
    %s6918 = sor.u32 256, 56
    %6919 = vbcast.lane.b32.xlu0 %v6889, %s6918
    %v6920 = vpop.permute.xlu0 %6919
    %v6921 = vlaneseq
    %v6922 = vshrl.u32 %v6921, 7
    %v6923 = vsub.s32 7, %v6922
    %v6924 = vrot.slane %v6384, %v6923
    %6926 = vbcast.lane.b32.xlu0 %v6924, 256
    %v6927 = vpop.permute.xlu0 %6926
    %s6929 = sor.u32 256, 8
    %6930 = vbcast.lane.b32.xlu0 %v6924, %s6929
    %v6931 = vpop.permute.xlu0 %6930
    %s6933 = sor.u32 256, 16
    %6934 = vbcast.lane.b32.xlu0 %v6924, %s6933
    %v6935 = vpop.permute.xlu0 %6934
    %s6937 = sor.u32 256, 24
    %6938 = vbcast.lane.b32.xlu0 %v6924, %s6937
    %v6939 = vpop.permute.xlu0 %6938
    %s6941 = sor.u32 256, 32
    %6942 = vbcast.lane.b32.xlu0 %v6924, %s6941
    %v6943 = vpop.permute.xlu0 %6942
    %s6945 = sor.u32 256, 40
    %6946 = vbcast.lane.b32.xlu0 %v6924, %s6945
    %v6947 = vpop.permute.xlu0 %6946
    %s6949 = sor.u32 256, 48
    %6950 = vbcast.lane.b32.xlu0 %v6924, %s6949
    %v6951 = vpop.permute.xlu0 %6950
    %s6953 = sor.u32 256, 56
    %6954 = vbcast.lane.b32.xlu0 %v6924, %s6953
    %v6955 = vpop.permute.xlu0 %6954
    %v6956 = vsel %vm317, %v6402, %v6682
    %v6957 = vsel %vm317, %v6406, %v6686
    %v6958 = vsel %vm317, %v6410, %v6690
    %v6959 = vsel %vm317, %v6414, %v6694
    %v6960 = vsel %vm317, %v6418, %v6698
    %v6961 = vsel %vm317, %v6422, %v6702
    %v6962 = vsel %vm317, %v6426, %v6706
    %v6963 = vsel %vm317, %v6430, %v6710
    %v6964 = vsel %vm317, %v6437, %v6717
    %v6965 = vsel %vm317, %v6441, %v6721
    %v6966 = vsel %vm317, %v6445, %v6725
    %v6967 = vsel %vm317, %v6449, %v6729
    %v6968 = vsel %vm317, %v6453, %v6733
    %v6969 = vsel %vm317, %v6457, %v6737
    %v6970 = vsel %vm317, %v6461, %v6741
    %v6971 = vsel %vm317, %v6465, %v6745
    %v6972 = vsel %vm317, %v6472, %v6752
    %v6973 = vsel %vm317, %v6476, %v6756
    %v6974 = vsel %vm317, %v6480, %v6760
    %v6975 = vsel %vm317, %v6484, %v6764
    %v6976 = vsel %vm317, %v6488, %v6768
    %v6977 = vsel %vm317, %v6492, %v6772
    %v6978 = vsel %vm317, %v6496, %v6776
    %v6979 = vsel %vm317, %v6500, %v6780
    %v6980 = vsel %vm317, %v6507, %v6787
    %v6981 = vsel %vm317, %v6511, %v6791
    %v6982 = vsel %vm317, %v6515, %v6795
    %v6983 = vsel %vm317, %v6519, %v6799
    %v6984 = vsel %vm317, %v6523, %v6803
    %v6985 = vsel %vm317, %v6527, %v6807
    %v6986 = vsel %vm317, %v6531, %v6811
    %v6987 = vsel %vm317, %v6535, %v6815
    %v6988 = vsel %vm317, %v6542, %v6822
    %v6989 = vsel %vm317, %v6546, %v6826
    %v6990 = vsel %vm317, %v6550, %v6830
    %v6991 = vsel %vm317, %v6554, %v6834
    %v6992 = vsel %vm317, %v6558, %v6838
    %v6993 = vsel %vm317, %v6562, %v6842
    %v6994 = vsel %vm317, %v6566, %v6846
    %v6995 = vsel %vm317, %v6570, %v6850
    %v6996 = vsel %vm317, %v6577, %v6857
    %v6997 = vsel %vm317, %v6581, %v6861
    %v6998 = vsel %vm317, %v6585, %v6865
    %v6999 = vsel %vm317, %v6589, %v6869
    %v7000 = vsel %vm317, %v6593, %v6873
    %v7001 = vsel %vm317, %v6597, %v6877
    %v7002 = vsel %vm317, %v6601, %v6881
    %v7003 = vsel %vm317, %v6605, %v6885
    %v7004 = vsel %vm317, %v6612, %v6892
    %v7005 = vsel %vm317, %v6616, %v6896
    %v7006 = vsel %vm317, %v6620, %v6900
    %v7007 = vsel %vm317, %v6624, %v6904
    %v7008 = vsel %vm317, %v6628, %v6908
    %v7009 = vsel %vm317, %v6632, %v6912
    %v7010 = vsel %vm317, %v6636, %v6916
    %v7011 = vsel %vm317, %v6640, %v6920
    %v7012 = vsel %vm317, %v6647, %v6927
    %v7013 = vsel %vm317, %v6651, %v6931
    %v7014 = vsel %vm317, %v6655, %v6935
    %v7015 = vsel %vm317, %v6659, %v6939
    %v7016 = vsel %vm317, %v6663, %v6943
    %v7017 = vsel %vm317, %v6667, %v6947
    %v7018 = vsel %vm317, %v6671, %v6951
    %v7019 = vsel %vm317, %v6675, %v6955
    %v7020 = vmul.f32 %v6956, %v6388
    %v7021 = vmul.f32 %v6957, %v6389
    %v7022 = vmul.f32 %v6958, %v6390
    %v7023 = vmul.f32 %v6959, %v6391
    %v7024 = vmul.f32 %v6960, %v6392
    %v7025 = vmul.f32 %v6961, %v6393
    %v7026 = vmul.f32 %v6962, %v6394
    %v7027 = vmul.f32 %v6963, %v6395
    %v7028 = vmul.f32 %v6964, %v6388
    %v7029 = vmul.f32 %v6965, %v6389
    %v7030 = vmul.f32 %v6966, %v6390
    %v7031 = vmul.f32 %v6967, %v6391
    %v7032 = vmul.f32 %v6968, %v6392
    %v7033 = vmul.f32 %v6969, %v6393
    %v7034 = vmul.f32 %v6970, %v6394
    %v7035 = vmul.f32 %v6971, %v6395
    %v7036 = vmul.f32 %v6972, %v6388
    %v7037 = vmul.f32 %v6973, %v6389
    %v7038 = vmul.f32 %v6974, %v6390
    %v7039 = vmul.f32 %v6975, %v6391
    %v7040 = vmul.f32 %v6976, %v6392
    %v7041 = vmul.f32 %v6977, %v6393
    %v7042 = vmul.f32 %v6978, %v6394
    %v7043 = vmul.f32 %v6979, %v6395
    %v7044 = vmul.f32 %v6980, %v6388
    %v7045 = vmul.f32 %v6981, %v6389
    %v7046 = vmul.f32 %v6982, %v6390
    %v7047 = vmul.f32 %v6983, %v6391
    %v7048 = vmul.f32 %v6984, %v6392
    %v7049 = vmul.f32 %v6985, %v6393
    %v7050 = vmul.f32 %v6986, %v6394
    %v7051 = vmul.f32 %v6987, %v6395
    %v7052 = vmul.f32 %v6988, %v6388
    %v7053 = vmul.f32 %v6989, %v6389
    %v7054 = vmul.f32 %v6990, %v6390
    %v7055 = vmul.f32 %v6991, %v6391
    %v7056 = vmul.f32 %v6992, %v6392
    %v7057 = vmul.f32 %v6993, %v6393
    %v7058 = vmul.f32 %v6994, %v6394
    %v7059 = vmul.f32 %v6995, %v6395
    %v7060 = vmul.f32 %v6996, %v6388
    %v7061 = vmul.f32 %v6997, %v6389
    %v7062 = vmul.f32 %v6998, %v6390
    %v7063 = vmul.f32 %v6999, %v6391
    %v7064 = vmul.f32 %v7000, %v6392
    %v7065 = vmul.f32 %v7001, %v6393
    %v7066 = vmul.f32 %v7002, %v6394
    %v7067 = vmul.f32 %v7003, %v6395
    %v7068 = vmul.f32 %v7004, %v6388
    %v7069 = vmul.f32 %v7005, %v6389
    %v7070 = vmul.f32 %v7006, %v6390
    %v7071 = vmul.f32 %v7007, %v6391
    %v7072 = vmul.f32 %v7008, %v6392
    %v7073 = vmul.f32 %v7009, %v6393
    %v7074 = vmul.f32 %v7010, %v6394
    %v7075 = vmul.f32 %v7011, %v6395
    %v7076 = vmul.f32 %v7012, %v6388
    %v7077 = vmul.f32 %v7013, %v6389
    %v7078 = vmul.f32 %v7014, %v6390
    %v7079 = vmul.f32 %v7015, %v6391
    %v7080 = vmul.f32 %v7016, %v6392
    %v7081 = vmul.f32 %v7017, %v6393
    %v7082 = vmul.f32 %v7018, %v6394
    %v7083 = vmul.f32 %v7019, %v6395
    %v7084 = vmul.f32 %v7020, 1.442695
    %v7085 = vpow.pop %v7084
    %v7086 = vmul.f32 %v7021, 1.442695
    %v7087 = vpow.pop %v7086
    %v7088 = vmul.f32 %v7022, 1.442695
    %v7089 = vpow.pop %v7088
    %v7090 = vmul.f32 %v7023, 1.442695
    %v7091 = vpow.pop %v7090
    %v7092 = vmul.f32 %v7024, 1.442695
    %v7093 = vpow.pop %v7092
    %v7094 = vmul.f32 %v7025, 1.442695
    %v7095 = vpow.pop %v7094
    %v7096 = vmul.f32 %v7026, 1.442695
    %v7097 = vpow.pop %v7096
    %v7098 = vmul.f32 %v7027, 1.442695
    %v7099 = vpow.pop %v7098
    %v7100 = vmul.f32 %v7028, 1.442695
    %v7101 = vpow.pop %v7100
    %v7102 = vmul.f32 %v7029, 1.442695
    %v7103 = vpow.pop %v7102
    %v7104 = vmul.f32 %v7030, 1.442695
    %v7105 = vpow.pop %v7104
    %v7106 = vmul.f32 %v7031, 1.442695
    %v7107 = vpow.pop %v7106
    %v7108 = vmul.f32 %v7032, 1.442695
    %v7109 = vpow.pop %v7108
    %v7110 = vmul.f32 %v7033, 1.442695
    %v7111 = vpow.pop %v7110
    %v7112 = vmul.f32 %v7034, 1.442695
    %v7113 = vpow.pop %v7112
    %v7114 = vmul.f32 %v7035, 1.442695
    %v7115 = vpow.pop %v7114
    %v7116 = vmul.f32 %v7036, 1.442695
    %v7117 = vpow.pop %v7116
    %v7118 = vmul.f32 %v7037, 1.442695
    %v7119 = vpow.pop %v7118
    %v7120 = vmul.f32 %v7038, 1.442695
    %v7121 = vpow.pop %v7120
    %v7122 = vmul.f32 %v7039, 1.442695
    %v7123 = vpow.pop %v7122
    %v7124 = vmul.f32 %v7040, 1.442695
    %v7125 = vpow.pop %v7124
    %v7126 = vmul.f32 %v7041, 1.442695
    %v7127 = vpow.pop %v7126
    %v7128 = vmul.f32 %v7042, 1.442695
    %v7129 = vpow.pop %v7128
    %v7130 = vmul.f32 %v7043, 1.442695
    %v7131 = vpow.pop %v7130
    %v7132 = vmul.f32 %v7044, 1.442695
    %v7133 = vpow.pop %v7132
    %v7134 = vmul.f32 %v7045, 1.442695
    %v7135 = vpow.pop %v7134
    %v7136 = vmul.f32 %v7046, 1.442695
    %v7137 = vpow.pop %v7136
    %v7138 = vmul.f32 %v7047, 1.442695
    %v7139 = vpow.pop %v7138
    %v7140 = vmul.f32 %v7048, 1.442695
    %v7141 = vpow.pop %v7140
    %v7142 = vmul.f32 %v7049, 1.442695
    %v7143 = vpow.pop %v7142
    %v7144 = vmul.f32 %v7050, 1.442695
    %v7145 = vpow.pop %v7144
    %v7146 = vmul.f32 %v7051, 1.442695
    %v7147 = vpow.pop %v7146
    %v7148 = vmul.f32 %v7052, 1.442695
    %v7149 = vpow.pop %v7148
    %v7150 = vmul.f32 %v7053, 1.442695
    %v7151 = vpow.pop %v7150
    %v7152 = vmul.f32 %v7054, 1.442695
    %v7153 = vpow.pop %v7152
    %v7154 = vmul.f32 %v7055, 1.442695
    %v7155 = vpow.pop %v7154
    %v7156 = vmul.f32 %v7056, 1.442695
    %v7157 = vpow.pop %v7156
    %v7158 = vmul.f32 %v7057, 1.442695
    %v7159 = vpow.pop %v7158
    %v7160 = vmul.f32 %v7058, 1.442695
    %v7161 = vpow.pop %v7160
    %v7162 = vmul.f32 %v7059, 1.442695
    %v7163 = vpow.pop %v7162
    %v7164 = vmul.f32 %v7060, 1.442695
    %v7165 = vpow.pop %v7164
    %v7166 = vmul.f32 %v7061, 1.442695
    %v7167 = vpow.pop %v7166
    %v7168 = vmul.f32 %v7062, 1.442695
    %v7169 = vpow.pop %v7168
    %v7170 = vmul.f32 %v7063, 1.442695
    %v7171 = vpow.pop %v7170
    %v7172 = vmul.f32 %v7064, 1.442695
    %v7173 = vpow.pop %v7172
    %v7174 = vmul.f32 %v7065, 1.442695
    %v7175 = vpow.pop %v7174
    %v7176 = vmul.f32 %v7066, 1.442695
    %v7177 = vpow.pop %v7176
    %v7178 = vmul.f32 %v7067, 1.442695
    %v7179 = vpow.pop %v7178
    %v7180 = vmul.f32 %v7068, 1.442695
    %v7181 = vpow.pop %v7180
    %v7182 = vmul.f32 %v7069, 1.442695
    %v7183 = vpow.pop %v7182
    %v7184 = vmul.f32 %v7070, 1.442695
    %v7185 = vpow.pop %v7184
    %v7186 = vmul.f32 %v7071, 1.442695
    %v7187 = vpow.pop %v7186
    %v7188 = vmul.f32 %v7072, 1.442695
    %v7189 = vpow.pop %v7188
    %v7190 = vmul.f32 %v7073, 1.442695
    %v7191 = vpow.pop %v7190
    %v7192 = vmul.f32 %v7074, 1.442695
    %v7193 = vpow.pop %v7192
    %v7194 = vmul.f32 %v7075, 1.442695
    %v7195 = vpow.pop %v7194
    %v7196 = vmul.f32 %v7076, 1.442695
    %v7197 = vpow.pop %v7196
    %v7198 = vmul.f32 %v7077, 1.442695
    %v7199 = vpow.pop %v7198
    %v7200 = vmul.f32 %v7078, 1.442695
    %v7201 = vpow.pop %v7200
    %v7202 = vmul.f32 %v7079, 1.442695
    %v7203 = vpow.pop %v7202
    %v7204 = vmul.f32 %v7080, 1.442695
    %v7205 = vpow.pop %v7204
    %v7206 = vmul.f32 %v7081, 1.442695
    %v7207 = vpow.pop %v7206
    %v7208 = vmul.f32 %v7082, 1.442695
    %v7209 = vpow.pop %v7208
    %v7210 = vmul.f32 %v7083, 1.442695
    %v7211 = vpow.pop %v7210
    %v7212 = vlaneseq
    %v7213 = vshrl.u32 %v7212, 7
    %v7214 = vsub.s32 0, %v7213
    %v7215 = vrot.slane %v6385, %v7214
    %7217 = vbcast.lane.b32.xlu0 %v7215, 256
    %v7218 = vpop.permute.xlu0 %7217
    %s7220 = sor.u32 256, 8
    %7221 = vbcast.lane.b32.xlu0 %v7215, %s7220
    %v7222 = vpop.permute.xlu0 %7221
    %s7224 = sor.u32 256, 16
    %7225 = vbcast.lane.b32.xlu0 %v7215, %s7224
    %v7226 = vpop.permute.xlu0 %7225
    %s7228 = sor.u32 256, 24
    %7229 = vbcast.lane.b32.xlu0 %v7215, %s7228
    %v7230 = vpop.permute.xlu0 %7229
    %s7232 = sor.u32 256, 32
    %7233 = vbcast.lane.b32.xlu0 %v7215, %s7232
    %v7234 = vpop.permute.xlu0 %7233
    %s7236 = sor.u32 256, 40
    %7237 = vbcast.lane.b32.xlu0 %v7215, %s7236
    %v7238 = vpop.permute.xlu0 %7237
    %s7240 = sor.u32 256, 48
    %7241 = vbcast.lane.b32.xlu0 %v7215, %s7240
    %v7242 = vpop.permute.xlu0 %7241
    %s7244 = sor.u32 256, 56
    %7245 = vbcast.lane.b32.xlu0 %v7215, %s7244
    %v7246 = vpop.permute.xlu0 %7245
    %v7247 = vlaneseq
    %v7248 = vshrl.u32 %v7247, 7
    %v7249 = vsub.s32 1, %v7248
    %v7250 = vrot.slane %v6385, %v7249
    %7252 = vbcast.lane.b32.xlu0 %v7250, 256
    %v7253 = vpop.permute.xlu0 %7252
    %s7255 = sor.u32 256, 8
    %7256 = vbcast.lane.b32.xlu0 %v7250, %s7255
    %v7257 = vpop.permute.xlu0 %7256
    %s7259 = sor.u32 256, 16
    %7260 = vbcast.lane.b32.xlu0 %v7250, %s7259
    %v7261 = vpop.permute.xlu0 %7260
    %s7263 = sor.u32 256, 24
    %7264 = vbcast.lane.b32.xlu0 %v7250, %s7263
    %v7265 = vpop.permute.xlu0 %7264
    %s7267 = sor.u32 256, 32
    %7268 = vbcast.lane.b32.xlu0 %v7250, %s7267
    %v7269 = vpop.permute.xlu0 %7268
    %s7271 = sor.u32 256, 40
    %7272 = vbcast.lane.b32.xlu0 %v7250, %s7271
    %v7273 = vpop.permute.xlu0 %7272
    %s7275 = sor.u32 256, 48
    %7276 = vbcast.lane.b32.xlu0 %v7250, %s7275
    %v7277 = vpop.permute.xlu0 %7276
    %s7279 = sor.u32 256, 56
    %7280 = vbcast.lane.b32.xlu0 %v7250, %s7279
    %v7281 = vpop.permute.xlu0 %7280
    %v7282 = vlaneseq
    %v7283 = vshrl.u32 %v7282, 7
    %v7284 = vsub.s32 2, %v7283
    %v7285 = vrot.slane %v6385, %v7284
    %7287 = vbcast.lane.b32.xlu0 %v7285, 256
    %v7288 = vpop.permute.xlu0 %7287
    %s7290 = sor.u32 256, 8
    %7291 = vbcast.lane.b32.xlu0 %v7285, %s7290
    %v7292 = vpop.permute.xlu0 %7291
    %s7294 = sor.u32 256, 16
    %7295 = vbcast.lane.b32.xlu0 %v7285, %s7294
    %v7296 = vpop.permute.xlu0 %7295
    %s7298 = sor.u32 256, 24
    %7299 = vbcast.lane.b32.xlu0 %v7285, %s7298
    %v7300 = vpop.permute.xlu0 %7299
    %s7302 = sor.u32 256, 32
    %7303 = vbcast.lane.b32.xlu0 %v7285, %s7302
    %v7304 = vpop.permute.xlu0 %7303
    %s7306 = sor.u32 256, 40
    %7307 = vbcast.lane.b32.xlu0 %v7285, %s7306
    %v7308 = vpop.permute.xlu0 %7307
    %s7310 = sor.u32 256, 48
    %7311 = vbcast.lane.b32.xlu0 %v7285, %s7310
    %v7312 = vpop.permute.xlu0 %7311
    %s7314 = sor.u32 256, 56
    %7315 = vbcast.lane.b32.xlu0 %v7285, %s7314
    %v7316 = vpop.permute.xlu0 %7315
    %v7317 = vlaneseq
    %v7318 = vshrl.u32 %v7317, 7
    %v7319 = vsub.s32 3, %v7318
    %v7320 = vrot.slane %v6385, %v7319
    %7322 = vbcast.lane.b32.xlu0 %v7320, 256
    %v7323 = vpop.permute.xlu0 %7322
    %s7325 = sor.u32 256, 8
    %7326 = vbcast.lane.b32.xlu0 %v7320, %s7325
    %v7327 = vpop.permute.xlu0 %7326
    %s7329 = sor.u32 256, 16
    %7330 = vbcast.lane.b32.xlu0 %v7320, %s7329
    %v7331 = vpop.permute.xlu0 %7330
    %s7333 = sor.u32 256, 24
    %7334 = vbcast.lane.b32.xlu0 %v7320, %s7333
    %v7335 = vpop.permute.xlu0 %7334
    %s7337 = sor.u32 256, 32
    %7338 = vbcast.lane.b32.xlu0 %v7320, %s7337
    %v7339 = vpop.permute.xlu0 %7338
    %s7341 = sor.u32 256, 40
    %7342 = vbcast.lane.b32.xlu0 %v7320, %s7341
    %v7343 = vpop.permute.xlu0 %7342
    %s7345 = sor.u32 256, 48
    %7346 = vbcast.lane.b32.xlu0 %v7320, %s7345
    %v7347 = vpop.permute.xlu0 %7346
    %s7349 = sor.u32 256, 56
    %7350 = vbcast.lane.b32.xlu0 %v7320, %s7349
    %v7351 = vpop.permute.xlu0 %7350
    %v7352 = vlaneseq
    %v7353 = vshrl.u32 %v7352, 7
    %v7354 = vsub.s32 4, %v7353
    %v7355 = vrot.slane %v6385, %v7354
    %7357 = vbcast.lane.b32.xlu0 %v7355, 256
    %v7358 = vpop.permute.xlu0 %7357
    %s7360 = sor.u32 256, 8
    %7361 = vbcast.lane.b32.xlu0 %v7355, %s7360
    %v7362 = vpop.permute.xlu0 %7361
    %s7364 = sor.u32 256, 16
    %7365 = vbcast.lane.b32.xlu0 %v7355, %s7364
    %v7366 = vpop.permute.xlu0 %7365
    %s7368 = sor.u32 256, 24
    %7369 = vbcast.lane.b32.xlu0 %v7355, %s7368
    %v7370 = vpop.permute.xlu0 %7369
    %s7372 = sor.u32 256, 32
    %7373 = vbcast.lane.b32.xlu0 %v7355, %s7372
    %v7374 = vpop.permute.xlu0 %7373
    %s7376 = sor.u32 256, 40
    %7377 = vbcast.lane.b32.xlu0 %v7355, %s7376
    %v7378 = vpop.permute.xlu0 %7377
    %s7380 = sor.u32 256, 48
    %7381 = vbcast.lane.b32.xlu0 %v7355, %s7380
    %v7382 = vpop.permute.xlu0 %7381
    %s7384 = sor.u32 256, 56
    %7385 = vbcast.lane.b32.xlu0 %v7355, %s7384
    %v7386 = vpop.permute.xlu0 %7385
    %v7387 = vlaneseq
    %v7388 = vshrl.u32 %v7387, 7
    %v7389 = vsub.s32 5, %v7388
    %v7390 = vrot.slane %v6385, %v7389
    %7392 = vbcast.lane.b32.xlu0 %v7390, 256
    %v7393 = vpop.permute.xlu0 %7392
    %s7395 = sor.u32 256, 8
    %7396 = vbcast.lane.b32.xlu0 %v7390, %s7395
    %v7397 = vpop.permute.xlu0 %7396
    %s7399 = sor.u32 256, 16
    %7400 = vbcast.lane.b32.xlu0 %v7390, %s7399
    %v7401 = vpop.permute.xlu0 %7400
    %s7403 = sor.u32 256, 24
    %7404 = vbcast.lane.b32.xlu0 %v7390, %s7403
    %v7405 = vpop.permute.xlu0 %7404
    %s7407 = sor.u32 256, 32
    %7408 = vbcast.lane.b32.xlu0 %v7390, %s7407
    %v7409 = vpop.permute.xlu0 %7408
    %s7411 = sor.u32 256, 40
    %7412 = vbcast.lane.b32.xlu0 %v7390, %s7411
    %v7413 = vpop.permute.xlu0 %7412
    %s7415 = sor.u32 256, 48
    %7416 = vbcast.lane.b32.xlu0 %v7390, %s7415
    %v7417 = vpop.permute.xlu0 %7416
    %s7419 = sor.u32 256, 56
    %7420 = vbcast.lane.b32.xlu0 %v7390, %s7419
    %v7421 = vpop.permute.xlu0 %7420
    %v7422 = vlaneseq
    %v7423 = vshrl.u32 %v7422, 7
    %v7424 = vsub.s32 6, %v7423
    %v7425 = vrot.slane %v6385, %v7424
    %7427 = vbcast.lane.b32.xlu0 %v7425, 256
    %v7428 = vpop.permute.xlu0 %7427
    %s7430 = sor.u32 256, 8
    %7431 = vbcast.lane.b32.xlu0 %v7425, %s7430
    %v7432 = vpop.permute.xlu0 %7431
    %s7434 = sor.u32 256, 16
    %7435 = vbcast.lane.b32.xlu0 %v7425, %s7434
    %v7436 = vpop.permute.xlu0 %7435
    %s7438 = sor.u32 256, 24
    %7439 = vbcast.lane.b32.xlu0 %v7425, %s7438
    %v7440 = vpop.permute.xlu0 %7439
    %s7442 = sor.u32 256, 32
    %7443 = vbcast.lane.b32.xlu0 %v7425, %s7442
    %v7444 = vpop.permute.xlu0 %7443
    %s7446 = sor.u32 256, 40
    %7447 = vbcast.lane.b32.xlu0 %v7425, %s7446
    %v7448 = vpop.permute.xlu0 %7447
    %s7450 = sor.u32 256, 48
    %7451 = vbcast.lane.b32.xlu0 %v7425, %s7450
    %v7452 = vpop.permute.xlu0 %7451
    %s7454 = sor.u32 256, 56
    %7455 = vbcast.lane.b32.xlu0 %v7425, %s7454
    %v7456 = vpop.permute.xlu0 %7455
    %v7457 = vlaneseq
    %v7458 = vshrl.u32 %v7457, 7
    %v7459 = vsub.s32 7, %v7458
    %v7460 = vrot.slane %v6385, %v7459
    %7462 = vbcast.lane.b32.xlu0 %v7460, 256
    %v7463 = vpop.permute.xlu0 %7462
    %s7465 = sor.u32 256, 8
    %7466 = vbcast.lane.b32.xlu0 %v7460, %s7465
    %v7467 = vpop.permute.xlu0 %7466
    %s7469 = sor.u32 256, 16
    %7470 = vbcast.lane.b32.xlu0 %v7460, %s7469
    %v7471 = vpop.permute.xlu0 %7470
    %s7473 = sor.u32 256, 24
    %7474 = vbcast.lane.b32.xlu0 %v7460, %s7473
    %v7475 = vpop.permute.xlu0 %7474
    %s7477 = sor.u32 256, 32
    %7478 = vbcast.lane.b32.xlu0 %v7460, %s7477
    %v7479 = vpop.permute.xlu0 %7478
    %s7481 = sor.u32 256, 40
    %7482 = vbcast.lane.b32.xlu0 %v7460, %s7481
    %v7483 = vpop.permute.xlu0 %7482
    %s7485 = sor.u32 256, 48
    %7486 = vbcast.lane.b32.xlu0 %v7460, %s7485
    %v7487 = vpop.permute.xlu0 %7486
    %s7489 = sor.u32 256, 56
    %7490 = vbcast.lane.b32.xlu0 %v7460, %s7489
    %v7491 = vpop.permute.xlu0 %7490
    %v7492 = vlaneseq
    %v7493 = vshrl.u32 %v7492, 7
    %v7494 = vsub.s32 0, %v7493
    %v7495 = vrot.slane %v6386, %v7494
    %7497 = vbcast.lane.b32.xlu0 %v7495, 256
    %v7498 = vpop.permute.xlu0 %7497
    %s7500 = sor.u32 256, 8
    %7501 = vbcast.lane.b32.xlu0 %v7495, %s7500
    %v7502 = vpop.permute.xlu0 %7501
    %s7504 = sor.u32 256, 16
    %7505 = vbcast.lane.b32.xlu0 %v7495, %s7504
    %v7506 = vpop.permute.xlu0 %7505
    %s7508 = sor.u32 256, 24
    %7509 = vbcast.lane.b32.xlu0 %v7495, %s7508
    %v7510 = vpop.permute.xlu0 %7509
    %s7512 = sor.u32 256, 32
    %7513 = vbcast.lane.b32.xlu0 %v7495, %s7512
    %v7514 = vpop.permute.xlu0 %7513
    %s7516 = sor.u32 256, 40
    %7517 = vbcast.lane.b32.xlu0 %v7495, %s7516
    %v7518 = vpop.permute.xlu0 %7517
    %s7520 = sor.u32 256, 48
    %7521 = vbcast.lane.b32.xlu0 %v7495, %s7520
    %v7522 = vpop.permute.xlu0 %7521
    %s7524 = sor.u32 256, 56
    %7525 = vbcast.lane.b32.xlu0 %v7495, %s7524
    %v7526 = vpop.permute.xlu0 %7525
    %v7527 = vlaneseq
    %v7528 = vshrl.u32 %v7527, 7
    %v7529 = vsub.s32 1, %v7528
    %v7530 = vrot.slane %v6386, %v7529
    %7532 = vbcast.lane.b32.xlu0 %v7530, 256
    %v7533 = vpop.permute.xlu0 %7532
    %s7535 = sor.u32 256, 8
    %7536 = vbcast.lane.b32.xlu0 %v7530, %s7535
    %v7537 = vpop.permute.xlu0 %7536
    %s7539 = sor.u32 256, 16
    %7540 = vbcast.lane.b32.xlu0 %v7530, %s7539
    %v7541 = vpop.permute.xlu0 %7540
    %s7543 = sor.u32 256, 24
    %7544 = vbcast.lane.b32.xlu0 %v7530, %s7543
    %v7545 = vpop.permute.xlu0 %7544
    %s7547 = sor.u32 256, 32
    %7548 = vbcast.lane.b32.xlu0 %v7530, %s7547
    %v7549 = vpop.permute.xlu0 %7548
    %s7551 = sor.u32 256, 40
    %7552 = vbcast.lane.b32.xlu0 %v7530, %s7551
    %v7553 = vpop.permute.xlu0 %7552
    %s7555 = sor.u32 256, 48
    %7556 = vbcast.lane.b32.xlu0 %v7530, %s7555
    %v7557 = vpop.permute.xlu0 %7556
    %s7559 = sor.u32 256, 56
    %7560 = vbcast.lane.b32.xlu0 %v7530, %s7559
    %v7561 = vpop.permute.xlu0 %7560
    %v7562 = vlaneseq
    %v7563 = vshrl.u32 %v7562, 7
    %v7564 = vsub.s32 2, %v7563
    %v7565 = vrot.slane %v6386, %v7564
    %7567 = vbcast.lane.b32.xlu0 %v7565, 256
    %v7568 = vpop.permute.xlu0 %7567
    %s7570 = sor.u32 256, 8
    %7571 = vbcast.lane.b32.xlu0 %v7565, %s7570
    %v7572 = vpop.permute.xlu0 %7571
    %s7574 = sor.u32 256, 16
    %7575 = vbcast.lane.b32.xlu0 %v7565, %s7574
    %v7576 = vpop.permute.xlu0 %7575
    %s7578 = sor.u32 256, 24
    %7579 = vbcast.lane.b32.xlu0 %v7565, %s7578
    %v7580 = vpop.permute.xlu0 %7579
    %s7582 = sor.u32 256, 32
    %7583 = vbcast.lane.b32.xlu0 %v7565, %s7582
    %v7584 = vpop.permute.xlu0 %7583
    %s7586 = sor.u32 256, 40
    %7587 = vbcast.lane.b32.xlu0 %v7565, %s7586
    %v7588 = vpop.permute.xlu0 %7587
    %s7590 = sor.u32 256, 48
    %7591 = vbcast.lane.b32.xlu0 %v7565, %s7590
    %v7592 = vpop.permute.xlu0 %7591
    %s7594 = sor.u32 256, 56
    %7595 = vbcast.lane.b32.xlu0 %v7565, %s7594
    %v7596 = vpop.permute.xlu0 %7595
    %v7597 = vlaneseq
    %v7598 = vshrl.u32 %v7597, 7
    %v7599 = vsub.s32 3, %v7598
    %v7600 = vrot.slane %v6386, %v7599
    %7602 = vbcast.lane.b32.xlu0 %v7600, 256
    %v7603 = vpop.permute.xlu0 %7602
    %s7605 = sor.u32 256, 8
    %7606 = vbcast.lane.b32.xlu0 %v7600, %s7605
    %v7607 = vpop.permute.xlu0 %7606
    %s7609 = sor.u32 256, 16
    %7610 = vbcast.lane.b32.xlu0 %v7600, %s7609
    %v7611 = vpop.permute.xlu0 %7610
    %s7613 = sor.u32 256, 24
    %7614 = vbcast.lane.b32.xlu0 %v7600, %s7613
    %v7615 = vpop.permute.xlu0 %7614
    %s7617 = sor.u32 256, 32
    %7618 = vbcast.lane.b32.xlu0 %v7600, %s7617
    %v7619 = vpop.permute.xlu0 %7618
    %s7621 = sor.u32 256, 40
    %7622 = vbcast.lane.b32.xlu0 %v7600, %s7621
    %v7623 = vpop.permute.xlu0 %7622
    %s7625 = sor.u32 256, 48
    %7626 = vbcast.lane.b32.xlu0 %v7600, %s7625
    %v7627 = vpop.permute.xlu0 %7626
    %s7629 = sor.u32 256, 56
    %7630 = vbcast.lane.b32.xlu0 %v7600, %s7629
    %v7631 = vpop.permute.xlu0 %7630
    %v7632 = vlaneseq
    %v7633 = vshrl.u32 %v7632, 7
    %v7634 = vsub.s32 4, %v7633
    %v7635 = vrot.slane %v6386, %v7634
    %7637 = vbcast.lane.b32.xlu0 %v7635, 256
    %v7638 = vpop.permute.xlu0 %7637
    %s7640 = sor.u32 256, 8
    %7641 = vbcast.lane.b32.xlu0 %v7635, %s7640
    %v7642 = vpop.permute.xlu0 %7641
    %s7644 = sor.u32 256, 16
    %7645 = vbcast.lane.b32.xlu0 %v7635, %s7644
    %v7646 = vpop.permute.xlu0 %7645
    %s7648 = sor.u32 256, 24
    %7649 = vbcast.lane.b32.xlu0 %v7635, %s7648
    %v7650 = vpop.permute.xlu0 %7649
    %s7652 = sor.u32 256, 32
    %7653 = vbcast.lane.b32.xlu0 %v7635, %s7652
    %v7654 = vpop.permute.xlu0 %7653
    %s7656 = sor.u32 256, 40
    %7657 = vbcast.lane.b32.xlu0 %v7635, %s7656
    %v7658 = vpop.permute.xlu0 %7657
    %s7660 = sor.u32 256, 48
    %7661 = vbcast.lane.b32.xlu0 %v7635, %s7660
    %v7662 = vpop.permute.xlu0 %7661
    %s7664 = sor.u32 256, 56
    %7665 = vbcast.lane.b32.xlu0 %v7635, %s7664
    %v7666 = vpop.permute.xlu0 %7665
    %v7667 = vlaneseq
    %v7668 = vshrl.u32 %v7667, 7
    %v7669 = vsub.s32 5, %v7668
    %v7670 = vrot.slane %v6386, %v7669
    %7672 = vbcast.lane.b32.xlu0 %v7670, 256
    %v7673 = vpop.permute.xlu0 %7672
    %s7675 = sor.u32 256, 8
    %7676 = vbcast.lane.b32.xlu0 %v7670, %s7675
    %v7677 = vpop.permute.xlu0 %7676
    %s7679 = sor.u32 256, 16
    %7680 = vbcast.lane.b32.xlu0 %v7670, %s7679
    %v7681 = vpop.permute.xlu0 %7680
    %s7683 = sor.u32 256, 24
    %7684 = vbcast.lane.b32.xlu0 %v7670, %s7683
    %v7685 = vpop.permute.xlu0 %7684
    %s7687 = sor.u32 256, 32
    %7688 = vbcast.lane.b32.xlu0 %v7670, %s7687
    %v7689 = vpop.permute.xlu0 %7688
    %s7691 = sor.u32 256, 40
    %7692 = vbcast.lane.b32.xlu0 %v7670, %s7691
    %v7693 = vpop.permute.xlu0 %7692
    %s7695 = sor.u32 256, 48
    %7696 = vbcast.lane.b32.xlu0 %v7670, %s7695
    %v7697 = vpop.permute.xlu0 %7696
    %s7699 = sor.u32 256, 56
    %7700 = vbcast.lane.b32.xlu0 %v7670, %s7699
    %v7701 = vpop.permute.xlu0 %7700
    %v7702 = vlaneseq
    %v7703 = vshrl.u32 %v7702, 7
    %v7704 = vsub.s32 6, %v7703
    %v7705 = vrot.slane %v6386, %v7704
    %7707 = vbcast.lane.b32.xlu0 %v7705, 256
    %v7708 = vpop.permute.xlu0 %7707
    %s7710 = sor.u32 256, 8
    %7711 = vbcast.lane.b32.xlu0 %v7705, %s7710
    %v7712 = vpop.permute.xlu0 %7711
    %s7714 = sor.u32 256, 16
    %7715 = vbcast.lane.b32.xlu0 %v7705, %s7714
    %v7716 = vpop.permute.xlu0 %7715
    %s7718 = sor.u32 256, 24
    %7719 = vbcast.lane.b32.xlu0 %v7705, %s7718
    %v7720 = vpop.permute.xlu0 %7719
    %s7722 = sor.u32 256, 32
    %7723 = vbcast.lane.b32.xlu0 %v7705, %s7722
    %v7724 = vpop.permute.xlu0 %7723
    %s7726 = sor.u32 256, 40
    %7727 = vbcast.lane.b32.xlu0 %v7705, %s7726
    %v7728 = vpop.permute.xlu0 %7727
    %s7730 = sor.u32 256, 48
    %7731 = vbcast.lane.b32.xlu0 %v7705, %s7730
    %v7732 = vpop.permute.xlu0 %7731
    %s7734 = sor.u32 256, 56
    %7735 = vbcast.lane.b32.xlu0 %v7705, %s7734
    %v7736 = vpop.permute.xlu0 %7735
    %v7737 = vlaneseq
    %v7738 = vshrl.u32 %v7737, 7
    %v7739 = vsub.s32 7, %v7738
    %v7740 = vrot.slane %v6386, %v7739
    %7742 = vbcast.lane.b32.xlu0 %v7740, 256
    %v7743 = vpop.permute.xlu0 %7742
    %s7745 = sor.u32 256, 8
    %7746 = vbcast.lane.b32.xlu0 %v7740, %s7745
    %v7747 = vpop.permute.xlu0 %7746
    %s7749 = sor.u32 256, 16
    %7750 = vbcast.lane.b32.xlu0 %v7740, %s7749
    %v7751 = vpop.permute.xlu0 %7750
    %s7753 = sor.u32 256, 24
    %7754 = vbcast.lane.b32.xlu0 %v7740, %s7753
    %v7755 = vpop.permute.xlu0 %7754
    %s7757 = sor.u32 256, 32
    %7758 = vbcast.lane.b32.xlu0 %v7740, %s7757
    %v7759 = vpop.permute.xlu0 %7758
    %s7761 = sor.u32 256, 40
    %7762 = vbcast.lane.b32.xlu0 %v7740, %s7761
    %v7763 = vpop.permute.xlu0 %7762
    %s7765 = sor.u32 256, 48
    %7766 = vbcast.lane.b32.xlu0 %v7740, %s7765
    %v7767 = vpop.permute.xlu0 %7766
    %s7769 = sor.u32 256, 56
    %7770 = vbcast.lane.b32.xlu0 %v7740, %s7769
    %v7771 = vpop.permute.xlu0 %7770
    %v7772 = vsel %vm317, %v7218, %v7498
    %v7773 = vsel %vm317, %v7222, %v7502
    %v7774 = vsel %vm317, %v7226, %v7506
    %v7775 = vsel %vm317, %v7230, %v7510
    %v7776 = vsel %vm317, %v7234, %v7514
    %v7777 = vsel %vm317, %v7238, %v7518
    %v7778 = vsel %vm317, %v7242, %v7522
    %v7779 = vsel %vm317, %v7246, %v7526
    %v7780 = vsel %vm317, %v7253, %v7533
    %v7781 = vsel %vm317, %v7257, %v7537
    %v7782 = vsel %vm317, %v7261, %v7541
    %v7783 = vsel %vm317, %v7265, %v7545
    %v7784 = vsel %vm317, %v7269, %v7549
    %v7785 = vsel %vm317, %v7273, %v7553
    %v7786 = vsel %vm317, %v7277, %v7557
    %v7787 = vsel %vm317, %v7281, %v7561
    %v7788 = vsel %vm317, %v7288, %v7568
    %v7789 = vsel %vm317, %v7292, %v7572
    %v7790 = vsel %vm317, %v7296, %v7576
    %v7791 = vsel %vm317, %v7300, %v7580
    %v7792 = vsel %vm317, %v7304, %v7584
    %v7793 = vsel %vm317, %v7308, %v7588
    %v7794 = vsel %vm317, %v7312, %v7592
    %v7795 = vsel %vm317, %v7316, %v7596
    %v7796 = vsel %vm317, %v7323, %v7603
    %v7797 = vsel %vm317, %v7327, %v7607
    %v7798 = vsel %vm317, %v7331, %v7611
    %v7799 = vsel %vm317, %v7335, %v7615
    %v7800 = vsel %vm317, %v7339, %v7619
    %v7801 = vsel %vm317, %v7343, %v7623
    %v7802 = vsel %vm317, %v7347, %v7627
    %v7803 = vsel %vm317, %v7351, %v7631
    %v7804 = vsel %vm317, %v7358, %v7638
    %v7805 = vsel %vm317, %v7362, %v7642
    %v7806 = vsel %vm317, %v7366, %v7646
    %v7807 = vsel %vm317, %v7370, %v7650
    %v7808 = vsel %vm317, %v7374, %v7654
    %v7809 = vsel %vm317, %v7378, %v7658
    %v7810 = vsel %vm317, %v7382, %v7662
    %v7811 = vsel %vm317, %v7386, %v7666
    %v7812 = vsel %vm317, %v7393, %v7673
    %v7813 = vsel %vm317, %v7397, %v7677
    %v7814 = vsel %vm317, %v7401, %v7681
    %v7815 = vsel %vm317, %v7405, %v7685
    %v7816 = vsel %vm317, %v7409, %v7689
    %v7817 = vsel %vm317, %v7413, %v7693
    %v7818 = vsel %vm317, %v7417, %v7697
    %v7819 = vsel %vm317, %v7421, %v7701
    %v7820 = vsel %vm317, %v7428, %v7708
    %v7821 = vsel %vm317, %v7432, %v7712
    %v7822 = vsel %vm317, %v7436, %v7716
    %v7823 = vsel %vm317, %v7440, %v7720
    %v7824 = vsel %vm317, %v7444, %v7724
    %v7825 = vsel %vm317, %v7448, %v7728
    %v7826 = vsel %vm317, %v7452, %v7732
    %v7827 = vsel %vm317, %v7456, %v7736
    %v7828 = vsel %vm317, %v7463, %v7743
    %v7829 = vsel %vm317, %v7467, %v7747
    %v7830 = vsel %vm317, %v7471, %v7751
    %v7831 = vsel %vm317, %v7475, %v7755
    %v7832 = vsel %vm317, %v7479, %v7759
    %v7833 = vsel %vm317, %v7483, %v7763
    %v7834 = vsel %vm317, %v7487, %v7767
    %v7835 = vsel %vm317, %v7491, %v7771
    %v7837 = vcombine.high %v6257, %v6257
    %v7839 = vunpack.c.l.s4 1966171168
    %v7840 = vunpack.c.0.s8 %v7839
    %v7841 = vlaneseq
    %v7842 = vshrl.u32 %v7841, 7
    %v7843 = vsub.s32 %v7840, %v7842
    %v7844 = vrot.slane %v6257, %v7843
    %v7846 = vunpack.c.l.s4 1966171168
    %v7847 = vunpack.c.0.s8 %v7846
    %v7848 = vlaneseq
    %v7849 = vshrl.u32 %v7848, 7
    %v7850 = vsub.s32 %v7847, %v7849
    %v7851 = vrot.slane %v7837, %v7850
    %v7852 = vcombine.high %v7844, %v7844
    %v7853 = vcombine.high %v7851, %v7851
    %v7855 = vunpack.c.l.s4 1966171168
    %v7856 = vunpack.c.0.s8 %v7855
    %v7857 = vlaneseq
    %v7858 = vshrl.u32 %v7857, 7
    %v7859 = vsub.s32 %v7856, %v7858
    %v7860 = vrot.slane %v7844, %v7859
    %v7862 = vunpack.c.l.s4 1966171168
    %v7863 = vunpack.c.0.s8 %v7862
    %v7864 = vlaneseq
    %v7865 = vshrl.u32 %v7864, 7
    %v7866 = vsub.s32 %v7863, %v7865
    %v7867 = vrot.slane %v7851, %v7866
    %v7869 = vunpack.c.l.s4 1966171168
    %v7870 = vunpack.c.0.s8 %v7869
    %v7871 = vlaneseq
    %v7872 = vshrl.u32 %v7871, 7
    %v7873 = vsub.s32 %v7870, %v7872
    %v7874 = vrot.slane %v7852, %v7873
    %v7876 = vunpack.c.l.s4 1966171168
    %v7877 = vunpack.c.0.s8 %v7876
    %v7878 = vlaneseq
    %v7879 = vshrl.u32 %v7878, 7
    %v7880 = vsub.s32 %v7877, %v7879
    %v7881 = vrot.slane %v7853, %v7880
    %v7882 = vcombine.high %v7860, %v7860
    %v7883 = vcombine.high %v7867, %v7867
    %v7884 = vcombine.high %v7874, %v7874
    %v7885 = vcombine.high %v7881, %v7881
    %v7886 = vlaneseq
    %v7887 = vshrl.u32 %v7886, 7
    %v7888 = vsub.s32 0, %v7887
    %v7889 = vrot.slane %v7860, %v7888
    %v7890 = vlaneseq
    %v7891 = vshrl.u32 %v7890, 7
    %v7892 = vsub.s32 0, %v7891
    %v7893 = vrot.slane %v7874, %v7892
    %v7894 = vlaneseq
    %v7895 = vshrl.u32 %v7894, 7
    %v7896 = vsub.s32 0, %v7895
    %v7897 = vrot.slane %v7882, %v7896
    %v7898 = vlaneseq
    %v7899 = vshrl.u32 %v7898, 7
    %v7900 = vsub.s32 0, %v7899
    %v7901 = vrot.slane %v7884, %v7900
    %v7902 = vlaneseq
    %v7903 = vshrl.u32 %v7902, 7
    %v7904 = vsub.s32 0, %v7903
    %v7905 = vrot.slane %v7867, %v7904
    %v7906 = vlaneseq
    %v7907 = vshrl.u32 %v7906, 7
    %v7908 = vsub.s32 0, %v7907
    %v7909 = vrot.slane %v7881, %v7908
    %v7910 = vlaneseq
    %v7911 = vshrl.u32 %v7910, 7
    %v7912 = vsub.s32 0, %v7911
    %v7913 = vrot.slane %v7883, %v7912
    %v7914 = vlaneseq
    %v7915 = vshrl.u32 %v7914, 7
    %v7916 = vsub.s32 0, %v7915
    %v7917 = vrot.slane %v7885, %v7916
    %v7927 = vcombine.high %v6262, %v6262
    %v7929 = vunpack.c.l.s4 1966171168
    %v7930 = vunpack.c.0.s8 %v7929
    %v7931 = vlaneseq
    %v7932 = vshrl.u32 %v7931, 7
    %v7933 = vsub.s32 %v7930, %v7932
    %v7934 = vrot.slane %v6262, %v7933
    %v7936 = vunpack.c.l.s4 1966171168
    %v7937 = vunpack.c.0.s8 %v7936
    %v7938 = vlaneseq
    %v7939 = vshrl.u32 %v7938, 7
    %v7940 = vsub.s32 %v7937, %v7939
    %v7941 = vrot.slane %v7927, %v7940
    %v7942 = vcombine.high %v7934, %v7934
    %v7943 = vcombine.high %v7941, %v7941
    %v7945 = vunpack.c.l.s4 1966171168
    %v7946 = vunpack.c.0.s8 %v7945
    %v7947 = vlaneseq
    %v7948 = vshrl.u32 %v7947, 7
    %v7949 = vsub.s32 %v7946, %v7948
    %v7950 = vrot.slane %v7934, %v7949
    %v7952 = vunpack.c.l.s4 1966171168
    %v7953 = vunpack.c.0.s8 %v7952
    %v7954 = vlaneseq
    %v7955 = vshrl.u32 %v7954, 7
    %v7956 = vsub.s32 %v7953, %v7955
    %v7957 = vrot.slane %v7941, %v7956
    %v7959 = vunpack.c.l.s4 1966171168
    %v7960 = vunpack.c.0.s8 %v7959
    %v7961 = vlaneseq
    %v7962 = vshrl.u32 %v7961, 7
    %v7963 = vsub.s32 %v7960, %v7962
    %v7964 = vrot.slane %v7942, %v7963
    %v7966 = vunpack.c.l.s4 1966171168
    %v7967 = vunpack.c.0.s8 %v7966
    %v7968 = vlaneseq
    %v7969 = vshrl.u32 %v7968, 7
    %v7970 = vsub.s32 %v7967, %v7969
    %v7971 = vrot.slane %v7943, %v7970
    %v7972 = vcombine.high %v7950, %v7950
    %v7973 = vcombine.high %v7957, %v7957
    %v7974 = vcombine.high %v7964, %v7964
    %v7975 = vcombine.high %v7971, %v7971
    %v7976 = vlaneseq
    %v7977 = vshrl.u32 %v7976, 7
    %v7978 = vsub.s32 0, %v7977
    %v7979 = vrot.slane %v7950, %v7978
    %v7980 = vlaneseq
    %v7981 = vshrl.u32 %v7980, 7
    %v7982 = vsub.s32 0, %v7981
    %v7983 = vrot.slane %v7964, %v7982
    %v7984 = vlaneseq
    %v7985 = vshrl.u32 %v7984, 7
    %v7986 = vsub.s32 0, %v7985
    %v7987 = vrot.slane %v7972, %v7986
    %v7988 = vlaneseq
    %v7989 = vshrl.u32 %v7988, 7
    %v7990 = vsub.s32 0, %v7989
    %v7991 = vrot.slane %v7974, %v7990
    %v7992 = vlaneseq
    %v7993 = vshrl.u32 %v7992, 7
    %v7994 = vsub.s32 0, %v7993
    %v7995 = vrot.slane %v7957, %v7994
    %v7996 = vlaneseq
    %v7997 = vshrl.u32 %v7996, 7
    %v7998 = vsub.s32 0, %v7997
    %v7999 = vrot.slane %v7971, %v7998
    %v8000 = vlaneseq
    %v8001 = vshrl.u32 %v8000, 7
    %v8002 = vsub.s32 0, %v8001
    %v8003 = vrot.slane %v7973, %v8002
    %v8004 = vlaneseq
    %v8005 = vshrl.u32 %v8004, 7
    %v8006 = vsub.s32 0, %v8005
    %v8007 = vrot.slane %v7975, %v8006
    %8008 = vrot.lane.b32.xlu0 %v7979, 64
    %v8009 = vpop.permute.xlu0 %8008
    %8010 = vrot.lane.b32.xlu0 %v7983, 64
    %v8011 = vpop.permute.xlu0 %8010
    %8012 = vrot.lane.b32.xlu0 %v7987, 64
    %v8013 = vpop.permute.xlu0 %8012
    %8014 = vrot.lane.b32.xlu0 %v7991, 64
    %v8015 = vpop.permute.xlu0 %8014
    %8016 = vrot.lane.b32.xlu0 %v7995, 64
    %v8017 = vpop.permute.xlu0 %8016
    %8018 = vrot.lane.b32.xlu0 %v7999, 64
    %v8019 = vpop.permute.xlu0 %8018
    %8020 = vrot.lane.b32.xlu0 %v8003, 64
    %v8021 = vpop.permute.xlu0 %8020
    %8022 = vrot.lane.b32.xlu0 %v8007, 64
    %v8023 = vpop.permute.xlu0 %8022
    %v8032 = vsel %vm317, %v7889, %v8009
    %v8033 = vsel %vm317, %v7893, %v8011
    %v8034 = vsel %vm317, %v7897, %v8013
    %v8035 = vsel %vm317, %v7901, %v8015
    %v8036 = vsel %vm317, %v7905, %v8017
    %v8037 = vsel %vm317, %v7909, %v8019
    %v8038 = vsel %vm317, %v7913, %v8021
    %v8039 = vsel %vm317, %v7917, %v8023
    %v8040 = vmul.f32 %v7772, %v8032
    %v8041 = vmul.f32 %v7773, %v8032
    %v8042 = vmul.f32 %v7774, %v8032
    %v8043 = vmul.f32 %v7775, %v8032
    %v8044 = vmul.f32 %v7776, %v8032
    %v8045 = vmul.f32 %v7777, %v8032
    %v8046 = vmul.f32 %v7778, %v8032
    %v8047 = vmul.f32 %v7779, %v8032
    %v8048 = vmul.f32 %v7780, %v8033
    %v8049 = vmul.f32 %v7781, %v8033
    %v8050 = vmul.f32 %v7782, %v8033
    %v8051 = vmul.f32 %v7783, %v8033
    %v8052 = vmul.f32 %v7784, %v8033
    %v8053 = vmul.f32 %v7785, %v8033
    %v8054 = vmul.f32 %v7786, %v8033
    %v8055 = vmul.f32 %v7787, %v8033
    %v8056 = vmul.f32 %v7788, %v8034
    %v8057 = vmul.f32 %v7789, %v8034
    %v8058 = vmul.f32 %v7790, %v8034
    %v8059 = vmul.f32 %v7791, %v8034
    %v8060 = vmul.f32 %v7792, %v8034
    %v8061 = vmul.f32 %v7793, %v8034
    %v8062 = vmul.f32 %v7794, %v8034
    %v8063 = vmul.f32 %v7795, %v8034
    %v8064 = vmul.f32 %v7796, %v8035
    %v8065 = vmul.f32 %v7797, %v8035
    %v8066 = vmul.f32 %v7798, %v8035
    %v8067 = vmul.f32 %v7799, %v8035
    %v8068 = vmul.f32 %v7800, %v8035
    %v8069 = vmul.f32 %v7801, %v8035
    %v8070 = vmul.f32 %v7802, %v8035
    %v8071 = vmul.f32 %v7803, %v8035
    %v8072 = vmul.f32 %v7804, %v8036
    %v8073 = vmul.f32 %v7805, %v8036
    %v8074 = vmul.f32 %v7806, %v8036
    %v8075 = vmul.f32 %v7807, %v8036
    %v8076 = vmul.f32 %v7808, %v8036
    %v8077 = vmul.f32 %v7809, %v8036
    %v8078 = vmul.f32 %v7810, %v8036
    %v8079 = vmul.f32 %v7811, %v8036
    %v8080 = vmul.f32 %v7812, %v8037
    %v8081 = vmul.f32 %v7813, %v8037
    %v8082 = vmul.f32 %v7814, %v8037
    %v8083 = vmul.f32 %v7815, %v8037
    %v8084 = vmul.f32 %v7816, %v8037
    %v8085 = vmul.f32 %v7817, %v8037
    %v8086 = vmul.f32 %v7818, %v8037
    %v8087 = vmul.f32 %v7819, %v8037
    %v8088 = vmul.f32 %v7820, %v8038
    %v8089 = vmul.f32 %v7821, %v8038
    %v8090 = vmul.f32 %v7822, %v8038
    %v8091 = vmul.f32 %v7823, %v8038
    %v8092 = vmul.f32 %v7824, %v8038
    %v8093 = vmul.f32 %v7825, %v8038
    %v8094 = vmul.f32 %v7826, %v8038
    %v8095 = vmul.f32 %v7827, %v8038
    %v8096 = vmul.f32 %v7828, %v8039
    %v8097 = vmul.f32 %v7829, %v8039
    %v8098 = vmul.f32 %v7830, %v8039
    %v8099 = vmul.f32 %v7831, %v8039
    %v8100 = vmul.f32 %v7832, %v8039
    %v8101 = vmul.f32 %v7833, %v8039
    %v8102 = vmul.f32 %v7834, %v8039
    %v8103 = vmul.f32 %v7835, %v8039
    %8105 = vrot.lane.b32.xlu0 %v7917, 64
    %v8106 = vpop.permute.xlu0 %8105
    %v8108 = vsel %vm317, %v8106, %v8007
    %v8109 = vmul.f32 %v7085, 0.0
    %v8110 = vmul.f32 %v7087, 0.0
    %v8111 = vmul.f32 %v7089, 0.0
    %v8112 = vmul.f32 %v7091, 0.0
    %v8113 = vmul.f32 %v7093, 0.0
    %v8114 = vmul.f32 %v7095, 0.0
    %v8115 = vmul.f32 %v7097, 0.0
    %v8116 = vmul.f32 %v7099, 0.0
    %v8117 = vadd.f32 %v8109, %v8040
    %v8118 = vadd.f32 %v8110, %v8041
    %v8119 = vadd.f32 %v8111, %v8042
    %v8120 = vadd.f32 %v8112, %v8043
    %v8121 = vadd.f32 %v8113, %v8044
    %v8122 = vadd.f32 %v8114, %v8045
    %v8123 = vadd.f32 %v8115, %v8046
    %v8124 = vadd.f32 %v8116, %v8047
    %v8125 = vmul.f32 %v7101, %v8117
    %v8126 = vmul.f32 %v7103, %v8118
    %v8127 = vmul.f32 %v7105, %v8119
    %v8128 = vmul.f32 %v7107, %v8120
    %v8129 = vmul.f32 %v7109, %v8121
    %v8130 = vmul.f32 %v7111, %v8122
    %v8131 = vmul.f32 %v7113, %v8123
    %v8132 = vmul.f32 %v7115, %v8124
    %v8133 = vadd.f32 %v8125, %v8048
    %v8134 = vadd.f32 %v8126, %v8049
    %v8135 = vadd.f32 %v8127, %v8050
    %v8136 = vadd.f32 %v8128, %v8051
    %v8137 = vadd.f32 %v8129, %v8052
    %v8138 = vadd.f32 %v8130, %v8053
    %v8139 = vadd.f32 %v8131, %v8054
    %v8140 = vadd.f32 %v8132, %v8055
    %v8141 = vmul.f32 %v7117, %v8133
    %v8142 = vmul.f32 %v7119, %v8134
    %v8143 = vmul.f32 %v7121, %v8135
    %v8144 = vmul.f32 %v7123, %v8136
    %v8145 = vmul.f32 %v7125, %v8137
    %v8146 = vmul.f32 %v7127, %v8138
    %v8147 = vmul.f32 %v7129, %v8139
    %v8148 = vmul.f32 %v7131, %v8140
    %v8149 = vadd.f32 %v8141, %v8056
    %v8150 = vadd.f32 %v8142, %v8057
    %v8151 = vadd.f32 %v8143, %v8058
    %v8152 = vadd.f32 %v8144, %v8059
    %v8153 = vadd.f32 %v8145, %v8060
    %v8154 = vadd.f32 %v8146, %v8061
    %v8155 = vadd.f32 %v8147, %v8062
    %v8156 = vadd.f32 %v8148, %v8063
    %v8157 = vmul.f32 %v7133, %v8149
    %v8158 = vmul.f32 %v7135, %v8150
    %v8159 = vmul.f32 %v7137, %v8151
    %v8160 = vmul.f32 %v7139, %v8152
    %v8161 = vmul.f32 %v7141, %v8153
    %v8162 = vmul.f32 %v7143, %v8154
    %v8163 = vmul.f32 %v7145, %v8155
    %v8164 = vmul.f32 %v7147, %v8156
    %v8165 = vadd.f32 %v8157, %v8064
    %v8166 = vadd.f32 %v8158, %v8065
    %v8167 = vadd.f32 %v8159, %v8066
    %v8168 = vadd.f32 %v8160, %v8067
    %v8169 = vadd.f32 %v8161, %v8068
    %v8170 = vadd.f32 %v8162, %v8069
    %v8171 = vadd.f32 %v8163, %v8070
    %v8172 = vadd.f32 %v8164, %v8071
    %v8173 = vmul.f32 %v7149, %v8165
    %v8174 = vmul.f32 %v7151, %v8166
    %v8175 = vmul.f32 %v7153, %v8167
    %v8176 = vmul.f32 %v7155, %v8168
    %v8177 = vmul.f32 %v7157, %v8169
    %v8178 = vmul.f32 %v7159, %v8170
    %v8179 = vmul.f32 %v7161, %v8171
    %v8180 = vmul.f32 %v7163, %v8172
    %v8181 = vadd.f32 %v8173, %v8072
    %v8182 = vadd.f32 %v8174, %v8073
    %v8183 = vadd.f32 %v8175, %v8074
    %v8184 = vadd.f32 %v8176, %v8075
    %v8185 = vadd.f32 %v8177, %v8076
    %v8186 = vadd.f32 %v8178, %v8077
    %v8187 = vadd.f32 %v8179, %v8078
    %v8188 = vadd.f32 %v8180, %v8079
    %v8189 = vmul.f32 %v7165, %v8181
    %v8190 = vmul.f32 %v7167, %v8182
    %v8191 = vmul.f32 %v7169, %v8183
    %v8192 = vmul.f32 %v7171, %v8184
    %v8193 = vmul.f32 %v7173, %v8185
    %v8194 = vmul.f32 %v7175, %v8186
    %v8195 = vmul.f32 %v7177, %v8187
    %v8196 = vmul.f32 %v7179, %v8188
    %v8197 = vadd.f32 %v8189, %v8080
    %v8198 = vadd.f32 %v8190, %v8081
    %v8199 = vadd.f32 %v8191, %v8082
    %v8200 = vadd.f32 %v8192, %v8083
    %v8201 = vadd.f32 %v8193, %v8084
    %v8202 = vadd.f32 %v8194, %v8085
    %v8203 = vadd.f32 %v8195, %v8086
    %v8204 = vadd.f32 %v8196, %v8087
    %v8205 = vmul.f32 %v7181, %v8197
    %v8206 = vmul.f32 %v7183, %v8198
    %v8207 = vmul.f32 %v7185, %v8199
    %v8208 = vmul.f32 %v7187, %v8200
    %v8209 = vmul.f32 %v7189, %v8201
    %v8210 = vmul.f32 %v7191, %v8202
    %v8211 = vmul.f32 %v7193, %v8203
    %v8212 = vmul.f32 %v7195, %v8204
    %v8213 = vadd.f32 %v8205, %v8088
    %v8214 = vadd.f32 %v8206, %v8089
    %v8215 = vadd.f32 %v8207, %v8090
    %v8216 = vadd.f32 %v8208, %v8091
    %v8217 = vadd.f32 %v8209, %v8092
    %v8218 = vadd.f32 %v8210, %v8093
    %v8219 = vadd.f32 %v8211, %v8094
    %v8220 = vadd.f32 %v8212, %v8095
    %v8221 = vmul.f32 %v7197, %v8213
    %v8222 = vmul.f32 %v7199, %v8214
    %v8223 = vmul.f32 %v7201, %v8215
    %v8224 = vmul.f32 %v7203, %v8216
    %v8225 = vmul.f32 %v7205, %v8217
    %v8226 = vmul.f32 %v7207, %v8218
    %v8227 = vmul.f32 %v7209, %v8219
    %v8228 = vmul.f32 %v7211, %v8220
    %v8229 = vadd.f32 %v8221, %v8096
    %v8230 = vadd.f32 %v8222, %v8097
    %v8231 = vadd.f32 %v8223, %v8098
    %v8232 = vadd.f32 %v8224, %v8099
    %v8233 = vadd.f32 %v8225, %v8100
    %v8234 = vadd.f32 %v8226, %v8101
    %v8235 = vadd.f32 %v8227, %v8102
    %v8236 = vadd.f32 %v8228, %v8103
    %v8237 = vmul.f32 %v8229, %v8108
    %v8238 = vmul.f32 %v8230, %v8108
    %v8239 = vmul.f32 %v8231, %v8108
    %v8240 = vmul.f32 %v8232, %v8108
    %v8241 = vmul.f32 %v8233, %v8108
    %v8242 = vmul.f32 %v8234, %v8108
    %v8243 = vmul.f32 %v8235, %v8108
    %v8244 = vmul.f32 %v8236, %v8108
    %v8245 = vsel %vm317, %v8237, 0.0
    %8246 = vadd.xlane.f32.xlu0 %v8245
    %v8247 = vpop.xlane.xlu0 %8246
    %v8248 = vsel %vm317, %v8238, 0.0
    %8249 = vadd.xlane.f32.xlu0 %v8248
    %v8250 = vpop.xlane.xlu0 %8249
    %v8251 = vsel %vm317, %v8239, 0.0
    %8252 = vadd.xlane.f32.xlu0 %v8251
    %v8253 = vpop.xlane.xlu0 %8252
    %v8254 = vsel %vm317, %v8240, 0.0
    %8255 = vadd.xlane.f32.xlu0 %v8254
    %v8256 = vpop.xlane.xlu0 %8255
    %v8257 = vsel %vm317, %v8241, 0.0
    %8258 = vadd.xlane.f32.xlu0 %v8257
    %v8259 = vpop.xlane.xlu0 %8258
    %v8260 = vsel %vm317, %v8242, 0.0
    %8261 = vadd.xlane.f32.xlu0 %v8260
    %v8262 = vpop.xlane.xlu0 %8261
    %v8263 = vsel %vm317, %v8243, 0.0
    %8264 = vadd.xlane.f32.xlu0 %v8263
    %v8265 = vpop.xlane.xlu0 %8264
    %v8266 = vsel %vm317, %v8244, 0.0
    %8267 = vadd.xlane.f32.xlu0 %v8266
    %v8268 = vpop.xlane.xlu0 %8267
    %8277 = vrot.lane.b32.xlu0 %v8237, 64
    %v8278 = vpop.permute.xlu0 %8277
    %8279 = vrot.lane.b32.xlu0 %v8238, 64
    %v8280 = vpop.permute.xlu0 %8279
    %8281 = vrot.lane.b32.xlu0 %v8239, 64
    %v8282 = vpop.permute.xlu0 %8281
    %8283 = vrot.lane.b32.xlu0 %v8240, 64
    %v8284 = vpop.permute.xlu0 %8283
    %8285 = vrot.lane.b32.xlu0 %v8241, 64
    %v8286 = vpop.permute.xlu0 %8285
    %8287 = vrot.lane.b32.xlu0 %v8242, 64
    %v8288 = vpop.permute.xlu0 %8287
    %8289 = vrot.lane.b32.xlu0 %v8243, 64
    %v8290 = vpop.permute.xlu0 %8289
    %8291 = vrot.lane.b32.xlu0 %v8244, 64
    %v8292 = vpop.permute.xlu0 %8291
    %v8301 = vsel %vm317, %v8278, 0.0
    %8302 = vadd.xlane.f32.xlu0 %v8301
    %v8303 = vpop.xlane.xlu0 %8302
    %v8304 = vsel %vm317, %v8280, 0.0
    %8305 = vadd.xlane.f32.xlu0 %v8304
    %v8306 = vpop.xlane.xlu0 %8305
    %v8307 = vsel %vm317, %v8282, 0.0
    %8308 = vadd.xlane.f32.xlu0 %v8307
    %v8309 = vpop.xlane.xlu0 %8308
    %v8310 = vsel %vm317, %v8284, 0.0
    %8311 = vadd.xlane.f32.xlu0 %v8310
    %v8312 = vpop.xlane.xlu0 %8311
    %v8313 = vsel %vm317, %v8286, 0.0
    %8314 = vadd.xlane.f32.xlu0 %v8313
    %v8315 = vpop.xlane.xlu0 %8314
    %v8316 = vsel %vm317, %v8288, 0.0
    %8317 = vadd.xlane.f32.xlu0 %v8316
    %v8318 = vpop.xlane.xlu0 %8317
    %v8319 = vsel %vm317, %v8290, 0.0
    %8320 = vadd.xlane.f32.xlu0 %v8319
    %v8321 = vpop.xlane.xlu0 %8320
    %v8322 = vsel %vm317, %v8292, 0.0
    %8323 = vadd.xlane.f32.xlu0 %v8322
    %v8324 = vpop.xlane.xlu0 %8323
    %v8333 = vlaneseq
    %v8334 = vshrl.u32 %v8333, 7
    %v8335 = vsub.s32 %v5301, %v8334
    %v8336 = vrot.slane %v8247, %v8335
    %v8337 = vlaneseq
    %v8338 = vshrl.u32 %v8337, 7
    %v8339 = vsub.s32 %v5306, %v8338
    %v8340 = vrot.slane %v8250, %v8339
    %v8341 = vsel %vm5311, %v8340, %v8336
    %v8342 = vlaneseq
    %v8343 = vshrl.u32 %v8342, 7
    %v8344 = vsub.s32 %v5313, %v8343
    %v8345 = vrot.slane %v8253, %v8344
    %v8346 = vsel %vm5318, %v8345, %v8341
    %v8347 = vlaneseq
    %v8348 = vshrl.u32 %v8347, 7
    %v8349 = vsub.s32 %v5320, %v8348
    %v8350 = vrot.slane %v8256, %v8349
    %v8351 = vsel %vm5325, %v8350, %v8346
    %v8352 = vlaneseq
    %v8353 = vshrl.u32 %v8352, 7
    %v8354 = vsub.s32 %v5327, %v8353
    %v8355 = vrot.slane %v8259, %v8354
    %v8356 = vsel %vm5332, %v8355, %v8351
    %v8357 = vlaneseq
    %v8358 = vshrl.u32 %v8357, 7
    %v8359 = vsub.s32 %v5334, %v8358
    %v8360 = vrot.slane %v8262, %v8359
    %v8361 = vsel %vm5339, %v8360, %v8356
    %v8362 = vlaneseq
    %v8363 = vshrl.u32 %v8362, 7
    %v8364 = vsub.s32 %v5341, %v8363
    %v8365 = vrot.slane %v8265, %v8364
    %v8366 = vsel %vm5346, %v8365, %v8361
    %v8367 = vlaneseq
    %v8368 = vshrl.u32 %v8367, 7
    %v8369 = vsub.s32 %v5348, %v8368
    %v8370 = vrot.slane %v8268, %v8369
    %v8371 = vsel %vm5353, %v8370, %v8366
    %v8381 = vlaneseq
    %v8382 = vshrl.u32 %v8381, 7
    %v8383 = vsub.s32 %v5301, %v8382
    %v8384 = vrot.slane %v8303, %v8383
    %v8385 = vlaneseq
    %v8386 = vshrl.u32 %v8385, 7
    %v8387 = vsub.s32 %v5306, %v8386
    %v8388 = vrot.slane %v8306, %v8387
    %v8389 = vsel %vm5311, %v8388, %v8384
    %v8390 = vlaneseq
    %v8391 = vshrl.u32 %v8390, 7
    %v8392 = vsub.s32 %v5313, %v8391
    %v8393 = vrot.slane %v8309, %v8392
    %v8394 = vsel %vm5318, %v8393, %v8389
    %v8395 = vlaneseq
    %v8396 = vshrl.u32 %v8395, 7
    %v8397 = vsub.s32 %v5320, %v8396
    %v8398 = vrot.slane %v8312, %v8397
    %v8399 = vsel %vm5325, %v8398, %v8394
    %v8400 = vlaneseq
    %v8401 = vshrl.u32 %v8400, 7
    %v8402 = vsub.s32 %v5327, %v8401
    %v8403 = vrot.slane %v8315, %v8402
    %v8404 = vsel %vm5332, %v8403, %v8399
    %v8405 = vlaneseq
    %v8406 = vshrl.u32 %v8405, 7
    %v8407 = vsub.s32 %v5334, %v8406
    %v8408 = vrot.slane %v8318, %v8407
    %v8409 = vsel %vm5339, %v8408, %v8404
    %v8410 = vlaneseq
    %v8411 = vshrl.u32 %v8410, 7
    %v8412 = vsub.s32 %v5341, %v8411
    %v8413 = vrot.slane %v8321, %v8412
    %v8414 = vsel %vm5346, %v8413, %v8409
    %v8415 = vlaneseq
    %v8416 = vshrl.u32 %v8415, 7
    %v8417 = vsub.s32 %v5348, %v8416
    %v8418 = vrot.slane %v8324, %v8417
    %v8419 = vsel %vm5353, %v8418, %v8414
    %v8421 = vsel %vm271, %v8371, %v8419
    %s8422 = scalar_lea.vmem %s10, 1
    %v8423 = vld [vmem:[%s8422] sm:$0x1]
    %v8425 = vlaneseq
    %v8426 = vshrl.u32 %v8425, 7
    %v8427 = vsub.s32 0, %v8426
    %v8428 = vrot.slane %v8423, %v8427
    %v8430 = vmul.f32 %v6173, %v8428
    %v8431 = vmul.f32 %v6174, %v8428
    %v8434 = vrot.slane %v8430, 7
    %v8435 = vrot.slane %v8431, 6
    %v8436 = vsel %vm5940, %v8435, %v8434
    %v8438 = vadd.f32 %v8421, %v8436
    %v8439 = vsub.f32 0.0, %v6118
    %v8440 = vsub.f32 0.0, %v6123
    %v8441 = vmul.f32 %v8439, 1.442695
    %v8442 = vpow.pop %v8441
    %v8443 = vmul.f32 %v8440, 1.442695
    %v8444 = vpow.pop %v8443
    %v8445 = vadd.f32 %v8442, 1.0
    %v8446 = vadd.f32 %v8444, 1.0
    %v8447 = vrcp.pop %v8445
    %v8448 = vrcp.pop %v8446
    %v8449 = vmul.f32 %v6118, %v8447
    %v8450 = vmul.f32 %v6123, %v8448
    %v8453 = vrot.slane %v8449, 7
    %v8454 = vrot.slane %v8450, 6
    %v8455 = vsel %vm5940, %v8454, %v8453
    %8456 = vrot.lane.b32.xlu0 %v8455, 64
    %v8457 = vpop.permute.xlu0 %8456
    %v8459 = vmul.f32 %v8438, %v8457
    %v8460 = vld [vmem:[%s12] sm:$0xff]
    %v8461 = vld [vmem:[%s12 + $0x8] sm:$0xff]
    %v8462 = vld [vmem:[%s12 + $0x10] sm:$0xff]
    %v8463 = vld [vmem:[%s12 + $0x18] sm:$0xff]
    %v8464 = vld [vmem:[%s12 + $0x20] sm:$0xff]
    %v8465 = vld [vmem:[%s12 + $0x28] sm:$0xff]
    %v8466 = vld [vmem:[%s12 + $0x30] sm:$0xff]
    %v8467 = vld [vmem:[%s12 + $0x38] sm:$0xff]
    %v8468 = vld [vmem:[%s13] sm:$0x1]
    %v8470 = vlaneseq
    %v8471 = vshrl.u32 %v8470, 7
    %v8472 = vsub.s32 0, %v8471
    %v8473 = vrot.slane %v8468, %v8472
    %v8476 = vsel %vm317, %v8459, 0
    %8478 = vmatprep.subr.mxu0 0.0
    %8479 = vmatpush1.msra.mxu0 %v8460
    %8480 = vmatprep.subr.mxu0 0.0
    %8481 = vmatpush1.msra.mxu0 %v8461
    %8482 = vmatprep.subr.mxu0 0.0
    %8483 = vmatpush1.msra.mxu0 %v8462
    %8484 = vmatprep.subr.mxu0 0.0
    %8485 = vmatpush1.msra.mxu0 %v8463
    %8486 = vmatprep.subr.mxu0 0.0
    %8487 = vmatpush1.msra.mxu0 %v8464
    %8488 = vmatprep.subr.mxu0 0.0
    %8489 = vmatpush1.msra.mxu0 %v8465
    %8490 = vmatprep.subr.mxu0 0.0
    %8491 = vmatpush1.msra.mxu0 %v8466
    %8492 = vmatprep.subr.mxu0 0.0
    %8493 = vmatpush1.msra.mxu0 %v8467
    %8494 = vmatprep.subr.mxu0 0.0
    %8495 = vmatpush1.msra.mxu0 0.0
    %8496 = vmatprep.subr.mxu0 0.0
    %8497 = vmatpush1.msra.mxu0 0.0
    %8498 = vmatprep.subr.mxu0 0.0
    %8499 = vmatpush1.msra.mxu0 0.0
    %8500 = vmatprep.subr.mxu0 0.0
    %8501 = vmatpush1.msra.mxu0 0.0
    %8502 = vmatprep.subr.mxu0 0.0
    %8503 = vmatpush1.msra.mxu0 0.0
    %8504 = vmatprep.subr.mxu0 0.0
    %8505 = vmatpush1.msra.mxu0 0.0
    %8506 = vmatprep.subr.mxu0 0.0
    %8507 = vmatpush1.msra.mxu0 0.0
    %8508 = vmatprep.subr.mxu0 0.0
    %8509 = vmatpush1.msra.mxu0 0.0
    %8510 = vmatprep.subr.mxu0 0.0
    %8511 = vmatpush1.msra.mxu0 0.0
    %8512 = vmatprep.subr.mxu0 0.0
    %8513 = vmatpush1.msra.mxu0 0.0
    %8514 = vmatprep.subr.mxu0 0.0
    %8515 = vmatpush1.msra.mxu0 0.0
    %8516 = vmatprep.subr.mxu0 0.0
    %8517 = vmatpush1.msra.mxu0 0.0
    %8518 = vmatprep.subr.mxu0 0.0
    %8519 = vmatpush1.msra.mxu0 0.0
    %8520 = vmatprep.subr.mxu0 0.0
    %8521 = vmatpush1.msra.mxu0 0.0
    %8522 = vmatprep.subr.mxu0 0.0
    %8523 = vmatpush1.msra.mxu0 0.0
    %8524 = vmatprep.subr.mxu0 0.0
    %8525 = vmatpush1.msra.mxu0 0.0
    %8526 = vmatprep.subr.mxu0 0.0
    %8527 = vmatpush1.msra.mxu0 0.0
    %8528 = vmatprep.subr.mxu0 0.0
    %8529 = vmatpush1.msra.mxu0 0.0
    %8530 = vmatprep.subr.mxu0 0.0
    %8531 = vmatpush1.msra.mxu0 0.0
    %8532 = vmatprep.subr.mxu0 0.0
    %8533 = vmatpush1.msra.mxu0 0.0
    %8534 = vmatprep.subr.mxu0 0.0
    %8535 = vmatpush1.msra.mxu0 0.0
    %8536 = vmatprep.subr.mxu0 0.0
    %8537 = vmatpush1.msra.mxu0 0.0
    %8538 = vmatprep.subr.mxu0 0.0
    %8539 = vmatpush1.msra.mxu0 0.0
    %8540 = vmatprep.subr.mxu0 0.0
    %8541 = vmatpush1.msra.mxu0 0.0
    %8542 = vmatprep.mubr.f32.mxu0 0.0
    %8543 = vmatmul.mubr.f32.gmra.mrb[0].mxu0 %v8476
    %v8544 = vpop.f32.mrb[0].mxu0
    %v8545 = vadd.f32 %v8473, %v8544
    %v8546 = vpop.f32.mrb[0].mxu0
    %8547 = vdwg.mxu0
    %vm8548 = vcmask 17408
    %8549 = vst.msk [vmem:[#allocation7] sm:$0x3] %vm8548, %v8545
    // Predicated region
    $region66: #{model_forward.1} parent=1 // pred_check
      _
    $region67: #{model_forward.1} parent=1 // pred_check_branch
      %8551 = sbr.rel (0) target = $region69
    $region68: #{model_forward.1} parent=1 // pred_region
      %s8553 = ssub.s32 32, 32
      %8554 = vsyncadd [#allocation4], %s8553
      %s8556 = sshll.u32 [#allocation7], 4
      %s8557 = int_to_ptr.vmem [resolvable:$true] %s8556
      %8559 = dma.vmem_to_hbm [thread:$0]  %s8557, 32, %s14, [#allocation4]
    $region69: #{model_forward.1} parent=1 // pred_fallthru
      _
    // Predicated region
    $region70: #{model_forward.1} parent=1 // pred_check
      _
    $region71: #{model_forward.1} parent=1 // pred_check_branch
      %8561 = sbr.rel (0) target = $region73
    $region72: #{model_forward.1} parent=1 // pred_region
      %8562 = dma.done [#allocation4], 32
    $region73: #{model_forward.1} parent=1 // pred_fallthru
      _
    %8563 = vsyncpa [#allocation3], 1
    %8564 = vsyncpa [#allocation6], 1
    %8565 = vsyncpa [#allocation4], 1

</llo_original>
